<compile_context>
chip_gen: v5e
topology: v5e:2x2
jax: 0.10.0
libtpu: 0.0.40
codegen_flags: <defaults>
</compile_context>

<pallas_src>
import functools

import numpy as np

import jax
import jax.numpy as jnp
from jax.experimental import pallas as pl
from jax.experimental.pallas import tpu as pltpu


# ---------------------------------------------------------------------------
# Pallas kernels
# ---------------------------------------------------------------------------
def _conv_direct_kernel(x_ref, w_ref, b_ref, o_ref, *, taps, relu):
    """Direct conv for one image: out = act( sum_t shift(x, taps[t]) @ w[t] + b ).

    x_ref: (1, Hp, Wp, Cin)  padded input tile (halo resident in VMEM)
    w_ref: (T, Cin, Cout)    per-tap weight matrices (bf16)
    b_ref: (1, Cout)         bias (f32)
    o_ref: (1, Ho, Wo, Cout) output tile
    """
    ho, wo, cout = o_ref.shape[1], o_ref.shape[2], o_ref.shape[3]
    m = ho * wo
    # Load once; do layout ops (slice/reshape) in f32, feed the MXU in bf16.
    x = x_ref[0].astype(jnp.float32)                       # (Hp, Wp, Cin)
    cin = x.shape[-1]
    # Bias folded into the accumulator init (no separate epilogue add).
    acc = jnp.broadcast_to(b_ref[...], (m, cout)).astype(jnp.float32)
    for t, (di, dj) in enumerate(taps):                    # static unroll
        xs = x[di:di + ho, dj:dj + wo, :].reshape(m, cin).astype(jnp.bfloat16)
        acc = acc + jnp.dot(xs, w_ref[t], preferred_element_type=jnp.float32)
    if relu:
        acc = jnp.maximum(acc, 0.0)
    o_ref[0] = acc.reshape(ho, wo, cout).astype(o_ref.dtype)


def _res_tail_kernel(h_ref, x_ref, w2_ref, b2_ref, ws_ref, bs_ref, o_ref, *, taps):
    """Fused residual tail: relu( masked_conv3x3(h, w2)+b2 + x @ ws + bs ).

    h_ref: (1, Hp, Wp, C2)  padded mconv1 output
    x_ref: (1, Ho, Wo, C1)  residual-block input (shortcut path)
    w2_ref: (T, C2, C2), b2_ref: (1, C2)
    ws_ref: (C1, C2),    bs_ref: (1, C2)
    o_ref: (1, Ho, Wo, C2)
    """
    ho, wo, c2 = o_ref.shape[1], o_ref.shape[2], o_ref.shape[3]
    m = ho * wo
    h = h_ref[0].astype(jnp.float32)                       # (Hp, Wp, C2)
    acc = jnp.broadcast_to(b2_ref[...] + bs_ref[...], (m, c2)).astype(jnp.float32)
    for t, (di, dj) in enumerate(taps):                    # 5 active AR taps
        hs = h[di:di + ho, dj:dj + wo, :].reshape(m, c2).astype(jnp.bfloat16)
        acc = acc + jnp.dot(hs, w2_ref[t], preferred_element_type=jnp.float32)
    c1 = x_ref.shape[-1]
    xs = x_ref[0].astype(jnp.float32).reshape(m, c1).astype(jnp.bfloat16)
    acc = acc + jnp.dot(xs, ws_ref[...], preferred_element_type=jnp.float32)
    acc = jnp.maximum(acc, 0.0)
    o_ref[0] = acc.reshape(ho, wo, c2).astype(o_ref.dtype)


# ---------------------------------------------------------------------------
# Pallas wrappers
# ---------------------------------------------------------------------------
def conv_direct(x, w_taps, bias, taps, *, ksize, padding, relu,
                out_dtype=jnp.bfloat16):
    """x: (N,H,W,Cin) bf16 NHWC; w_taps: (T,Cin,Cout) bf16; bias: (Cout,) f32."""
    n = x.shape[0]
    if padding:
        x = jnp.pad(x, ((0, 0), (padding, padding), (padding, padding), (0, 0)))
    hp, wp, cin = x.shape[1], x.shape[2], x.shape[3]
    ho, wo = hp - (ksize - 1), wp - (ksize - 1)
    t, _, cout = w_taps.shape
    bias2 = bias.reshape(1, cout).astype(jnp.float32)

    kernel = functools.partial(_conv_direct_kernel, taps=tuple(taps), relu=relu)
    return pl.pallas_call(
        kernel,
        out_shape=jax.ShapeDtypeStruct((n, ho, wo, cout), out_dtype),
        grid_spec=pltpu.PrefetchScalarGridSpec(
            num_scalar_prefetch=0,
            grid=(n,),
            in_specs=[
                pl.BlockSpec((1, hp, wp, cin), lambda b: (b, 0, 0, 0)),
                pl.BlockSpec((t, cin, cout), lambda b: (0, 0, 0)),
                pl.BlockSpec((1, cout), lambda b: (0, 0)),
            ],
            out_specs=pl.BlockSpec((1, ho, wo, cout), lambda b: (b, 0, 0, 0)),
        ),
        compiler_params=pltpu.CompilerParams(dimension_semantics=("parallel",)),
    )(x, w_taps, bias2)


def res_block_tail(h, x_in, w2_taps, b2, ws, bs, taps):
    """Fused: relu( masked_conv3x3(h, w2)+b2 + conv1x1(x_in, ws)+bs )."""
    n = h.shape[0]
    h_pad = jnp.pad(h, ((0, 0), (1, 1), (1, 1), (0, 0)))
    hp, wp, c2 = h_pad.shape[1], h_pad.shape[2], h_pad.shape[3]
    ho, wo = hp - 2, wp - 2
    c1 = x_in.shape[3]
    t = w2_taps.shape[0]
    b2r = b2.reshape(1, c2).astype(jnp.float32)
    bsr = bs.reshape(1, c2).astype(jnp.float32)

    kernel = functools.partial(_res_tail_kernel, taps=tuple(taps))
    return pl.pallas_call(
        kernel,
        out_shape=jax.ShapeDtypeStruct((n, ho, wo, c2), jnp.bfloat16),
        grid_spec=pltpu.PrefetchScalarGridSpec(
            num_scalar_prefetch=0,
            grid=(n,),
            in_specs=[
                pl.BlockSpec((1, hp, wp, c2), lambda b: (b, 0, 0, 0)),
                pl.BlockSpec((1, ho, wo, c1), lambda b: (b, 0, 0, 0)),
                pl.BlockSpec((t, c2, c2), lambda b: (0, 0, 0)),
                pl.BlockSpec((1, c2), lambda b: (0, 0)),
                pl.BlockSpec((c1, c2), lambda b: (0, 0)),
                pl.BlockSpec((1, c2), lambda b: (0, 0)),
            ],
            out_specs=pl.BlockSpec((1, ho, wo, c2), lambda b: (b, 0, 0, 0)),
        ),
        compiler_params=pltpu.CompilerParams(dimension_semantics=("parallel",)),
    )(h_pad, x_in, w2_taps, b2r, ws, bsr)


# ---------------------------------------------------------------------------
# Weight / mask helpers
# ---------------------------------------------------------------------------
ALL_TAPS = tuple((i, j) for i in range(3) for j in range(3))


def ar_taps(ordering):
    """Non-zero taps of the causal 3x3 AR mask; ordering selects rotation/flip.
    Only the 5 active taps are evaluated (the 4 zeroed taps are skipped)."""
    base = np.array([[1, 1, 1], [1, 1, 0], [0, 0, 0]], dtype=np.int32)
    m = np.rot90(base, k=int(ordering) % 4)
    if int(ordering) >= 4:
        m = np.fliplr(m)
    return tuple((int(i), int(j)) for i in range(3) for j in range(3) if m[i, j])


def _stack_taps(w, taps):
    """Torch-layout weight (Cout,Cin,kh,kw) -> per-tap (T,Cin,Cout) bf16."""
    return jnp.stack([w[:, :, di, dj].T for di, dj in taps], axis=0).astype(jnp.bfloat16)


def _w1x1(w):
    """(Cout,Cin,1,1) -> (Cin,Cout) bf16."""
    return w[:, :, 0, 0].T.astype(jnp.bfloat16)


def conv3x3(x, wb, taps, *, stride=1, relu=False):
    w, b = wb
    y = conv_direct(x, _stack_taps(w, taps), b, taps, ksize=3, padding=1, relu=relu)
    if stride > 1:
        # Strided conv == stride-1 conv subsampled at the same window starts.
        # Only used by the tiny stem layers; avoids strided in-kernel slices.
        y = y[:, ::stride, ::stride, :]
    return y


# ---------------------------------------------------------------------------
# Parameters (deterministic synthetic init — no checkpoint loading)
# ---------------------------------------------------------------------------
def init_params(key, in_channels=3, num_classes=3):
    keys = iter(jax.random.split(key, 32))

    def conv_p(cout, cin, kh, kw):
        k1, k2 = next(keys), next(keys)
        fan_in = cin * kh * kw
        w = jax.random.normal(k1, (cout, cin, kh, kw), jnp.float32) * jnp.sqrt(2.0 / fan_in)
        b = 0.01 * jax.random.normal(k2, (cout,), jnp.float32)
        return (w, b)

    params = {
        "stem1": conv_p(32, in_channels, 3, 3),
        "stem2": conv_p(64, 32, 3, 3),
    }
    for i, c in enumerate([64, 128], start=1):   # ARSegmentationNet2: 2 res blocks
        params[f"res{i}"] = {
            "mconv1": conv_p(2 * c, c, 3, 3),
            "mconv2": conv_p(2 * c, 2 * c, 3, 3),
            "short": conv_p(2 * c, c, 1, 1),
        }
    params["dec"] = conv_p(num_classes, 256, 1, 1)
    return params


# ---------------------------------------------------------------------------
# Forward pass
# ---------------------------------------------------------------------------
def forward(params, x_nchw, ordering, stride=1):
    x = jnp.transpose(x_nchw, (0, 2, 3, 1)).astype(jnp.bfloat16)  # NCHW -> NHWC

    mask_taps = ar_taps(ordering)

    # stem: downsample by 2*stride
    x = conv3x3(x, params["stem1"], ALL_TAPS, stride=2, relu=True)
    x = conv3x3(x, params["stem2"], ALL_TAPS, stride=stride, relu=True)

    # residual blocks: masked conv -> fused (masked conv + 1x1 shortcut + add + ReLU)
    for name in ("res1", "res2"):
        p = params[name]
        h = conv3x3(x, p["mconv1"], mask_taps, stride=1, relu=True)
        w2, b2 = p["mconv2"]
        ws, bs = p["short"]
        x = res_block_tail(h, x, _stack_taps(w2, mask_taps), b2, _w1x1(ws), bs, mask_taps)

    # decoder: 1x1 conv to num_classes, then upsample by 2*stride
    wd, bd = params["dec"]
    y = conv_direct(x, _w1x1(wd)[None], bd, ((0, 0),), ksize=1, padding=0,
                    relu=False, out_dtype=jnp.float32)
    up = 2 * stride
    # TODO(synk): reference decoder may use bilinear upsampling; nearest-neighbor used here (glue).
    y = jnp.repeat(jnp.repeat(y, up, axis=1), up, axis=2)
    return jnp.transpose(y, (0, 3, 1, 2))  # NHWC -> NCHW


if __name__ == "__main__":
    key = jax.random.PRNGKey(0)
    params = init_params(key, in_channels=3, num_classes=3)

    x = jax.random.normal(jax.random.fold_in(key, 123), (2, 3, 16, 16), jnp.float32)
    ordering = 0  # raster-scan ordering

    fwd = jax.jit(forward, static_argnums=(2, 3))
    out = fwd(params, x, ordering, 1)
    out = jax.block_until_ready(out)

    assert out.shape == (2, 3, 16, 16), out.shape
    assert jnp.all(jnp.isfinite(out))
    print("KERNEL_OK")
</pallas_src>

<mosaic_0001>
module attributes {stable_mosaic.version = 11 : i64} {
  func.func @_conv_direct_kernel(%arg0: i32, %arg1: memref<1x18x18x3xbf16, #tpu.memory_space<vmem>>, %arg2: memref<9x3x32xbf16, #tpu.memory_space<vmem>>, %arg3: memref<1x32xf32, #tpu.memory_space<vmem>>, %arg4: memref<1x16x16x32xbf16, #tpu.memory_space<vmem>>) attributes {dimension_semantics = [#tpu.dimension_semantics<parallel>], iteration_bounds = array<i64: 2>, scalar_prefetch = 0 : i64, scratch_operands = 0 : i64, tpu.core_type = #tpu.core_type<tc>, window_params = [{transform_indices = @transform_0, window_bounds = array<i64: 1, 18, 18, 3>}, {pipeline_mode = #tpu.pipeline_mode<synchronous>, transform_indices = @transform_1, window_bounds = array<i64: 9, 3, 32>}, {pipeline_mode = #tpu.pipeline_mode<synchronous>, transform_indices = @transform_2, window_bounds = array<i64: 1, 32>}, {transform_indices = @transform_3, window_bounds = array<i64: 1, 16, 16, 32>}]} {
    %c0 = arith.constant 0 : index
    %c0_0 = arith.constant 0 : index
    %c0_1 = arith.constant 0 : index
    %c0_2 = arith.constant 0 : index
    %0 = vector.load %arg1[%c0, %c0_0, %c0_1, %c0_2] : memref<1x18x18x3xbf16, #tpu.memory_space<vmem>>, vector<1x18x18x3xbf16>
    %1 = vector.shape_cast %0 : vector<1x18x18x3xbf16> to vector<18x18x3xbf16>
    %2 = arith.extf %1 : vector<18x18x3xbf16> to vector<18x18x3xf32>
    %c0_3 = arith.constant 0 : index
    %c0_4 = arith.constant 0 : index
    %3 = vector.load %arg3[%c0_3, %c0_4] : memref<1x32xf32, #tpu.memory_space<vmem>>, vector<1x32xf32>
    %4 = vector.shape_cast %3 : vector<1x32xf32> to vector<1x32xf32>
    %5 = vector.broadcast %4 : vector<1x32xf32> to vector<256x32xf32>
    %6 = vector.extract_strided_slice %2 {offsets = [0, 0, 0], sizes = [16, 16, 3], strides = [1, 1, 1]} : vector<18x18x3xf32> to vector<16x16x3xf32>
    %7 = vector.shape_cast %6 : vector<16x16x3xf32> to vector<256x3xf32>
    %8 = arith.truncf %7 : vector<256x3xf32> to vector<256x3xbf16>
    %c0_5 = arith.constant 0 : index
    %c0_6 = arith.constant 0 : index
    %c0_7 = arith.constant 0 : index
    %9 = vector.load %arg2[%c0_5, %c0_6, %c0_7] : memref<9x3x32xbf16, #tpu.memory_space<vmem>>, vector<1x3x32xbf16>
    %10 = vector.shape_cast %9 : vector<1x3x32xbf16> to vector<3x32xbf16>
    %cst = arith.constant dense<0.000000e+00> : vector<256x32xf32>
    %11 = tpu.matmul %8, %10, %cst {dimension_numbers = #tpu.dot_dimension_numbers<[1], [0], [0], [1], [0, 0, 1, 1], [], []>} : vector<256x3xbf16>, vector<3x32xbf16>, vector<256x32xf32> -> vector<256x32xf32>
    %12 = arith.addf %5, %11 : vector<256x32xf32>
    %13 = vector.extract_strided_slice %2 {offsets = [0, 1, 0], sizes = [16, 16, 3], strides = [1, 1, 1]} : vector<18x18x3xf32> to vector<16x16x3xf32>
    %14 = vector.shape_cast %13 : vector<16x16x3xf32> to vector<256x3xf32>
    %15 = arith.truncf %14 : vector<256x3xf32> to vector<256x3xbf16>
    %c1 = arith.constant 1 : index
    %c0_8 = arith.constant 0 : index
    %c0_9 = arith.constant 0 : index
    %16 = vector.load %arg2[%c1, %c0_8, %c0_9] : memref<9x3x32xbf16, #tpu.memory_space<vmem>>, vector<1x3x32xbf16>
    %17 = vector.shape_cast %16 : vector<1x3x32xbf16> to vector<3x32xbf16>
    %cst_10 = arith.constant dense<0.000000e+00> : vector<256x32xf32>
    %18 = tpu.matmul %15, %17, %cst_10 {dimension_numbers = #tpu.dot_dimension_numbers<[1], [0], [0], [1], [0, 0, 1, 1], [], []>} : vector<256x3xbf16>, vector<3x32xbf16>, vector<256x32xf32> -> vector<256x32xf32>
    %19 = arith.addf %12, %18 : vector<256x32xf32>
    %20 = vector.extract_strided_slice %2 {offsets = [0, 2, 0], sizes = [16, 16, 3], strides = [1, 1, 1]} : vector<18x18x3xf32> to vector<16x16x3xf32>
    %21 = vector.shape_cast %20 : vector<16x16x3xf32> to vector<256x3xf32>
    %22 = arith.truncf %21 : vector<256x3xf32> to vector<256x3xbf16>
    %c2 = arith.constant 2 : index
    %c0_11 = arith.constant 0 : index
    %c0_12 = arith.constant 0 : index
    %23 = vector.load %arg2[%c2, %c0_11, %c0_12] : memref<9x3x32xbf16, #tpu.memory_space<vmem>>, vector<1x3x32xbf16>
    %24 = vector.shape_cast %23 : vector<1x3x32xbf16> to vector<3x32xbf16>
    %cst_13 = arith.constant dense<0.000000e+00> : vector<256x32xf32>
    %25 = tpu.matmul %22, %24, %cst_13 {dimension_numbers = #tpu.dot_dimension_numbers<[1], [0], [0], [1], [0, 0, 1, 1], [], []>} : vector<256x3xbf16>, vector<3x32xbf16>, vector<256x32xf32> -> vector<256x32xf32>
    %26 = arith.addf %19, %25 : vector<256x32xf32>
    %27 = vector.extract_strided_slice %2 {offsets = [1, 0, 0], sizes = [16, 16, 3], strides = [1, 1, 1]} : vector<18x18x3xf32> to vector<16x16x3xf32>
    %28 = vector.shape_cast %27 : vector<16x16x3xf32> to vector<256x3xf32>
    %29 = arith.truncf %28 : vector<256x3xf32> to vector<256x3xbf16>
    %c3 = arith.constant 3 : index
    %c0_14 = arith.constant 0 : index
    %c0_15 = arith.constant 0 : index
    %30 = vector.load %arg2[%c3, %c0_14, %c0_15] : memref<9x3x32xbf16, #tpu.memory_space<vmem>>, vector<1x3x32xbf16>
    %31 = vector.shape_cast %30 : vector<1x3x32xbf16> to vector<3x32xbf16>
    %cst_16 = arith.constant dense<0.000000e+00> : vector<256x32xf32>
    %32 = tpu.matmul %29, %31, %cst_16 {dimension_numbers = #tpu.dot_dimension_numbers<[1], [0], [0], [1], [0, 0, 1, 1], [], []>} : vector<256x3xbf16>, vector<3x32xbf16>, vector<256x32xf32> -> vector<256x32xf32>
    %33 = arith.addf %26, %32 : vector<256x32xf32>
    %34 = vector.extract_strided_slice %2 {offsets = [1, 1, 0], sizes = [16, 16, 3], strides = [1, 1, 1]} : vector<18x18x3xf32> to vector<16x16x3xf32>
    %35 = vector.shape_cast %34 : vector<16x16x3xf32> to vector<256x3xf32>
    %36 = arith.truncf %35 : vector<256x3xf32> to vector<256x3xbf16>
    %c4 = arith.constant 4 : index
    %c0_17 = arith.constant 0 : index
    %c0_18 = arith.constant 0 : index
    %37 = vector.load %arg2[%c4, %c0_17, %c0_18] : memref<9x3x32xbf16, #tpu.memory_space<vmem>>, vector<1x3x32xbf16>
    %38 = vector.shape_cast %37 : vector<1x3x32xbf16> to vector<3x32xbf16>
    %cst_19 = arith.constant dense<0.000000e+00> : vector<256x32xf32>
    %39 = tpu.matmul %36, %38, %cst_19 {dimension_numbers = #tpu.dot_dimension_numbers<[1], [0], [0], [1], [0, 0, 1, 1], [], []>} : vector<256x3xbf16>, vector<3x32xbf16>, vector<256x32xf32> -> vector<256x32xf32>
    %40 = arith.addf %33, %39 : vector<256x32xf32>
    %41 = vector.extract_strided_slice %2 {offsets = [1, 2, 0], sizes = [16, 16, 3], strides = [1, 1, 1]} : vector<18x18x3xf32> to vector<16x16x3xf32>
    %42 = vector.shape_cast %41 : vector<16x16x3xf32> to vector<256x3xf32>
    %43 = arith.truncf %42 : vector<256x3xf32> to vector<256x3xbf16>
    %c5 = arith.constant 5 : index
    %c0_20 = arith.constant 0 : index
    %c0_21 = arith.constant 0 : index
    %44 = vector.load %arg2[%c5, %c0_20, %c0_21] : memref<9x3x32xbf16, #tpu.memory_space<vmem>>, vector<1x3x32xbf16>
    %45 = vector.shape_cast %44 : vector<1x3x32xbf16> to vector<3x32xbf16>
    %cst_22 = arith.constant dense<0.000000e+00> : vector<256x32xf32>
    %46 = tpu.matmul %43, %45, %cst_22 {dimension_numbers = #tpu.dot_dimension_numbers<[1], [0], [0], [1], [0, 0, 1, 1], [], []>} : vector<256x3xbf16>, vector<3x32xbf16>, vector<256x32xf32> -> vector<256x32xf32>
    %47 = arith.addf %40, %46 : vector<256x32xf32>
    %48 = vector.extract_strided_slice %2 {offsets = [2, 0, 0], sizes = [16, 16, 3], strides = [1, 1, 1]} : vector<18x18x3xf32> to vector<16x16x3xf32>
    %49 = vector.shape_cast %48 : vector<16x16x3xf32> to vector<256x3xf32>
    %50 = arith.truncf %49 : vector<256x3xf32> to vector<256x3xbf16>
    %c6 = arith.constant 6 : index
    %c0_23 = arith.constant 0 : index
    %c0_24 = arith.constant 0 : index
    %51 = vector.load %arg2[%c6, %c0_23, %c0_24] : memref<9x3x32xbf16, #tpu.memory_space<vmem>>, vector<1x3x32xbf16>
    %52 = vector.shape_cast %51 : vector<1x3x32xbf16> to vector<3x32xbf16>
    %cst_25 = arith.constant dense<0.000000e+00> : vector<256x32xf32>
    %53 = tpu.matmul %50, %52, %cst_25 {dimension_numbers = #tpu.dot_dimension_numbers<[1], [0], [0], [1], [0, 0, 1, 1], [], []>} : vector<256x3xbf16>, vector<3x32xbf16>, vector<256x32xf32> -> vector<256x32xf32>
    %54 = arith.addf %47, %53 : vector<256x32xf32>
    %55 = vector.extract_strided_slice %2 {offsets = [2, 1, 0], sizes = [16, 16, 3], strides = [1, 1, 1]} : vector<18x18x3xf32> to vector<16x16x3xf32>
    %56 = vector.shape_cast %55 : vector<16x16x3xf32> to vector<256x3xf32>
    %57 = arith.truncf %56 : vector<256x3xf32> to vector<256x3xbf16>
    %c7 = arith.constant 7 : index
    %c0_26 = arith.constant 0 : index
    %c0_27 = arith.constant 0 : index
    %58 = vector.load %arg2[%c7, %c0_26, %c0_27] : memref<9x3x32xbf16, #tpu.memory_space<vmem>>, vector<1x3x32xbf16>
    %59 = vector.shape_cast %58 : vector<1x3x32xbf16> to vector<3x32xbf16>
    %cst_28 = arith.constant dense<0.000000e+00> : vector<256x32xf32>
    %60 = tpu.matmul %57, %59, %cst_28 {dimension_numbers = #tpu.dot_dimension_numbers<[1], [0], [0], [1], [0, 0, 1, 1], [], []>} : vector<256x3xbf16>, vector<3x32xbf16>, vector<256x32xf32> -> vector<256x32xf32>
    %61 = arith.addf %54, %60 : vector<256x32xf32>
    %62 = vector.extract_strided_slice %2 {offsets = [2, 2, 0], sizes = [16, 16, 3], strides = [1, 1, 1]} : vector<18x18x3xf32> to vector<16x16x3xf32>
    %63 = vector.shape_cast %62 : vector<16x16x3xf32> to vector<256x3xf32>
    %64 = arith.truncf %63 : vector<256x3xf32> to vector<256x3xbf16>
    %c8 = arith.constant 8 : index
    %c0_29 = arith.constant 0 : index
    %c0_30 = arith.constant 0 : index
    %65 = vector.load %arg2[%c8, %c0_29, %c0_30] : memref<9x3x32xbf16, #tpu.memory_space<vmem>>, vector<1x3x32xbf16>
    %66 = vector.shape_cast %65 : vector<1x3x32xbf16> to vector<3x32xbf16>
    %cst_31 = arith.constant dense<0.000000e+00> : vector<256x32xf32>
    %67 = tpu.matmul %64, %66, %cst_31 {dimension_numbers = #tpu.dot_dimension_numbers<[1], [0], [0], [1], [0, 0, 1, 1], [], []>} : vector<256x3xbf16>, vector<3x32xbf16>, vector<256x32xf32> -> vector<256x32xf32>
    %68 = arith.addf %61, %67 : vector<256x32xf32>
    %cst_32 = arith.constant 0.000000e+00 : f32
    %69 = vector.broadcast %cst_32 : f32 to vector<256x32xf32>
    %70 = arith.maximumf %68, %69 : vector<256x32xf32>
    %71 = vector.shape_cast %70 : vector<256x32xf32> to vector<16x16x32xf32>
    %72 = arith.truncf %71 : vector<16x16x32xf32> to vector<16x16x32xbf16>
    %c0_33 = arith.constant 0 : index
    %c0_34 = arith.constant 0 : index
    %c0_35 = arith.constant 0 : index
    %c0_36 = arith.constant 0 : index
    %73 = vector.load %arg4[%c0_33, %c0_34, %c0_35, %c0_36] : memref<1x16x16x32xbf16, #tpu.memory_space<vmem>>, vector<1x16x16x32xbf16>
    %74 = vector.shape_cast %73 : vector<1x16x16x32xbf16> to vector<16x16x32xbf16>
    %75 = vector.shape_cast %72 : vector<16x16x32xbf16> to vector<1x16x16x32xbf16>
    tpu.vector_store %arg4[%c0_33, %c0_34, %c0_35, %c0_36], %75 {strides = array<i32>} : memref<1x16x16x32xbf16, #tpu.memory_space<vmem>>, vector<1x16x16x32xbf16>,
    return
  }
  func.func @transform_0(%arg0: i32) -> (i32, i32, i32, i32) {
    %c0_i32 = arith.constant 0 : i32
    %c0_i32_0 = arith.constant 0 : i32
    %c0_i32_1 = arith.constant 0 : i32
    %c0_i32_2 = arith.constant 0 : i32
    return %arg0, %c0_i32, %c0_i32_0, %c0_i32_1 : i32, i32, i32, i32
  }
  func.func @transform_1(%arg0: i32) -> (i32, i32, i32) {
    %c0_i32 = arith.constant 0 : i32
    %c0_i32_0 = arith.constant 0 : i32
    %c0_i32_1 = arith.constant 0 : i32
    %c0_i32_2 = arith.constant 0 : i32
    return %c0_i32, %c0_i32_0, %c0_i32_1 : i32, i32, i32
  }
  func.func @transform_2(%arg0: i32) -> (i32, i32) {
    %c0_i32 = arith.constant 0 : i32
    %c0_i32_0 = arith.constant 0 : i32
    %c0_i32_1 = arith.constant 0 : i32
    return %c0_i32, %c0_i32_0 : i32, i32
  }
  func.func @transform_3(%arg0: i32) -> (i32, i32, i32, i32) {
    %c0_i32 = arith.constant 0 : i32
    %c0_i32_0 = arith.constant 0 : i32
    %c0_i32_1 = arith.constant 0 : i32
    %c0_i32_2 = arith.constant 0 : i32
    return %arg0, %c0_i32, %c0_i32_0, %c0_i32_1 : i32, i32, i32, i32
  }
}

module attributes {stable_mosaic.version = 11 : i64} {
  func.func @_conv_direct_kernel(%arg0: i32, %arg1: memref<1x10x10x32xbf16, #tpu.memory_space<vmem>>, %arg2: memref<9x32x64xbf16, #tpu.memory_space<vmem>>, %arg3: memref<1x64xf32, #tpu.memory_space<vmem>>, %arg4: memref<1x8x8x64xbf16, #tpu.memory_space<vmem>>) attributes {dimension_semantics = [#tpu.dimension_semantics<parallel>], iteration_bounds = array<i64: 2>, scalar_prefetch = 0 : i64, scratch_operands = 0 : i64, tpu.core_type = #tpu.core_type<tc>, window_params = [{transform_indices = @transform_0, window_bounds = array<i64: 1, 10, 10, 32>}, {pipeline_mode = #tpu.pipeline_mode<synchronous>, transform_indices = @transform_1, window_bounds = array<i64: 9, 32, 64>}, {pipeline_mode = #tpu.pipeline_mode<synchronous>, transform_indices = @transform_2, window_bounds = array<i64: 1, 64>}, {transform_indices = @transform_3, window_bounds = array<i64: 1, 8, 8, 64>}]} {
    %c0 = arith.constant 0 : index
    %c0_0 = arith.constant 0 : index
    %c0_1 = arith.constant 0 : index
    %c0_2 = arith.constant 0 : index
    %0 = vector.load %arg1[%c0, %c0_0, %c0_1, %c0_2] : memref<1x10x10x32xbf16, #tpu.memory_space<vmem>>, vector<1x10x10x32xbf16>
    %1 = vector.shape_cast %0 : vector<1x10x10x32xbf16> to vector<10x10x32xbf16>
    %2 = arith.extf %1 : vector<10x10x32xbf16> to vector<10x10x32xf32>
    %c0_3 = arith.constant 0 : index
    %c0_4 = arith.constant 0 : index
    %3 = vector.load %arg3[%c0_3, %c0_4] : memref<1x64xf32, #tpu.memory_space<vmem>>, vector<1x64xf32>
    %4 = vector.shape_cast %3 : vector<1x64xf32> to vector<1x64xf32>
    %5 = vector.broadcast %4 : vector<1x64xf32> to vector<64x64xf32>
    %6 = vector.extract_strided_slice %2 {offsets = [0, 0, 0], sizes = [8, 8, 32], strides = [1, 1, 1]} : vector<10x10x32xf32> to vector<8x8x32xf32>
    %7 = vector.shape_cast %6 : vector<8x8x32xf32> to vector<64x32xf32>
    %8 = arith.truncf %7 : vector<64x32xf32> to vector<64x32xbf16>
    %c0_5 = arith.constant 0 : index
    %c0_6 = arith.constant 0 : index
    %c0_7 = arith.constant 0 : index
    %9 = vector.load %arg2[%c0_5, %c0_6, %c0_7] : memref<9x32x64xbf16, #tpu.memory_space<vmem>>, vector<1x32x64xbf16>
    %10 = vector.shape_cast %9 : vector<1x32x64xbf16> to vector<32x64xbf16>
    %cst = arith.constant dense<0.000000e+00> : vector<64x64xf32>
    %11 = tpu.matmul %8, %10, %cst {dimension_numbers = #tpu.dot_dimension_numbers<[1], [0], [0], [1], [0, 0, 1, 1], [], []>} : vector<64x32xbf16>, vector<32x64xbf16>, vector<64x64xf32> -> vector<64x64xf32>
    %12 = arith.addf %5, %11 : vector<64x64xf32>
    %13 = vector.extract_strided_slice %2 {offsets = [0, 1, 0], sizes = [8, 8, 32], strides = [1, 1, 1]} : vector<10x10x32xf32> to vector<8x8x32xf32>
    %14 = vector.shape_cast %13 : vector<8x8x32xf32> to vector<64x32xf32>
    %15 = arith.truncf %14 : vector<64x32xf32> to vector<64x32xbf16>
    %c1 = arith.constant 1 : index
    %c0_8 = arith.constant 0 : index
    %c0_9 = arith.constant 0 : index
    %16 = vector.load %arg2[%c1, %c0_8, %c0_9] : memref<9x32x64xbf16, #tpu.memory_space<vmem>>, vector<1x32x64xbf16>
    %17 = vector.shape_cast %16 : vector<1x32x64xbf16> to vector<32x64xbf16>
    %cst_10 = arith.constant dense<0.000000e+00> : vector<64x64xf32>
    %18 = tpu.matmul %15, %17, %cst_10 {dimension_numbers = #tpu.dot_dimension_numbers<[1], [0], [0], [1], [0, 0, 1, 1], [], []>} : vector<64x32xbf16>, vector<32x64xbf16>, vector<64x64xf32> -> vector<64x64xf32>
    %19 = arith.addf %12, %18 : vector<64x64xf32>
    %20 = vector.extract_strided_slice %2 {offsets = [0, 2, 0], sizes = [8, 8, 32], strides = [1, 1, 1]} : vector<10x10x32xf32> to vector<8x8x32xf32>
    %21 = vector.shape_cast %20 : vector<8x8x32xf32> to vector<64x32xf32>
    %22 = arith.truncf %21 : vector<64x32xf32> to vector<64x32xbf16>
    %c2 = arith.constant 2 : index
    %c0_11 = arith.constant 0 : index
    %c0_12 = arith.constant 0 : index
    %23 = vector.load %arg2[%c2, %c0_11, %c0_12] : memref<9x32x64xbf16, #tpu.memory_space<vmem>>, vector<1x32x64xbf16>
    %24 = vector.shape_cast %23 : vector<1x32x64xbf16> to vector<32x64xbf16>
    %cst_13 = arith.constant dense<0.000000e+00> : vector<64x64xf32>
    %25 = tpu.matmul %22, %24, %cst_13 {dimension_numbers = #tpu.dot_dimension_numbers<[1], [0], [0], [1], [0, 0, 1, 1], [], []>} : vector<64x32xbf16>, vector<32x64xbf16>, vector<64x64xf32> -> vector<64x64xf32>
    %26 = arith.addf %19, %25 : vector<64x64xf32>
    %27 = vector.extract_strided_slice %2 {offsets = [1, 0, 0], sizes = [8, 8, 32], strides = [1, 1, 1]} : vector<10x10x32xf32> to vector<8x8x32xf32>
    %28 = vector.shape_cast %27 : vector<8x8x32xf32> to vector<64x32xf32>
    %29 = arith.truncf %28 : vector<64x32xf32> to vector<64x32xbf16>
    %c3 = arith.constant 3 : index
    %c0_14 = arith.constant 0 : index
    %c0_15 = arith.constant 0 : index
    %30 = vector.load %arg2[%c3, %c0_14, %c0_15] : memref<9x32x64xbf16, #tpu.memory_space<vmem>>, vector<1x32x64xbf16>
    %31 = vector.shape_cast %30 : vector<1x32x64xbf16> to vector<32x64xbf16>
    %cst_16 = arith.constant dense<0.000000e+00> : vector<64x64xf32>
    %32 = tpu.matmul %29, %31, %cst_16 {dimension_numbers = #tpu.dot_dimension_numbers<[1], [0], [0], [1], [0, 0, 1, 1], [], []>} : vector<64x32xbf16>, vector<32x64xbf16>, vector<64x64xf32> -> vector<64x64xf32>
    %33 = arith.addf %26, %32 : vector<64x64xf32>
    %34 = vector.extract_strided_slice %2 {offsets = [1, 1, 0], sizes = [8, 8, 32], strides = [1, 1, 1]} : vector<10x10x32xf32> to vector<8x8x32xf32>
    %35 = vector.shape_cast %34 : vector<8x8x32xf32> to vector<64x32xf32>
    %36 = arith.truncf %35 : vector<64x32xf32> to vector<64x32xbf16>
    %c4 = arith.constant 4 : index
    %c0_17 = arith.constant 0 : index
    %c0_18 = arith.constant 0 : index
    %37 = vector.load %arg2[%c4, %c0_17, %c0_18] : memref<9x32x64xbf16, #tpu.memory_space<vmem>>, vector<1x32x64xbf16>
    %38 = vector.shape_cast %37 : vector<1x32x64xbf16> to vector<32x64xbf16>
    %cst_19 = arith.constant dense<0.000000e+00> : vector<64x64xf32>
    %39 = tpu.matmul %36, %38, %cst_19 {dimension_numbers = #tpu.dot_dimension_numbers<[1], [0], [0], [1], [0, 0, 1, 1], [], []>} : vector<64x32xbf16>, vector<32x64xbf16>, vector<64x64xf32> -> vector<64x64xf32>
    %40 = arith.addf %33, %39 : vector<64x64xf32>
    %41 = vector.extract_strided_slice %2 {offsets = [1, 2, 0], sizes = [8, 8, 32], strides = [1, 1, 1]} : vector<10x10x32xf32> to vector<8x8x32xf32>
    %42 = vector.shape_cast %41 : vector<8x8x32xf32> to vector<64x32xf32>
    %43 = arith.truncf %42 : vector<64x32xf32> to vector<64x32xbf16>
    %c5 = arith.constant 5 : index
    %c0_20 = arith.constant 0 : index
    %c0_21 = arith.constant 0 : index
    %44 = vector.load %arg2[%c5, %c0_20, %c0_21] : memref<9x32x64xbf16, #tpu.memory_space<vmem>>, vector<1x32x64xbf16>
    %45 = vector.shape_cast %44 : vector<1x32x64xbf16> to vector<32x64xbf16>
    %cst_22 = arith.constant dense<0.000000e+00> : vector<64x64xf32>
    %46 = tpu.matmul %43, %45, %cst_22 {dimension_numbers = #tpu.dot_dimension_numbers<[1], [0], [0], [1], [0, 0, 1, 1], [], []>} : vector<64x32xbf16>, vector<32x64xbf16>, vector<64x64xf32> -> vector<64x64xf32>
    %47 = arith.addf %40, %46 : vector<64x64xf32>
    %48 = vector.extract_strided_slice %2 {offsets = [2, 0, 0], sizes = [8, 8, 32], strides = [1, 1, 1]} : vector<10x10x32xf32> to vector<8x8x32xf32>
    %49 = vector.shape_cast %48 : vector<8x8x32xf32> to vector<64x32xf32>
    %50 = arith.truncf %49 : vector<64x32xf32> to vector<64x32xbf16>
    %c6 = arith.constant 6 : index
    %c0_23 = arith.constant 0 : index
    %c0_24 = arith.constant 0 : index
    %51 = vector.load %arg2[%c6, %c0_23, %c0_24] : memref<9x32x64xbf16, #tpu.memory_space<vmem>>, vector<1x32x64xbf16>
    %52 = vector.shape_cast %51 : vector<1x32x64xbf16> to vector<32x64xbf16>
    %cst_25 = arith.constant dense<0.000000e+00> : vector<64x64xf32>
    %53 = tpu.matmul %50, %52, %cst_25 {dimension_numbers = #tpu.dot_dimension_numbers<[1], [0], [0], [1], [0, 0, 1, 1], [], []>} : vector<64x32xbf16>, vector<32x64xbf16>, vector<64x64xf32> -> vector<64x64xf32>
    %54 = arith.addf %47, %53 : vector<64x64xf32>
    %55 = vector.extract_strided_slice %2 {offsets = [2, 1, 0], sizes = [8, 8, 32], strides = [1, 1, 1]} : vector<10x10x32xf32> to vector<8x8x32xf32>
    %56 = vector.shape_cast %55 : vector<8x8x32xf32> to vector<64x32xf32>
    %57 = arith.truncf %56 : vector<64x32xf32> to vector<64x32xbf16>
    %c7 = arith.constant 7 : index
    %c0_26 = arith.constant 0 : index
    %c0_27 = arith.constant 0 : index
    %58 = vector.load %arg2[%c7, %c0_26, %c0_27] : memref<9x32x64xbf16, #tpu.memory_space<vmem>>, vector<1x32x64xbf16>
    %59 = vector.shape_cast %58 : vector<1x32x64xbf16> to vector<32x64xbf16>
    %cst_28 = arith.constant dense<0.000000e+00> : vector<64x64xf32>
    %60 = tpu.matmul %57, %59, %cst_28 {dimension_numbers = #tpu.dot_dimension_numbers<[1], [0], [0], [1], [0, 0, 1, 1], [], []>} : vector<64x32xbf16>, vector<32x64xbf16>, vector<64x64xf32> -> vector<64x64xf32>
    %61 = arith.addf %54, %60 : vector<64x64xf32>
    %62 = vector.extract_strided_slice %2 {offsets = [2, 2, 0], sizes = [8, 8, 32], strides = [1, 1, 1]} : vector<10x10x32xf32> to vector<8x8x32xf32>
    %63 = vector.shape_cast %62 : vector<8x8x32xf32> to vector<64x32xf32>
    %64 = arith.truncf %63 : vector<64x32xf32> to vector<64x32xbf16>
    %c8 = arith.constant 8 : index
    %c0_29 = arith.constant 0 : index
    %c0_30 = arith.constant 0 : index
    %65 = vector.load %arg2[%c8, %c0_29, %c0_30] : memref<9x32x64xbf16, #tpu.memory_space<vmem>>, vector<1x32x64xbf16>
    %66 = vector.shape_cast %65 : vector<1x32x64xbf16> to vector<32x64xbf16>
    %cst_31 = arith.constant dense<0.000000e+00> : vector<64x64xf32>
    %67 = tpu.matmul %64, %66, %cst_31 {dimension_numbers = #tpu.dot_dimension_numbers<[1], [0], [0], [1], [0, 0, 1, 1], [], []>} : vector<64x32xbf16>, vector<32x64xbf16>, vector<64x64xf32> -> vector<64x64xf32>
    %68 = arith.addf %61, %67 : vector<64x64xf32>
    %cst_32 = arith.constant 0.000000e+00 : f32
    %69 = vector.broadcast %cst_32 : f32 to vector<64x64xf32>
    %70 = arith.maximumf %68, %69 : vector<64x64xf32>
    %71 = vector.shape_cast %70 : vector<64x64xf32> to vector<8x8x64xf32>
    %72 = arith.truncf %71 : vector<8x8x64xf32> to vector<8x8x64xbf16>
    %c0_33 = arith.constant 0 : index
    %c0_34 = arith.constant 0 : index
    %c0_35 = arith.constant 0 : index
    %c0_36 = arith.constant 0 : index
    %73 = vector.load %arg4[%c0_33, %c0_34, %c0_35, %c0_36] : memref<1x8x8x64xbf16, #tpu.memory_space<vmem>>, vector<1x8x8x64xbf16>
    %74 = vector.shape_cast %73 : vector<1x8x8x64xbf16> to vector<8x8x64xbf16>
    %75 = vector.shape_cast %72 : vector<8x8x64xbf16> to vector<1x8x8x64xbf16>
    tpu.vector_store %arg4[%c0_33, %c0_34, %c0_35, %c0_36], %75 {strides = array<i32>} : memref<1x8x8x64xbf16, #tpu.memory_space<vmem>>, vector<1x8x8x64xbf16>,
    return
  }
  func.func @transform_0(%arg0: i32) -> (i32, i32, i32, i32) {
    %c0_i32 = arith.constant 0 : i32
    %c0_i32_0 = arith.constant 0 : i32
    %c0_i32_1 = arith.constant 0 : i32
    %c0_i32_2 = arith.constant 0 : i32
    return %arg0, %c0_i32, %c0_i32_0, %c0_i32_1 : i32, i32, i32, i32
  }
  func.func @transform_1(%arg0: i32) -> (i32, i32, i32) {
    %c0_i32 = arith.constant 0 : i32
    %c0_i32_0 = arith.constant 0 : i32
    %c0_i32_1 = arith.constant 0 : i32
    %c0_i32_2 = arith.constant 0 : i32
    return %c0_i32, %c0_i32_0, %c0_i32_1 : i32, i32, i32
  }
  func.func @transform_2(%arg0: i32) -> (i32, i32) {
    %c0_i32 = arith.constant 0 : i32
    %c0_i32_0 = arith.constant 0 : i32
    %c0_i32_1 = arith.constant 0 : i32
    return %c0_i32, %c0_i32_0 : i32, i32
  }
  func.func @transform_3(%arg0: i32) -> (i32, i32, i32, i32) {
    %c0_i32 = arith.constant 0 : i32
    %c0_i32_0 = arith.constant 0 : i32
    %c0_i32_1 = arith.constant 0 : i32
    %c0_i32_2 = arith.constant 0 : i32
    return %arg0, %c0_i32, %c0_i32_0, %c0_i32_1 : i32, i32, i32, i32
  }
}

module attributes {stable_mosaic.version = 11 : i64} {
  func.func @_conv_direct_kernel(%arg0: i32, %arg1: memref<1x10x10x64xbf16, #tpu.memory_space<vmem>>, %arg2: memref<5x64x128xbf16, #tpu.memory_space<vmem>>, %arg3: memref<1x128xf32, #tpu.memory_space<vmem>>, %arg4: memref<1x8x8x128xbf16, #tpu.memory_space<vmem>>) attributes {dimension_semantics = [#tpu.dimension_semantics<parallel>], iteration_bounds = array<i64: 2>, scalar_prefetch = 0 : i64, scratch_operands = 0 : i64, tpu.core_type = #tpu.core_type<tc>, window_params = [{transform_indices = @transform_0, window_bounds = array<i64: 1, 10, 10, 64>}, {pipeline_mode = #tpu.pipeline_mode<synchronous>, transform_indices = @transform_1, window_bounds = array<i64: 5, 64, 128>}, {pipeline_mode = #tpu.pipeline_mode<synchronous>, transform_indices = @transform_2, window_bounds = array<i64: 1, 128>}, {transform_indices = @transform_3, window_bounds = array<i64: 1, 8, 8, 128>}]} {
    %c0 = arith.constant 0 : index
    %c0_0 = arith.constant 0 : index
    %c0_1 = arith.constant 0 : index
    %c0_2 = arith.constant 0 : index
    %0 = vector.load %arg1[%c0, %c0_0, %c0_1, %c0_2] : memref<1x10x10x64xbf16, #tpu.memory_space<vmem>>, vector<1x10x10x64xbf16>
    %1 = vector.shape_cast %0 : vector<1x10x10x64xbf16> to vector<10x10x64xbf16>
    %2 = arith.extf %1 : vector<10x10x64xbf16> to vector<10x10x64xf32>
    %c0_3 = arith.constant 0 : index
    %c0_4 = arith.constant 0 : index
    %3 = vector.load %arg3[%c0_3, %c0_4] : memref<1x128xf32, #tpu.memory_space<vmem>>, vector<1x128xf32>
    %4 = vector.shape_cast %3 : vector<1x128xf32> to vector<1x128xf32>
    %5 = vector.broadcast %4 : vector<1x128xf32> to vector<64x128xf32>
    %6 = vector.extract_strided_slice %2 {offsets = [0, 0, 0], sizes = [8, 8, 64], strides = [1, 1, 1]} : vector<10x10x64xf32> to vector<8x8x64xf32>
    %7 = vector.shape_cast %6 : vector<8x8x64xf32> to vector<64x64xf32>
    %8 = arith.truncf %7 : vector<64x64xf32> to vector<64x64xbf16>
    %c0_5 = arith.constant 0 : index
    %c0_6 = arith.constant 0 : index
    %c0_7 = arith.constant 0 : index
    %9 = vector.load %arg2[%c0_5, %c0_6, %c0_7] : memref<5x64x128xbf16, #tpu.memory_space<vmem>>, vector<1x64x128xbf16>
    %10 = vector.shape_cast %9 : vector<1x64x128xbf16> to vector<64x128xbf16>
    %cst = arith.constant dense<0.000000e+00> : vector<64x128xf32>
    %11 = tpu.matmul %8, %10, %cst {dimension_numbers = #tpu.dot_dimension_numbers<[1], [0], [0], [1], [0, 0, 1, 1], [], []>} : vector<64x64xbf16>, vector<64x128xbf16>, vector<64x128xf32> -> vector<64x128xf32>
    %12 = arith.addf %5, %11 : vector<64x128xf32>
    %13 = vector.extract_strided_slice %2 {offsets = [0, 1, 0], sizes = [8, 8, 64], strides = [1, 1, 1]} : vector<10x10x64xf32> to vector<8x8x64xf32>
    %14 = vector.shape_cast %13 : vector<8x8x64xf32> to vector<64x64xf32>
    %15 = arith.truncf %14 : vector<64x64xf32> to vector<64x64xbf16>
    %c1 = arith.constant 1 : index
    %c0_8 = arith.constant 0 : index
    %c0_9 = arith.constant 0 : index
    %16 = vector.load %arg2[%c1, %c0_8, %c0_9] : memref<5x64x128xbf16, #tpu.memory_space<vmem>>, vector<1x64x128xbf16>
    %17 = vector.shape_cast %16 : vector<1x64x128xbf16> to vector<64x128xbf16>
    %cst_10 = arith.constant dense<0.000000e+00> : vector<64x128xf32>
    %18 = tpu.matmul %15, %17, %cst_10 {dimension_numbers = #tpu.dot_dimension_numbers<[1], [0], [0], [1], [0, 0, 1, 1], [], []>} : vector<64x64xbf16>, vector<64x128xbf16>, vector<64x128xf32> -> vector<64x128xf32>
    %19 = arith.addf %12, %18 : vector<64x128xf32>
    %20 = vector.extract_strided_slice %2 {offsets = [0, 2, 0], sizes = [8, 8, 64], strides = [1, 1, 1]} : vector<10x10x64xf32> to vector<8x8x64xf32>
    %21 = vector.shape_cast %20 : vector<8x8x64xf32> to vector<64x64xf32>
    %22 = arith.truncf %21 : vector<64x64xf32> to vector<64x64xbf16>
    %c2 = arith.constant 2 : index
    %c0_11 = arith.constant 0 : index
    %c0_12 = arith.constant 0 : index
    %23 = vector.load %arg2[%c2, %c0_11, %c0_12] : memref<5x64x128xbf16, #tpu.memory_space<vmem>>, vector<1x64x128xbf16>
    %24 = vector.shape_cast %23 : vector<1x64x128xbf16> to vector<64x128xbf16>
    %cst_13 = arith.constant dense<0.000000e+00> : vector<64x128xf32>
    %25 = tpu.matmul %22, %24, %cst_13 {dimension_numbers = #tpu.dot_dimension_numbers<[1], [0], [0], [1], [0, 0, 1, 1], [], []>} : vector<64x64xbf16>, vector<64x128xbf16>, vector<64x128xf32> -> vector<64x128xf32>
    %26 = arith.addf %19, %25 : vector<64x128xf32>
    %27 = vector.extract_strided_slice %2 {offsets = [1, 0, 0], sizes = [8, 8, 64], strides = [1, 1, 1]} : vector<10x10x64xf32> to vector<8x8x64xf32>
    %28 = vector.shape_cast %27 : vector<8x8x64xf32> to vector<64x64xf32>
    %29 = arith.truncf %28 : vector<64x64xf32> to vector<64x64xbf16>
    %c3 = arith.constant 3 : index
    %c0_14 = arith.constant 0 : index
    %c0_15 = arith.constant 0 : index
    %30 = vector.load %arg2[%c3, %c0_14, %c0_15] : memref<5x64x128xbf16, #tpu.memory_space<vmem>>, vector<1x64x128xbf16>
    %31 = vector.shape_cast %30 : vector<1x64x128xbf16> to vector<64x128xbf16>
    %cst_16 = arith.constant dense<0.000000e+00> : vector<64x128xf32>
    %32 = tpu.matmul %29, %31, %cst_16 {dimension_numbers = #tpu.dot_dimension_numbers<[1], [0], [0], [1], [0, 0, 1, 1], [], []>} : vector<64x64xbf16>, vector<64x128xbf16>, vector<64x128xf32> -> vector<64x128xf32>
    %33 = arith.addf %26, %32 : vector<64x128xf32>
    %34 = vector.extract_strided_slice %2 {offsets = [1, 1, 0], sizes = [8, 8, 64], strides = [1, 1, 1]} : vector<10x10x64xf32> to vector<8x8x64xf32>
    %35 = vector.shape_cast %34 : vector<8x8x64xf32> to vector<64x64xf32>
    %36 = arith.truncf %35 : vector<64x64xf32> to vector<64x64xbf16>
    %c4 = arith.constant 4 : index
    %c0_17 = arith.constant 0 : index
    %c0_18 = arith.constant 0 : index
    %37 = vector.load %arg2[%c4, %c0_17, %c0_18] : memref<5x64x128xbf16, #tpu.memory_space<vmem>>, vector<1x64x128xbf16>
    %38 = vector.shape_cast %37 : vector<1x64x128xbf16> to vector<64x128xbf16>
    %cst_19 = arith.constant dense<0.000000e+00> : vector<64x128xf32>
    %39 = tpu.matmul %36, %38, %cst_19 {dimension_numbers = #tpu.dot_dimension_numbers<[1], [0], [0], [1], [0, 0, 1, 1], [], []>} : vector<64x64xbf16>, vector<64x128xbf16>, vector<64x128xf32> -> vector<64x128xf32>
    %40 = arith.addf %33, %39 : vector<64x128xf32>
    %cst_20 = arith.constant 0.000000e+00 : f32
    %41 = vector.broadcast %cst_20 : f32 to vector<64x128xf32>
    %42 = arith.maximumf %40, %41 : vector<64x128xf32>
    %43 = vector.shape_cast %42 : vector<64x128xf32> to vector<8x8x128xf32>
    %44 = arith.truncf %43 : vector<8x8x128xf32> to vector<8x8x128xbf16>
    %c0_21 = arith.constant 0 : index
    %c0_22 = arith.constant 0 : index
    %c0_23 = arith.constant 0 : index
    %c0_24 = arith.constant 0 : index
    %45 = vector.load %arg4[%c0_21, %c0_22, %c0_23, %c0_24] : memref<1x8x8x128xbf16, #tpu.memory_space<vmem>>, vector<1x8x8x128xbf16>
    %46 = vector.shape_cast %45 : vector<1x8x8x128xbf16> to vector<8x8x128xbf16>
    %47 = vector.shape_cast %44 : vector<8x8x128xbf16> to vector<1x8x8x128xbf16>
    tpu.vector_store %arg4[%c0_21, %c0_22, %c0_23, %c0_24], %47 {strides = array<i32>} : memref<1x8x8x128xbf16, #tpu.memory_space<vmem>>, vector<1x8x8x128xbf16>,
    return
  }
  func.func @transform_0(%arg0: i32) -> (i32, i32, i32, i32) {
    %c0_i32 = arith.constant 0 : i32
    %c0_i32_0 = arith.constant 0 : i32
    %c0_i32_1 = arith.constant 0 : i32
    %c0_i32_2 = arith.constant 0 : i32
    return %arg0, %c0_i32, %c0_i32_0, %c0_i32_1 : i32, i32, i32, i32
  }
  func.func @transform_1(%arg0: i32) -> (i32, i32, i32) {
    %c0_i32 = arith.constant 0 : i32
    %c0_i32_0 = arith.constant 0 : i32
    %c0_i32_1 = arith.constant 0 : i32
    %c0_i32_2 = arith.constant 0 : i32
    return %c0_i32, %c0_i32_0, %c0_i32_1 : i32, i32, i32
  }
  func.func @transform_2(%arg0: i32) -> (i32, i32) {
    %c0_i32 = arith.constant 0 : i32
    %c0_i32_0 = arith.constant 0 : i32
    %c0_i32_1 = arith.constant 0 : i32
    return %c0_i32, %c0_i32_0 : i32, i32
  }
  func.func @transform_3(%arg0: i32) -> (i32, i32, i32, i32) {
    %c0_i32 = arith.constant 0 : i32
    %c0_i32_0 = arith.constant 0 : i32
    %c0_i32_1 = arith.constant 0 : i32
    %c0_i32_2 = arith.constant 0 : i32
    return %arg0, %c0_i32, %c0_i32_0, %c0_i32_1 : i32, i32, i32, i32
  }
}

module attributes {stable_mosaic.version = 11 : i64} {
  func.func @_res_tail_kernel(%arg0: i32, %arg1: memref<1x10x10x128xbf16, #tpu.memory_space<vmem>>, %arg2: memref<1x8x8x64xbf16, #tpu.memory_space<vmem>>, %arg3: memref<5x128x128xbf16, #tpu.memory_space<vmem>>, %arg4: memref<1x128xf32, #tpu.memory_space<vmem>>, %arg5: memref<64x128xbf16, #tpu.memory_space<vmem>>, %arg6: memref<1x128xf32, #tpu.memory_space<vmem>>, %arg7: memref<1x8x8x128xbf16, #tpu.memory_space<vmem>>) attributes {dimension_semantics = [#tpu.dimension_semantics<parallel>], iteration_bounds = array<i64: 2>, scalar_prefetch = 0 : i64, scratch_operands = 0 : i64, tpu.core_type = #tpu.core_type<tc>, window_params = [{transform_indices = @transform_0, window_bounds = array<i64: 1, 10, 10, 128>}, {transform_indices = @transform_1, window_bounds = array<i64: 1, 8, 8, 64>}, {pipeline_mode = #tpu.pipeline_mode<synchronous>, transform_indices = @transform_2, window_bounds = array<i64: 5, 128, 128>}, {pipeline_mode = #tpu.pipeline_mode<synchronous>, transform_indices = @transform_3, window_bounds = array<i64: 1, 128>}, {pipeline_mode = #tpu.pipeline_mode<synchronous>, transform_indices = @transform_4, window_bounds = array<i64: 64, 128>}, {pipeline_mode = #tpu.pipeline_mode<synchronous>, transform_indices = @transform_5, window_bounds = array<i64: 1, 128>}, {transform_indices = @transform_6, window_bounds = array<i64: 1, 8, 8, 128>}]} {
    %c0 = arith.constant 0 : index
    %c0_0 = arith.constant 0 : index
    %c0_1 = arith.constant 0 : index
    %c0_2 = arith.constant 0 : index
    %0 = vector.load %arg1[%c0, %c0_0, %c0_1, %c0_2] : memref<1x10x10x128xbf16, #tpu.memory_space<vmem>>, vector<1x10x10x128xbf16>
    %1 = vector.shape_cast %0 : vector<1x10x10x128xbf16> to vector<10x10x128xbf16>
    %2 = arith.extf %1 : vector<10x10x128xbf16> to vector<10x10x128xf32>
    %c0_3 = arith.constant 0 : index
    %c0_4 = arith.constant 0 : index
    %3 = vector.load %arg4[%c0_3, %c0_4] : memref<1x128xf32, #tpu.memory_space<vmem>>, vector<1x128xf32>
    %c0_5 = arith.constant 0 : index
    %c0_6 = arith.constant 0 : index
    %4 = vector.load %arg6[%c0_5, %c0_6] : memref<1x128xf32, #tpu.memory_space<vmem>>, vector<1x128xf32>
    %5 = arith.addf %3, %4 : vector<1x128xf32>
    %6 = vector.shape_cast %5 : vector<1x128xf32> to vector<1x128xf32>
    %7 = vector.broadcast %6 : vector<1x128xf32> to vector<64x128xf32>
    %8 = vector.extract_strided_slice %2 {offsets = [0, 0, 0], sizes = [8, 8, 128], strides = [1, 1, 1]} : vector<10x10x128xf32> to vector<8x8x128xf32>
    %9 = vector.shape_cast %8 : vector<8x8x128xf32> to vector<64x128xf32>
    %10 = arith.truncf %9 : vector<64x128xf32> to vector<64x128xbf16>
    %c0_7 = arith.constant 0 : index
    %c0_8 = arith.constant 0 : index
    %c0_9 = arith.constant 0 : index
    %11 = vector.load %arg3[%c0_7, %c0_8, %c0_9] : memref<5x128x128xbf16, #tpu.memory_space<vmem>>, vector<1x128x128xbf16>
    %12 = vector.shape_cast %11 : vector<1x128x128xbf16> to vector<128x128xbf16>
    %cst = arith.constant dense<0.000000e+00> : vector<64x128xf32>
    %13 = tpu.matmul %10, %12, %cst {dimension_numbers = #tpu.dot_dimension_numbers<[1], [0], [0], [1], [0, 0, 1, 1], [], []>} : vector<64x128xbf16>, vector<128x128xbf16>, vector<64x128xf32> -> vector<64x128xf32>
    %14 = arith.addf %7, %13 : vector<64x128xf32>
    %15 = vector.extract_strided_slice %2 {offsets = [0, 1, 0], sizes = [8, 8, 128], strides = [1, 1, 1]} : vector<10x10x128xf32> to vector<8x8x128xf32>
    %16 = vector.shape_cast %15 : vector<8x8x128xf32> to vector<64x128xf32>
    %17 = arith.truncf %16 : vector<64x128xf32> to vector<64x128xbf16>
    %c1 = arith.constant 1 : index
    %c0_10 = arith.constant 0 : index
    %c0_11 = arith.constant 0 : index
    %18 = vector.load %arg3[%c1, %c0_10, %c0_11] : memref<5x128x128xbf16, #tpu.memory_space<vmem>>, vector<1x128x128xbf16>
    %19 = vector.shape_cast %18 : vector<1x128x128xbf16> to vector<128x128xbf16>
    %cst_12 = arith.constant dense<0.000000e+00> : vector<64x128xf32>
    %20 = tpu.matmul %17, %19, %cst_12 {dimension_numbers = #tpu.dot_dimension_numbers<[1], [0], [0], [1], [0, 0, 1, 1], [], []>} : vector<64x128xbf16>, vector<128x128xbf16>, vector<64x128xf32> -> vector<64x128xf32>
    %21 = arith.addf %14, %20 : vector<64x128xf32>
    %22 = vector.extract_strided_slice %2 {offsets = [0, 2, 0], sizes = [8, 8, 128], strides = [1, 1, 1]} : vector<10x10x128xf32> to vector<8x8x128xf32>
    %23 = vector.shape_cast %22 : vector<8x8x128xf32> to vector<64x128xf32>
    %24 = arith.truncf %23 : vector<64x128xf32> to vector<64x128xbf16>
    %c2 = arith.constant 2 : index
    %c0_13 = arith.constant 0 : index
    %c0_14 = arith.constant 0 : index
    %25 = vector.load %arg3[%c2, %c0_13, %c0_14] : memref<5x128x128xbf16, #tpu.memory_space<vmem>>, vector<1x128x128xbf16>
    %26 = vector.shape_cast %25 : vector<1x128x128xbf16> to vector<128x128xbf16>
    %cst_15 = arith.constant dense<0.000000e+00> : vector<64x128xf32>
    %27 = tpu.matmul %24, %26, %cst_15 {dimension_numbers = #tpu.dot_dimension_numbers<[1], [0], [0], [1], [0, 0, 1, 1], [], []>} : vector<64x128xbf16>, vector<128x128xbf16>, vector<64x128xf32> -> vector<64x128xf32>
    %28 = arith.addf %21, %27 : vector<64x128xf32>
    %29 = vector.extract_strided_slice %2 {offsets = [1, 0, 0], sizes = [8, 8, 128], strides = [1, 1, 1]} : vector<10x10x128xf32> to vector<8x8x128xf32>
    %30 = vector.shape_cast %29 : vector<8x8x128xf32> to vector<64x128xf32>
    %31 = arith.truncf %30 : vector<64x128xf32> to vector<64x128xbf16>
    %c3 = arith.constant 3 : index
    %c0_16 = arith.constant 0 : index
    %c0_17 = arith.constant 0 : index
    %32 = vector.load %arg3[%c3, %c0_16, %c0_17] : memref<5x128x128xbf16, #tpu.memory_space<vmem>>, vector<1x128x128xbf16>
    %33 = vector.shape_cast %32 : vector<1x128x128xbf16> to vector<128x128xbf16>
    %cst_18 = arith.constant dense<0.000000e+00> : vector<64x128xf32>
    %34 = tpu.matmul %31, %33, %cst_18 {dimension_numbers = #tpu.dot_dimension_numbers<[1], [0], [0], [1], [0, 0, 1, 1], [], []>} : vector<64x128xbf16>, vector<128x128xbf16>, vector<64x128xf32> -> vector<64x128xf32>
    %35 = arith.addf %28, %34 : vector<64x128xf32>
    %36 = vector.extract_strided_slice %2 {offsets = [1, 1, 0], sizes = [8, 8, 128], strides = [1, 1, 1]} : vector<10x10x128xf32> to vector<8x8x128xf32>
    %37 = vector.shape_cast %36 : vector<8x8x128xf32> to vector<64x128xf32>
    %38 = arith.truncf %37 : vector<64x128xf32> to vector<64x128xbf16>
    %c4 = arith.constant 4 : index
    %c0_19 = arith.constant 0 : index
    %c0_20 = arith.constant 0 : index
    %39 = vector.load %arg3[%c4, %c0_19, %c0_20] : memref<5x128x128xbf16, #tpu.memory_space<vmem>>, vector<1x128x128xbf16>
    %40 = vector.shape_cast %39 : vector<1x128x128xbf16> to vector<128x128xbf16>
    %cst_21 = arith.constant dense<0.000000e+00> : vector<64x128xf32>
    %41 = tpu.matmul %38, %40, %cst_21 {dimension_numbers = #tpu.dot_dimension_numbers<[1], [0], [0], [1], [0, 0, 1, 1], [], []>} : vector<64x128xbf16>, vector<128x128xbf16>, vector<64x128xf32> -> vector<64x128xf32>
    %42 = arith.addf %35, %41 : vector<64x128xf32>
    %c0_22 = arith.constant 0 : index
    %c0_23 = arith.constant 0 : index
    %c0_24 = arith.constant 0 : index
    %c0_25 = arith.constant 0 : index
    %43 = vector.load %arg2[%c0_22, %c0_23, %c0_24, %c0_25] : memref<1x8x8x64xbf16, #tpu.memory_space<vmem>>, vector<1x8x8x64xbf16>
    %44 = vector.shape_cast %43 : vector<1x8x8x64xbf16> to vector<8x8x64xbf16>
    %45 = arith.extf %44 : vector<8x8x64xbf16> to vector<8x8x64xf32>
    %46 = vector.shape_cast %45 : vector<8x8x64xf32> to vector<64x64xf32>
    %47 = arith.truncf %46 : vector<64x64xf32> to vector<64x64xbf16>
    %c0_26 = arith.constant 0 : index
    %c0_27 = arith.constant 0 : index
    %48 = vector.load %arg5[%c0_26, %c0_27] : memref<64x128xbf16, #tpu.memory_space<vmem>>, vector<64x128xbf16>
    %cst_28 = arith.constant dense<0.000000e+00> : vector<64x128xf32>
    %49 = tpu.matmul %47, %48, %cst_28 {dimension_numbers = #tpu.dot_dimension_numbers<[1], [0], [0], [1], [0, 0, 1, 1], [], []>} : vector<64x64xbf16>, vector<64x128xbf16>, vector<64x128xf32> -> vector<64x128xf32>
    %50 = arith.addf %42, %49 : vector<64x128xf32>
    %cst_29 = arith.constant 0.000000e+00 : f32
    %51 = vector.broadcast %cst_29 : f32 to vector<64x128xf32>
    %52 = arith.maximumf %50, %51 : vector<64x128xf32>
    %53 = vector.shape_cast %52 : vector<64x128xf32> to vector<8x8x128xf32>
    %54 = arith.truncf %53 : vector<8x8x128xf32> to vector<8x8x128xbf16>
    %c0_30 = arith.constant 0 : index
    %c0_31 = arith.constant 0 : index
    %c0_32 = arith.constant 0 : index
    %c0_33 = arith.constant 0 : index
    %55 = vector.load %arg7[%c0_30, %c0_31, %c0_32, %c0_33] : memref<1x8x8x128xbf16, #tpu.memory_space<vmem>>, vector<1x8x8x128xbf16>
    %56 = vector.shape_cast %55 : vector<1x8x8x128xbf16> to vector<8x8x128xbf16>
    %57 = vector.shape_cast %54 : vector<8x8x128xbf16> to vector<1x8x8x128xbf16>
    tpu.vector_store %arg7[%c0_30, %c0_31, %c0_32, %c0_33], %57 {strides = array<i32>} : memref<1x8x8x128xbf16, #tpu.memory_space<vmem>>, vector<1x8x8x128xbf16>,
    return
  }
  func.func @transform_0(%arg0: i32) -> (i32, i32, i32, i32) {
    %c0_i32 = arith.constant 0 : i32
    %c0_i32_0 = arith.constant 0 : i32
    %c0_i32_1 = arith.constant 0 : i32
    %c0_i32_2 = arith.constant 0 : i32
    return %arg0, %c0_i32, %c0_i32_0, %c0_i32_1 : i32, i32, i32, i32
  }
  func.func @transform_1(%arg0: i32) -> (i32, i32, i32, i32) {
    %c0_i32 = arith.constant 0 : i32
    %c0_i32_0 = arith.constant 0 : i32
    %c0_i32_1 = arith.constant 0 : i32
    %c0_i32_2 = arith.constant 0 : i32
    return %arg0, %c0_i32, %c0_i32_0, %c0_i32_1 : i32, i32, i32, i32
  }
  func.func @transform_2(%arg0: i32) -> (i32, i32, i32) {
    %c0_i32 = arith.constant 0 : i32
    %c0_i32_0 = arith.constant 0 : i32
    %c0_i32_1 = arith.constant 0 : i32
    %c0_i32_2 = arith.constant 0 : i32
    return %c0_i32, %c0_i32_0, %c0_i32_1 : i32, i32, i32
  }
  func.func @transform_3(%arg0: i32) -> (i32, i32) {
    %c0_i32 = arith.constant 0 : i32
    %c0_i32_0 = arith.constant 0 : i32
    %c0_i32_1 = arith.constant 0 : i32
    return %c0_i32, %c0_i32_0 : i32, i32
  }
  func.func @transform_4(%arg0: i32) -> (i32, i32) {
    %c0_i32 = arith.constant 0 : i32
    %c0_i32_0 = arith.constant 0 : i32
    %c0_i32_1 = arith.constant 0 : i32
    return %c0_i32, %c0_i32_0 : i32, i32
  }
  func.func @transform_5(%arg0: i32) -> (i32, i32) {
    %c0_i32 = arith.constant 0 : i32
    %c0_i32_0 = arith.constant 0 : i32
    %c0_i32_1 = arith.constant 0 : i32
    return %c0_i32, %c0_i32_0 : i32, i32
  }
  func.func @transform_6(%arg0: i32) -> (i32, i32, i32, i32) {
    %c0_i32 = arith.constant 0 : i32
    %c0_i32_0 = arith.constant 0 : i32
    %c0_i32_1 = arith.constant 0 : i32
    %c0_i32_2 = arith.constant 0 : i32
    return %arg0, %c0_i32, %c0_i32_0, %c0_i32_1 : i32, i32, i32, i32
  }
}

module attributes {stable_mosaic.version = 11 : i64} {
  func.func @_conv_direct_kernel(%arg0: i32, %arg1: memref<1x10x10x128xbf16, #tpu.memory_space<vmem>>, %arg2: memref<5x128x256xbf16, #tpu.memory_space<vmem>>, %arg3: memref<1x256xf32, #tpu.memory_space<vmem>>, %arg4: memref<1x8x8x256xbf16, #tpu.memory_space<vmem>>) attributes {dimension_semantics = [#tpu.dimension_semantics<parallel>], iteration_bounds = array<i64: 2>, scalar_prefetch = 0 : i64, scratch_operands = 0 : i64, tpu.core_type = #tpu.core_type<tc>, window_params = [{transform_indices = @transform_0, window_bounds = array<i64: 1, 10, 10, 128>}, {pipeline_mode = #tpu.pipeline_mode<synchronous>, transform_indices = @transform_1, window_bounds = array<i64: 5, 128, 256>}, {pipeline_mode = #tpu.pipeline_mode<synchronous>, transform_indices = @transform_2, window_bounds = array<i64: 1, 256>}, {transform_indices = @transform_3, window_bounds = array<i64: 1, 8, 8, 256>}]} {
    %c0 = arith.constant 0 : index
    %c0_0 = arith.constant 0 : index
    %c0_1 = arith.constant 0 : index
    %c0_2 = arith.constant 0 : index
    %0 = vector.load %arg1[%c0, %c0_0, %c0_1, %c0_2] : memref<1x10x10x128xbf16, #tpu.memory_space<vmem>>, vector<1x10x10x128xbf16>
    %1 = vector.shape_cast %0 : vector<1x10x10x128xbf16> to vector<10x10x128xbf16>
    %2 = arith.extf %1 : vector<10x10x128xbf16> to vector<10x10x128xf32>
    %c0_3 = arith.constant 0 : index
    %c0_4 = arith.constant 0 : index
    %3 = vector.load %arg3[%c0_3, %c0_4] : memref<1x256xf32, #tpu.memory_space<vmem>>, vector<1x256xf32>
    %4 = vector.shape_cast %3 : vector<1x256xf32> to vector<1x256xf32>
    %5 = vector.broadcast %4 : vector<1x256xf32> to vector<64x256xf32>
    %6 = vector.extract_strided_slice %2 {offsets = [0, 0, 0], sizes = [8, 8, 128], strides = [1, 1, 1]} : vector<10x10x128xf32> to vector<8x8x128xf32>
    %7 = vector.shape_cast %6 : vector<8x8x128xf32> to vector<64x128xf32>
    %8 = arith.truncf %7 : vector<64x128xf32> to vector<64x128xbf16>
    %c0_5 = arith.constant 0 : index
    %c0_6 = arith.constant 0 : index
    %c0_7 = arith.constant 0 : index
    %9 = vector.load %arg2[%c0_5, %c0_6, %c0_7] : memref<5x128x256xbf16, #tpu.memory_space<vmem>>, vector<1x128x256xbf16>
    %10 = vector.shape_cast %9 : vector<1x128x256xbf16> to vector<128x256xbf16>
    %cst = arith.constant dense<0.000000e+00> : vector<64x256xf32>
    %11 = tpu.matmul %8, %10, %cst {dimension_numbers = #tpu.dot_dimension_numbers<[1], [0], [0], [1], [0, 0, 1, 1], [], []>} : vector<64x128xbf16>, vector<128x256xbf16>, vector<64x256xf32> -> vector<64x256xf32>
    %12 = arith.addf %5, %11 : vector<64x256xf32>
    %13 = vector.extract_strided_slice %2 {offsets = [0, 1, 0], sizes = [8, 8, 128], strides = [1, 1, 1]} : vector<10x10x128xf32> to vector<8x8x128xf32>
    %14 = vector.shape_cast %13 : vector<8x8x128xf32> to vector<64x128xf32>
    %15 = arith.truncf %14 : vector<64x128xf32> to vector<64x128xbf16>
    %c1 = arith.constant 1 : index
    %c0_8 = arith.constant 0 : index
    %c0_9 = arith.constant 0 : index
    %16 = vector.load %arg2[%c1, %c0_8, %c0_9] : memref<5x128x256xbf16, #tpu.memory_space<vmem>>, vector<1x128x256xbf16>
    %17 = vector.shape_cast %16 : vector<1x128x256xbf16> to vector<128x256xbf16>
    %cst_10 = arith.constant dense<0.000000e+00> : vector<64x256xf32>
    %18 = tpu.matmul %15, %17, %cst_10 {dimension_numbers = #tpu.dot_dimension_numbers<[1], [0], [0], [1], [0, 0, 1, 1], [], []>} : vector<64x128xbf16>, vector<128x256xbf16>, vector<64x256xf32> -> vector<64x256xf32>
    %19 = arith.addf %12, %18 : vector<64x256xf32>
    %20 = vector.extract_strided_slice %2 {offsets = [0, 2, 0], sizes = [8, 8, 128], strides = [1, 1, 1]} : vector<10x10x128xf32> to vector<8x8x128xf32>
    %21 = vector.shape_cast %20 : vector<8x8x128xf32> to vector<64x128xf32>
    %22 = arith.truncf %21 : vector<64x128xf32> to vector<64x128xbf16>
    %c2 = arith.constant 2 : index
    %c0_11 = arith.constant 0 : index
    %c0_12 = arith.constant 0 : index
    %23 = vector.load %arg2[%c2, %c0_11, %c0_12] : memref<5x128x256xbf16, #tpu.memory_space<vmem>>, vector<1x128x256xbf16>
    %24 = vector.shape_cast %23 : vector<1x128x256xbf16> to vector<128x256xbf16>
    %cst_13 = arith.constant dense<0.000000e+00> : vector<64x256xf32>
    %25 = tpu.matmul %22, %24, %cst_13 {dimension_numbers = #tpu.dot_dimension_numbers<[1], [0], [0], [1], [0, 0, 1, 1], [], []>} : vector<64x128xbf16>, vector<128x256xbf16>, vector<64x256xf32> -> vector<64x256xf32>
    %26 = arith.addf %19, %25 : vector<64x256xf32>
    %27 = vector.extract_strided_slice %2 {offsets = [1, 0, 0], sizes = [8, 8, 128], strides = [1, 1, 1]} : vector<10x10x128xf32> to vector<8x8x128xf32>
    %28 = vector.shape_cast %27 : vector<8x8x128xf32> to vector<64x128xf32>
    %29 = arith.truncf %28 : vector<64x128xf32> to vector<64x128xbf16>
    %c3 = arith.constant 3 : index
    %c0_14 = arith.constant 0 : index
    %c0_15 = arith.constant 0 : index
    %30 = vector.load %arg2[%c3, %c0_14, %c0_15] : memref<5x128x256xbf16, #tpu.memory_space<vmem>>, vector<1x128x256xbf16>
    %31 = vector.shape_cast %30 : vector<1x128x256xbf16> to vector<128x256xbf16>
    %cst_16 = arith.constant dense<0.000000e+00> : vector<64x256xf32>
    %32 = tpu.matmul %29, %31, %cst_16 {dimension_numbers = #tpu.dot_dimension_numbers<[1], [0], [0], [1], [0, 0, 1, 1], [], []>} : vector<64x128xbf16>, vector<128x256xbf16>, vector<64x256xf32> -> vector<64x256xf32>
    %33 = arith.addf %26, %32 : vector<64x256xf32>
    %34 = vector.extract_strided_slice %2 {offsets = [1, 1, 0], sizes = [8, 8, 128], strides = [1, 1, 1]} : vector<10x10x128xf32> to vector<8x8x128xf32>
    %35 = vector.shape_cast %34 : vector<8x8x128xf32> to vector<64x128xf32>
    %36 = arith.truncf %35 : vector<64x128xf32> to vector<64x128xbf16>
    %c4 = arith.constant 4 : index
    %c0_17 = arith.constant 0 : index
    %c0_18 = arith.constant 0 : index
    %37 = vector.load %arg2[%c4, %c0_17, %c0_18] : memref<5x128x256xbf16, #tpu.memory_space<vmem>>, vector<1x128x256xbf16>
    %38 = vector.shape_cast %37 : vector<1x128x256xbf16> to vector<128x256xbf16>
    %cst_19 = arith.constant dense<0.000000e+00> : vector<64x256xf32>
    %39 = tpu.matmul %36, %38, %cst_19 {dimension_numbers = #tpu.dot_dimension_numbers<[1], [0], [0], [1], [0, 0, 1, 1], [], []>} : vector<64x128xbf16>, vector<128x256xbf16>, vector<64x256xf32> -> vector<64x256xf32>
    %40 = arith.addf %33, %39 : vector<64x256xf32>
    %cst_20 = arith.constant 0.000000e+00 : f32
    %41 = vector.broadcast %cst_20 : f32 to vector<64x256xf32>
    %42 = arith.maximumf %40, %41 : vector<64x256xf32>
    %43 = vector.shape_cast %42 : vector<64x256xf32> to vector<8x8x256xf32>
    %44 = arith.truncf %43 : vector<8x8x256xf32> to vector<8x8x256xbf16>
    %c0_21 = arith.constant 0 : index
    %c0_22 = arith.constant 0 : index
    %c0_23 = arith.constant 0 : index
    %c0_24 = arith.constant 0 : index
    %45 = vector.load %arg4[%c0_21, %c0_22, %c0_23, %c0_24] : memref<1x8x8x256xbf16, #tpu.memory_space<vmem>>, vector<1x8x8x256xbf16>
    %46 = vector.shape_cast %45 : vector<1x8x8x256xbf16> to vector<8x8x256xbf16>
    %47 = vector.shape_cast %44 : vector<8x8x256xbf16> to vector<1x8x8x256xbf16>
    tpu.vector_store %arg4[%c0_21, %c0_22, %c0_23, %c0_24], %47 {strides = array<i32>} : memref<1x8x8x256xbf16, #tpu.memory_space<vmem>>, vector<1x8x8x256xbf16>,
    return
  }
  func.func @transform_0(%arg0: i32) -> (i32, i32, i32, i32) {
    %c0_i32 = arith.constant 0 : i32
    %c0_i32_0 = arith.constant 0 : i32
    %c0_i32_1 = arith.constant 0 : i32
    %c0_i32_2 = arith.constant 0 : i32
    return %arg0, %c0_i32, %c0_i32_0, %c0_i32_1 : i32, i32, i32, i32
  }
  func.func @transform_1(%arg0: i32) -> (i32, i32, i32) {
    %c0_i32 = arith.constant 0 : i32
    %c0_i32_0 = arith.constant 0 : i32
    %c0_i32_1 = arith.constant 0 : i32
    %c0_i32_2 = arith.constant 0 : i32
    return %c0_i32, %c0_i32_0, %c0_i32_1 : i32, i32, i32
  }
  func.func @transform_2(%arg0: i32) -> (i32, i32) {
    %c0_i32 = arith.constant 0 : i32
    %c0_i32_0 = arith.constant 0 : i32
    %c0_i32_1 = arith.constant 0 : i32
    return %c0_i32, %c0_i32_0 : i32, i32
  }
  func.func @transform_3(%arg0: i32) -> (i32, i32, i32, i32) {
    %c0_i32 = arith.constant 0 : i32
    %c0_i32_0 = arith.constant 0 : i32
    %c0_i32_1 = arith.constant 0 : i32
    %c0_i32_2 = arith.constant 0 : i32
    return %arg0, %c0_i32, %c0_i32_0, %c0_i32_1 : i32, i32, i32, i32
  }
}

module attributes {stable_mosaic.version = 11 : i64} {
  func.func @_res_tail_kernel(%arg0: i32, %arg1: memref<1x10x10x256xbf16, #tpu.memory_space<vmem>>, %arg2: memref<1x8x8x128xbf16, #tpu.memory_space<vmem>>, %arg3: memref<5x256x256xbf16, #tpu.memory_space<vmem>>, %arg4: memref<1x256xf32, #tpu.memory_space<vmem>>, %arg5: memref<128x256xbf16, #tpu.memory_space<vmem>>, %arg6: memref<1x256xf32, #tpu.memory_space<vmem>>, %arg7: memref<1x8x8x256xbf16, #tpu.memory_space<vmem>>) attributes {dimension_semantics = [#tpu.dimension_semantics<parallel>], iteration_bounds = array<i64: 2>, scalar_prefetch = 0 : i64, scratch_operands = 0 : i64, tpu.core_type = #tpu.core_type<tc>, window_params = [{transform_indices = @transform_0, window_bounds = array<i64: 1, 10, 10, 256>}, {transform_indices = @transform_1, window_bounds = array<i64: 1, 8, 8, 128>}, {pipeline_mode = #tpu.pipeline_mode<synchronous>, transform_indices = @transform_2, window_bounds = array<i64: 5, 256, 256>}, {pipeline_mode = #tpu.pipeline_mode<synchronous>, transform_indices = @transform_3, window_bounds = array<i64: 1, 256>}, {pipeline_mode = #tpu.pipeline_mode<synchronous>, transform_indices = @transform_4, window_bounds = array<i64: 128, 256>}, {pipeline_mode = #tpu.pipeline_mode<synchronous>, transform_indices = @transform_5, window_bounds = array<i64: 1, 256>}, {transform_indices = @transform_6, window_bounds = array<i64: 1, 8, 8, 256>}]} {
    %c0 = arith.constant 0 : index
    %c0_0 = arith.constant 0 : index
    %c0_1 = arith.constant 0 : index
    %c0_2 = arith.constant 0 : index
    %0 = vector.load %arg1[%c0, %c0_0, %c0_1, %c0_2] : memref<1x10x10x256xbf16, #tpu.memory_space<vmem>>, vector<1x10x10x256xbf16>
    %1 = vector.shape_cast %0 : vector<1x10x10x256xbf16> to vector<10x10x256xbf16>
    %2 = arith.extf %1 : vector<10x10x256xbf16> to vector<10x10x256xf32>
    %c0_3 = arith.constant 0 : index
    %c0_4 = arith.constant 0 : index
    %3 = vector.load %arg4[%c0_3, %c0_4] : memref<1x256xf32, #tpu.memory_space<vmem>>, vector<1x256xf32>
    %c0_5 = arith.constant 0 : index
    %c0_6 = arith.constant 0 : index
    %4 = vector.load %arg6[%c0_5, %c0_6] : memref<1x256xf32, #tpu.memory_space<vmem>>, vector<1x256xf32>
    %5 = arith.addf %3, %4 : vector<1x256xf32>
    %6 = vector.shape_cast %5 : vector<1x256xf32> to vector<1x256xf32>
    %7 = vector.broadcast %6 : vector<1x256xf32> to vector<64x256xf32>
    %8 = vector.extract_strided_slice %2 {offsets = [0, 0, 0], sizes = [8, 8, 256], strides = [1, 1, 1]} : vector<10x10x256xf32> to vector<8x8x256xf32>
    %9 = vector.shape_cast %8 : vector<8x8x256xf32> to vector<64x256xf32>
    %10 = arith.truncf %9 : vector<64x256xf32> to vector<64x256xbf16>
    %c0_7 = arith.constant 0 : index
    %c0_8 = arith.constant 0 : index
    %c0_9 = arith.constant 0 : index
    %11 = vector.load %arg3[%c0_7, %c0_8, %c0_9] : memref<5x256x256xbf16, #tpu.memory_space<vmem>>, vector<1x256x256xbf16>
    %12 = vector.shape_cast %11 : vector<1x256x256xbf16> to vector<256x256xbf16>
    %cst = arith.constant dense<0.000000e+00> : vector<64x256xf32>
    %13 = tpu.matmul %10, %12, %cst {dimension_numbers = #tpu.dot_dimension_numbers<[1], [0], [0], [1], [0, 0, 1, 1], [], []>} : vector<64x256xbf16>, vector<256x256xbf16>, vector<64x256xf32> -> vector<64x256xf32>
    %14 = arith.addf %7, %13 : vector<64x256xf32>
    %15 = vector.extract_strided_slice %2 {offsets = [0, 1, 0], sizes = [8, 8, 256], strides = [1, 1, 1]} : vector<10x10x256xf32> to vector<8x8x256xf32>
    %16 = vector.shape_cast %15 : vector<8x8x256xf32> to vector<64x256xf32>
    %17 = arith.truncf %16 : vector<64x256xf32> to vector<64x256xbf16>
    %c1 = arith.constant 1 : index
    %c0_10 = arith.constant 0 : index
    %c0_11 = arith.constant 0 : index
    %18 = vector.load %arg3[%c1, %c0_10, %c0_11] : memref<5x256x256xbf16, #tpu.memory_space<vmem>>, vector<1x256x256xbf16>
    %19 = vector.shape_cast %18 : vector<1x256x256xbf16> to vector<256x256xbf16>
    %cst_12 = arith.constant dense<0.000000e+00> : vector<64x256xf32>
    %20 = tpu.matmul %17, %19, %cst_12 {dimension_numbers = #tpu.dot_dimension_numbers<[1], [0], [0], [1], [0, 0, 1, 1], [], []>} : vector<64x256xbf16>, vector<256x256xbf16>, vector<64x256xf32> -> vector<64x256xf32>
    %21 = arith.addf %14, %20 : vector<64x256xf32>
    %22 = vector.extract_strided_slice %2 {offsets = [0, 2, 0], sizes = [8, 8, 256], strides = [1, 1, 1]} : vector<10x10x256xf32> to vector<8x8x256xf32>
    %23 = vector.shape_cast %22 : vector<8x8x256xf32> to vector<64x256xf32>
    %24 = arith.truncf %23 : vector<64x256xf32> to vector<64x256xbf16>
    %c2 = arith.constant 2 : index
    %c0_13 = arith.constant 0 : index
    %c0_14 = arith.constant 0 : index
    %25 = vector.load %arg3[%c2, %c0_13, %c0_14] : memref<5x256x256xbf16, #tpu.memory_space<vmem>>, vector<1x256x256xbf16>
    %26 = vector.shape_cast %25 : vector<1x256x256xbf16> to vector<256x256xbf16>
    %cst_15 = arith.constant dense<0.000000e+00> : vector<64x256xf32>
    %27 = tpu.matmul %24, %26, %cst_15 {dimension_numbers = #tpu.dot_dimension_numbers<[1], [0], [0], [1], [0, 0, 1, 1], [], []>} : vector<64x256xbf16>, vector<256x256xbf16>, vector<64x256xf32> -> vector<64x256xf32>
    %28 = arith.addf %21, %27 : vector<64x256xf32>
    %29 = vector.extract_strided_slice %2 {offsets = [1, 0, 0], sizes = [8, 8, 256], strides = [1, 1, 1]} : vector<10x10x256xf32> to vector<8x8x256xf32>
    %30 = vector.shape_cast %29 : vector<8x8x256xf32> to vector<64x256xf32>
    %31 = arith.truncf %30 : vector<64x256xf32> to vector<64x256xbf16>
    %c3 = arith.constant 3 : index
    %c0_16 = arith.constant 0 : index
    %c0_17 = arith.constant 0 : index
    %32 = vector.load %arg3[%c3, %c0_16, %c0_17] : memref<5x256x256xbf16, #tpu.memory_space<vmem>>, vector<1x256x256xbf16>
    %33 = vector.shape_cast %32 : vector<1x256x256xbf16> to vector<256x256xbf16>
    %cst_18 = arith.constant dense<0.000000e+00> : vector<64x256xf32>
    %34 = tpu.matmul %31, %33, %cst_18 {dimension_numbers = #tpu.dot_dimension_numbers<[1], [0], [0], [1], [0, 0, 1, 1], [], []>} : vector<64x256xbf16>, vector<256x256xbf16>, vector<64x256xf32> -> vector<64x256xf32>
    %35 = arith.addf %28, %34 : vector<64x256xf32>
    %36 = vector.extract_strided_slice %2 {offsets = [1, 1, 0], sizes = [8, 8, 256], strides = [1, 1, 1]} : vector<10x10x256xf32> to vector<8x8x256xf32>
    %37 = vector.shape_cast %36 : vector<8x8x256xf32> to vector<64x256xf32>
    %38 = arith.truncf %37 : vector<64x256xf32> to vector<64x256xbf16>
    %c4 = arith.constant 4 : index
    %c0_19 = arith.constant 0 : index
    %c0_20 = arith.constant 0 : index
    %39 = vector.load %arg3[%c4, %c0_19, %c0_20] : memref<5x256x256xbf16, #tpu.memory_space<vmem>>, vector<1x256x256xbf16>
    %40 = vector.shape_cast %39 : vector<1x256x256xbf16> to vector<256x256xbf16>
    %cst_21 = arith.constant dense<0.000000e+00> : vector<64x256xf32>
    %41 = tpu.matmul %38, %40, %cst_21 {dimension_numbers = #tpu.dot_dimension_numbers<[1], [0], [0], [1], [0, 0, 1, 1], [], []>} : vector<64x256xbf16>, vector<256x256xbf16>, vector<64x256xf32> -> vector<64x256xf32>
    %42 = arith.addf %35, %41 : vector<64x256xf32>
    %c0_22 = arith.constant 0 : index
    %c0_23 = arith.constant 0 : index
    %c0_24 = arith.constant 0 : index
    %c0_25 = arith.constant 0 : index
    %43 = vector.load %arg2[%c0_22, %c0_23, %c0_24, %c0_25] : memref<1x8x8x128xbf16, #tpu.memory_space<vmem>>, vector<1x8x8x128xbf16>
    %44 = vector.shape_cast %43 : vector<1x8x8x128xbf16> to vector<8x8x128xbf16>
    %45 = arith.extf %44 : vector<8x8x128xbf16> to vector<8x8x128xf32>
    %46 = vector.shape_cast %45 : vector<8x8x128xf32> to vector<64x128xf32>
    %47 = arith.truncf %46 : vector<64x128xf32> to vector<64x128xbf16>
    %c0_26 = arith.constant 0 : index
    %c0_27 = arith.constant 0 : index
    %48 = vector.load %arg5[%c0_26, %c0_27] : memref<128x256xbf16, #tpu.memory_space<vmem>>, vector<128x256xbf16>
    %cst_28 = arith.constant dense<0.000000e+00> : vector<64x256xf32>
    %49 = tpu.matmul %47, %48, %cst_28 {dimension_numbers = #tpu.dot_dimension_numbers<[1], [0], [0], [1], [0, 0, 1, 1], [], []>} : vector<64x128xbf16>, vector<128x256xbf16>, vector<64x256xf32> -> vector<64x256xf32>
    %50 = arith.addf %42, %49 : vector<64x256xf32>
    %cst_29 = arith.constant 0.000000e+00 : f32
    %51 = vector.broadcast %cst_29 : f32 to vector<64x256xf32>
    %52 = arith.maximumf %50, %51 : vector<64x256xf32>
    %53 = vector.shape_cast %52 : vector<64x256xf32> to vector<8x8x256xf32>
    %54 = arith.truncf %53 : vector<8x8x256xf32> to vector<8x8x256xbf16>
    %c0_30 = arith.constant 0 : index
    %c0_31 = arith.constant 0 : index
    %c0_32 = arith.constant 0 : index
    %c0_33 = arith.constant 0 : index
    %55 = vector.load %arg7[%c0_30, %c0_31, %c0_32, %c0_33] : memref<1x8x8x256xbf16, #tpu.memory_space<vmem>>, vector<1x8x8x256xbf16>
    %56 = vector.shape_cast %55 : vector<1x8x8x256xbf16> to vector<8x8x256xbf16>
    %57 = vector.shape_cast %54 : vector<8x8x256xbf16> to vector<1x8x8x256xbf16>
    tpu.vector_store %arg7[%c0_30, %c0_31, %c0_32, %c0_33], %57 {strides = array<i32>} : memref<1x8x8x256xbf16, #tpu.memory_space<vmem>>, vector<1x8x8x256xbf16>,
    return
  }
  func.func @transform_0(%arg0: i32) -> (i32, i32, i32, i32) {
    %c0_i32 = arith.constant 0 : i32
    %c0_i32_0 = arith.constant 0 : i32
    %c0_i32_1 = arith.constant 0 : i32
    %c0_i32_2 = arith.constant 0 : i32
    return %arg0, %c0_i32, %c0_i32_0, %c0_i32_1 : i32, i32, i32, i32
  }
  func.func @transform_1(%arg0: i32) -> (i32, i32, i32, i32) {
    %c0_i32 = arith.constant 0 : i32
    %c0_i32_0 = arith.constant 0 : i32
    %c0_i32_1 = arith.constant 0 : i32
    %c0_i32_2 = arith.constant 0 : i32
    return %arg0, %c0_i32, %c0_i32_0, %c0_i32_1 : i32, i32, i32, i32
  }
  func.func @transform_2(%arg0: i32) -> (i32, i32, i32) {
    %c0_i32 = arith.constant 0 : i32
    %c0_i32_0 = arith.constant 0 : i32
    %c0_i32_1 = arith.constant 0 : i32
    %c0_i32_2 = arith.constant 0 : i32
    return %c0_i32, %c0_i32_0, %c0_i32_1 : i32, i32, i32
  }
  func.func @transform_3(%arg0: i32) -> (i32, i32) {
    %c0_i32 = arith.constant 0 : i32
    %c0_i32_0 = arith.constant 0 : i32
    %c0_i32_1 = arith.constant 0 : i32
    return %c0_i32, %c0_i32_0 : i32, i32
  }
  func.func @transform_4(%arg0: i32) -> (i32, i32) {
    %c0_i32 = arith.constant 0 : i32
    %c0_i32_0 = arith.constant 0 : i32
    %c0_i32_1 = arith.constant 0 : i32
    return %c0_i32, %c0_i32_0 : i32, i32
  }
  func.func @transform_5(%arg0: i32) -> (i32, i32) {
    %c0_i32 = arith.constant 0 : i32
    %c0_i32_0 = arith.constant 0 : i32
    %c0_i32_1 = arith.constant 0 : i32
    return %c0_i32, %c0_i32_0 : i32, i32
  }
  func.func @transform_6(%arg0: i32) -> (i32, i32, i32, i32) {
    %c0_i32 = arith.constant 0 : i32
    %c0_i32_0 = arith.constant 0 : i32
    %c0_i32_1 = arith.constant 0 : i32
    %c0_i32_2 = arith.constant 0 : i32
    return %arg0, %c0_i32, %c0_i32_0, %c0_i32_1 : i32, i32, i32, i32
  }
}

module attributes {stable_mosaic.version = 11 : i64} {
  func.func @_conv_direct_kernel(%arg0: i32, %arg1: memref<1x8x8x256xbf16, #tpu.memory_space<vmem>>, %arg2: memref<1x256x3xbf16, #tpu.memory_space<vmem>>, %arg3: memref<1x3xf32, #tpu.memory_space<vmem>>, %arg4: memref<1x8x8x3xf32, #tpu.memory_space<vmem>>) attributes {dimension_semantics = [#tpu.dimension_semantics<parallel>], iteration_bounds = array<i64: 2>, scalar_prefetch = 0 : i64, scratch_operands = 0 : i64, tpu.core_type = #tpu.core_type<tc>, window_params = [{transform_indices = @transform_0, window_bounds = array<i64: 1, 8, 8, 256>}, {pipeline_mode = #tpu.pipeline_mode<synchronous>, transform_indices = @transform_1, window_bounds = array<i64: 1, 256, 3>}, {pipeline_mode = #tpu.pipeline_mode<synchronous>, transform_indices = @transform_2, window_bounds = array<i64: 1, 3>}, {transform_indices = @transform_3, window_bounds = array<i64: 1, 8, 8, 3>}]} {
    %c0 = arith.constant 0 : index
    %c0_0 = arith.constant 0 : index
    %c0_1 = arith.constant 0 : index
    %c0_2 = arith.constant 0 : index
    %0 = vector.load %arg1[%c0, %c0_0, %c0_1, %c0_2] : memref<1x8x8x256xbf16, #tpu.memory_space<vmem>>, vector<1x8x8x256xbf16>
    %1 = vector.shape_cast %0 : vector<1x8x8x256xbf16> to vector<8x8x256xbf16>
    %2 = arith.extf %1 : vector<8x8x256xbf16> to vector<8x8x256xf32>
    %c0_3 = arith.constant 0 : index
    %c0_4 = arith.constant 0 : index
    %3 = vector.load %arg3[%c0_3, %c0_4] : memref<1x3xf32, #tpu.memory_space<vmem>>, vector<1x3xf32>
    %4 = vector.shape_cast %3 : vector<1x3xf32> to vector<1x3xf32>
    %5 = vector.broadcast %4 : vector<1x3xf32> to vector<64x3xf32>
    %6 = vector.shape_cast %2 : vector<8x8x256xf32> to vector<64x256xf32>
    %7 = arith.truncf %6 : vector<64x256xf32> to vector<64x256xbf16>
    %c0_5 = arith.constant 0 : index
    %c0_6 = arith.constant 0 : index
    %c0_7 = arith.constant 0 : index
    %8 = vector.load %arg2[%c0_5, %c0_6, %c0_7] : memref<1x256x3xbf16, #tpu.memory_space<vmem>>, vector<1x256x3xbf16>
    %9 = vector.shape_cast %8 : vector<1x256x3xbf16> to vector<256x3xbf16>
    %cst = arith.constant dense<0.000000e+00> : vector<64x3xf32>
    %10 = tpu.matmul %7, %9, %cst {dimension_numbers = #tpu.dot_dimension_numbers<[1], [0], [0], [1], [0, 0, 1, 1], [], []>} : vector<64x256xbf16>, vector<256x3xbf16>, vector<64x3xf32> -> vector<64x3xf32>
    %11 = arith.addf %5, %10 : vector<64x3xf32>
    %12 = vector.shape_cast %11 : vector<64x3xf32> to vector<8x8x3xf32>
    %c0_8 = arith.constant 0 : index
    %c0_9 = arith.constant 0 : index
    %c0_10 = arith.constant 0 : index
    %c0_11 = arith.constant 0 : index
    %13 = vector.load %arg4[%c0_8, %c0_9, %c0_10, %c0_11] : memref<1x8x8x3xf32, #tpu.memory_space<vmem>>, vector<1x8x8x3xf32>
    %14 = vector.shape_cast %13 : vector<1x8x8x3xf32> to vector<8x8x3xf32>
    %15 = vector.shape_cast %12 : vector<8x8x3xf32> to vector<1x8x8x3xf32>
    tpu.vector_store %arg4[%c0_8, %c0_9, %c0_10, %c0_11], %15 {strides = array<i32>} : memref<1x8x8x3xf32, #tpu.memory_space<vmem>>, vector<1x8x8x3xf32>,
    return
  }
  func.func @transform_0(%arg0: i32) -> (i32, i32, i32, i32) {
    %c0_i32 = arith.constant 0 : i32
    %c0_i32_0 = arith.constant 0 : i32
    %c0_i32_1 = arith.constant 0 : i32
    %c0_i32_2 = arith.constant 0 : i32
    return %arg0, %c0_i32, %c0_i32_0, %c0_i32_1 : i32, i32, i32, i32
  }
  func.func @transform_1(%arg0: i32) -> (i32, i32, i32) {
    %c0_i32 = arith.constant 0 : i32
    %c0_i32_0 = arith.constant 0 : i32
    %c0_i32_1 = arith.constant 0 : i32
    %c0_i32_2 = arith.constant 0 : i32
    return %c0_i32, %c0_i32_0, %c0_i32_1 : i32, i32, i32
  }
  func.func @transform_2(%arg0: i32) -> (i32, i32) {
    %c0_i32 = arith.constant 0 : i32
    %c0_i32_0 = arith.constant 0 : i32
    %c0_i32_1 = arith.constant 0 : i32
    return %c0_i32, %c0_i32_0 : i32, i32
  }
  func.func @transform_3(%arg0: i32) -> (i32, i32, i32, i32) {
    %c0_i32 = arith.constant 0 : i32
    %c0_i32_0 = arith.constant 0 : i32
    %c0_i32_1 = arith.constant 0 : i32
    %c0_i32_2 = arith.constant 0 : i32
    return %arg0, %c0_i32, %c0_i32_0, %c0_i32_1 : i32, i32, i32, i32
  }
}

</mosaic_0001>

<llo_original>
// kernel: forward.8
$region0: #{forward.8}
  #allocation0 [shape = 'u32[]', space=smem, size = 0x4, offset = 0x4, fixed_abs, tag = 'smem constant byte address 0x4 - core index']
  #allocation1 [shape = 'u32[72,128]{1,0:T(1,128)}', space=vmem, size = 0x9000, scoped, tag = 'internal scratch']
  %s0 = inlined_call_operand.vmem [shape: bf16[2,10,10,32], index: 0, kind: input, shape index: {}]
  %s1 = inlined_call_operand.vmem [shape: bf16[9,32,64], index: 1, kind: input, shape index: {}]
  %s2 = inlined_call_operand.vmem [shape: f32[1,64], index: 2, kind: input, shape index: {}]
  %s3 = inlined_call_operand.vmem [shape: bf16[2,8,8,64], index: 3, kind: output, shape index: {}]
  %s4 = sld [smem:[#allocation0]]
  $region45: #{forward.8} parent=0
    _
  %s6 = ssub.s32 1, %s4
  %s7 = scalar_select 0, %s6, %s4
  loop: start=0, step=1, limit=4
  $region2: #{forward.8} parent=0 // loop_pre_header
    _
  $region3: #{forward.8} parent=0 // loop_header
    %s9 = sphi 0, %s13
    %p10 = scmp.ge.s32.totalorder %s9, 4
    %s19 = sphi 0, %s21
    %s22 = sphi 0, %s19
    %s23 = sphi 0, %s22
    %s39 = sphi 0, %s23
    %s43 = sphi 0, %s43
    %s45 = sphi 0, %s43
    %s46 = sphi 0, %s45
    %s60 = sphi 0, %s46
    %s64 = sphi 0, %s64
    %s66 = sphi 0, %s64
    %s67 = sphi 0, %s66
    %s81 = sphi 0, %s67
    %s87 = sphi 0, %s89
    %s90 = sphi 0, %s87
    %s91 = sphi 0, %s90
    %s107 = sphi 0, %s91
  $region4: #{forward.8} parent=0 // loop_header_branch
    %12 = sbr.rel (%p10) target = $region8
  $region5: #{forward.8} parent=0 // loop_body
    %s14 = ssub.s32 %s9, 1
    %s15 = ssub.s32 %s9, 2
    %s16 = sadd.s32 %s9, 1
    %s17 = ssub.s32 %s9, %s16
    %p18 = scmp.eq.s32.totalorder %s17, 0
    %s20 = sadd.s32 %s19, 1
    %s21 = scalar_select %p18, %s19, %s20
    %p24 = pneg %p18
    %p25 = scmp.eq.s32.totalorder %s9, 1
    %p26 = por %p24, %p25
    %p27 = scmp.ne.s32.totalorder %s19, %s22
    %p28 = scmp.eq.s32.totalorder %s9, 0
    %p29 = por %p27, %p28
    %p30 = scmp.ne.s32.totalorder %s19, %s22
    %p31 = scmp.eq.s32.totalorder %s14, 1
    %p32 = por %p30, %p31
    %p33 = scmp.ne.s32.totalorder %s22, %s23
    %p34 = scmp.eq.s32.totalorder %s14, 0
    %p35 = por %p33, %p34
    %p36 = scmp.ne.s32.totalorder %s22, %s23
    %p37 = scmp.eq.s32.totalorder %s15, 1
    %p38 = por %p36, %p37
    %p40 = scmp.ne.s32.totalorder %s23, %s39
    %p41 = scmp.eq.s32.totalorder %s15, 0
    %p42 = por %p40, %p41
    %s44 = sadd.s32 %s43, 1
    %p47 = scmp.eq.s32.totalorder %s9, 1
    %p48 = scmp.ne.s32.totalorder %s43, %s45
    %p49 = scmp.eq.s32.totalorder %s9, 0
    %p50 = por %p48, %p49
    %p51 = scmp.ne.s32.totalorder %s43, %s45
    %p52 = scmp.eq.s32.totalorder %s14, 1
    %p53 = por %p51, %p52
    %p54 = scmp.ne.s32.totalorder %s45, %s46
    %p55 = scmp.eq.s32.totalorder %s14, 0
    %p56 = por %p54, %p55
    %p57 = scmp.ne.s32.totalorder %s45, %s46
    %p58 = scmp.eq.s32.totalorder %s15, 1
    %p59 = por %p57, %p58
    %p61 = scmp.ne.s32.totalorder %s46, %s60
    %p62 = scmp.eq.s32.totalorder %s15, 0
    %p63 = por %p61, %p62
    %s65 = sadd.s32 %s64, 1
    %p68 = scmp.eq.s32.totalorder %s9, 1
    %p69 = scmp.ne.s32.totalorder %s64, %s66
    %p70 = scmp.eq.s32.totalorder %s9, 0
    %p71 = por %p69, %p70
    %p72 = scmp.ne.s32.totalorder %s64, %s66
    %p73 = scmp.eq.s32.totalorder %s14, 1
    %p74 = por %p72, %p73
    %p75 = scmp.ne.s32.totalorder %s66, %s67
    %p76 = scmp.eq.s32.totalorder %s14, 0
    %p77 = por %p75, %p76
    %p78 = scmp.ne.s32.totalorder %s66, %s67
    %p79 = scmp.eq.s32.totalorder %s15, 1
    %p80 = por %p78, %p79
    %p82 = scmp.ne.s32.totalorder %s67, %s81
    %p83 = scmp.eq.s32.totalorder %s15, 0
    %p84 = por %p82, %p83
    %s85 = ssub.s32 %s9, %s16
    %p86 = scmp.eq.s32.totalorder %s85, 0
    %s88 = sadd.s32 %s87, 1
    %s89 = scalar_select %p86, %s87, %s88
    %p92 = pneg %p86
    %p93 = scmp.eq.s32.totalorder %s9, 1
    %p94 = por %p92, %p93
    %p95 = scmp.ne.s32.totalorder %s87, %s90
    %p96 = scmp.eq.s32.totalorder %s9, 0
    %p97 = por %p95, %p96
    %p98 = scmp.ne.s32.totalorder %s87, %s90
    %p99 = scmp.eq.s32.totalorder %s14, 1
    %p100 = por %p98, %p99
    %p101 = scmp.ne.s32.totalorder %s90, %s91
    %p102 = scmp.eq.s32.totalorder %s14, 0
    %p103 = por %p101, %p102
    %p104 = scmp.ne.s32.totalorder %s90, %s91
    %p105 = scmp.eq.s32.totalorder %s15, 1
    %p106 = por %p104, %p105
    %p108 = scmp.ne.s32.totalorder %s91, %s107
    %p109 = scmp.eq.s32.totalorder %s15, 0
    %p110 = por %p108, %p109
    %p111 = scmp.le.s32.totalorder 1, %s9
    %p112 = scmp.lt.s32.totalorder %s9, 3
    %p113 = pnand %p111, %p112
    %p114 = pneg %p113
    // Predicated region
    $region9: #{forward.8} parent=5 // pred_check
      _
    $region10: #{forward.8} parent=5 // pred_check_branch
      %116 = sbr.rel (%p113) target = $region12
    $region11: #{forward.8} parent=5 // pred_region
      %s117 = ssub.s32 %s9, 1
      // Predicated region
      $region13: #{forward.8} parent=11 // pred_check
        %p118 = pneg %p56
      $region14: #{forward.8} parent=11 // pred_check_branch
        %120 = sbr.rel (%p118) target = $region16
      $region15: #{forward.8} parent=11 // pred_region
        _
      $region16: #{forward.8} parent=11 // pred_fallthru
        _
      // Predicated region
      $region17: #{forward.8} parent=11 // pred_check
        %p121 = pneg %p77
      $region18: #{forward.8} parent=11 // pred_check_branch
        %123 = sbr.rel (%p121) target = $region20
      $region19: #{forward.8} parent=11 // pred_region
        _
      $region20: #{forward.8} parent=11 // pred_fallthru
        _
    $region12: #{forward.8} parent=5 // pred_fallthru
      _
    %p124 = scmp.lt.s32.totalorder %s9, 2
    // Predicated region
    $region21: #{forward.8} parent=5 // pred_check
      %p125 = pneg %p124
    $region22: #{forward.8} parent=5 // pred_check_branch
      %127 = sbr.rel (%p125) target = $region24
    $region23: #{forward.8} parent=5 // pred_region
      // Predicated region
      $region25: #{forward.8} parent=23 // pred_check
        %p128 = pneg %p29
      $region26: #{forward.8} parent=23 // pred_check_branch
        %130 = sbr.rel (%p128) target = $region28
      $region27: #{forward.8} parent=23 // pred_region
        %p131 = scmp.lt.s32.totalorder %s9, 1
        %s132 = scalar_select %p131, %s9, 1
        %s133 = smul.addr %s132, 20
        %s134 = smul.addr %s133, 4
        %s135 = scalar_lea.vmem %s0, %s134
      $region28: #{forward.8} parent=23 // pred_fallthru
        _
    $region24: #{forward.8} parent=5 // pred_fallthru
      _
    %p136 = scmp.le.s32.totalorder 1, %s9
    %p137 = scmp.lt.s32.totalorder %s9, 3
    %p138 = pnand %p136, %p137
    %p139 = pneg %p138
    // Predicated region
    $region29: #{forward.8} parent=5 // pred_check
      _
    $region30: #{forward.8} parent=5 // pred_check_branch
      %141 = sbr.rel (%p138) target = $region32
    $region31: #{forward.8} parent=5 // pred_region
      %s142 = ssub.s32 %s9, 1
      %p143 = scmp.lt.s32.totalorder %s14, 1
      %s144 = scalar_select %p143, %s14, 1
      %s145 = smul.addr %s144, 20
      %s146 = smul.addr %s145, 4
      %s147 = scalar_lea.vmem %s0, %s146
      %p148 = pneg %p35
      %p149 = pneg %p32
      %p150 = pneg %p56
      %p151 = pneg %p53
      %p152 = pneg %p77
      %p153 = pneg %p74
      %p154 = pneg %p103
      %p155 = pneg %p100
      %p156 = scmp.lt.s32.totalorder %s14, 1
      %s157 = scalar_select %p156, %s14, 1
      %s158 = smul.addr %s157, 8
      %s159 = smul.addr %s158, 4
      %s160 = scalar_lea.vmem %s3, %s159
      %p161 = scmp.lt.s32.totalorder %s14, 1
      %s162 = scalar_select %p161, %s14, 1
      %s163 = smul.addr %s162, 20
      %s164 = smul.addr %s163, 4
      %s165 = scalar_lea.vmem %s0, %s164
      %p166 = scmp.lt.s32.totalorder %s14, 1
      %s167 = scalar_select %p166, %s14, 1
      %s168 = smul.addr %s167, 8
      %s169 = smul.addr %s168, 4
      %s170 = scalar_lea.vmem %s3, %s169
      %v172 = vld [vmem:[%s165] sm:$0xf]
      %v173 = vld [vmem:[%s165 + $0x4] sm:$0x1]
      %v174 = vld [vmem:[%s165 + $0x8] sm:$0xf]
      %v175 = vld [vmem:[%s165 + $0xc] sm:$0x1]
      %v176 = vld [vmem:[%s165 + $0x10] sm:$0xf]
      %v177 = vld [vmem:[%s165 + $0x14] sm:$0x1]
      %v178 = vld [vmem:[%s165 + $0x18] sm:$0xf]
      %v179 = vld [vmem:[%s165 + $0x1c] sm:$0x1]
      %v180 = vld [vmem:[%s165 + $0x20] sm:$0xf]
      %v181 = vld [vmem:[%s165 + $0x24] sm:$0x1]
      %v182 = vld [vmem:[%s165 + $0x28] sm:$0xf]
      %v183 = vld [vmem:[%s165 + $0x2c] sm:$0x1]
      %v184 = vld [vmem:[%s165 + $0x30] sm:$0xf]
      %v185 = vld [vmem:[%s165 + $0x34] sm:$0x1]
      %v186 = vld [vmem:[%s165 + $0x38] sm:$0xf]
      %v187 = vld [vmem:[%s165 + $0x3c] sm:$0x1]
      %v188 = vld [vmem:[%s165 + $0x40] sm:$0xf]
      %v189 = vld [vmem:[%s165 + $0x44] sm:$0x1]
      %v190 = vld [vmem:[%s165 + $0x48] sm:$0xf]
      %v191 = vld [vmem:[%s165 + $0x4c] sm:$0x1]
      %v192 = vunpack.c.l.bf16 %v172
      %v193 = vunpack.c.l.bf16 %v173
      %v194 = vunpack.c.l.bf16 %v174
      %v195 = vunpack.c.l.bf16 %v175
      %v196 = vunpack.c.l.bf16 %v176
      %v197 = vunpack.c.l.bf16 %v177
      %v198 = vunpack.c.l.bf16 %v178
      %v199 = vunpack.c.l.bf16 %v179
      %v200 = vunpack.c.l.bf16 %v180
      %v201 = vunpack.c.l.bf16 %v181
      %v202 = vunpack.c.l.bf16 %v182
      %v203 = vunpack.c.l.bf16 %v183
      %v204 = vunpack.c.l.bf16 %v184
      %v205 = vunpack.c.l.bf16 %v185
      %v206 = vunpack.c.l.bf16 %v186
      %v207 = vunpack.c.l.bf16 %v187
      %v208 = vunpack.c.l.bf16 %v188
      %v209 = vunpack.c.l.bf16 %v189
      %v210 = vunpack.c.l.bf16 %v190
      %v211 = vunpack.c.l.bf16 %v191
      %v212 = vld [vmem:[%s2] sm:$0x1]
      %v214 = vperm.slane %v212, 0
      %v216 = vpack.c.bf16 %v194, %v192
      %v217 = vpack.c.bf16 %v198, %v196
      %v218 = vpack.c.bf16 %v202, %v200
      %v219 = vpack.c.bf16 %v206, %v204
      %v220 = vld [vmem:[%s1] sm:$0xf]
      %v221 = vld [vmem:[%s1 + $0x4] sm:$0xf]
      %v222 = vld [vmem:[%s1 + $0x8] sm:$0xf]
      %v223 = vld [vmem:[%s1 + $0xc] sm:$0xf]
      %v228 = vunpack.c.l.b16 %v220
      %v229 = vunpack.c.l.b16 %v221
      %v230 = vunpack.c.l.b16 %v222
      %v231 = vunpack.c.l.b16 %v223
      %v232 = vpack.c.b16 %v229, %v228
      %v233 = vpack.c.b16 %v231, %v230
      %vm236 = vcmask 261120
      %v238 = vsel %vm236, %v216, 0
      %v241 = vsel %vm236, %v217, 0
      %v244 = vsel %vm236, %v218, 0
      %v247 = vsel %vm236, %v219, 0
      %249 = vmatpush.bf16.msra.mxu0 0
      %250 = vmatpush.bf16.msra.mxu0 0
      %251 = vmatpush.bf16.msra.mxu0 0
      %252 = vmatpush.bf16.msra.mxu0 0
      %253 = vmatpush.bf16.msra.mxu0 0
      %254 = vmatpush.bf16.msra.mxu0 0
      %255 = vmatpush.bf16.msra.mxu0 %v233
      %256 = vmatpush.bf16.msra.mxu0 %v232
      %257 = vmatmul.bf16.gmra.mxu0 %v238
      %v258 = vpop.f32.mrf.mxu0
      %v259 = vadd.f32 0.0, %v258
      %v260 = vpop.f32.mrf.mxu0
      %v261 = vadd.f32 0.0, %v260
      %262 = vmatmul.bf16.gmra.mxu0 %v241
      %v263 = vpop.f32.mrf.mxu0
      %v264 = vadd.f32 0.0, %v263
      %v265 = vpop.f32.mrf.mxu0
      %v266 = vadd.f32 0.0, %v265
      %267 = vmatmul.bf16.gmra.mxu0 %v244
      %v268 = vpop.f32.mrf.mxu0
      %v269 = vadd.f32 0.0, %v268
      %v270 = vpop.f32.mrf.mxu0
      %v271 = vadd.f32 0.0, %v270
      %272 = vmatmul.bf16.gmra.mxu0 %v247
      %v273 = vpop.f32.mrf.mxu0
      %v274 = vadd.f32 0.0, %v273
      %v275 = vpop.f32.mrf.mxu0
      %v276 = vadd.f32 0.0, %v275
      %277 = vdwg.mxu0
      %v278 = vadd.f32 %v214, %v259
      %v279 = vadd.f32 %v214, %v261
      %v280 = vadd.f32 %v214, %v264
      %v281 = vadd.f32 %v214, %v266
      %v282 = vadd.f32 %v214, %v269
      %v283 = vadd.f32 %v214, %v271
      %v284 = vadd.f32 %v214, %v274
      %v285 = vadd.f32 %v214, %v276
      %vm302 = vcmask 1046528
      %v303 = vrot.slane %v192, 1
      %v304 = vrot.slane %v193, 1
      %v305 = vsel %vm302, %v303, %v304
      %v306 = vrot.slane %v194, 1
      %v307 = vrot.slane %v195, 1
      %v308 = vsel %vm302, %v306, %v307
      %v309 = vrot.slane %v196, 1
      %v310 = vrot.slane %v197, 1
      %v311 = vsel %vm302, %v309, %v310
      %v312 = vrot.slane %v198, 1
      %v313 = vrot.slane %v199, 1
      %v314 = vsel %vm302, %v312, %v313
      %v315 = vrot.slane %v200, 1
      %v316 = vrot.slane %v201, 1
      %v317 = vsel %vm302, %v315, %v316
      %v318 = vrot.slane %v202, 1
      %v319 = vrot.slane %v203, 1
      %v320 = vsel %vm302, %v318, %v319
      %v321 = vrot.slane %v204, 1
      %v322 = vrot.slane %v205, 1
      %v323 = vsel %vm302, %v321, %v322
      %v324 = vrot.slane %v206, 1
      %v325 = vrot.slane %v207, 1
      %v326 = vsel %vm302, %v324, %v325
      %v335 = vpack.c.bf16 %v308, %v305
      %v336 = vpack.c.bf16 %v314, %v311
      %v337 = vpack.c.bf16 %v320, %v317
      %v338 = vpack.c.bf16 %v326, %v323
      %s339 = scalar_lea.vmem %s1, 16
      %v340 = vld [vmem:[%s339] sm:$0xf]
      %v341 = vld [vmem:[%s339 + $0x4] sm:$0xf]
      %v342 = vld [vmem:[%s339 + $0x8] sm:$0xf]
      %v343 = vld [vmem:[%s339 + $0xc] sm:$0xf]
      %v348 = vunpack.c.l.b16 %v340
      %v349 = vunpack.c.l.b16 %v341
      %v350 = vunpack.c.l.b16 %v342
      %v351 = vunpack.c.l.b16 %v343
      %v352 = vpack.c.b16 %v349, %v348
      %v353 = vpack.c.b16 %v351, %v350
      %v357 = vsel %vm236, %v335, 0
      %v360 = vsel %vm236, %v336, 0
      %v363 = vsel %vm236, %v337, 0
      %v366 = vsel %vm236, %v338, 0
      %368 = vmatpush.bf16.msra.mxu0 0
      %369 = vmatpush.bf16.msra.mxu0 0
      %370 = vmatpush.bf16.msra.mxu0 0
      %371 = vmatpush.bf16.msra.mxu0 0
      %372 = vmatpush.bf16.msra.mxu0 0
      %373 = vmatpush.bf16.msra.mxu0 0
      %374 = vmatpush.bf16.msra.mxu0 %v353
      %375 = vmatpush.bf16.msra.mxu0 %v352
      %376 = vmatmul.bf16.gmra.mxu0 %v357
      %v377 = vpop.f32.mrf.mxu0
      %v378 = vadd.f32 0.0, %v377
      %v379 = vpop.f32.mrf.mxu0
      %v380 = vadd.f32 0.0, %v379
      %381 = vmatmul.bf16.gmra.mxu0 %v360
      %v382 = vpop.f32.mrf.mxu0
      %v383 = vadd.f32 0.0, %v382
      %v384 = vpop.f32.mrf.mxu0
      %v385 = vadd.f32 0.0, %v384
      %386 = vmatmul.bf16.gmra.mxu0 %v363
      %v387 = vpop.f32.mrf.mxu0
      %v388 = vadd.f32 0.0, %v387
      %v389 = vpop.f32.mrf.mxu0
      %v390 = vadd.f32 0.0, %v389
      %391 = vmatmul.bf16.gmra.mxu0 %v366
      %v392 = vpop.f32.mrf.mxu0
      %v393 = vadd.f32 0.0, %v392
      %v394 = vpop.f32.mrf.mxu0
      %v395 = vadd.f32 0.0, %v394
      %396 = vdwg.mxu0
      %v397 = vadd.f32 %v278, %v378
      %v398 = vadd.f32 %v279, %v380
      %v399 = vadd.f32 %v280, %v383
      %v400 = vadd.f32 %v281, %v385
      %v401 = vadd.f32 %v282, %v388
      %v402 = vadd.f32 %v283, %v390
      %v403 = vadd.f32 %v284, %v393
      %v404 = vadd.f32 %v285, %v395
      %vm405 = vcmask 1045504
      %v406 = vrot.slane %v192, 2
      %v407 = vrot.slane %v193, 2
      %v408 = vsel %vm405, %v406, %v407
      %v409 = vrot.slane %v194, 2
      %v410 = vrot.slane %v195, 2
      %v411 = vsel %vm405, %v409, %v410
      %v412 = vrot.slane %v196, 2
      %v413 = vrot.slane %v197, 2
      %v414 = vsel %vm405, %v412, %v413
      %v415 = vrot.slane %v198, 2
      %v416 = vrot.slane %v199, 2
      %v417 = vsel %vm405, %v415, %v416
      %v418 = vrot.slane %v200, 2
      %v419 = vrot.slane %v201, 2
      %v420 = vsel %vm405, %v418, %v419
      %v421 = vrot.slane %v202, 2
      %v422 = vrot.slane %v203, 2
      %v423 = vsel %vm405, %v421, %v422
      %v424 = vrot.slane %v204, 2
      %v425 = vrot.slane %v205, 2
      %v426 = vsel %vm405, %v424, %v425
      %v427 = vrot.slane %v206, 2
      %v428 = vrot.slane %v207, 2
      %v429 = vsel %vm405, %v427, %v428
      %v438 = vpack.c.bf16 %v411, %v408
      %v439 = vpack.c.bf16 %v417, %v414
      %v440 = vpack.c.bf16 %v423, %v420
      %v441 = vpack.c.bf16 %v429, %v426
      %s442 = scalar_lea.vmem %s1, 32
      %v443 = vld [vmem:[%s442] sm:$0xf]
      %v444 = vld [vmem:[%s442 + $0x4] sm:$0xf]
      %v445 = vld [vmem:[%s442 + $0x8] sm:$0xf]
      %v446 = vld [vmem:[%s442 + $0xc] sm:$0xf]
      %v451 = vunpack.c.l.b16 %v443
      %v452 = vunpack.c.l.b16 %v444
      %v453 = vunpack.c.l.b16 %v445
      %v454 = vunpack.c.l.b16 %v446
      %v455 = vpack.c.b16 %v452, %v451
      %v456 = vpack.c.b16 %v454, %v453
      %v460 = vsel %vm236, %v438, 0
      %v463 = vsel %vm236, %v439, 0
      %v466 = vsel %vm236, %v440, 0
      %v469 = vsel %vm236, %v441, 0
      %471 = vmatpush.bf16.msra.mxu0 0
      %472 = vmatpush.bf16.msra.mxu0 0
      %473 = vmatpush.bf16.msra.mxu0 0
      %474 = vmatpush.bf16.msra.mxu0 0
      %475 = vmatpush.bf16.msra.mxu0 0
      %476 = vmatpush.bf16.msra.mxu0 0
      %477 = vmatpush.bf16.msra.mxu0 %v456
      %478 = vmatpush.bf16.msra.mxu0 %v455
      %479 = vmatmul.bf16.gmra.mxu0 %v460
      %v480 = vpop.f32.mrf.mxu0
      %v481 = vadd.f32 0.0, %v480
      %v482 = vpop.f32.mrf.mxu0
      %v483 = vadd.f32 0.0, %v482
      %484 = vmatmul.bf16.gmra.mxu0 %v463
      %v485 = vpop.f32.mrf.mxu0
      %v486 = vadd.f32 0.0, %v485
      %v487 = vpop.f32.mrf.mxu0
      %v488 = vadd.f32 0.0, %v487
      %489 = vmatmul.bf16.gmra.mxu0 %v466
      %v490 = vpop.f32.mrf.mxu0
      %v491 = vadd.f32 0.0, %v490
      %v492 = vpop.f32.mrf.mxu0
      %v493 = vadd.f32 0.0, %v492
      %494 = vmatmul.bf16.gmra.mxu0 %v469
      %v495 = vpop.f32.mrf.mxu0
      %v496 = vadd.f32 0.0, %v495
      %v497 = vpop.f32.mrf.mxu0
      %v498 = vadd.f32 0.0, %v497
      %499 = vdwg.mxu0
      %v500 = vadd.f32 %v397, %v481
      %v501 = vadd.f32 %v398, %v483
      %v502 = vadd.f32 %v399, %v486
      %v503 = vadd.f32 %v400, %v488
      %v504 = vadd.f32 %v401, %v491
      %v505 = vadd.f32 %v402, %v493
      %v506 = vadd.f32 %v403, %v496
      %v507 = vadd.f32 %v404, %v498
      %v508 = vpack.c.bf16 %v196, %v194
      %v509 = vpack.c.bf16 %v200, %v198
      %v510 = vpack.c.bf16 %v204, %v202
      %v511 = vpack.c.bf16 %v208, %v206
      %s512 = scalar_lea.vmem %s1, 48
      %v513 = vld [vmem:[%s512] sm:$0xf]
      %v514 = vld [vmem:[%s512 + $0x4] sm:$0xf]
      %v515 = vld [vmem:[%s512 + $0x8] sm:$0xf]
      %v516 = vld [vmem:[%s512 + $0xc] sm:$0xf]
      %v521 = vunpack.c.l.b16 %v513
      %v522 = vunpack.c.l.b16 %v514
      %v523 = vunpack.c.l.b16 %v515
      %v524 = vunpack.c.l.b16 %v516
      %v525 = vpack.c.b16 %v522, %v521
      %v526 = vpack.c.b16 %v524, %v523
      %v530 = vsel %vm236, %v508, 0
      %v533 = vsel %vm236, %v509, 0
      %v536 = vsel %vm236, %v510, 0
      %v539 = vsel %vm236, %v511, 0
      %541 = vmatpush.bf16.msra.mxu0 0
      %542 = vmatpush.bf16.msra.mxu0 0
      %543 = vmatpush.bf16.msra.mxu0 0
      %544 = vmatpush.bf16.msra.mxu0 0
      %545 = vmatpush.bf16.msra.mxu0 0
      %546 = vmatpush.bf16.msra.mxu0 0
      %547 = vmatpush.bf16.msra.mxu0 %v526
      %548 = vmatpush.bf16.msra.mxu0 %v525
      %549 = vmatmul.bf16.gmra.mxu0 %v530
      %v550 = vpop.f32.mrf.mxu0
      %v551 = vadd.f32 0.0, %v550
      %v552 = vpop.f32.mrf.mxu0
      %v553 = vadd.f32 0.0, %v552
      %554 = vmatmul.bf16.gmra.mxu0 %v533
      %v555 = vpop.f32.mrf.mxu0
      %v556 = vadd.f32 0.0, %v555
      %v557 = vpop.f32.mrf.mxu0
      %v558 = vadd.f32 0.0, %v557
      %559 = vmatmul.bf16.gmra.mxu0 %v536
      %v560 = vpop.f32.mrf.mxu0
      %v561 = vadd.f32 0.0, %v560
      %v562 = vpop.f32.mrf.mxu0
      %v563 = vadd.f32 0.0, %v562
      %564 = vmatmul.bf16.gmra.mxu0 %v539
      %v565 = vpop.f32.mrf.mxu0
      %v566 = vadd.f32 0.0, %v565
      %v567 = vpop.f32.mrf.mxu0
      %v568 = vadd.f32 0.0, %v567
      %569 = vdwg.mxu0
      %v570 = vadd.f32 %v500, %v551
      %v571 = vadd.f32 %v501, %v553
      %v572 = vadd.f32 %v502, %v556
      %v573 = vadd.f32 %v503, %v558
      %v574 = vadd.f32 %v504, %v561
      %v575 = vadd.f32 %v505, %v563
      %v576 = vadd.f32 %v506, %v566
      %v577 = vadd.f32 %v507, %v568
      %v580 = vrot.slane %v208, 1
      %v581 = vrot.slane %v209, 1
      %v582 = vsel %vm302, %v580, %v581
      %v584 = vpack.c.bf16 %v311, %v308
      %v585 = vpack.c.bf16 %v317, %v314
      %v586 = vpack.c.bf16 %v323, %v320
      %v587 = vpack.c.bf16 %v582, %v326
      %s588 = scalar_lea.vmem %s1, 64
      %v589 = vld [vmem:[%s588] sm:$0xf]
      %v590 = vld [vmem:[%s588 + $0x4] sm:$0xf]
      %v591 = vld [vmem:[%s588 + $0x8] sm:$0xf]
      %v592 = vld [vmem:[%s588 + $0xc] sm:$0xf]
      %v597 = vunpack.c.l.b16 %v589
      %v598 = vunpack.c.l.b16 %v590
      %v599 = vunpack.c.l.b16 %v591
      %v600 = vunpack.c.l.b16 %v592
      %v601 = vpack.c.b16 %v598, %v597
      %v602 = vpack.c.b16 %v600, %v599
      %v606 = vsel %vm236, %v584, 0
      %v609 = vsel %vm236, %v585, 0
      %v612 = vsel %vm236, %v586, 0
      %v615 = vsel %vm236, %v587, 0
      %617 = vmatpush.bf16.msra.mxu0 0
      %618 = vmatpush.bf16.msra.mxu0 0
      %619 = vmatpush.bf16.msra.mxu0 0
      %620 = vmatpush.bf16.msra.mxu0 0
      %621 = vmatpush.bf16.msra.mxu0 0
      %622 = vmatpush.bf16.msra.mxu0 0
      %623 = vmatpush.bf16.msra.mxu0 %v602
      %624 = vmatpush.bf16.msra.mxu0 %v601
      %625 = vmatmul.bf16.gmra.mxu0 %v606
      %v626 = vpop.f32.mrf.mxu0
      %v627 = vadd.f32 0.0, %v626
      %v628 = vpop.f32.mrf.mxu0
      %v629 = vadd.f32 0.0, %v628
      %630 = vmatmul.bf16.gmra.mxu0 %v609
      %v631 = vpop.f32.mrf.mxu0
      %v632 = vadd.f32 0.0, %v631
      %v633 = vpop.f32.mrf.mxu0
      %v634 = vadd.f32 0.0, %v633
      %635 = vmatmul.bf16.gmra.mxu0 %v612
      %v636 = vpop.f32.mrf.mxu0
      %v637 = vadd.f32 0.0, %v636
      %v638 = vpop.f32.mrf.mxu0
      %v639 = vadd.f32 0.0, %v638
      %640 = vmatmul.bf16.gmra.mxu0 %v615
      %v641 = vpop.f32.mrf.mxu0
      %v642 = vadd.f32 0.0, %v641
      %v643 = vpop.f32.mrf.mxu0
      %v644 = vadd.f32 0.0, %v643
      %645 = vdwg.mxu0
      %v646 = vadd.f32 %v570, %v627
      %v647 = vadd.f32 %v571, %v629
      %v648 = vadd.f32 %v572, %v632
      %v649 = vadd.f32 %v573, %v634
      %v650 = vadd.f32 %v574, %v637
      %v651 = vadd.f32 %v575, %v639
      %v652 = vadd.f32 %v576, %v642
      %v653 = vadd.f32 %v577, %v644
      %v654 = vrot.slane %v208, 2
      %v655 = vrot.slane %v209, 2
      %v656 = vsel %vm405, %v654, %v655
      %v658 = vpack.c.bf16 %v414, %v411
      %v659 = vpack.c.bf16 %v420, %v417
      %v660 = vpack.c.bf16 %v426, %v423
      %v661 = vpack.c.bf16 %v656, %v429
      %s662 = scalar_lea.vmem %s1, 80
      %v663 = vld [vmem:[%s662] sm:$0xf]
      %v664 = vld [vmem:[%s662 + $0x4] sm:$0xf]
      %v665 = vld [vmem:[%s662 + $0x8] sm:$0xf]
      %v666 = vld [vmem:[%s662 + $0xc] sm:$0xf]
      %v671 = vunpack.c.l.b16 %v663
      %v672 = vunpack.c.l.b16 %v664
      %v673 = vunpack.c.l.b16 %v665
      %v674 = vunpack.c.l.b16 %v666
      %v675 = vpack.c.b16 %v672, %v671
      %v676 = vpack.c.b16 %v674, %v673
      %v680 = vsel %vm236, %v658, 0
      %v683 = vsel %vm236, %v659, 0
      %v686 = vsel %vm236, %v660, 0
      %v689 = vsel %vm236, %v661, 0
      %691 = vmatpush.bf16.msra.mxu0 0
      %692 = vmatpush.bf16.msra.mxu0 0
      %693 = vmatpush.bf16.msra.mxu0 0
      %694 = vmatpush.bf16.msra.mxu0 0
      %695 = vmatpush.bf16.msra.mxu0 0
      %696 = vmatpush.bf16.msra.mxu0 0
      %697 = vmatpush.bf16.msra.mxu0 %v676
      %698 = vmatpush.bf16.msra.mxu0 %v675
      %699 = vmatmul.bf16.gmra.mxu0 %v680
      %v700 = vpop.f32.mrf.mxu0
      %v701 = vadd.f32 0.0, %v700
      %v702 = vpop.f32.mrf.mxu0
      %v703 = vadd.f32 0.0, %v702
      %704 = vmatmul.bf16.gmra.mxu0 %v683
      %v705 = vpop.f32.mrf.mxu0
      %v706 = vadd.f32 0.0, %v705
      %v707 = vpop.f32.mrf.mxu0
      %v708 = vadd.f32 0.0, %v707
      %709 = vmatmul.bf16.gmra.mxu0 %v686
      %v710 = vpop.f32.mrf.mxu0
      %v711 = vadd.f32 0.0, %v710
      %v712 = vpop.f32.mrf.mxu0
      %v713 = vadd.f32 0.0, %v712
      %714 = vmatmul.bf16.gmra.mxu0 %v689
      %v715 = vpop.f32.mrf.mxu0
      %v716 = vadd.f32 0.0, %v715
      %v717 = vpop.f32.mrf.mxu0
      %v718 = vadd.f32 0.0, %v717
      %719 = vdwg.mxu0
      %v720 = vadd.f32 %v646, %v701
      %v721 = vadd.f32 %v647, %v703
      %v722 = vadd.f32 %v648, %v706
      %v723 = vadd.f32 %v649, %v708
      %v724 = vadd.f32 %v650, %v711
      %v725 = vadd.f32 %v651, %v713
      %v726 = vadd.f32 %v652, %v716
      %v727 = vadd.f32 %v653, %v718
      %v728 = vpack.c.bf16 %v210, %v208
      %s729 = scalar_lea.vmem %s1, 96
      %v730 = vld [vmem:[%s729] sm:$0xf]
      %v731 = vld [vmem:[%s729 + $0x4] sm:$0xf]
      %v732 = vld [vmem:[%s729 + $0x8] sm:$0xf]
      %v733 = vld [vmem:[%s729 + $0xc] sm:$0xf]
      %v738 = vunpack.c.l.b16 %v730
      %v739 = vunpack.c.l.b16 %v731
      %v740 = vunpack.c.l.b16 %v732
      %v741 = vunpack.c.l.b16 %v733
      %v742 = vpack.c.b16 %v739, %v738
      %v743 = vpack.c.b16 %v741, %v740
      %v747 = vsel %vm236, %v728, 0
      %749 = vmatpush.bf16.msra.mxu0 0
      %750 = vmatpush.bf16.msra.mxu0 0
      %751 = vmatpush.bf16.msra.mxu0 0
      %752 = vmatpush.bf16.msra.mxu0 0
      %753 = vmatpush.bf16.msra.mxu0 0
      %754 = vmatpush.bf16.msra.mxu0 0
      %755 = vmatpush.bf16.msra.mxu0 %v743
      %756 = vmatpush.bf16.msra.mxu0 %v742
      %757 = vmatmul.bf16.gmra.mxu0 %v241
      %v758 = vpop.f32.mrf.mxu0
      %v759 = vadd.f32 0.0, %v758
      %v760 = vpop.f32.mrf.mxu0
      %v761 = vadd.f32 0.0, %v760
      %762 = vmatmul.bf16.gmra.mxu0 %v244
      %v763 = vpop.f32.mrf.mxu0
      %v764 = vadd.f32 0.0, %v763
      %v765 = vpop.f32.mrf.mxu0
      %v766 = vadd.f32 0.0, %v765
      %767 = vmatmul.bf16.gmra.mxu0 %v247
      %v768 = vpop.f32.mrf.mxu0
      %v769 = vadd.f32 0.0, %v768
      %v770 = vpop.f32.mrf.mxu0
      %v771 = vadd.f32 0.0, %v770
      %772 = vmatmul.bf16.gmra.mxu0 %v747
      %v773 = vpop.f32.mrf.mxu0
      %v774 = vadd.f32 0.0, %v773
      %v775 = vpop.f32.mrf.mxu0
      %v776 = vadd.f32 0.0, %v775
      %777 = vdwg.mxu0
      %v778 = vadd.f32 %v720, %v759
      %v779 = vadd.f32 %v721, %v761
      %v780 = vadd.f32 %v722, %v764
      %v781 = vadd.f32 %v723, %v766
      %v782 = vadd.f32 %v724, %v769
      %v783 = vadd.f32 %v725, %v771
      %v784 = vadd.f32 %v726, %v774
      %v785 = vadd.f32 %v727, %v776
      %v788 = vrot.slane %v210, 1
      %v789 = vrot.slane %v211, 1
      %v790 = vsel %vm302, %v788, %v789
      %v792 = vpack.c.bf16 %v790, %v582
      %s793 = scalar_lea.vmem %s1, 112
      %v794 = vld [vmem:[%s793] sm:$0xf]
      %v795 = vld [vmem:[%s793 + $0x4] sm:$0xf]
      %v796 = vld [vmem:[%s793 + $0x8] sm:$0xf]
      %v797 = vld [vmem:[%s793 + $0xc] sm:$0xf]
      %v802 = vunpack.c.l.b16 %v794
      %v803 = vunpack.c.l.b16 %v795
      %v804 = vunpack.c.l.b16 %v796
      %v805 = vunpack.c.l.b16 %v797
      %v806 = vpack.c.b16 %v803, %v802
      %v807 = vpack.c.b16 %v805, %v804
      %v811 = vsel %vm236, %v792, 0
      %813 = vmatpush.bf16.msra.mxu0 0
      %814 = vmatpush.bf16.msra.mxu0 0
      %815 = vmatpush.bf16.msra.mxu0 0
      %816 = vmatpush.bf16.msra.mxu0 0
      %817 = vmatpush.bf16.msra.mxu0 0
      %818 = vmatpush.bf16.msra.mxu0 0
      %819 = vmatpush.bf16.msra.mxu0 %v807
      %820 = vmatpush.bf16.msra.mxu0 %v806
      %821 = vmatmul.bf16.gmra.mxu0 %v360
      %v822 = vpop.f32.mrf.mxu0
      %v823 = vadd.f32 0.0, %v822
      %v824 = vpop.f32.mrf.mxu0
      %v825 = vadd.f32 0.0, %v824
      %826 = vmatmul.bf16.gmra.mxu0 %v363
      %v827 = vpop.f32.mrf.mxu0
      %v828 = vadd.f32 0.0, %v827
      %v829 = vpop.f32.mrf.mxu0
      %v830 = vadd.f32 0.0, %v829
      %831 = vmatmul.bf16.gmra.mxu0 %v366
      %v832 = vpop.f32.mrf.mxu0
      %v833 = vadd.f32 0.0, %v832
      %v834 = vpop.f32.mrf.mxu0
      %v835 = vadd.f32 0.0, %v834
      %836 = vmatmul.bf16.gmra.mxu0 %v811
      %v837 = vpop.f32.mrf.mxu0
      %v838 = vadd.f32 0.0, %v837
      %v839 = vpop.f32.mrf.mxu0
      %v840 = vadd.f32 0.0, %v839
      %841 = vdwg.mxu0
      %v842 = vadd.f32 %v778, %v823
      %v843 = vadd.f32 %v779, %v825
      %v844 = vadd.f32 %v780, %v828
      %v845 = vadd.f32 %v781, %v830
      %v846 = vadd.f32 %v782, %v833
      %v847 = vadd.f32 %v783, %v835
      %v848 = vadd.f32 %v784, %v838
      %v849 = vadd.f32 %v785, %v840
      %v850 = vrot.slane %v210, 2
      %v851 = vrot.slane %v211, 2
      %v852 = vsel %vm405, %v850, %v851
      %v854 = vpack.c.bf16 %v852, %v656
      %s855 = scalar_lea.vmem %s1, 128
      %v856 = vld [vmem:[%s855] sm:$0xf]
      %v857 = vld [vmem:[%s855 + $0x4] sm:$0xf]
      %v858 = vld [vmem:[%s855 + $0x8] sm:$0xf]
      %v859 = vld [vmem:[%s855 + $0xc] sm:$0xf]
      %v864 = vunpack.c.l.b16 %v856
      %v865 = vunpack.c.l.b16 %v857
      %v866 = vunpack.c.l.b16 %v858
      %v867 = vunpack.c.l.b16 %v859
      %v868 = vpack.c.b16 %v865, %v864
      %v869 = vpack.c.b16 %v867, %v866
      %v873 = vsel %vm236, %v854, 0
      %875 = vmatpush.bf16.msra.mxu0 0
      %876 = vmatpush.bf16.msra.mxu0 0
      %877 = vmatpush.bf16.msra.mxu0 0
      %878 = vmatpush.bf16.msra.mxu0 0
      %879 = vmatpush.bf16.msra.mxu0 0
      %880 = vmatpush.bf16.msra.mxu0 0
      %881 = vmatpush.bf16.msra.mxu0 %v869
      %882 = vmatpush.bf16.msra.mxu0 %v868
      %883 = vmatmul.bf16.gmra.mxu0 %v463
      %v884 = vpop.f32.mrf.mxu0
      %v885 = vadd.f32 0.0, %v884
      %v886 = vpop.f32.mrf.mxu0
      %v887 = vadd.f32 0.0, %v886
      %888 = vmatmul.bf16.gmra.mxu0 %v466
      %v889 = vpop.f32.mrf.mxu0
      %v890 = vadd.f32 0.0, %v889
      %v891 = vpop.f32.mrf.mxu0
      %v892 = vadd.f32 0.0, %v891
      %893 = vmatmul.bf16.gmra.mxu0 %v469
      %v894 = vpop.f32.mrf.mxu0
      %v895 = vadd.f32 0.0, %v894
      %v896 = vpop.f32.mrf.mxu0
      %v897 = vadd.f32 0.0, %v896
      %898 = vmatmul.bf16.gmra.mxu0 %v873
      %v899 = vpop.f32.mrf.mxu0
      %v900 = vadd.f32 0.0, %v899
      %v901 = vpop.f32.mrf.mxu0
      %v902 = vadd.f32 0.0, %v901
      %903 = vdwg.mxu0
      %v904 = vadd.f32 %v842, %v885
      %v905 = vadd.f32 %v843, %v887
      %v906 = vadd.f32 %v844, %v890
      %v907 = vadd.f32 %v845, %v892
      %v908 = vadd.f32 %v846, %v895
      %v909 = vadd.f32 %v847, %v897
      %v910 = vadd.f32 %v848, %v900
      %v911 = vadd.f32 %v849, %v902
      %v912 = vmax.f32 %v904, 0.0
      %v913 = vmax.f32 %v905, 0.0
      %v914 = vmax.f32 %v906, 0.0
      %v915 = vmax.f32 %v907, 0.0
      %v916 = vmax.f32 %v908, 0.0
      %v917 = vmax.f32 %v909, 0.0
      %v918 = vmax.f32 %v910, 0.0
      %v919 = vmax.f32 %v911, 0.0
      %v920 = vpack.c.bf16 %v912, %v912
      %v921 = vpack.c.bf16 %v913, %v913
      %v922 = vpack.c.bf16 %v914, %v914
      %v923 = vpack.c.bf16 %v915, %v915
      %v924 = vpack.c.bf16 %v916, %v916
      %v925 = vpack.c.bf16 %v917, %v917
      %v926 = vpack.c.bf16 %v918, %v918
      %v927 = vpack.c.bf16 %v919, %v919
      %vm928 = vcmask 519168
      %929 = vst.msk [vmem:[%s170] sm:$0xf] %vm928, %v920
      %930 = vst.msk [vmem:[%s170 + $0x4] sm:$0xf] %vm928, %v921
      %931 = vst.msk [vmem:[%s170 + $0x8] sm:$0xf] %vm928, %v922
      %932 = vst.msk [vmem:[%s170 + $0xc] sm:$0xf] %vm928, %v923
      %933 = vst.msk [vmem:[%s170 + $0x10] sm:$0xf] %vm928, %v924
      %934 = vst.msk [vmem:[%s170 + $0x14] sm:$0xf] %vm928, %v925
      %935 = vst.msk [vmem:[%s170 + $0x18] sm:$0xf] %vm928, %v926
      %936 = vst.msk [vmem:[%s170 + $0x1c] sm:$0xf] %vm928, %v927
      %p937 = scmp.lt.s32.totalorder %s14, 1
      %s938 = scalar_select %p937, %s14, 1
      %s939 = smul.addr %s938, 8
      %s940 = smul.addr %s939, 4
      %s941 = scalar_lea.vmem %s3, %s940
      // Predicated region
      $region33: #{forward.8} parent=31 // pred_check
        %p942 = pneg %p100
      $region34: #{forward.8} parent=31 // pred_check_branch
        %944 = sbr.rel (%p942) target = $region36
      $region35: #{forward.8} parent=31 // pred_region
        _
      $region36: #{forward.8} parent=31 // pred_fallthru
        _
    $region32: #{forward.8} parent=5 // pred_fallthru
      _
    %p945 = scmp.le.s32.totalorder 2, %s9
    // Predicated region
    $region37: #{forward.8} parent=5 // pred_check
      %p946 = pneg %p945
    $region38: #{forward.8} parent=5 // pred_check_branch
      %948 = sbr.rel (%p946) target = $region40
    $region39: #{forward.8} parent=5 // pred_region
      %s949 = ssub.s32 %s9, 2
      // Predicated region
      $region41: #{forward.8} parent=39 // pred_check
        %p950 = pneg %p106
      $region42: #{forward.8} parent=39 // pred_check_branch
        %952 = sbr.rel (%p950) target = $region44
      $region43: #{forward.8} parent=39 // pred_region
        %p953 = scmp.lt.s32.totalorder %s15, 1
        %s954 = scalar_select %p953, %s15, 1
        %s955 = smul.addr %s954, 8
        %s956 = smul.addr %s955, 4
        %s957 = scalar_lea.vmem %s3, %s956
      $region44: #{forward.8} parent=39 // pred_fallthru
        _
    $region40: #{forward.8} parent=5 // pred_fallthru
      _
  $region6: #{forward.8} parent=0 // loop_footer
    %s13 = sadd.s32 1, %s9
  $region7: #{forward.8} parent=0 // loop_footer_branch
    %8 = sbr.rel target = $region3
  $region8: #{forward.8} parent=0 // loop_exit
    _

// kernel: forward.7
$region0: #{forward.7}
  #allocation0 [shape = 'u32[]', space=smem, size = 0x4, offset = 0x4, fixed_abs, tag = 'smem constant byte address 0x4 - core index']
  #allocation1 [shape = 'u32[72,128]{1,0:T(1,128)}', space=vmem, size = 0x9000, scoped, tag = 'internal scratch']
  %s0 = inlined_call_operand.vmem [shape: bf16[2,18,18,3], index: 0, kind: input, shape index: {}]
  %s1 = inlined_call_operand.vmem [shape: bf16[9,3,32], index: 1, kind: input, shape index: {}]
  %s2 = inlined_call_operand.hbm [shape: f32[1,32], index: 2, kind: input, shape index: {}]
  %s3 = inlined_call_operand.vmem [shape: bf16[2,16,16,32], index: 3, kind: output, shape index: {}]
  %s4 = sld [smem:[#allocation0]]
  $region49: #{forward.7} parent=0
    _
  %s6 = ssub.s32 1, %s4
  %s7 = scalar_select 0, %s6, %s4
  $region1: #{forward.7} parent=0
    #allocation2 [shape = 'u8[512]{0}', space=vmem, size = 0x400, scoped, tag = 'input window, operand 2, single buffered']
    #allocation3 [shape = 's32[2]{0}', space=sflag, size = 0x8, scoped, tag = 'scoped memory for forward.7']
    %8 = vsyncpa [#allocation3], 0
    loop: start=0, step=1, limit=4
    $region2: #{forward.7} parent=1 // loop_pre_header
      _
    $region3: #{forward.7} parent=1 // loop_header
      %s10 = sphi 0, %s14
      %p11 = scmp.ge.s32.totalorder %s10, 4
      %s20 = sphi 0, %s22
      %s23 = sphi 0, %s20
      %s24 = sphi 0, %s23
      %s40 = sphi 0, %s24
      %s44 = sphi 0, %s44
      %s46 = sphi 0, %s44
      %s47 = sphi 0, %s46
      %s61 = sphi 0, %s47
      %s65 = sphi 0, %s65
      %s67 = sphi 0, %s65
      %s68 = sphi 0, %s67
      %s82 = sphi 0, %s68
      %s88 = sphi 0, %s90
      %s91 = sphi 0, %s88
      %s92 = sphi 0, %s91
      %s108 = sphi 0, %s92
    $region4: #{forward.7} parent=1 // loop_header_branch
      %13 = sbr.rel (%p11) target = $region8
    $region5: #{forward.7} parent=1 // loop_body
      %s15 = ssub.s32 %s10, 1
      %s16 = ssub.s32 %s10, 2
      %s17 = sadd.s32 %s10, 1
      %s18 = ssub.s32 %s10, %s17
      %p19 = scmp.eq.s32.totalorder %s18, 0
      %s21 = sadd.s32 %s20, 1
      %s22 = scalar_select %p19, %s20, %s21
      %p25 = pneg %p19
      %p26 = scmp.eq.s32.totalorder %s10, 1
      %p27 = por %p25, %p26
      %p28 = scmp.ne.s32.totalorder %s20, %s23
      %p29 = scmp.eq.s32.totalorder %s10, 0
      %p30 = por %p28, %p29
      %p31 = scmp.ne.s32.totalorder %s20, %s23
      %p32 = scmp.eq.s32.totalorder %s15, 1
      %p33 = por %p31, %p32
      %p34 = scmp.ne.s32.totalorder %s23, %s24
      %p35 = scmp.eq.s32.totalorder %s15, 0
      %p36 = por %p34, %p35
      %p37 = scmp.ne.s32.totalorder %s23, %s24
      %p38 = scmp.eq.s32.totalorder %s16, 1
      %p39 = por %p37, %p38
      %p41 = scmp.ne.s32.totalorder %s24, %s40
      %p42 = scmp.eq.s32.totalorder %s16, 0
      %p43 = por %p41, %p42
      %s45 = sadd.s32 %s44, 1
      %p48 = scmp.eq.s32.totalorder %s10, 1
      %p49 = scmp.ne.s32.totalorder %s44, %s46
      %p50 = scmp.eq.s32.totalorder %s10, 0
      %p51 = por %p49, %p50
      %p52 = scmp.ne.s32.totalorder %s44, %s46
      %p53 = scmp.eq.s32.totalorder %s15, 1
      %p54 = por %p52, %p53
      %p55 = scmp.ne.s32.totalorder %s46, %s47
      %p56 = scmp.eq.s32.totalorder %s15, 0
      %p57 = por %p55, %p56
      %p58 = scmp.ne.s32.totalorder %s46, %s47
      %p59 = scmp.eq.s32.totalorder %s16, 1
      %p60 = por %p58, %p59
      %p62 = scmp.ne.s32.totalorder %s47, %s61
      %p63 = scmp.eq.s32.totalorder %s16, 0
      %p64 = por %p62, %p63
      %s66 = sadd.s32 %s65, 1
      %p69 = scmp.eq.s32.totalorder %s10, 1
      %p70 = scmp.ne.s32.totalorder %s65, %s67
      %p71 = scmp.eq.s32.totalorder %s10, 0
      %p72 = por %p70, %p71
      %p73 = scmp.ne.s32.totalorder %s65, %s67
      %p74 = scmp.eq.s32.totalorder %s15, 1
      %p75 = por %p73, %p74
      %p76 = scmp.ne.s32.totalorder %s67, %s68
      %p77 = scmp.eq.s32.totalorder %s15, 0
      %p78 = por %p76, %p77
      %p79 = scmp.ne.s32.totalorder %s67, %s68
      %p80 = scmp.eq.s32.totalorder %s16, 1
      %p81 = por %p79, %p80
      %p83 = scmp.ne.s32.totalorder %s68, %s82
      %p84 = scmp.eq.s32.totalorder %s16, 0
      %p85 = por %p83, %p84
      %s86 = ssub.s32 %s10, %s17
      %p87 = scmp.eq.s32.totalorder %s86, 0
      %s89 = sadd.s32 %s88, 1
      %s90 = scalar_select %p87, %s88, %s89
      %p93 = pneg %p87
      %p94 = scmp.eq.s32.totalorder %s10, 1
      %p95 = por %p93, %p94
      %p96 = scmp.ne.s32.totalorder %s88, %s91
      %p97 = scmp.eq.s32.totalorder %s10, 0
      %p98 = por %p96, %p97
      %p99 = scmp.ne.s32.totalorder %s88, %s91
      %p100 = scmp.eq.s32.totalorder %s15, 1
      %p101 = por %p99, %p100
      %p102 = scmp.ne.s32.totalorder %s91, %s92
      %p103 = scmp.eq.s32.totalorder %s15, 0
      %p104 = por %p102, %p103
      %p105 = scmp.ne.s32.totalorder %s91, %s92
      %p106 = scmp.eq.s32.totalorder %s16, 1
      %p107 = por %p105, %p106
      %p109 = scmp.ne.s32.totalorder %s92, %s108
      %p110 = scmp.eq.s32.totalorder %s16, 0
      %p111 = por %p109, %p110
      %p112 = scmp.le.s32.totalorder 1, %s10
      %p113 = scmp.lt.s32.totalorder %s10, 3
      %p114 = pnand %p112, %p113
      %p115 = pneg %p114
      // Predicated region
      $region9: #{forward.7} parent=5 // pred_check
        _
      $region10: #{forward.7} parent=5 // pred_check_branch
        %117 = sbr.rel (%p114) target = $region12
      $region11: #{forward.7} parent=5 // pred_region
        %s118 = ssub.s32 %s10, 1
        // Predicated region
        $region13: #{forward.7} parent=11 // pred_check
          %p119 = pneg %p57
        $region14: #{forward.7} parent=11 // pred_check_branch
          %121 = sbr.rel (%p119) target = $region16
        $region15: #{forward.7} parent=11 // pred_region
          _
        $region16: #{forward.7} parent=11 // pred_fallthru
          _
        // Predicated region
        $region17: #{forward.7} parent=11 // pred_check
          %p122 = pneg %p78
        $region18: #{forward.7} parent=11 // pred_check_branch
          %124 = sbr.rel (%p122) target = $region20
        $region19: #{forward.7} parent=11 // pred_region
          %126 = vsyncadd [#allocation3], 0
          %s128 = sshll.u32 %s2, 4
          %s129 = int_to_ptr.hbm [resolvable:$true] %s128
          %s130 = sshll.u32 [#allocation2], 4
          %s131 = int_to_ptr.vmem [resolvable:$true] %s130
          %133 = dma.hbm_to_vmem [thread:$0]  %s129, 16, %s131, [#allocation3]
        $region20: #{forward.7} parent=11 // pred_fallthru
          _
      $region12: #{forward.7} parent=5 // pred_fallthru
        _
      %p134 = scmp.lt.s32.totalorder %s10, 2
      // Predicated region
      $region21: #{forward.7} parent=5 // pred_check
        %p135 = pneg %p134
      $region22: #{forward.7} parent=5 // pred_check_branch
        %137 = sbr.rel (%p135) target = $region24
      $region23: #{forward.7} parent=5 // pred_region
        // Predicated region
        $region25: #{forward.7} parent=23 // pred_check
          %p138 = pneg %p30
        $region26: #{forward.7} parent=23 // pred_check_branch
          %140 = sbr.rel (%p138) target = $region28
        $region27: #{forward.7} parent=23 // pred_region
          %p141 = scmp.lt.s32.totalorder %s10, 1
          %s142 = scalar_select %p141, %s10, 1
          %s143 = smul.addr %s142, 54
          %s144 = smul.addr %s143, 4
          %s145 = scalar_lea.vmem %s0, %s144
        $region28: #{forward.7} parent=23 // pred_fallthru
          _
      $region24: #{forward.7} parent=5 // pred_fallthru
        _
      %p146 = scmp.le.s32.totalorder 1, %s10
      %p147 = scmp.lt.s32.totalorder %s10, 3
      %p148 = pnand %p146, %p147
      %p149 = pneg %p148
      // Predicated region
      $region29: #{forward.7} parent=5 // pred_check
        _
      $region30: #{forward.7} parent=5 // pred_check_branch
        %151 = sbr.rel (%p148) target = $region32
      $region31: #{forward.7} parent=5 // pred_region
        %s152 = ssub.s32 %s10, 1
        // Predicated region
        $region33: #{forward.7} parent=31 // pred_check
          %p153 = pneg %p78
        $region34: #{forward.7} parent=31 // pred_check_branch
          %155 = sbr.rel (%p153) target = $region36
        $region35: #{forward.7} parent=31 // pred_region
          %157 = dma.done [#allocation3], 16
        $region36: #{forward.7} parent=31 // pred_fallthru
          _
        %p158 = scmp.lt.s32.totalorder %s15, 1
        %s159 = scalar_select %p158, %s15, 1
        %s160 = smul.addr %s159, 54
        %s161 = smul.addr %s160, 4
        %s162 = scalar_lea.vmem %s0, %s161
        %p163 = pneg %p36
        %p164 = pneg %p33
        %p165 = pneg %p57
        %p166 = pneg %p54
        %p167 = pneg %p78
        %p168 = pneg %p75
        %p169 = pneg %p104
        %p170 = pneg %p101
        %p171 = scmp.lt.s32.totalorder %s15, 1
        %s172 = scalar_select %p171, %s15, 1
        %s173 = smul.addr %s172, 32
        %s174 = smul.addr %s173, 4
        %s175 = scalar_lea.vmem %s3, %s174
        %p176 = scmp.lt.s32.totalorder %s15, 1
        %s177 = scalar_select %p176, %s15, 1
        %s178 = smul.addr %s177, 54
        %s179 = smul.addr %s178, 4
        %s180 = scalar_lea.vmem %s0, %s179
        %p181 = scmp.lt.s32.totalorder %s15, 1
        %s182 = scalar_select %p181, %s15, 1
        %s183 = smul.addr %s182, 32
        %s184 = smul.addr %s183, 4
        %s185 = scalar_lea.vmem %s3, %s184
        %v187 = vld [vmem:[%s180] sm:$0xf]
        %v188 = vld [vmem:[%s180 + $0x4] sm:$0xf]
        %v189 = vld [vmem:[%s180 + $0x8] sm:$0x1]
        %v190 = vld [vmem:[%s180 + $0xc] sm:$0xf]
        %v191 = vld [vmem:[%s180 + $0x10] sm:$0xf]
        %v192 = vld [vmem:[%s180 + $0x14] sm:$0x1]
        %v193 = vld [vmem:[%s180 + $0x18] sm:$0xf]
        %v194 = vld [vmem:[%s180 + $0x1c] sm:$0xf]
        %v195 = vld [vmem:[%s180 + $0x20] sm:$0x1]
        %v196 = vld [vmem:[%s180 + $0x24] sm:$0xf]
        %v197 = vld [vmem:[%s180 + $0x28] sm:$0xf]
        %v198 = vld [vmem:[%s180 + $0x2c] sm:$0x1]
        %v199 = vld [vmem:[%s180 + $0x30] sm:$0xf]
        %v200 = vld [vmem:[%s180 + $0x34] sm:$0xf]
        %v201 = vld [vmem:[%s180 + $0x38] sm:$0x1]
        %v202 = vld [vmem:[%s180 + $0x3c] sm:$0xf]
        %v203 = vld [vmem:[%s180 + $0x40] sm:$0xf]
        %v204 = vld [vmem:[%s180 + $0x44] sm:$0x1]
        %v205 = vld [vmem:[%s180 + $0x48] sm:$0xf]
        %v206 = vld [vmem:[%s180 + $0x4c] sm:$0xf]
        %v207 = vld [vmem:[%s180 + $0x50] sm:$0x1]
        %v208 = vld [vmem:[%s180 + $0x54] sm:$0xf]
        %v209 = vld [vmem:[%s180 + $0x58] sm:$0xf]
        %v210 = vld [vmem:[%s180 + $0x5c] sm:$0x1]
        %v211 = vld [vmem:[%s180 + $0x60] sm:$0xf]
        %v212 = vld [vmem:[%s180 + $0x64] sm:$0xf]
        %v213 = vld [vmem:[%s180 + $0x68] sm:$0x1]
        %v214 = vld [vmem:[%s180 + $0x6c] sm:$0xf]
        %v215 = vld [vmem:[%s180 + $0x70] sm:$0xf]
        %v216 = vld [vmem:[%s180 + $0x74] sm:$0x1]
        %v217 = vld [vmem:[%s180 + $0x78] sm:$0xf]
        %v218 = vld [vmem:[%s180 + $0x7c] sm:$0xf]
        %v219 = vld [vmem:[%s180 + $0x80] sm:$0x1]
        %v220 = vld [vmem:[%s180 + $0x84] sm:$0xf]
        %v221 = vld [vmem:[%s180 + $0x88] sm:$0xf]
        %v222 = vld [vmem:[%s180 + $0x8c] sm:$0x1]
        %v223 = vld [vmem:[%s180 + $0x90] sm:$0xf]
        %v224 = vld [vmem:[%s180 + $0x94] sm:$0xf]
        %v225 = vld [vmem:[%s180 + $0x98] sm:$0x1]
        %v226 = vld [vmem:[%s180 + $0x9c] sm:$0xf]
        %v227 = vld [vmem:[%s180 + $0xa0] sm:$0xf]
        %v228 = vld [vmem:[%s180 + $0xa4] sm:$0x1]
        %v229 = vld [vmem:[%s180 + $0xa8] sm:$0xf]
        %v230 = vld [vmem:[%s180 + $0xac] sm:$0xf]
        %v231 = vld [vmem:[%s180 + $0xb0] sm:$0x1]
        %v232 = vld [vmem:[%s180 + $0xb4] sm:$0xf]
        %v233 = vld [vmem:[%s180 + $0xb8] sm:$0xf]
        %v234 = vld [vmem:[%s180 + $0xbc] sm:$0x1]
        %v235 = vld [vmem:[%s180 + $0xc0] sm:$0xf]
        %v236 = vld [vmem:[%s180 + $0xc4] sm:$0xf]
        %v237 = vld [vmem:[%s180 + $0xc8] sm:$0x1]
        %v238 = vld [vmem:[%s180 + $0xcc] sm:$0xf]
        %v239 = vld [vmem:[%s180 + $0xd0] sm:$0xf]
        %v240 = vld [vmem:[%s180 + $0xd4] sm:$0x1]
        %v241 = vunpack.c.l.bf16 %v187
        %v242 = vunpack.c.l.bf16 %v188
        %v243 = vunpack.c.l.bf16 %v189
        %v244 = vunpack.c.l.bf16 %v190
        %v245 = vunpack.c.l.bf16 %v191
        %v246 = vunpack.c.l.bf16 %v192
        %v247 = vunpack.c.l.bf16 %v193
        %v248 = vunpack.c.l.bf16 %v194
        %v249 = vunpack.c.l.bf16 %v195
        %v250 = vunpack.c.l.bf16 %v196
        %v251 = vunpack.c.l.bf16 %v197
        %v252 = vunpack.c.l.bf16 %v198
        %v253 = vunpack.c.l.bf16 %v199
        %v254 = vunpack.c.l.bf16 %v200
        %v255 = vunpack.c.l.bf16 %v201
        %v256 = vunpack.c.l.bf16 %v202
        %v257 = vunpack.c.l.bf16 %v203
        %v258 = vunpack.c.l.bf16 %v204
        %v259 = vunpack.c.l.bf16 %v205
        %v260 = vunpack.c.l.bf16 %v206
        %v261 = vunpack.c.l.bf16 %v207
        %v262 = vunpack.c.l.bf16 %v208
        %v263 = vunpack.c.l.bf16 %v209
        %v264 = vunpack.c.l.bf16 %v210
        %v265 = vunpack.c.l.bf16 %v211
        %v266 = vunpack.c.l.bf16 %v212
        %v267 = vunpack.c.l.bf16 %v213
        %v268 = vunpack.c.l.bf16 %v214
        %v269 = vunpack.c.l.bf16 %v215
        %v270 = vunpack.c.l.bf16 %v216
        %v271 = vunpack.c.l.bf16 %v217
        %v272 = vunpack.c.l.bf16 %v218
        %v273 = vunpack.c.l.bf16 %v219
        %v274 = vunpack.c.l.bf16 %v220
        %v275 = vunpack.c.l.bf16 %v221
        %v276 = vunpack.c.l.bf16 %v222
        %v277 = vunpack.c.l.bf16 %v223
        %v278 = vunpack.c.l.bf16 %v224
        %v279 = vunpack.c.l.bf16 %v225
        %v280 = vunpack.c.l.bf16 %v226
        %v281 = vunpack.c.l.bf16 %v227
        %v282 = vunpack.c.l.bf16 %v228
        %v283 = vunpack.c.l.bf16 %v229
        %v284 = vunpack.c.l.bf16 %v230
        %v285 = vunpack.c.l.bf16 %v231
        %v286 = vunpack.c.l.bf16 %v232
        %v287 = vunpack.c.l.bf16 %v233
        %v288 = vunpack.c.l.bf16 %v234
        %v289 = vunpack.c.l.bf16 %v235
        %v290 = vunpack.c.l.bf16 %v236
        %v291 = vunpack.c.l.bf16 %v237
        %v292 = vunpack.c.l.bf16 %v238
        %v293 = vunpack.c.l.bf16 %v239
        %v294 = vunpack.c.l.bf16 %v240
        %v295 = vld [vmem:[#allocation2] sm:$0x1]
        %v297 = vperm.slane %v295, 0
        %v299 = vpack.c.bf16 %v242, %v241
        %v300 = vpack.c.bf16 %v245, %v244
        %v301 = vpack.c.bf16 %v248, %v247
        %v302 = vpack.c.bf16 %v251, %v250
        %v303 = vpack.c.bf16 %v254, %v253
        %v304 = vpack.c.bf16 %v257, %v256
        %v305 = vpack.c.bf16 %v260, %v259
        %v306 = vpack.c.bf16 %v263, %v262
        %v307 = vpack.c.bf16 %v266, %v265
        %v308 = vpack.c.bf16 %v269, %v268
        %v309 = vpack.c.bf16 %v272, %v271
        %v310 = vpack.c.bf16 %v275, %v274
        %v311 = vpack.c.bf16 %v278, %v277
        %v312 = vpack.c.bf16 %v281, %v280
        %v313 = vpack.c.bf16 %v284, %v283
        %v314 = vpack.c.bf16 %v287, %v286
        %v315 = vld [vmem:[%s1] sm:$0x3]
        %vm316 = vcmask 23552
        %v318 = vsel %vm316, %v299, 0
        %v321 = vsel %vm316, %v300, 0
        %v324 = vsel %vm316, %v301, 0
        %v327 = vsel %vm316, %v302, 0
        %v330 = vsel %vm316, %v303, 0
        %v333 = vsel %vm316, %v304, 0
        %v336 = vsel %vm316, %v305, 0
        %v339 = vsel %vm316, %v306, 0
        %v342 = vsel %vm316, %v307, 0
        %v345 = vsel %vm316, %v308, 0
        %v348 = vsel %vm316, %v309, 0
        %v351 = vsel %vm316, %v310, 0
        %v354 = vsel %vm316, %v311, 0
        %v357 = vsel %vm316, %v312, 0
        %v360 = vsel %vm316, %v313, 0
        %v363 = vsel %vm316, %v314, 0
        %vm365 = vcmask 1040384
        %vm366 = vcmask 1041408
        %v367 = vsel %vm365, 4294967295, 65535
        %v368 = vsel %vm366, %v367, 0
        %v370 = vand.u32 %v315, %v368
        %372 = vmatpush.bf16.msra.mxu0 0
        %373 = vmatpush.bf16.msra.mxu0 0
        %374 = vmatpush.bf16.msra.mxu0 0
        %375 = vmatpush.bf16.msra.mxu0 0
        %376 = vmatpush.bf16.msra.mxu0 0
        %377 = vmatpush.bf16.msra.mxu0 0
        %378 = vmatpush.bf16.msra.mxu0 0
        %379 = vmatpush.bf16.msra.mxu0 %v370
        %380 = vmatmul.bf16.gmra.mxu0 %v318
        %v381 = vpop.f32.mrf.mxu0
        %v382 = vadd.f32 0.0, %v381
        %v383 = vpop.f32.mrf.mxu0
        %v384 = vadd.f32 0.0, %v383
        %385 = vmatmul.bf16.gmra.mxu0 %v321
        %v386 = vpop.f32.mrf.mxu0
        %v387 = vadd.f32 0.0, %v386
        %v388 = vpop.f32.mrf.mxu0
        %v389 = vadd.f32 0.0, %v388
        %390 = vmatmul.bf16.gmra.mxu0 %v324
        %v391 = vpop.f32.mrf.mxu0
        %v392 = vadd.f32 0.0, %v391
        %v393 = vpop.f32.mrf.mxu0
        %v394 = vadd.f32 0.0, %v393
        %395 = vmatmul.bf16.gmra.mxu0 %v327
        %v396 = vpop.f32.mrf.mxu0
        %v397 = vadd.f32 0.0, %v396
        %v398 = vpop.f32.mrf.mxu0
        %v399 = vadd.f32 0.0, %v398
        %400 = vmatmul.bf16.gmra.mxu0 %v330
        %v401 = vpop.f32.mrf.mxu0
        %v402 = vadd.f32 0.0, %v401
        %v403 = vpop.f32.mrf.mxu0
        %v404 = vadd.f32 0.0, %v403
        %405 = vmatmul.bf16.gmra.mxu0 %v333
        %v406 = vpop.f32.mrf.mxu0
        %v407 = vadd.f32 0.0, %v406
        %v408 = vpop.f32.mrf.mxu0
        %v409 = vadd.f32 0.0, %v408
        %410 = vmatmul.bf16.gmra.mxu0 %v336
        %v411 = vpop.f32.mrf.mxu0
        %v412 = vadd.f32 0.0, %v411
        %v413 = vpop.f32.mrf.mxu0
        %v414 = vadd.f32 0.0, %v413
        %415 = vmatmul.bf16.gmra.mxu0 %v339
        %v416 = vpop.f32.mrf.mxu0
        %v417 = vadd.f32 0.0, %v416
        %v418 = vpop.f32.mrf.mxu0
        %v419 = vadd.f32 0.0, %v418
        %420 = vmatmul.bf16.gmra.mxu0 %v342
        %v421 = vpop.f32.mrf.mxu0
        %v422 = vadd.f32 0.0, %v421
        %v423 = vpop.f32.mrf.mxu0
        %v424 = vadd.f32 0.0, %v423
        %425 = vmatmul.bf16.gmra.mxu0 %v345
        %v426 = vpop.f32.mrf.mxu0
        %v427 = vadd.f32 0.0, %v426
        %v428 = vpop.f32.mrf.mxu0
        %v429 = vadd.f32 0.0, %v428
        %430 = vmatmul.bf16.gmra.mxu0 %v348
        %v431 = vpop.f32.mrf.mxu0
        %v432 = vadd.f32 0.0, %v431
        %v433 = vpop.f32.mrf.mxu0
        %v434 = vadd.f32 0.0, %v433
        %435 = vmatmul.bf16.gmra.mxu0 %v351
        %v436 = vpop.f32.mrf.mxu0
        %v437 = vadd.f32 0.0, %v436
        %v438 = vpop.f32.mrf.mxu0
        %v439 = vadd.f32 0.0, %v438
        %440 = vmatmul.bf16.gmra.mxu0 %v354
        %v441 = vpop.f32.mrf.mxu0
        %v442 = vadd.f32 0.0, %v441
        %v443 = vpop.f32.mrf.mxu0
        %v444 = vadd.f32 0.0, %v443
        %445 = vmatmul.bf16.gmra.mxu0 %v357
        %v446 = vpop.f32.mrf.mxu0
        %v447 = vadd.f32 0.0, %v446
        %v448 = vpop.f32.mrf.mxu0
        %v449 = vadd.f32 0.0, %v448
        %450 = vmatmul.bf16.gmra.mxu0 %v360
        %v451 = vpop.f32.mrf.mxu0
        %v452 = vadd.f32 0.0, %v451
        %v453 = vpop.f32.mrf.mxu0
        %v454 = vadd.f32 0.0, %v453
        %455 = vmatmul.bf16.gmra.mxu0 %v363
        %v456 = vpop.f32.mrf.mxu0
        %v457 = vadd.f32 0.0, %v456
        %v458 = vpop.f32.mrf.mxu0
        %v459 = vadd.f32 0.0, %v458
        %460 = vdwg.mxu0
        %v461 = vadd.f32 %v297, %v382
        %v462 = vadd.f32 %v297, %v384
        %v463 = vadd.f32 %v297, %v387
        %v464 = vadd.f32 %v297, %v389
        %v465 = vadd.f32 %v297, %v392
        %v466 = vadd.f32 %v297, %v394
        %v467 = vadd.f32 %v297, %v397
        %v468 = vadd.f32 %v297, %v399
        %v469 = vadd.f32 %v297, %v402
        %v470 = vadd.f32 %v297, %v404
        %v471 = vadd.f32 %v297, %v407
        %v472 = vadd.f32 %v297, %v409
        %v473 = vadd.f32 %v297, %v412
        %v474 = vadd.f32 %v297, %v414
        %v475 = vadd.f32 %v297, %v417
        %v476 = vadd.f32 %v297, %v419
        %v477 = vadd.f32 %v297, %v422
        %v478 = vadd.f32 %v297, %v424
        %v479 = vadd.f32 %v297, %v427
        %v480 = vadd.f32 %v297, %v429
        %v481 = vadd.f32 %v297, %v432
        %v482 = vadd.f32 %v297, %v434
        %v483 = vadd.f32 %v297, %v437
        %v484 = vadd.f32 %v297, %v439
        %v485 = vadd.f32 %v297, %v442
        %v486 = vadd.f32 %v297, %v444
        %v487 = vadd.f32 %v297, %v447
        %v488 = vadd.f32 %v297, %v449
        %v489 = vadd.f32 %v297, %v452
        %v490 = vadd.f32 %v297, %v454
        %v491 = vadd.f32 %v297, %v457
        %v492 = vadd.f32 %v297, %v459
        %vm541 = vcmask 1046528
        %v542 = vrot.slane %v241, 1
        %v543 = vrot.slane %v242, 1
        %v544 = vsel %vm541, %v542, %v543
        %v545 = vrot.slane %v243, 1
        %v546 = vsel %vm541, %v543, %v545
        %v547 = vrot.slane %v244, 1
        %v548 = vrot.slane %v245, 1
        %v549 = vsel %vm541, %v547, %v548
        %v550 = vrot.slane %v246, 1
        %v551 = vsel %vm541, %v548, %v550
        %v552 = vrot.slane %v247, 1
        %v553 = vrot.slane %v248, 1
        %v554 = vsel %vm541, %v552, %v553
        %v555 = vrot.slane %v249, 1
        %v556 = vsel %vm541, %v553, %v555
        %v557 = vrot.slane %v250, 1
        %v558 = vrot.slane %v251, 1
        %v559 = vsel %vm541, %v557, %v558
        %v560 = vrot.slane %v252, 1
        %v561 = vsel %vm541, %v558, %v560
        %v562 = vrot.slane %v253, 1
        %v563 = vrot.slane %v254, 1
        %v564 = vsel %vm541, %v562, %v563
        %v565 = vrot.slane %v255, 1
        %v566 = vsel %vm541, %v563, %v565
        %v567 = vrot.slane %v256, 1
        %v568 = vrot.slane %v257, 1
        %v569 = vsel %vm541, %v567, %v568
        %v570 = vrot.slane %v258, 1
        %v571 = vsel %vm541, %v568, %v570
        %v572 = vrot.slane %v259, 1
        %v573 = vrot.slane %v260, 1
        %v574 = vsel %vm541, %v572, %v573
        %v575 = vrot.slane %v261, 1
        %v576 = vsel %vm541, %v573, %v575
        %v577 = vrot.slane %v262, 1
        %v578 = vrot.slane %v263, 1
        %v579 = vsel %vm541, %v577, %v578
        %v580 = vrot.slane %v264, 1
        %v581 = vsel %vm541, %v578, %v580
        %v582 = vrot.slane %v265, 1
        %v583 = vrot.slane %v266, 1
        %v584 = vsel %vm541, %v582, %v583
        %v585 = vrot.slane %v267, 1
        %v586 = vsel %vm541, %v583, %v585
        %v587 = vrot.slane %v268, 1
        %v588 = vrot.slane %v269, 1
        %v589 = vsel %vm541, %v587, %v588
        %v590 = vrot.slane %v270, 1
        %v591 = vsel %vm541, %v588, %v590
        %v592 = vrot.slane %v271, 1
        %v593 = vrot.slane %v272, 1
        %v594 = vsel %vm541, %v592, %v593
        %v595 = vrot.slane %v273, 1
        %v596 = vsel %vm541, %v593, %v595
        %v597 = vrot.slane %v274, 1
        %v598 = vrot.slane %v275, 1
        %v599 = vsel %vm541, %v597, %v598
        %v600 = vrot.slane %v276, 1
        %v601 = vsel %vm541, %v598, %v600
        %v602 = vrot.slane %v277, 1
        %v603 = vrot.slane %v278, 1
        %v604 = vsel %vm541, %v602, %v603
        %v605 = vrot.slane %v279, 1
        %v606 = vsel %vm541, %v603, %v605
        %v607 = vrot.slane %v280, 1
        %v608 = vrot.slane %v281, 1
        %v609 = vsel %vm541, %v607, %v608
        %v610 = vrot.slane %v282, 1
        %v611 = vsel %vm541, %v608, %v610
        %v612 = vrot.slane %v283, 1
        %v613 = vrot.slane %v284, 1
        %v614 = vsel %vm541, %v612, %v613
        %v615 = vrot.slane %v285, 1
        %v616 = vsel %vm541, %v613, %v615
        %v617 = vrot.slane %v286, 1
        %v618 = vrot.slane %v287, 1
        %v619 = vsel %vm541, %v617, %v618
        %v620 = vrot.slane %v288, 1
        %v621 = vsel %vm541, %v618, %v620
        %v654 = vpack.c.bf16 %v546, %v544
        %v655 = vpack.c.bf16 %v551, %v549
        %v656 = vpack.c.bf16 %v556, %v554
        %v657 = vpack.c.bf16 %v561, %v559
        %v658 = vpack.c.bf16 %v566, %v564
        %v659 = vpack.c.bf16 %v571, %v569
        %v660 = vpack.c.bf16 %v576, %v574
        %v661 = vpack.c.bf16 %v581, %v579
        %v662 = vpack.c.bf16 %v586, %v584
        %v663 = vpack.c.bf16 %v591, %v589
        %v664 = vpack.c.bf16 %v596, %v594
        %v665 = vpack.c.bf16 %v601, %v599
        %v666 = vpack.c.bf16 %v606, %v604
        %v667 = vpack.c.bf16 %v611, %v609
        %v668 = vpack.c.bf16 %v616, %v614
        %v669 = vpack.c.bf16 %v621, %v619
        %s670 = scalar_lea.vmem %s1, 2
        %v671 = vld [vmem:[%s670] sm:$0x3]
        %v673 = vsel %vm316, %v654, 0
        %v676 = vsel %vm316, %v655, 0
        %v679 = vsel %vm316, %v656, 0
        %v682 = vsel %vm316, %v657, 0
        %v685 = vsel %vm316, %v658, 0
        %v688 = vsel %vm316, %v659, 0
        %v691 = vsel %vm316, %v660, 0
        %v694 = vsel %vm316, %v661, 0
        %v697 = vsel %vm316, %v662, 0
        %v700 = vsel %vm316, %v663, 0
        %v703 = vsel %vm316, %v664, 0
        %v706 = vsel %vm316, %v665, 0
        %v709 = vsel %vm316, %v666, 0
        %v712 = vsel %vm316, %v667, 0
        %v715 = vsel %vm316, %v668, 0
        %v718 = vsel %vm316, %v669, 0
        %v721 = vand.u32 %v671, %v368
        %723 = vmatpush.bf16.msra.mxu0 0
        %724 = vmatpush.bf16.msra.mxu0 0
        %725 = vmatpush.bf16.msra.mxu0 0
        %726 = vmatpush.bf16.msra.mxu0 0
        %727 = vmatpush.bf16.msra.mxu0 0
        %728 = vmatpush.bf16.msra.mxu0 0
        %729 = vmatpush.bf16.msra.mxu0 0
        %730 = vmatpush.bf16.msra.mxu0 %v721
        %731 = vmatmul.bf16.gmra.mxu0 %v673
        %v732 = vpop.f32.mrf.mxu0
        %v733 = vadd.f32 0.0, %v732
        %v734 = vpop.f32.mrf.mxu0
        %v735 = vadd.f32 0.0, %v734
        %736 = vmatmul.bf16.gmra.mxu0 %v676
        %v737 = vpop.f32.mrf.mxu0
        %v738 = vadd.f32 0.0, %v737
        %v739 = vpop.f32.mrf.mxu0
        %v740 = vadd.f32 0.0, %v739
        %741 = vmatmul.bf16.gmra.mxu0 %v679
        %v742 = vpop.f32.mrf.mxu0
        %v743 = vadd.f32 0.0, %v742
        %v744 = vpop.f32.mrf.mxu0
        %v745 = vadd.f32 0.0, %v744
        %746 = vmatmul.bf16.gmra.mxu0 %v682
        %v747 = vpop.f32.mrf.mxu0
        %v748 = vadd.f32 0.0, %v747
        %v749 = vpop.f32.mrf.mxu0
        %v750 = vadd.f32 0.0, %v749
        %751 = vmatmul.bf16.gmra.mxu0 %v685
        %v752 = vpop.f32.mrf.mxu0
        %v753 = vadd.f32 0.0, %v752
        %v754 = vpop.f32.mrf.mxu0
        %v755 = vadd.f32 0.0, %v754
        %756 = vmatmul.bf16.gmra.mxu0 %v688
        %v757 = vpop.f32.mrf.mxu0
        %v758 = vadd.f32 0.0, %v757
        %v759 = vpop.f32.mrf.mxu0
        %v760 = vadd.f32 0.0, %v759
        %761 = vmatmul.bf16.gmra.mxu0 %v691
        %v762 = vpop.f32.mrf.mxu0
        %v763 = vadd.f32 0.0, %v762
        %v764 = vpop.f32.mrf.mxu0
        %v765 = vadd.f32 0.0, %v764
        %766 = vmatmul.bf16.gmra.mxu0 %v694
        %v767 = vpop.f32.mrf.mxu0
        %v768 = vadd.f32 0.0, %v767
        %v769 = vpop.f32.mrf.mxu0
        %v770 = vadd.f32 0.0, %v769
        %771 = vmatmul.bf16.gmra.mxu0 %v697
        %v772 = vpop.f32.mrf.mxu0
        %v773 = vadd.f32 0.0, %v772
        %v774 = vpop.f32.mrf.mxu0
        %v775 = vadd.f32 0.0, %v774
        %776 = vmatmul.bf16.gmra.mxu0 %v700
        %v777 = vpop.f32.mrf.mxu0
        %v778 = vadd.f32 0.0, %v777
        %v779 = vpop.f32.mrf.mxu0
        %v780 = vadd.f32 0.0, %v779
        %781 = vmatmul.bf16.gmra.mxu0 %v703
        %v782 = vpop.f32.mrf.mxu0
        %v783 = vadd.f32 0.0, %v782
        %v784 = vpop.f32.mrf.mxu0
        %v785 = vadd.f32 0.0, %v784
        %786 = vmatmul.bf16.gmra.mxu0 %v706
        %v787 = vpop.f32.mrf.mxu0
        %v788 = vadd.f32 0.0, %v787
        %v789 = vpop.f32.mrf.mxu0
        %v790 = vadd.f32 0.0, %v789
        %791 = vmatmul.bf16.gmra.mxu0 %v709
        %v792 = vpop.f32.mrf.mxu0
        %v793 = vadd.f32 0.0, %v792
        %v794 = vpop.f32.mrf.mxu0
        %v795 = vadd.f32 0.0, %v794
        %796 = vmatmul.bf16.gmra.mxu0 %v712
        %v797 = vpop.f32.mrf.mxu0
        %v798 = vadd.f32 0.0, %v797
        %v799 = vpop.f32.mrf.mxu0
        %v800 = vadd.f32 0.0, %v799
        %801 = vmatmul.bf16.gmra.mxu0 %v715
        %v802 = vpop.f32.mrf.mxu0
        %v803 = vadd.f32 0.0, %v802
        %v804 = vpop.f32.mrf.mxu0
        %v805 = vadd.f32 0.0, %v804
        %806 = vmatmul.bf16.gmra.mxu0 %v718
        %v807 = vpop.f32.mrf.mxu0
        %v808 = vadd.f32 0.0, %v807
        %v809 = vpop.f32.mrf.mxu0
        %v810 = vadd.f32 0.0, %v809
        %811 = vdwg.mxu0
        %v812 = vadd.f32 %v461, %v733
        %v813 = vadd.f32 %v462, %v735
        %v814 = vadd.f32 %v463, %v738
        %v815 = vadd.f32 %v464, %v740
        %v816 = vadd.f32 %v465, %v743
        %v817 = vadd.f32 %v466, %v745
        %v818 = vadd.f32 %v467, %v748
        %v819 = vadd.f32 %v468, %v750
        %v820 = vadd.f32 %v469, %v753
        %v821 = vadd.f32 %v470, %v755
        %v822 = vadd.f32 %v471, %v758
        %v823 = vadd.f32 %v472, %v760
        %v824 = vadd.f32 %v473, %v763
        %v825 = vadd.f32 %v474, %v765
        %v826 = vadd.f32 %v475, %v768
        %v827 = vadd.f32 %v476, %v770
        %v828 = vadd.f32 %v477, %v773
        %v829 = vadd.f32 %v478, %v775
        %v830 = vadd.f32 %v479, %v778
        %v831 = vadd.f32 %v480, %v780
        %v832 = vadd.f32 %v481, %v783
        %v833 = vadd.f32 %v482, %v785
        %v834 = vadd.f32 %v483, %v788
        %v835 = vadd.f32 %v484, %v790
        %v836 = vadd.f32 %v485, %v793
        %v837 = vadd.f32 %v486, %v795
        %v838 = vadd.f32 %v487, %v798
        %v839 = vadd.f32 %v488, %v800
        %v840 = vadd.f32 %v489, %v803
        %v841 = vadd.f32 %v490, %v805
        %v842 = vadd.f32 %v491, %v808
        %v843 = vadd.f32 %v492, %v810
        %vm844 = vcmask 1045504
        %v845 = vrot.slane %v241, 2
        %v846 = vrot.slane %v242, 2
        %v847 = vsel %vm844, %v845, %v846
        %v848 = vrot.slane %v243, 2
        %v849 = vsel %vm844, %v846, %v848
        %v850 = vrot.slane %v244, 2
        %v851 = vrot.slane %v245, 2
        %v852 = vsel %vm844, %v850, %v851
        %v853 = vrot.slane %v246, 2
        %v854 = vsel %vm844, %v851, %v853
        %v855 = vrot.slane %v247, 2
        %v856 = vrot.slane %v248, 2
        %v857 = vsel %vm844, %v855, %v856
        %v858 = vrot.slane %v249, 2
        %v859 = vsel %vm844, %v856, %v858
        %v860 = vrot.slane %v250, 2
        %v861 = vrot.slane %v251, 2
        %v862 = vsel %vm844, %v860, %v861
        %v863 = vrot.slane %v252, 2
        %v864 = vsel %vm844, %v861, %v863
        %v865 = vrot.slane %v253, 2
        %v866 = vrot.slane %v254, 2
        %v867 = vsel %vm844, %v865, %v866
        %v868 = vrot.slane %v255, 2
        %v869 = vsel %vm844, %v866, %v868
        %v870 = vrot.slane %v256, 2
        %v871 = vrot.slane %v257, 2
        %v872 = vsel %vm844, %v870, %v871
        %v873 = vrot.slane %v258, 2
        %v874 = vsel %vm844, %v871, %v873
        %v875 = vrot.slane %v259, 2
        %v876 = vrot.slane %v260, 2
        %v877 = vsel %vm844, %v875, %v876
        %v878 = vrot.slane %v261, 2
        %v879 = vsel %vm844, %v876, %v878
        %v880 = vrot.slane %v262, 2
        %v881 = vrot.slane %v263, 2
        %v882 = vsel %vm844, %v880, %v881
        %v883 = vrot.slane %v264, 2
        %v884 = vsel %vm844, %v881, %v883
        %v885 = vrot.slane %v265, 2
        %v886 = vrot.slane %v266, 2
        %v887 = vsel %vm844, %v885, %v886
        %v888 = vrot.slane %v267, 2
        %v889 = vsel %vm844, %v886, %v888
        %v890 = vrot.slane %v268, 2
        %v891 = vrot.slane %v269, 2
        %v892 = vsel %vm844, %v890, %v891
        %v893 = vrot.slane %v270, 2
        %v894 = vsel %vm844, %v891, %v893
        %v895 = vrot.slane %v271, 2
        %v896 = vrot.slane %v272, 2
        %v897 = vsel %vm844, %v895, %v896
        %v898 = vrot.slane %v273, 2
        %v899 = vsel %vm844, %v896, %v898
        %v900 = vrot.slane %v274, 2
        %v901 = vrot.slane %v275, 2
        %v902 = vsel %vm844, %v900, %v901
        %v903 = vrot.slane %v276, 2
        %v904 = vsel %vm844, %v901, %v903
        %v905 = vrot.slane %v277, 2
        %v906 = vrot.slane %v278, 2
        %v907 = vsel %vm844, %v905, %v906
        %v908 = vrot.slane %v279, 2
        %v909 = vsel %vm844, %v906, %v908
        %v910 = vrot.slane %v280, 2
        %v911 = vrot.slane %v281, 2
        %v912 = vsel %vm844, %v910, %v911
        %v913 = vrot.slane %v282, 2
        %v914 = vsel %vm844, %v911, %v913
        %v915 = vrot.slane %v283, 2
        %v916 = vrot.slane %v284, 2
        %v917 = vsel %vm844, %v915, %v916
        %v918 = vrot.slane %v285, 2
        %v919 = vsel %vm844, %v916, %v918
        %v920 = vrot.slane %v286, 2
        %v921 = vrot.slane %v287, 2
        %v922 = vsel %vm844, %v920, %v921
        %v923 = vrot.slane %v288, 2
        %v924 = vsel %vm844, %v921, %v923
        %v957 = vpack.c.bf16 %v849, %v847
        %v958 = vpack.c.bf16 %v854, %v852
        %v959 = vpack.c.bf16 %v859, %v857
        %v960 = vpack.c.bf16 %v864, %v862
        %v961 = vpack.c.bf16 %v869, %v867
        %v962 = vpack.c.bf16 %v874, %v872
        %v963 = vpack.c.bf16 %v879, %v877
        %v964 = vpack.c.bf16 %v884, %v882
        %v965 = vpack.c.bf16 %v889, %v887
        %v966 = vpack.c.bf16 %v894, %v892
        %v967 = vpack.c.bf16 %v899, %v897
        %v968 = vpack.c.bf16 %v904, %v902
        %v969 = vpack.c.bf16 %v909, %v907
        %v970 = vpack.c.bf16 %v914, %v912
        %v971 = vpack.c.bf16 %v919, %v917
        %v972 = vpack.c.bf16 %v924, %v922
        %s973 = scalar_lea.vmem %s1, 4
        %v974 = vld [vmem:[%s973] sm:$0x3]
        %v976 = vsel %vm316, %v957, 0
        %v979 = vsel %vm316, %v958, 0
        %v982 = vsel %vm316, %v959, 0
        %v985 = vsel %vm316, %v960, 0
        %v988 = vsel %vm316, %v961, 0
        %v991 = vsel %vm316, %v962, 0
        %v994 = vsel %vm316, %v963, 0
        %v997 = vsel %vm316, %v964, 0
        %v1000 = vsel %vm316, %v965, 0
        %v1003 = vsel %vm316, %v966, 0
        %v1006 = vsel %vm316, %v967, 0
        %v1009 = vsel %vm316, %v968, 0
        %v1012 = vsel %vm316, %v969, 0
        %v1015 = vsel %vm316, %v970, 0
        %v1018 = vsel %vm316, %v971, 0
        %v1021 = vsel %vm316, %v972, 0
        %v1024 = vand.u32 %v974, %v368
        %1026 = vmatpush.bf16.msra.mxu0 0
        %1027 = vmatpush.bf16.msra.mxu0 0
        %1028 = vmatpush.bf16.msra.mxu0 0
        %1029 = vmatpush.bf16.msra.mxu0 0
        %1030 = vmatpush.bf16.msra.mxu0 0
        %1031 = vmatpush.bf16.msra.mxu0 0
        %1032 = vmatpush.bf16.msra.mxu0 0
        %1033 = vmatpush.bf16.msra.mxu0 %v1024
        %1034 = vmatmul.bf16.gmra.mxu0 %v976
        %v1035 = vpop.f32.mrf.mxu0
        %v1036 = vadd.f32 0.0, %v1035
        %v1037 = vpop.f32.mrf.mxu0
        %v1038 = vadd.f32 0.0, %v1037
        %1039 = vmatmul.bf16.gmra.mxu0 %v979
        %v1040 = vpop.f32.mrf.mxu0
        %v1041 = vadd.f32 0.0, %v1040
        %v1042 = vpop.f32.mrf.mxu0
        %v1043 = vadd.f32 0.0, %v1042
        %1044 = vmatmul.bf16.gmra.mxu0 %v982
        %v1045 = vpop.f32.mrf.mxu0
        %v1046 = vadd.f32 0.0, %v1045
        %v1047 = vpop.f32.mrf.mxu0
        %v1048 = vadd.f32 0.0, %v1047
        %1049 = vmatmul.bf16.gmra.mxu0 %v985
        %v1050 = vpop.f32.mrf.mxu0
        %v1051 = vadd.f32 0.0, %v1050
        %v1052 = vpop.f32.mrf.mxu0
        %v1053 = vadd.f32 0.0, %v1052
        %1054 = vmatmul.bf16.gmra.mxu0 %v988
        %v1055 = vpop.f32.mrf.mxu0
        %v1056 = vadd.f32 0.0, %v1055
        %v1057 = vpop.f32.mrf.mxu0
        %v1058 = vadd.f32 0.0, %v1057
        %1059 = vmatmul.bf16.gmra.mxu0 %v991
        %v1060 = vpop.f32.mrf.mxu0
        %v1061 = vadd.f32 0.0, %v1060
        %v1062 = vpop.f32.mrf.mxu0
        %v1063 = vadd.f32 0.0, %v1062
        %1064 = vmatmul.bf16.gmra.mxu0 %v994
        %v1065 = vpop.f32.mrf.mxu0
        %v1066 = vadd.f32 0.0, %v1065
        %v1067 = vpop.f32.mrf.mxu0
        %v1068 = vadd.f32 0.0, %v1067
        %1069 = vmatmul.bf16.gmra.mxu0 %v997
        %v1070 = vpop.f32.mrf.mxu0
        %v1071 = vadd.f32 0.0, %v1070
        %v1072 = vpop.f32.mrf.mxu0
        %v1073 = vadd.f32 0.0, %v1072
        %1074 = vmatmul.bf16.gmra.mxu0 %v1000
        %v1075 = vpop.f32.mrf.mxu0
        %v1076 = vadd.f32 0.0, %v1075
        %v1077 = vpop.f32.mrf.mxu0
        %v1078 = vadd.f32 0.0, %v1077
        %1079 = vmatmul.bf16.gmra.mxu0 %v1003
        %v1080 = vpop.f32.mrf.mxu0
        %v1081 = vadd.f32 0.0, %v1080
        %v1082 = vpop.f32.mrf.mxu0
        %v1083 = vadd.f32 0.0, %v1082
        %1084 = vmatmul.bf16.gmra.mxu0 %v1006
        %v1085 = vpop.f32.mrf.mxu0
        %v1086 = vadd.f32 0.0, %v1085
        %v1087 = vpop.f32.mrf.mxu0
        %v1088 = vadd.f32 0.0, %v1087
        %1089 = vmatmul.bf16.gmra.mxu0 %v1009
        %v1090 = vpop.f32.mrf.mxu0
        %v1091 = vadd.f32 0.0, %v1090
        %v1092 = vpop.f32.mrf.mxu0
        %v1093 = vadd.f32 0.0, %v1092
        %1094 = vmatmul.bf16.gmra.mxu0 %v1012
        %v1095 = vpop.f32.mrf.mxu0
        %v1096 = vadd.f32 0.0, %v1095
        %v1097 = vpop.f32.mrf.mxu0
        %v1098 = vadd.f32 0.0, %v1097
        %1099 = vmatmul.bf16.gmra.mxu0 %v1015
        %v1100 = vpop.f32.mrf.mxu0
        %v1101 = vadd.f32 0.0, %v1100
        %v1102 = vpop.f32.mrf.mxu0
        %v1103 = vadd.f32 0.0, %v1102
        %1104 = vmatmul.bf16.gmra.mxu0 %v1018
        %v1105 = vpop.f32.mrf.mxu0
        %v1106 = vadd.f32 0.0, %v1105
        %v1107 = vpop.f32.mrf.mxu0
        %v1108 = vadd.f32 0.0, %v1107
        %1109 = vmatmul.bf16.gmra.mxu0 %v1021
        %v1110 = vpop.f32.mrf.mxu0
        %v1111 = vadd.f32 0.0, %v1110
        %v1112 = vpop.f32.mrf.mxu0
        %v1113 = vadd.f32 0.0, %v1112
        %1114 = vdwg.mxu0
        %v1115 = vadd.f32 %v812, %v1036
        %v1116 = vadd.f32 %v813, %v1038
        %v1117 = vadd.f32 %v814, %v1041
        %v1118 = vadd.f32 %v815, %v1043
        %v1119 = vadd.f32 %v816, %v1046
        %v1120 = vadd.f32 %v817, %v1048
        %v1121 = vadd.f32 %v818, %v1051
        %v1122 = vadd.f32 %v819, %v1053
        %v1123 = vadd.f32 %v820, %v1056
        %v1124 = vadd.f32 %v821, %v1058
        %v1125 = vadd.f32 %v822, %v1061
        %v1126 = vadd.f32 %v823, %v1063
        %v1127 = vadd.f32 %v824, %v1066
        %v1128 = vadd.f32 %v825, %v1068
        %v1129 = vadd.f32 %v826, %v1071
        %v1130 = vadd.f32 %v827, %v1073
        %v1131 = vadd.f32 %v828, %v1076
        %v1132 = vadd.f32 %v829, %v1078
        %v1133 = vadd.f32 %v830, %v1081
        %v1134 = vadd.f32 %v831, %v1083
        %v1135 = vadd.f32 %v832, %v1086
        %v1136 = vadd.f32 %v833, %v1088
        %v1137 = vadd.f32 %v834, %v1091
        %v1138 = vadd.f32 %v835, %v1093
        %v1139 = vadd.f32 %v836, %v1096
        %v1140 = vadd.f32 %v837, %v1098
        %v1141 = vadd.f32 %v838, %v1101
        %v1142 = vadd.f32 %v839, %v1103
        %v1143 = vadd.f32 %v840, %v1106
        %v1144 = vadd.f32 %v841, %v1108
        %v1145 = vadd.f32 %v842, %v1111
        %v1146 = vadd.f32 %v843, %v1113
        %v1147 = vpack.c.bf16 %v290, %v289
        %s1148 = scalar_lea.vmem %s1, 6
        %v1149 = vld [vmem:[%s1148] sm:$0x3]
        %v1151 = vsel %vm316, %v1147, 0
        %v1154 = vand.u32 %v1149, %v368
        %1156 = vmatpush.bf16.msra.mxu0 0
        %1157 = vmatpush.bf16.msra.mxu0 0
        %1158 = vmatpush.bf16.msra.mxu0 0
        %1159 = vmatpush.bf16.msra.mxu0 0
        %1160 = vmatpush.bf16.msra.mxu0 0
        %1161 = vmatpush.bf16.msra.mxu0 0
        %1162 = vmatpush.bf16.msra.mxu0 0
        %1163 = vmatpush.bf16.msra.mxu0 %v1154
        %1164 = vmatmul.bf16.gmra.mxu0 %v321
        %v1165 = vpop.f32.mrf.mxu0
        %v1166 = vadd.f32 0.0, %v1165
        %v1167 = vpop.f32.mrf.mxu0
        %v1168 = vadd.f32 0.0, %v1167
        %1169 = vmatmul.bf16.gmra.mxu0 %v324
        %v1170 = vpop.f32.mrf.mxu0
        %v1171 = vadd.f32 0.0, %v1170
        %v1172 = vpop.f32.mrf.mxu0
        %v1173 = vadd.f32 0.0, %v1172
        %1174 = vmatmul.bf16.gmra.mxu0 %v327
        %v1175 = vpop.f32.mrf.mxu0
        %v1176 = vadd.f32 0.0, %v1175
        %v1177 = vpop.f32.mrf.mxu0
        %v1178 = vadd.f32 0.0, %v1177
        %1179 = vmatmul.bf16.gmra.mxu0 %v330
        %v1180 = vpop.f32.mrf.mxu0
        %v1181 = vadd.f32 0.0, %v1180
        %v1182 = vpop.f32.mrf.mxu0
        %v1183 = vadd.f32 0.0, %v1182
        %1184 = vmatmul.bf16.gmra.mxu0 %v333
        %v1185 = vpop.f32.mrf.mxu0
        %v1186 = vadd.f32 0.0, %v1185
        %v1187 = vpop.f32.mrf.mxu0
        %v1188 = vadd.f32 0.0, %v1187
        %1189 = vmatmul.bf16.gmra.mxu0 %v336
        %v1190 = vpop.f32.mrf.mxu0
        %v1191 = vadd.f32 0.0, %v1190
        %v1192 = vpop.f32.mrf.mxu0
        %v1193 = vadd.f32 0.0, %v1192
        %1194 = vmatmul.bf16.gmra.mxu0 %v339
        %v1195 = vpop.f32.mrf.mxu0
        %v1196 = vadd.f32 0.0, %v1195
        %v1197 = vpop.f32.mrf.mxu0
        %v1198 = vadd.f32 0.0, %v1197
        %1199 = vmatmul.bf16.gmra.mxu0 %v342
        %v1200 = vpop.f32.mrf.mxu0
        %v1201 = vadd.f32 0.0, %v1200
        %v1202 = vpop.f32.mrf.mxu0
        %v1203 = vadd.f32 0.0, %v1202
        %1204 = vmatmul.bf16.gmra.mxu0 %v345
        %v1205 = vpop.f32.mrf.mxu0
        %v1206 = vadd.f32 0.0, %v1205
        %v1207 = vpop.f32.mrf.mxu0
        %v1208 = vadd.f32 0.0, %v1207
        %1209 = vmatmul.bf16.gmra.mxu0 %v348
        %v1210 = vpop.f32.mrf.mxu0
        %v1211 = vadd.f32 0.0, %v1210
        %v1212 = vpop.f32.mrf.mxu0
        %v1213 = vadd.f32 0.0, %v1212
        %1214 = vmatmul.bf16.gmra.mxu0 %v351
        %v1215 = vpop.f32.mrf.mxu0
        %v1216 = vadd.f32 0.0, %v1215
        %v1217 = vpop.f32.mrf.mxu0
        %v1218 = vadd.f32 0.0, %v1217
        %1219 = vmatmul.bf16.gmra.mxu0 %v354
        %v1220 = vpop.f32.mrf.mxu0
        %v1221 = vadd.f32 0.0, %v1220
        %v1222 = vpop.f32.mrf.mxu0
        %v1223 = vadd.f32 0.0, %v1222
        %1224 = vmatmul.bf16.gmra.mxu0 %v357
        %v1225 = vpop.f32.mrf.mxu0
        %v1226 = vadd.f32 0.0, %v1225
        %v1227 = vpop.f32.mrf.mxu0
        %v1228 = vadd.f32 0.0, %v1227
        %1229 = vmatmul.bf16.gmra.mxu0 %v360
        %v1230 = vpop.f32.mrf.mxu0
        %v1231 = vadd.f32 0.0, %v1230
        %v1232 = vpop.f32.mrf.mxu0
        %v1233 = vadd.f32 0.0, %v1232
        %1234 = vmatmul.bf16.gmra.mxu0 %v363
        %v1235 = vpop.f32.mrf.mxu0
        %v1236 = vadd.f32 0.0, %v1235
        %v1237 = vpop.f32.mrf.mxu0
        %v1238 = vadd.f32 0.0, %v1237
        %1239 = vmatmul.bf16.gmra.mxu0 %v1151
        %v1240 = vpop.f32.mrf.mxu0
        %v1241 = vadd.f32 0.0, %v1240
        %v1242 = vpop.f32.mrf.mxu0
        %v1243 = vadd.f32 0.0, %v1242
        %1244 = vdwg.mxu0
        %v1245 = vadd.f32 %v1115, %v1166
        %v1246 = vadd.f32 %v1116, %v1168
        %v1247 = vadd.f32 %v1117, %v1171
        %v1248 = vadd.f32 %v1118, %v1173
        %v1249 = vadd.f32 %v1119, %v1176
        %v1250 = vadd.f32 %v1120, %v1178
        %v1251 = vadd.f32 %v1121, %v1181
        %v1252 = vadd.f32 %v1122, %v1183
        %v1253 = vadd.f32 %v1123, %v1186
        %v1254 = vadd.f32 %v1124, %v1188
        %v1255 = vadd.f32 %v1125, %v1191
        %v1256 = vadd.f32 %v1126, %v1193
        %v1257 = vadd.f32 %v1127, %v1196
        %v1258 = vadd.f32 %v1128, %v1198
        %v1259 = vadd.f32 %v1129, %v1201
        %v1260 = vadd.f32 %v1130, %v1203
        %v1261 = vadd.f32 %v1131, %v1206
        %v1262 = vadd.f32 %v1132, %v1208
        %v1263 = vadd.f32 %v1133, %v1211
        %v1264 = vadd.f32 %v1134, %v1213
        %v1265 = vadd.f32 %v1135, %v1216
        %v1266 = vadd.f32 %v1136, %v1218
        %v1267 = vadd.f32 %v1137, %v1221
        %v1268 = vadd.f32 %v1138, %v1223
        %v1269 = vadd.f32 %v1139, %v1226
        %v1270 = vadd.f32 %v1140, %v1228
        %v1271 = vadd.f32 %v1141, %v1231
        %v1272 = vadd.f32 %v1142, %v1233
        %v1273 = vadd.f32 %v1143, %v1236
        %v1274 = vadd.f32 %v1144, %v1238
        %v1275 = vadd.f32 %v1145, %v1241
        %v1276 = vadd.f32 %v1146, %v1243
        %v1280 = vrot.slane %v289, 1
        %v1281 = vrot.slane %v290, 1
        %v1282 = vsel %vm541, %v1280, %v1281
        %v1283 = vrot.slane %v291, 1
        %v1284 = vsel %vm541, %v1281, %v1283
        %v1287 = vpack.c.bf16 %v1284, %v1282
        %s1288 = scalar_lea.vmem %s1, 8
        %v1289 = vld [vmem:[%s1288] sm:$0x3]
        %v1291 = vsel %vm316, %v1287, 0
        %v1294 = vand.u32 %v1289, %v368
        %1296 = vmatpush.bf16.msra.mxu0 0
        %1297 = vmatpush.bf16.msra.mxu0 0
        %1298 = vmatpush.bf16.msra.mxu0 0
        %1299 = vmatpush.bf16.msra.mxu0 0
        %1300 = vmatpush.bf16.msra.mxu0 0
        %1301 = vmatpush.bf16.msra.mxu0 0
        %1302 = vmatpush.bf16.msra.mxu0 0
        %1303 = vmatpush.bf16.msra.mxu0 %v1294
        %1304 = vmatmul.bf16.gmra.mxu0 %v676
        %v1305 = vpop.f32.mrf.mxu0
        %v1306 = vadd.f32 0.0, %v1305
        %v1307 = vpop.f32.mrf.mxu0
        %v1308 = vadd.f32 0.0, %v1307
        %1309 = vmatmul.bf16.gmra.mxu0 %v679
        %v1310 = vpop.f32.mrf.mxu0
        %v1311 = vadd.f32 0.0, %v1310
        %v1312 = vpop.f32.mrf.mxu0
        %v1313 = vadd.f32 0.0, %v1312
        %1314 = vmatmul.bf16.gmra.mxu0 %v682
        %v1315 = vpop.f32.mrf.mxu0
        %v1316 = vadd.f32 0.0, %v1315
        %v1317 = vpop.f32.mrf.mxu0
        %v1318 = vadd.f32 0.0, %v1317
        %1319 = vmatmul.bf16.gmra.mxu0 %v685
        %v1320 = vpop.f32.mrf.mxu0
        %v1321 = vadd.f32 0.0, %v1320
        %v1322 = vpop.f32.mrf.mxu0
        %v1323 = vadd.f32 0.0, %v1322
        %1324 = vmatmul.bf16.gmra.mxu0 %v688
        %v1325 = vpop.f32.mrf.mxu0
        %v1326 = vadd.f32 0.0, %v1325
        %v1327 = vpop.f32.mrf.mxu0
        %v1328 = vadd.f32 0.0, %v1327
        %1329 = vmatmul.bf16.gmra.mxu0 %v691
        %v1330 = vpop.f32.mrf.mxu0
        %v1331 = vadd.f32 0.0, %v1330
        %v1332 = vpop.f32.mrf.mxu0
        %v1333 = vadd.f32 0.0, %v1332
        %1334 = vmatmul.bf16.gmra.mxu0 %v694
        %v1335 = vpop.f32.mrf.mxu0
        %v1336 = vadd.f32 0.0, %v1335
        %v1337 = vpop.f32.mrf.mxu0
        %v1338 = vadd.f32 0.0, %v1337
        %1339 = vmatmul.bf16.gmra.mxu0 %v697
        %v1340 = vpop.f32.mrf.mxu0
        %v1341 = vadd.f32 0.0, %v1340
        %v1342 = vpop.f32.mrf.mxu0
        %v1343 = vadd.f32 0.0, %v1342
        %1344 = vmatmul.bf16.gmra.mxu0 %v700
        %v1345 = vpop.f32.mrf.mxu0
        %v1346 = vadd.f32 0.0, %v1345
        %v1347 = vpop.f32.mrf.mxu0
        %v1348 = vadd.f32 0.0, %v1347
        %1349 = vmatmul.bf16.gmra.mxu0 %v703
        %v1350 = vpop.f32.mrf.mxu0
        %v1351 = vadd.f32 0.0, %v1350
        %v1352 = vpop.f32.mrf.mxu0
        %v1353 = vadd.f32 0.0, %v1352
        %1354 = vmatmul.bf16.gmra.mxu0 %v706
        %v1355 = vpop.f32.mrf.mxu0
        %v1356 = vadd.f32 0.0, %v1355
        %v1357 = vpop.f32.mrf.mxu0
        %v1358 = vadd.f32 0.0, %v1357
        %1359 = vmatmul.bf16.gmra.mxu0 %v709
        %v1360 = vpop.f32.mrf.mxu0
        %v1361 = vadd.f32 0.0, %v1360
        %v1362 = vpop.f32.mrf.mxu0
        %v1363 = vadd.f32 0.0, %v1362
        %1364 = vmatmul.bf16.gmra.mxu0 %v712
        %v1365 = vpop.f32.mrf.mxu0
        %v1366 = vadd.f32 0.0, %v1365
        %v1367 = vpop.f32.mrf.mxu0
        %v1368 = vadd.f32 0.0, %v1367
        %1369 = vmatmul.bf16.gmra.mxu0 %v715
        %v1370 = vpop.f32.mrf.mxu0
        %v1371 = vadd.f32 0.0, %v1370
        %v1372 = vpop.f32.mrf.mxu0
        %v1373 = vadd.f32 0.0, %v1372
        %1374 = vmatmul.bf16.gmra.mxu0 %v718
        %v1375 = vpop.f32.mrf.mxu0
        %v1376 = vadd.f32 0.0, %v1375
        %v1377 = vpop.f32.mrf.mxu0
        %v1378 = vadd.f32 0.0, %v1377
        %1379 = vmatmul.bf16.gmra.mxu0 %v1291
        %v1380 = vpop.f32.mrf.mxu0
        %v1381 = vadd.f32 0.0, %v1380
        %v1382 = vpop.f32.mrf.mxu0
        %v1383 = vadd.f32 0.0, %v1382
        %1384 = vdwg.mxu0
        %v1385 = vadd.f32 %v1245, %v1306
        %v1386 = vadd.f32 %v1246, %v1308
        %v1387 = vadd.f32 %v1247, %v1311
        %v1388 = vadd.f32 %v1248, %v1313
        %v1389 = vadd.f32 %v1249, %v1316
        %v1390 = vadd.f32 %v1250, %v1318
        %v1391 = vadd.f32 %v1251, %v1321
        %v1392 = vadd.f32 %v1252, %v1323
        %v1393 = vadd.f32 %v1253, %v1326
        %v1394 = vadd.f32 %v1254, %v1328
        %v1395 = vadd.f32 %v1255, %v1331
        %v1396 = vadd.f32 %v1256, %v1333
        %v1397 = vadd.f32 %v1257, %v1336
        %v1398 = vadd.f32 %v1258, %v1338
        %v1399 = vadd.f32 %v1259, %v1341
        %v1400 = vadd.f32 %v1260, %v1343
        %v1401 = vadd.f32 %v1261, %v1346
        %v1402 = vadd.f32 %v1262, %v1348
        %v1403 = vadd.f32 %v1263, %v1351
        %v1404 = vadd.f32 %v1264, %v1353
        %v1405 = vadd.f32 %v1265, %v1356
        %v1406 = vadd.f32 %v1266, %v1358
        %v1407 = vadd.f32 %v1267, %v1361
        %v1408 = vadd.f32 %v1268, %v1363
        %v1409 = vadd.f32 %v1269, %v1366
        %v1410 = vadd.f32 %v1270, %v1368
        %v1411 = vadd.f32 %v1271, %v1371
        %v1412 = vadd.f32 %v1272, %v1373
        %v1413 = vadd.f32 %v1273, %v1376
        %v1414 = vadd.f32 %v1274, %v1378
        %v1415 = vadd.f32 %v1275, %v1381
        %v1416 = vadd.f32 %v1276, %v1383
        %v1417 = vrot.slane %v289, 2
        %v1418 = vrot.slane %v290, 2
        %v1419 = vsel %vm844, %v1417, %v1418
        %v1420 = vrot.slane %v291, 2
        %v1421 = vsel %vm844, %v1418, %v1420
        %v1424 = vpack.c.bf16 %v1421, %v1419
        %s1425 = scalar_lea.vmem %s1, 10
        %v1426 = vld [vmem:[%s1425] sm:$0x3]
        %v1428 = vsel %vm316, %v1424, 0
        %v1431 = vand.u32 %v1426, %v368
        %1433 = vmatpush.bf16.msra.mxu0 0
        %1434 = vmatpush.bf16.msra.mxu0 0
        %1435 = vmatpush.bf16.msra.mxu0 0
        %1436 = vmatpush.bf16.msra.mxu0 0
        %1437 = vmatpush.bf16.msra.mxu0 0
        %1438 = vmatpush.bf16.msra.mxu0 0
        %1439 = vmatpush.bf16.msra.mxu0 0
        %1440 = vmatpush.bf16.msra.mxu0 %v1431
        %1441 = vmatmul.bf16.gmra.mxu0 %v979
        %v1442 = vpop.f32.mrf.mxu0
        %v1443 = vadd.f32 0.0, %v1442
        %v1444 = vpop.f32.mrf.mxu0
        %v1445 = vadd.f32 0.0, %v1444
        %1446 = vmatmul.bf16.gmra.mxu0 %v982
        %v1447 = vpop.f32.mrf.mxu0
        %v1448 = vadd.f32 0.0, %v1447
        %v1449 = vpop.f32.mrf.mxu0
        %v1450 = vadd.f32 0.0, %v1449
        %1451 = vmatmul.bf16.gmra.mxu0 %v985
        %v1452 = vpop.f32.mrf.mxu0
        %v1453 = vadd.f32 0.0, %v1452
        %v1454 = vpop.f32.mrf.mxu0
        %v1455 = vadd.f32 0.0, %v1454
        %1456 = vmatmul.bf16.gmra.mxu0 %v988
        %v1457 = vpop.f32.mrf.mxu0
        %v1458 = vadd.f32 0.0, %v1457
        %v1459 = vpop.f32.mrf.mxu0
        %v1460 = vadd.f32 0.0, %v1459
        %1461 = vmatmul.bf16.gmra.mxu0 %v991
        %v1462 = vpop.f32.mrf.mxu0
        %v1463 = vadd.f32 0.0, %v1462
        %v1464 = vpop.f32.mrf.mxu0
        %v1465 = vadd.f32 0.0, %v1464
        %1466 = vmatmul.bf16.gmra.mxu0 %v994
        %v1467 = vpop.f32.mrf.mxu0
        %v1468 = vadd.f32 0.0, %v1467
        %v1469 = vpop.f32.mrf.mxu0
        %v1470 = vadd.f32 0.0, %v1469
        %1471 = vmatmul.bf16.gmra.mxu0 %v997
        %v1472 = vpop.f32.mrf.mxu0
        %v1473 = vadd.f32 0.0, %v1472
        %v1474 = vpop.f32.mrf.mxu0
        %v1475 = vadd.f32 0.0, %v1474
        %1476 = vmatmul.bf16.gmra.mxu0 %v1000
        %v1477 = vpop.f32.mrf.mxu0
        %v1478 = vadd.f32 0.0, %v1477
        %v1479 = vpop.f32.mrf.mxu0
        %v1480 = vadd.f32 0.0, %v1479
        %1481 = vmatmul.bf16.gmra.mxu0 %v1003
        %v1482 = vpop.f32.mrf.mxu0
        %v1483 = vadd.f32 0.0, %v1482
        %v1484 = vpop.f32.mrf.mxu0
        %v1485 = vadd.f32 0.0, %v1484
        %1486 = vmatmul.bf16.gmra.mxu0 %v1006
        %v1487 = vpop.f32.mrf.mxu0
        %v1488 = vadd.f32 0.0, %v1487
        %v1489 = vpop.f32.mrf.mxu0
        %v1490 = vadd.f32 0.0, %v1489
        %1491 = vmatmul.bf16.gmra.mxu0 %v1009
        %v1492 = vpop.f32.mrf.mxu0
        %v1493 = vadd.f32 0.0, %v1492
        %v1494 = vpop.f32.mrf.mxu0
        %v1495 = vadd.f32 0.0, %v1494
        %1496 = vmatmul.bf16.gmra.mxu0 %v1012
        %v1497 = vpop.f32.mrf.mxu0
        %v1498 = vadd.f32 0.0, %v1497
        %v1499 = vpop.f32.mrf.mxu0
        %v1500 = vadd.f32 0.0, %v1499
        %1501 = vmatmul.bf16.gmra.mxu0 %v1015
        %v1502 = vpop.f32.mrf.mxu0
        %v1503 = vadd.f32 0.0, %v1502
        %v1504 = vpop.f32.mrf.mxu0
        %v1505 = vadd.f32 0.0, %v1504
        %1506 = vmatmul.bf16.gmra.mxu0 %v1018
        %v1507 = vpop.f32.mrf.mxu0
        %v1508 = vadd.f32 0.0, %v1507
        %v1509 = vpop.f32.mrf.mxu0
        %v1510 = vadd.f32 0.0, %v1509
        %1511 = vmatmul.bf16.gmra.mxu0 %v1021
        %v1512 = vpop.f32.mrf.mxu0
        %v1513 = vadd.f32 0.0, %v1512
        %v1514 = vpop.f32.mrf.mxu0
        %v1515 = vadd.f32 0.0, %v1514
        %1516 = vmatmul.bf16.gmra.mxu0 %v1428
        %v1517 = vpop.f32.mrf.mxu0
        %v1518 = vadd.f32 0.0, %v1517
        %v1519 = vpop.f32.mrf.mxu0
        %v1520 = vadd.f32 0.0, %v1519
        %1521 = vdwg.mxu0
        %v1522 = vadd.f32 %v1385, %v1443
        %v1523 = vadd.f32 %v1386, %v1445
        %v1524 = vadd.f32 %v1387, %v1448
        %v1525 = vadd.f32 %v1388, %v1450
        %v1526 = vadd.f32 %v1389, %v1453
        %v1527 = vadd.f32 %v1390, %v1455
        %v1528 = vadd.f32 %v1391, %v1458
        %v1529 = vadd.f32 %v1392, %v1460
        %v1530 = vadd.f32 %v1393, %v1463
        %v1531 = vadd.f32 %v1394, %v1465
        %v1532 = vadd.f32 %v1395, %v1468
        %v1533 = vadd.f32 %v1396, %v1470
        %v1534 = vadd.f32 %v1397, %v1473
        %v1535 = vadd.f32 %v1398, %v1475
        %v1536 = vadd.f32 %v1399, %v1478
        %v1537 = vadd.f32 %v1400, %v1480
        %v1538 = vadd.f32 %v1401, %v1483
        %v1539 = vadd.f32 %v1402, %v1485
        %v1540 = vadd.f32 %v1403, %v1488
        %v1541 = vadd.f32 %v1404, %v1490
        %v1542 = vadd.f32 %v1405, %v1493
        %v1543 = vadd.f32 %v1406, %v1495
        %v1544 = vadd.f32 %v1407, %v1498
        %v1545 = vadd.f32 %v1408, %v1500
        %v1546 = vadd.f32 %v1409, %v1503
        %v1547 = vadd.f32 %v1410, %v1505
        %v1548 = vadd.f32 %v1411, %v1508
        %v1549 = vadd.f32 %v1412, %v1510
        %v1550 = vadd.f32 %v1413, %v1513
        %v1551 = vadd.f32 %v1414, %v1515
        %v1552 = vadd.f32 %v1415, %v1518
        %v1553 = vadd.f32 %v1416, %v1520
        %v1554 = vpack.c.bf16 %v293, %v292
        %s1555 = scalar_lea.vmem %s1, 12
        %v1556 = vld [vmem:[%s1555] sm:$0x3]
        %v1558 = vsel %vm316, %v1554, 0
        %v1561 = vand.u32 %v1556, %v368
        %1563 = vmatpush.bf16.msra.mxu0 0
        %1564 = vmatpush.bf16.msra.mxu0 0
        %1565 = vmatpush.bf16.msra.mxu0 0
        %1566 = vmatpush.bf16.msra.mxu0 0
        %1567 = vmatpush.bf16.msra.mxu0 0
        %1568 = vmatpush.bf16.msra.mxu0 0
        %1569 = vmatpush.bf16.msra.mxu0 0
        %1570 = vmatpush.bf16.msra.mxu0 %v1561
        %1571 = vmatmul.bf16.gmra.mxu0 %v324
        %v1572 = vpop.f32.mrf.mxu0
        %v1573 = vadd.f32 0.0, %v1572
        %v1574 = vpop.f32.mrf.mxu0
        %v1575 = vadd.f32 0.0, %v1574
        %1576 = vmatmul.bf16.gmra.mxu0 %v327
        %v1577 = vpop.f32.mrf.mxu0
        %v1578 = vadd.f32 0.0, %v1577
        %v1579 = vpop.f32.mrf.mxu0
        %v1580 = vadd.f32 0.0, %v1579
        %1581 = vmatmul.bf16.gmra.mxu0 %v330
        %v1582 = vpop.f32.mrf.mxu0
        %v1583 = vadd.f32 0.0, %v1582
        %v1584 = vpop.f32.mrf.mxu0
        %v1585 = vadd.f32 0.0, %v1584
        %1586 = vmatmul.bf16.gmra.mxu0 %v333
        %v1587 = vpop.f32.mrf.mxu0
        %v1588 = vadd.f32 0.0, %v1587
        %v1589 = vpop.f32.mrf.mxu0
        %v1590 = vadd.f32 0.0, %v1589
        %1591 = vmatmul.bf16.gmra.mxu0 %v336
        %v1592 = vpop.f32.mrf.mxu0
        %v1593 = vadd.f32 0.0, %v1592
        %v1594 = vpop.f32.mrf.mxu0
        %v1595 = vadd.f32 0.0, %v1594
        %1596 = vmatmul.bf16.gmra.mxu0 %v339
        %v1597 = vpop.f32.mrf.mxu0
        %v1598 = vadd.f32 0.0, %v1597
        %v1599 = vpop.f32.mrf.mxu0
        %v1600 = vadd.f32 0.0, %v1599
        %1601 = vmatmul.bf16.gmra.mxu0 %v342
        %v1602 = vpop.f32.mrf.mxu0
        %v1603 = vadd.f32 0.0, %v1602
        %v1604 = vpop.f32.mrf.mxu0
        %v1605 = vadd.f32 0.0, %v1604
        %1606 = vmatmul.bf16.gmra.mxu0 %v345
        %v1607 = vpop.f32.mrf.mxu0
        %v1608 = vadd.f32 0.0, %v1607
        %v1609 = vpop.f32.mrf.mxu0
        %v1610 = vadd.f32 0.0, %v1609
        %1611 = vmatmul.bf16.gmra.mxu0 %v348
        %v1612 = vpop.f32.mrf.mxu0
        %v1613 = vadd.f32 0.0, %v1612
        %v1614 = vpop.f32.mrf.mxu0
        %v1615 = vadd.f32 0.0, %v1614
        %1616 = vmatmul.bf16.gmra.mxu0 %v351
        %v1617 = vpop.f32.mrf.mxu0
        %v1618 = vadd.f32 0.0, %v1617
        %v1619 = vpop.f32.mrf.mxu0
        %v1620 = vadd.f32 0.0, %v1619
        %1621 = vmatmul.bf16.gmra.mxu0 %v354
        %v1622 = vpop.f32.mrf.mxu0
        %v1623 = vadd.f32 0.0, %v1622
        %v1624 = vpop.f32.mrf.mxu0
        %v1625 = vadd.f32 0.0, %v1624
        %1626 = vmatmul.bf16.gmra.mxu0 %v357
        %v1627 = vpop.f32.mrf.mxu0
        %v1628 = vadd.f32 0.0, %v1627
        %v1629 = vpop.f32.mrf.mxu0
        %v1630 = vadd.f32 0.0, %v1629
        %1631 = vmatmul.bf16.gmra.mxu0 %v360
        %v1632 = vpop.f32.mrf.mxu0
        %v1633 = vadd.f32 0.0, %v1632
        %v1634 = vpop.f32.mrf.mxu0
        %v1635 = vadd.f32 0.0, %v1634
        %1636 = vmatmul.bf16.gmra.mxu0 %v363
        %v1637 = vpop.f32.mrf.mxu0
        %v1638 = vadd.f32 0.0, %v1637
        %v1639 = vpop.f32.mrf.mxu0
        %v1640 = vadd.f32 0.0, %v1639
        %1641 = vmatmul.bf16.gmra.mxu0 %v1151
        %v1642 = vpop.f32.mrf.mxu0
        %v1643 = vadd.f32 0.0, %v1642
        %v1644 = vpop.f32.mrf.mxu0
        %v1645 = vadd.f32 0.0, %v1644
        %1646 = vmatmul.bf16.gmra.mxu0 %v1558
        %v1647 = vpop.f32.mrf.mxu0
        %v1648 = vadd.f32 0.0, %v1647
        %v1649 = vpop.f32.mrf.mxu0
        %v1650 = vadd.f32 0.0, %v1649
        %1651 = vdwg.mxu0
        %v1652 = vadd.f32 %v1522, %v1573
        %v1653 = vadd.f32 %v1523, %v1575
        %v1654 = vadd.f32 %v1524, %v1578
        %v1655 = vadd.f32 %v1525, %v1580
        %v1656 = vadd.f32 %v1526, %v1583
        %v1657 = vadd.f32 %v1527, %v1585
        %v1658 = vadd.f32 %v1528, %v1588
        %v1659 = vadd.f32 %v1529, %v1590
        %v1660 = vadd.f32 %v1530, %v1593
        %v1661 = vadd.f32 %v1531, %v1595
        %v1662 = vadd.f32 %v1532, %v1598
        %v1663 = vadd.f32 %v1533, %v1600
        %v1664 = vadd.f32 %v1534, %v1603
        %v1665 = vadd.f32 %v1535, %v1605
        %v1666 = vadd.f32 %v1536, %v1608
        %v1667 = vadd.f32 %v1537, %v1610
        %v1668 = vadd.f32 %v1538, %v1613
        %v1669 = vadd.f32 %v1539, %v1615
        %v1670 = vadd.f32 %v1540, %v1618
        %v1671 = vadd.f32 %v1541, %v1620
        %v1672 = vadd.f32 %v1542, %v1623
        %v1673 = vadd.f32 %v1543, %v1625
        %v1674 = vadd.f32 %v1544, %v1628
        %v1675 = vadd.f32 %v1545, %v1630
        %v1676 = vadd.f32 %v1546, %v1633
        %v1677 = vadd.f32 %v1547, %v1635
        %v1678 = vadd.f32 %v1548, %v1638
        %v1679 = vadd.f32 %v1549, %v1640
        %v1680 = vadd.f32 %v1550, %v1643
        %v1681 = vadd.f32 %v1551, %v1645
        %v1682 = vadd.f32 %v1552, %v1648
        %v1683 = vadd.f32 %v1553, %v1650
        %v1687 = vrot.slane %v292, 1
        %v1688 = vrot.slane %v293, 1
        %v1689 = vsel %vm541, %v1687, %v1688
        %v1690 = vrot.slane %v294, 1
        %v1691 = vsel %vm541, %v1688, %v1690
        %v1694 = vpack.c.bf16 %v1691, %v1689
        %s1695 = scalar_lea.vmem %s1, 14
        %v1696 = vld [vmem:[%s1695] sm:$0x3]
        %v1698 = vsel %vm316, %v1694, 0
        %v1701 = vand.u32 %v1696, %v368
        %1703 = vmatpush.bf16.msra.mxu0 0
        %1704 = vmatpush.bf16.msra.mxu0 0
        %1705 = vmatpush.bf16.msra.mxu0 0
        %1706 = vmatpush.bf16.msra.mxu0 0
        %1707 = vmatpush.bf16.msra.mxu0 0
        %1708 = vmatpush.bf16.msra.mxu0 0
        %1709 = vmatpush.bf16.msra.mxu0 0
        %1710 = vmatpush.bf16.msra.mxu0 %v1701
        %1711 = vmatmul.bf16.gmra.mxu0 %v679
        %v1712 = vpop.f32.mrf.mxu0
        %v1713 = vadd.f32 0.0, %v1712
        %v1714 = vpop.f32.mrf.mxu0
        %v1715 = vadd.f32 0.0, %v1714
        %1716 = vmatmul.bf16.gmra.mxu0 %v682
        %v1717 = vpop.f32.mrf.mxu0
        %v1718 = vadd.f32 0.0, %v1717
        %v1719 = vpop.f32.mrf.mxu0
        %v1720 = vadd.f32 0.0, %v1719
        %1721 = vmatmul.bf16.gmra.mxu0 %v685
        %v1722 = vpop.f32.mrf.mxu0
        %v1723 = vadd.f32 0.0, %v1722
        %v1724 = vpop.f32.mrf.mxu0
        %v1725 = vadd.f32 0.0, %v1724
        %1726 = vmatmul.bf16.gmra.mxu0 %v688
        %v1727 = vpop.f32.mrf.mxu0
        %v1728 = vadd.f32 0.0, %v1727
        %v1729 = vpop.f32.mrf.mxu0
        %v1730 = vadd.f32 0.0, %v1729
        %1731 = vmatmul.bf16.gmra.mxu0 %v691
        %v1732 = vpop.f32.mrf.mxu0
        %v1733 = vadd.f32 0.0, %v1732
        %v1734 = vpop.f32.mrf.mxu0
        %v1735 = vadd.f32 0.0, %v1734
        %1736 = vmatmul.bf16.gmra.mxu0 %v694
        %v1737 = vpop.f32.mrf.mxu0
        %v1738 = vadd.f32 0.0, %v1737
        %v1739 = vpop.f32.mrf.mxu0
        %v1740 = vadd.f32 0.0, %v1739
        %1741 = vmatmul.bf16.gmra.mxu0 %v697
        %v1742 = vpop.f32.mrf.mxu0
        %v1743 = vadd.f32 0.0, %v1742
        %v1744 = vpop.f32.mrf.mxu0
        %v1745 = vadd.f32 0.0, %v1744
        %1746 = vmatmul.bf16.gmra.mxu0 %v700
        %v1747 = vpop.f32.mrf.mxu0
        %v1748 = vadd.f32 0.0, %v1747
        %v1749 = vpop.f32.mrf.mxu0
        %v1750 = vadd.f32 0.0, %v1749
        %1751 = vmatmul.bf16.gmra.mxu0 %v703
        %v1752 = vpop.f32.mrf.mxu0
        %v1753 = vadd.f32 0.0, %v1752
        %v1754 = vpop.f32.mrf.mxu0
        %v1755 = vadd.f32 0.0, %v1754
        %1756 = vmatmul.bf16.gmra.mxu0 %v706
        %v1757 = vpop.f32.mrf.mxu0
        %v1758 = vadd.f32 0.0, %v1757
        %v1759 = vpop.f32.mrf.mxu0
        %v1760 = vadd.f32 0.0, %v1759
        %1761 = vmatmul.bf16.gmra.mxu0 %v709
        %v1762 = vpop.f32.mrf.mxu0
        %v1763 = vadd.f32 0.0, %v1762
        %v1764 = vpop.f32.mrf.mxu0
        %v1765 = vadd.f32 0.0, %v1764
        %1766 = vmatmul.bf16.gmra.mxu0 %v712
        %v1767 = vpop.f32.mrf.mxu0
        %v1768 = vadd.f32 0.0, %v1767
        %v1769 = vpop.f32.mrf.mxu0
        %v1770 = vadd.f32 0.0, %v1769
        %1771 = vmatmul.bf16.gmra.mxu0 %v715
        %v1772 = vpop.f32.mrf.mxu0
        %v1773 = vadd.f32 0.0, %v1772
        %v1774 = vpop.f32.mrf.mxu0
        %v1775 = vadd.f32 0.0, %v1774
        %1776 = vmatmul.bf16.gmra.mxu0 %v718
        %v1777 = vpop.f32.mrf.mxu0
        %v1778 = vadd.f32 0.0, %v1777
        %v1779 = vpop.f32.mrf.mxu0
        %v1780 = vadd.f32 0.0, %v1779
        %1781 = vmatmul.bf16.gmra.mxu0 %v1291
        %v1782 = vpop.f32.mrf.mxu0
        %v1783 = vadd.f32 0.0, %v1782
        %v1784 = vpop.f32.mrf.mxu0
        %v1785 = vadd.f32 0.0, %v1784
        %1786 = vmatmul.bf16.gmra.mxu0 %v1698
        %v1787 = vpop.f32.mrf.mxu0
        %v1788 = vadd.f32 0.0, %v1787
        %v1789 = vpop.f32.mrf.mxu0
        %v1790 = vadd.f32 0.0, %v1789
        %1791 = vdwg.mxu0
        %v1792 = vadd.f32 %v1652, %v1713
        %v1793 = vadd.f32 %v1653, %v1715
        %v1794 = vadd.f32 %v1654, %v1718
        %v1795 = vadd.f32 %v1655, %v1720
        %v1796 = vadd.f32 %v1656, %v1723
        %v1797 = vadd.f32 %v1657, %v1725
        %v1798 = vadd.f32 %v1658, %v1728
        %v1799 = vadd.f32 %v1659, %v1730
        %v1800 = vadd.f32 %v1660, %v1733
        %v1801 = vadd.f32 %v1661, %v1735
        %v1802 = vadd.f32 %v1662, %v1738
        %v1803 = vadd.f32 %v1663, %v1740
        %v1804 = vadd.f32 %v1664, %v1743
        %v1805 = vadd.f32 %v1665, %v1745
        %v1806 = vadd.f32 %v1666, %v1748
        %v1807 = vadd.f32 %v1667, %v1750
        %v1808 = vadd.f32 %v1668, %v1753
        %v1809 = vadd.f32 %v1669, %v1755
        %v1810 = vadd.f32 %v1670, %v1758
        %v1811 = vadd.f32 %v1671, %v1760
        %v1812 = vadd.f32 %v1672, %v1763
        %v1813 = vadd.f32 %v1673, %v1765
        %v1814 = vadd.f32 %v1674, %v1768
        %v1815 = vadd.f32 %v1675, %v1770
        %v1816 = vadd.f32 %v1676, %v1773
        %v1817 = vadd.f32 %v1677, %v1775
        %v1818 = vadd.f32 %v1678, %v1778
        %v1819 = vadd.f32 %v1679, %v1780
        %v1820 = vadd.f32 %v1680, %v1783
        %v1821 = vadd.f32 %v1681, %v1785
        %v1822 = vadd.f32 %v1682, %v1788
        %v1823 = vadd.f32 %v1683, %v1790
        %v1824 = vrot.slane %v292, 2
        %v1825 = vrot.slane %v293, 2
        %v1826 = vsel %vm844, %v1824, %v1825
        %v1827 = vrot.slane %v294, 2
        %v1828 = vsel %vm844, %v1825, %v1827
        %v1831 = vpack.c.bf16 %v1828, %v1826
        %s1832 = scalar_lea.vmem %s1, 16
        %v1833 = vld [vmem:[%s1832] sm:$0x3]
        %v1835 = vsel %vm316, %v1831, 0
        %v1838 = vand.u32 %v1833, %v368
        %1840 = vmatpush.bf16.msra.mxu0 0
        %1841 = vmatpush.bf16.msra.mxu0 0
        %1842 = vmatpush.bf16.msra.mxu0 0
        %1843 = vmatpush.bf16.msra.mxu0 0
        %1844 = vmatpush.bf16.msra.mxu0 0
        %1845 = vmatpush.bf16.msra.mxu0 0
        %1846 = vmatpush.bf16.msra.mxu0 0
        %1847 = vmatpush.bf16.msra.mxu0 %v1838
        %1848 = vmatmul.bf16.gmra.mxu0 %v982
        %v1849 = vpop.f32.mrf.mxu0
        %v1850 = vadd.f32 0.0, %v1849
        %v1851 = vpop.f32.mrf.mxu0
        %v1852 = vadd.f32 0.0, %v1851
        %1853 = vmatmul.bf16.gmra.mxu0 %v985
        %v1854 = vpop.f32.mrf.mxu0
        %v1855 = vadd.f32 0.0, %v1854
        %v1856 = vpop.f32.mrf.mxu0
        %v1857 = vadd.f32 0.0, %v1856
        %1858 = vmatmul.bf16.gmra.mxu0 %v988
        %v1859 = vpop.f32.mrf.mxu0
        %v1860 = vadd.f32 0.0, %v1859
        %v1861 = vpop.f32.mrf.mxu0
        %v1862 = vadd.f32 0.0, %v1861
        %1863 = vmatmul.bf16.gmra.mxu0 %v991
        %v1864 = vpop.f32.mrf.mxu0
        %v1865 = vadd.f32 0.0, %v1864
        %v1866 = vpop.f32.mrf.mxu0
        %v1867 = vadd.f32 0.0, %v1866
        %1868 = vmatmul.bf16.gmra.mxu0 %v994
        %v1869 = vpop.f32.mrf.mxu0
        %v1870 = vadd.f32 0.0, %v1869
        %v1871 = vpop.f32.mrf.mxu0
        %v1872 = vadd.f32 0.0, %v1871
        %1873 = vmatmul.bf16.gmra.mxu0 %v997
        %v1874 = vpop.f32.mrf.mxu0
        %v1875 = vadd.f32 0.0, %v1874
        %v1876 = vpop.f32.mrf.mxu0
        %v1877 = vadd.f32 0.0, %v1876
        %1878 = vmatmul.bf16.gmra.mxu0 %v1000
        %v1879 = vpop.f32.mrf.mxu0
        %v1880 = vadd.f32 0.0, %v1879
        %v1881 = vpop.f32.mrf.mxu0
        %v1882 = vadd.f32 0.0, %v1881
        %1883 = vmatmul.bf16.gmra.mxu0 %v1003
        %v1884 = vpop.f32.mrf.mxu0
        %v1885 = vadd.f32 0.0, %v1884
        %v1886 = vpop.f32.mrf.mxu0
        %v1887 = vadd.f32 0.0, %v1886
        %1888 = vmatmul.bf16.gmra.mxu0 %v1006
        %v1889 = vpop.f32.mrf.mxu0
        %v1890 = vadd.f32 0.0, %v1889
        %v1891 = vpop.f32.mrf.mxu0
        %v1892 = vadd.f32 0.0, %v1891
        %1893 = vmatmul.bf16.gmra.mxu0 %v1009
        %v1894 = vpop.f32.mrf.mxu0
        %v1895 = vadd.f32 0.0, %v1894
        %v1896 = vpop.f32.mrf.mxu0
        %v1897 = vadd.f32 0.0, %v1896
        %1898 = vmatmul.bf16.gmra.mxu0 %v1012
        %v1899 = vpop.f32.mrf.mxu0
        %v1900 = vadd.f32 0.0, %v1899
        %v1901 = vpop.f32.mrf.mxu0
        %v1902 = vadd.f32 0.0, %v1901
        %1903 = vmatmul.bf16.gmra.mxu0 %v1015
        %v1904 = vpop.f32.mrf.mxu0
        %v1905 = vadd.f32 0.0, %v1904
        %v1906 = vpop.f32.mrf.mxu0
        %v1907 = vadd.f32 0.0, %v1906
        %1908 = vmatmul.bf16.gmra.mxu0 %v1018
        %v1909 = vpop.f32.mrf.mxu0
        %v1910 = vadd.f32 0.0, %v1909
        %v1911 = vpop.f32.mrf.mxu0
        %v1912 = vadd.f32 0.0, %v1911
        %1913 = vmatmul.bf16.gmra.mxu0 %v1021
        %v1914 = vpop.f32.mrf.mxu0
        %v1915 = vadd.f32 0.0, %v1914
        %v1916 = vpop.f32.mrf.mxu0
        %v1917 = vadd.f32 0.0, %v1916
        %1918 = vmatmul.bf16.gmra.mxu0 %v1428
        %v1919 = vpop.f32.mrf.mxu0
        %v1920 = vadd.f32 0.0, %v1919
        %v1921 = vpop.f32.mrf.mxu0
        %v1922 = vadd.f32 0.0, %v1921
        %1923 = vmatmul.bf16.gmra.mxu0 %v1835
        %v1924 = vpop.f32.mrf.mxu0
        %v1925 = vadd.f32 0.0, %v1924
        %v1926 = vpop.f32.mrf.mxu0
        %v1927 = vadd.f32 0.0, %v1926
        %1928 = vdwg.mxu0
        %v1929 = vadd.f32 %v1792, %v1850
        %v1930 = vadd.f32 %v1793, %v1852
        %v1931 = vadd.f32 %v1794, %v1855
        %v1932 = vadd.f32 %v1795, %v1857
        %v1933 = vadd.f32 %v1796, %v1860
        %v1934 = vadd.f32 %v1797, %v1862
        %v1935 = vadd.f32 %v1798, %v1865
        %v1936 = vadd.f32 %v1799, %v1867
        %v1937 = vadd.f32 %v1800, %v1870
        %v1938 = vadd.f32 %v1801, %v1872
        %v1939 = vadd.f32 %v1802, %v1875
        %v1940 = vadd.f32 %v1803, %v1877
        %v1941 = vadd.f32 %v1804, %v1880
        %v1942 = vadd.f32 %v1805, %v1882
        %v1943 = vadd.f32 %v1806, %v1885
        %v1944 = vadd.f32 %v1807, %v1887
        %v1945 = vadd.f32 %v1808, %v1890
        %v1946 = vadd.f32 %v1809, %v1892
        %v1947 = vadd.f32 %v1810, %v1895
        %v1948 = vadd.f32 %v1811, %v1897
        %v1949 = vadd.f32 %v1812, %v1900
        %v1950 = vadd.f32 %v1813, %v1902
        %v1951 = vadd.f32 %v1814, %v1905
        %v1952 = vadd.f32 %v1815, %v1907
        %v1953 = vadd.f32 %v1816, %v1910
        %v1954 = vadd.f32 %v1817, %v1912
        %v1955 = vadd.f32 %v1818, %v1915
        %v1956 = vadd.f32 %v1819, %v1917
        %v1957 = vadd.f32 %v1820, %v1920
        %v1958 = vadd.f32 %v1821, %v1922
        %v1959 = vadd.f32 %v1822, %v1925
        %v1960 = vadd.f32 %v1823, %v1927
        %v1961 = vmax.f32 %v1929, 0.0
        %v1962 = vmax.f32 %v1930, 0.0
        %v1963 = vmax.f32 %v1931, 0.0
        %v1964 = vmax.f32 %v1932, 0.0
        %v1965 = vmax.f32 %v1933, 0.0
        %v1966 = vmax.f32 %v1934, 0.0
        %v1967 = vmax.f32 %v1935, 0.0
        %v1968 = vmax.f32 %v1936, 0.0
        %v1969 = vmax.f32 %v1937, 0.0
        %v1970 = vmax.f32 %v1938, 0.0
        %v1971 = vmax.f32 %v1939, 0.0
        %v1972 = vmax.f32 %v1940, 0.0
        %v1973 = vmax.f32 %v1941, 0.0
        %v1974 = vmax.f32 %v1942, 0.0
        %v1975 = vmax.f32 %v1943, 0.0
        %v1976 = vmax.f32 %v1944, 0.0
        %v1977 = vmax.f32 %v1945, 0.0
        %v1978 = vmax.f32 %v1946, 0.0
        %v1979 = vmax.f32 %v1947, 0.0
        %v1980 = vmax.f32 %v1948, 0.0
        %v1981 = vmax.f32 %v1949, 0.0
        %v1982 = vmax.f32 %v1950, 0.0
        %v1983 = vmax.f32 %v1951, 0.0
        %v1984 = vmax.f32 %v1952, 0.0
        %v1985 = vmax.f32 %v1953, 0.0
        %v1986 = vmax.f32 %v1954, 0.0
        %v1987 = vmax.f32 %v1955, 0.0
        %v1988 = vmax.f32 %v1956, 0.0
        %v1989 = vmax.f32 %v1957, 0.0
        %v1990 = vmax.f32 %v1958, 0.0
        %v1991 = vmax.f32 %v1959, 0.0
        %v1992 = vmax.f32 %v1960, 0.0
        %v1993 = vpack.c.bf16 %v1961, %v1961
        %v1994 = vpack.c.bf16 %v1962, %v1962
        %v1995 = vpack.c.bf16 %v1963, %v1963
        %v1996 = vpack.c.bf16 %v1964, %v1964
        %v1997 = vpack.c.bf16 %v1965, %v1965
        %v1998 = vpack.c.bf16 %v1966, %v1966
        %v1999 = vpack.c.bf16 %v1967, %v1967
        %v2000 = vpack.c.bf16 %v1968, %v1968
        %v2001 = vpack.c.bf16 %v1969, %v1969
        %v2002 = vpack.c.bf16 %v1970, %v1970
        %v2003 = vpack.c.bf16 %v1971, %v1971
        %v2004 = vpack.c.bf16 %v1972, %v1972
        %v2005 = vpack.c.bf16 %v1973, %v1973
        %v2006 = vpack.c.bf16 %v1974, %v1974
        %v2007 = vpack.c.bf16 %v1975, %v1975
        %v2008 = vpack.c.bf16 %v1976, %v1976
        %v2009 = vpack.c.bf16 %v1977, %v1977
        %v2010 = vpack.c.bf16 %v1978, %v1978
        %v2011 = vpack.c.bf16 %v1979, %v1979
        %v2012 = vpack.c.bf16 %v1980, %v1980
        %v2013 = vpack.c.bf16 %v1981, %v1981
        %v2014 = vpack.c.bf16 %v1982, %v1982
        %v2015 = vpack.c.bf16 %v1983, %v1983
        %v2016 = vpack.c.bf16 %v1984, %v1984
        %v2017 = vpack.c.bf16 %v1985, %v1985
        %v2018 = vpack.c.bf16 %v1986, %v1986
        %v2019 = vpack.c.bf16 %v1987, %v1987
        %v2020 = vpack.c.bf16 %v1988, %v1988
        %v2021 = vpack.c.bf16 %v1989, %v1989
        %v2022 = vpack.c.bf16 %v1990, %v1990
        %v2023 = vpack.c.bf16 %v1991, %v1991
        %v2024 = vpack.c.bf16 %v1992, %v1992
        %vm2025 = vcmask 257024
        %2026 = vst.msk [vmem:[%s185] sm:$0xf] %vm2025, %v1993
        %2027 = vst.msk [vmem:[%s185 + $0x4] sm:$0xf] %vm2025, %v1994
        %2028 = vst.msk [vmem:[%s185 + $0x8] sm:$0xf] %vm2025, %v1995
        %2029 = vst.msk [vmem:[%s185 + $0xc] sm:$0xf] %vm2025, %v1996
        %2030 = vst.msk [vmem:[%s185 + $0x10] sm:$0xf] %vm2025, %v1997
        %2031 = vst.msk [vmem:[%s185 + $0x14] sm:$0xf] %vm2025, %v1998
        %2032 = vst.msk [vmem:[%s185 + $0x18] sm:$0xf] %vm2025, %v1999
        %2033 = vst.msk [vmem:[%s185 + $0x1c] sm:$0xf] %vm2025, %v2000
        %2034 = vst.msk [vmem:[%s185 + $0x20] sm:$0xf] %vm2025, %v2001
        %2035 = vst.msk [vmem:[%s185 + $0x24] sm:$0xf] %vm2025, %v2002
        %2036 = vst.msk [vmem:[%s185 + $0x28] sm:$0xf] %vm2025, %v2003
        %2037 = vst.msk [vmem:[%s185 + $0x2c] sm:$0xf] %vm2025, %v2004
        %2038 = vst.msk [vmem:[%s185 + $0x30] sm:$0xf] %vm2025, %v2005
        %2039 = vst.msk [vmem:[%s185 + $0x34] sm:$0xf] %vm2025, %v2006
        %2040 = vst.msk [vmem:[%s185 + $0x38] sm:$0xf] %vm2025, %v2007
        %2041 = vst.msk [vmem:[%s185 + $0x3c] sm:$0xf] %vm2025, %v2008
        %2042 = vst.msk [vmem:[%s185 + $0x40] sm:$0xf] %vm2025, %v2009
        %2043 = vst.msk [vmem:[%s185 + $0x44] sm:$0xf] %vm2025, %v2010
        %2044 = vst.msk [vmem:[%s185 + $0x48] sm:$0xf] %vm2025, %v2011
        %2045 = vst.msk [vmem:[%s185 + $0x4c] sm:$0xf] %vm2025, %v2012
        %2046 = vst.msk [vmem:[%s185 + $0x50] sm:$0xf] %vm2025, %v2013
        %2047 = vst.msk [vmem:[%s185 + $0x54] sm:$0xf] %vm2025, %v2014
        %2048 = vst.msk [vmem:[%s185 + $0x58] sm:$0xf] %vm2025, %v2015
        %2049 = vst.msk [vmem:[%s185 + $0x5c] sm:$0xf] %vm2025, %v2016
        %2050 = vst.msk [vmem:[%s185 + $0x60] sm:$0xf] %vm2025, %v2017
        %2051 = vst.msk [vmem:[%s185 + $0x64] sm:$0xf] %vm2025, %v2018
        %2052 = vst.msk [vmem:[%s185 + $0x68] sm:$0xf] %vm2025, %v2019
        %2053 = vst.msk [vmem:[%s185 + $0x6c] sm:$0xf] %vm2025, %v2020
        %2054 = vst.msk [vmem:[%s185 + $0x70] sm:$0xf] %vm2025, %v2021
        %2055 = vst.msk [vmem:[%s185 + $0x74] sm:$0xf] %vm2025, %v2022
        %2056 = vst.msk [vmem:[%s185 + $0x78] sm:$0xf] %vm2025, %v2023
        %2057 = vst.msk [vmem:[%s185 + $0x7c] sm:$0xf] %vm2025, %v2024
        %p2058 = scmp.lt.s32.totalorder %s15, 1
        %s2059 = scalar_select %p2058, %s15, 1
        %s2060 = smul.addr %s2059, 32
        %s2061 = smul.addr %s2060, 4
        %s2062 = scalar_lea.vmem %s3, %s2061
        // Predicated region
        $region37: #{forward.7} parent=31 // pred_check
          %p2063 = pneg %p101
        $region38: #{forward.7} parent=31 // pred_check_branch
          %2065 = sbr.rel (%p2063) target = $region40
        $region39: #{forward.7} parent=31 // pred_region
          _
        $region40: #{forward.7} parent=31 // pred_fallthru
          _
      $region32: #{forward.7} parent=5 // pred_fallthru
        _
      %p2066 = scmp.le.s32.totalorder 2, %s10
      // Predicated region
      $region41: #{forward.7} parent=5 // pred_check
        %p2067 = pneg %p2066
      $region42: #{forward.7} parent=5 // pred_check_branch
        %2069 = sbr.rel (%p2067) target = $region44
      $region43: #{forward.7} parent=5 // pred_region
        %s2070 = ssub.s32 %s10, 2
        // Predicated region
        $region45: #{forward.7} parent=43 // pred_check
          %p2071 = pneg %p107
        $region46: #{forward.7} parent=43 // pred_check_branch
          %2073 = sbr.rel (%p2071) target = $region48
        $region47: #{forward.7} parent=43 // pred_region
          %p2074 = scmp.lt.s32.totalorder %s16, 1
          %s2075 = scalar_select %p2074, %s16, 1
          %s2076 = smul.addr %s2075, 32
          %s2077 = smul.addr %s2076, 4
          %s2078 = scalar_lea.vmem %s3, %s2077
        $region48: #{forward.7} parent=43 // pred_fallthru
          _
      $region44: #{forward.7} parent=5 // pred_fallthru
        _
    $region6: #{forward.7} parent=1 // loop_footer
      %s14 = sadd.s32 1, %s10
    $region7: #{forward.7} parent=1 // loop_footer_branch
      %9 = sbr.rel target = $region3
    $region8: #{forward.7} parent=1 // loop_exit
      _
    %2079 = vsyncpa [#allocation3], 1
    %s2080 = scalar_lea.sflag [#allocation3], 1
    %2081 = vsyncpa %s2080, 1

// kernel: forward.9
$region0: #{forward.9}
  #allocation0 [shape = 'u32[]', space=smem, size = 0x4, offset = 0x4, fixed_abs, tag = 'smem constant byte address 0x4 - core index']
  #allocation1 [shape = 'u32[72,128]{1,0:T(1,128)}', space=vmem, size = 0x9000, scoped, tag = 'internal scratch']
  %s0 = inlined_call_operand.vmem [shape: bf16[2,10,10,64], index: 0, kind: input, shape index: {}]
  %s1 = inlined_call_operand.vmem [shape: bf16[5,64,128], index: 1, kind: input, shape index: {}]
  %s2 = inlined_call_operand.vmem [shape: f32[1,128], index: 2, kind: input, shape index: {}]
  %s3 = inlined_call_operand.vmem [shape: bf16[2,8,8,128], index: 3, kind: output, shape index: {}]
  %s4 = sld [smem:[#allocation0]]
  $region45: #{forward.9} parent=0
    _
  %s6 = ssub.s32 1, %s4
  %s7 = scalar_select 0, %s6, %s4
  loop: start=0, step=1, limit=4
  $region2: #{forward.9} parent=0 // loop_pre_header
    _
  $region3: #{forward.9} parent=0 // loop_header
    %s9 = sphi 0, %s13
    %p10 = scmp.ge.s32.totalorder %s9, 4
    %s19 = sphi 0, %s21
    %s22 = sphi 0, %s19
    %s23 = sphi 0, %s22
    %s39 = sphi 0, %s23
    %s43 = sphi 0, %s43
    %s45 = sphi 0, %s43
    %s46 = sphi 0, %s45
    %s60 = sphi 0, %s46
    %s64 = sphi 0, %s64
    %s66 = sphi 0, %s64
    %s67 = sphi 0, %s66
    %s81 = sphi 0, %s67
    %s87 = sphi 0, %s89
    %s90 = sphi 0, %s87
    %s91 = sphi 0, %s90
    %s107 = sphi 0, %s91
  $region4: #{forward.9} parent=0 // loop_header_branch
    %12 = sbr.rel (%p10) target = $region8
  $region5: #{forward.9} parent=0 // loop_body
    %s14 = ssub.s32 %s9, 1
    %s15 = ssub.s32 %s9, 2
    %s16 = sadd.s32 %s9, 1
    %s17 = ssub.s32 %s9, %s16
    %p18 = scmp.eq.s32.totalorder %s17, 0
    %s20 = sadd.s32 %s19, 1
    %s21 = scalar_select %p18, %s19, %s20
    %p24 = pneg %p18
    %p25 = scmp.eq.s32.totalorder %s9, 1
    %p26 = por %p24, %p25
    %p27 = scmp.ne.s32.totalorder %s19, %s22
    %p28 = scmp.eq.s32.totalorder %s9, 0
    %p29 = por %p27, %p28
    %p30 = scmp.ne.s32.totalorder %s19, %s22
    %p31 = scmp.eq.s32.totalorder %s14, 1
    %p32 = por %p30, %p31
    %p33 = scmp.ne.s32.totalorder %s22, %s23
    %p34 = scmp.eq.s32.totalorder %s14, 0
    %p35 = por %p33, %p34
    %p36 = scmp.ne.s32.totalorder %s22, %s23
    %p37 = scmp.eq.s32.totalorder %s15, 1
    %p38 = por %p36, %p37
    %p40 = scmp.ne.s32.totalorder %s23, %s39
    %p41 = scmp.eq.s32.totalorder %s15, 0
    %p42 = por %p40, %p41
    %s44 = sadd.s32 %s43, 1
    %p47 = scmp.eq.s32.totalorder %s9, 1
    %p48 = scmp.ne.s32.totalorder %s43, %s45
    %p49 = scmp.eq.s32.totalorder %s9, 0
    %p50 = por %p48, %p49
    %p51 = scmp.ne.s32.totalorder %s43, %s45
    %p52 = scmp.eq.s32.totalorder %s14, 1
    %p53 = por %p51, %p52
    %p54 = scmp.ne.s32.totalorder %s45, %s46
    %p55 = scmp.eq.s32.totalorder %s14, 0
    %p56 = por %p54, %p55
    %p57 = scmp.ne.s32.totalorder %s45, %s46
    %p58 = scmp.eq.s32.totalorder %s15, 1
    %p59 = por %p57, %p58
    %p61 = scmp.ne.s32.totalorder %s46, %s60
    %p62 = scmp.eq.s32.totalorder %s15, 0
    %p63 = por %p61, %p62
    %s65 = sadd.s32 %s64, 1
    %p68 = scmp.eq.s32.totalorder %s9, 1
    %p69 = scmp.ne.s32.totalorder %s64, %s66
    %p70 = scmp.eq.s32.totalorder %s9, 0
    %p71 = por %p69, %p70
    %p72 = scmp.ne.s32.totalorder %s64, %s66
    %p73 = scmp.eq.s32.totalorder %s14, 1
    %p74 = por %p72, %p73
    %p75 = scmp.ne.s32.totalorder %s66, %s67
    %p76 = scmp.eq.s32.totalorder %s14, 0
    %p77 = por %p75, %p76
    %p78 = scmp.ne.s32.totalorder %s66, %s67
    %p79 = scmp.eq.s32.totalorder %s15, 1
    %p80 = por %p78, %p79
    %p82 = scmp.ne.s32.totalorder %s67, %s81
    %p83 = scmp.eq.s32.totalorder %s15, 0
    %p84 = por %p82, %p83
    %s85 = ssub.s32 %s9, %s16
    %p86 = scmp.eq.s32.totalorder %s85, 0
    %s88 = sadd.s32 %s87, 1
    %s89 = scalar_select %p86, %s87, %s88
    %p92 = pneg %p86
    %p93 = scmp.eq.s32.totalorder %s9, 1
    %p94 = por %p92, %p93
    %p95 = scmp.ne.s32.totalorder %s87, %s90
    %p96 = scmp.eq.s32.totalorder %s9, 0
    %p97 = por %p95, %p96
    %p98 = scmp.ne.s32.totalorder %s87, %s90
    %p99 = scmp.eq.s32.totalorder %s14, 1
    %p100 = por %p98, %p99
    %p101 = scmp.ne.s32.totalorder %s90, %s91
    %p102 = scmp.eq.s32.totalorder %s14, 0
    %p103 = por %p101, %p102
    %p104 = scmp.ne.s32.totalorder %s90, %s91
    %p105 = scmp.eq.s32.totalorder %s15, 1
    %p106 = por %p104, %p105
    %p108 = scmp.ne.s32.totalorder %s91, %s107
    %p109 = scmp.eq.s32.totalorder %s15, 0
    %p110 = por %p108, %p109
    %p111 = scmp.le.s32.totalorder 1, %s9
    %p112 = scmp.lt.s32.totalorder %s9, 3
    %p113 = pnand %p111, %p112
    %p114 = pneg %p113
    // Predicated region
    $region9: #{forward.9} parent=5 // pred_check
      _
    $region10: #{forward.9} parent=5 // pred_check_branch
      %116 = sbr.rel (%p113) target = $region12
    $region11: #{forward.9} parent=5 // pred_region
      %s117 = ssub.s32 %s9, 1
      // Predicated region
      $region13: #{forward.9} parent=11 // pred_check
        %p118 = pneg %p56
      $region14: #{forward.9} parent=11 // pred_check_branch
        %120 = sbr.rel (%p118) target = $region16
      $region15: #{forward.9} parent=11 // pred_region
        _
      $region16: #{forward.9} parent=11 // pred_fallthru
        _
      // Predicated region
      $region17: #{forward.9} parent=11 // pred_check
        %p121 = pneg %p77
      $region18: #{forward.9} parent=11 // pred_check_branch
        %123 = sbr.rel (%p121) target = $region20
      $region19: #{forward.9} parent=11 // pred_region
        _
      $region20: #{forward.9} parent=11 // pred_fallthru
        _
    $region12: #{forward.9} parent=5 // pred_fallthru
      _
    %p124 = scmp.lt.s32.totalorder %s9, 2
    // Predicated region
    $region21: #{forward.9} parent=5 // pred_check
      %p125 = pneg %p124
    $region22: #{forward.9} parent=5 // pred_check_branch
      %127 = sbr.rel (%p125) target = $region24
    $region23: #{forward.9} parent=5 // pred_region
      // Predicated region
      $region25: #{forward.9} parent=23 // pred_check
        %p128 = pneg %p29
      $region26: #{forward.9} parent=23 // pred_check_branch
        %130 = sbr.rel (%p128) target = $region28
      $region27: #{forward.9} parent=23 // pred_region
        %p131 = scmp.lt.s32.totalorder %s9, 1
        %s132 = scalar_select %p131, %s9, 1
        %s133 = smul.addr %s132, 20
        %s134 = smul.addr %s133, 4
        %s135 = scalar_lea.vmem %s0, %s134
      $region28: #{forward.9} parent=23 // pred_fallthru
        _
    $region24: #{forward.9} parent=5 // pred_fallthru
      _
    %p136 = scmp.le.s32.totalorder 1, %s9
    %p137 = scmp.lt.s32.totalorder %s9, 3
    %p138 = pnand %p136, %p137
    %p139 = pneg %p138
    // Predicated region
    $region29: #{forward.9} parent=5 // pred_check
      _
    $region30: #{forward.9} parent=5 // pred_check_branch
      %141 = sbr.rel (%p138) target = $region32
    $region31: #{forward.9} parent=5 // pred_region
      %s142 = ssub.s32 %s9, 1
      %p143 = scmp.lt.s32.totalorder %s14, 1
      %s144 = scalar_select %p143, %s14, 1
      %s145 = smul.addr %s144, 20
      %s146 = smul.addr %s145, 4
      %s147 = scalar_lea.vmem %s0, %s146
      %p148 = pneg %p35
      %p149 = pneg %p32
      %p150 = pneg %p56
      %p151 = pneg %p53
      %p152 = pneg %p77
      %p153 = pneg %p74
      %p154 = pneg %p103
      %p155 = pneg %p100
      %p156 = scmp.lt.s32.totalorder %s14, 1
      %s157 = scalar_select %p156, %s14, 1
      %s158 = smul.addr %s157, 8
      %s159 = smul.addr %s158, 4
      %s160 = scalar_lea.vmem %s3, %s159
      %p161 = scmp.lt.s32.totalorder %s14, 1
      %s162 = scalar_select %p161, %s14, 1
      %s163 = smul.addr %s162, 20
      %s164 = smul.addr %s163, 4
      %s165 = scalar_lea.vmem %s0, %s164
      %p166 = scmp.lt.s32.totalorder %s14, 1
      %s167 = scalar_select %p166, %s14, 1
      %s168 = smul.addr %s167, 8
      %s169 = smul.addr %s168, 4
      %s170 = scalar_lea.vmem %s3, %s169
      %v172 = vld [vmem:[%s165] sm:$0xf]
      %v173 = vld [vmem:[%s165 + $0x4] sm:$0x1]
      %v174 = vld [vmem:[%s165 + $0x8] sm:$0xf]
      %v175 = vld [vmem:[%s165 + $0xc] sm:$0x1]
      %v176 = vld [vmem:[%s165 + $0x10] sm:$0xf]
      %v177 = vld [vmem:[%s165 + $0x14] sm:$0x1]
      %v178 = vld [vmem:[%s165 + $0x18] sm:$0xf]
      %v179 = vld [vmem:[%s165 + $0x1c] sm:$0x1]
      %v180 = vld [vmem:[%s165 + $0x20] sm:$0xf]
      %v181 = vld [vmem:[%s165 + $0x24] sm:$0x1]
      %v182 = vld [vmem:[%s165 + $0x28] sm:$0xf]
      %v183 = vld [vmem:[%s165 + $0x2c] sm:$0x1]
      %v184 = vld [vmem:[%s165 + $0x30] sm:$0xf]
      %v185 = vld [vmem:[%s165 + $0x34] sm:$0x1]
      %v186 = vld [vmem:[%s165 + $0x38] sm:$0xf]
      %v187 = vld [vmem:[%s165 + $0x3c] sm:$0x1]
      %v188 = vld [vmem:[%s165 + $0x40] sm:$0xf]
      %v189 = vld [vmem:[%s165 + $0x44] sm:$0x1]
      %v190 = vunpack.c.l.bf16 %v172
      %v191 = vunpack.c.l.bf16 %v173
      %v192 = vunpack.c.l.bf16 %v174
      %v193 = vunpack.c.l.bf16 %v175
      %v194 = vunpack.c.l.bf16 %v176
      %v195 = vunpack.c.l.bf16 %v177
      %v196 = vunpack.c.l.bf16 %v178
      %v197 = vunpack.c.l.bf16 %v179
      %v198 = vunpack.c.l.bf16 %v180
      %v199 = vunpack.c.l.bf16 %v181
      %v200 = vunpack.c.l.bf16 %v182
      %v201 = vunpack.c.l.bf16 %v183
      %v202 = vunpack.c.l.bf16 %v184
      %v203 = vunpack.c.l.bf16 %v185
      %v204 = vunpack.c.l.bf16 %v186
      %v205 = vunpack.c.l.bf16 %v187
      %v206 = vunpack.c.l.bf16 %v188
      %v207 = vunpack.c.l.bf16 %v189
      %v208 = vld [vmem:[%s2] sm:$0x1]
      %v210 = vperm.slane %v208, 0
      %v212 = vpack.c.bf16 %v192, %v190
      %v213 = vpack.c.bf16 %v196, %v194
      %v214 = vpack.c.bf16 %v200, %v198
      %v215 = vpack.c.bf16 %v204, %v202
      %v216 = vld [vmem:[%s1] sm:$0xf]
      %v217 = vld [vmem:[%s1 + $0x4] sm:$0xf]
      %v218 = vld [vmem:[%s1 + $0x8] sm:$0xf]
      %v219 = vld [vmem:[%s1 + $0xc] sm:$0xf]
      %v220 = vld [vmem:[%s1 + $0x10] sm:$0xf]
      %v221 = vld [vmem:[%s1 + $0x14] sm:$0xf]
      %v222 = vld [vmem:[%s1 + $0x18] sm:$0xf]
      %v223 = vld [vmem:[%s1 + $0x1c] sm:$0xf]
      %v232 = vunpack.c.l.b16 %v216
      %v233 = vunpack.c.l.b16 %v217
      %v234 = vunpack.c.l.b16 %v218
      %v235 = vunpack.c.l.b16 %v219
      %v236 = vunpack.c.l.b16 %v220
      %v237 = vunpack.c.l.b16 %v221
      %v238 = vunpack.c.l.b16 %v222
      %v239 = vunpack.c.l.b16 %v223
      %v240 = vpack.c.b16 %v233, %v232
      %v241 = vpack.c.b16 %v235, %v234
      %v242 = vpack.c.b16 %v237, %v236
      %v243 = vpack.c.b16 %v239, %v238
      %vm248 = vcmask 523264
      %v250 = vsel %vm248, %v212, 0
      %v253 = vsel %vm248, %v213, 0
      %v256 = vsel %vm248, %v214, 0
      %v259 = vsel %vm248, %v215, 0
      %261 = vmatpush.bf16.msra.mxu0 0
      %262 = vmatpush.bf16.msra.mxu0 0
      %263 = vmatpush.bf16.msra.mxu0 0
      %264 = vmatpush.bf16.msra.mxu0 0
      %265 = vmatpush.bf16.msra.mxu0 %v243
      %266 = vmatpush.bf16.msra.mxu0 %v242
      %267 = vmatpush.bf16.msra.mxu0 %v241
      %268 = vmatpush.bf16.msra.mxu0 %v240
      %269 = vmatmul.bf16.gmra.mxu0 %v250
      %v270 = vpop.f32.mrf.mxu0
      %v271 = vadd.f32 0.0, %v270
      %v272 = vpop.f32.mrf.mxu0
      %v273 = vadd.f32 0.0, %v272
      %274 = vmatmul.bf16.gmra.mxu0 %v253
      %v275 = vpop.f32.mrf.mxu0
      %v276 = vadd.f32 0.0, %v275
      %v277 = vpop.f32.mrf.mxu0
      %v278 = vadd.f32 0.0, %v277
      %279 = vmatmul.bf16.gmra.mxu0 %v256
      %v280 = vpop.f32.mrf.mxu0
      %v281 = vadd.f32 0.0, %v280
      %v282 = vpop.f32.mrf.mxu0
      %v283 = vadd.f32 0.0, %v282
      %284 = vmatmul.bf16.gmra.mxu0 %v259
      %v285 = vpop.f32.mrf.mxu0
      %v286 = vadd.f32 0.0, %v285
      %v287 = vpop.f32.mrf.mxu0
      %v288 = vadd.f32 0.0, %v287
      %289 = vdwg.mxu0
      %v290 = vadd.f32 %v210, %v271
      %v291 = vadd.f32 %v210, %v273
      %v292 = vadd.f32 %v210, %v276
      %v293 = vadd.f32 %v210, %v278
      %v294 = vadd.f32 %v210, %v281
      %v295 = vadd.f32 %v210, %v283
      %v296 = vadd.f32 %v210, %v286
      %v297 = vadd.f32 %v210, %v288
      %vm314 = vcmask 1046528
      %v315 = vrot.slane %v190, 1
      %v316 = vrot.slane %v191, 1
      %v317 = vsel %vm314, %v315, %v316
      %v318 = vrot.slane %v192, 1
      %v319 = vrot.slane %v193, 1
      %v320 = vsel %vm314, %v318, %v319
      %v321 = vrot.slane %v194, 1
      %v322 = vrot.slane %v195, 1
      %v323 = vsel %vm314, %v321, %v322
      %v324 = vrot.slane %v196, 1
      %v325 = vrot.slane %v197, 1
      %v326 = vsel %vm314, %v324, %v325
      %v327 = vrot.slane %v198, 1
      %v328 = vrot.slane %v199, 1
      %v329 = vsel %vm314, %v327, %v328
      %v330 = vrot.slane %v200, 1
      %v331 = vrot.slane %v201, 1
      %v332 = vsel %vm314, %v330, %v331
      %v333 = vrot.slane %v202, 1
      %v334 = vrot.slane %v203, 1
      %v335 = vsel %vm314, %v333, %v334
      %v336 = vrot.slane %v204, 1
      %v337 = vrot.slane %v205, 1
      %v338 = vsel %vm314, %v336, %v337
      %v347 = vpack.c.bf16 %v320, %v317
      %v348 = vpack.c.bf16 %v326, %v323
      %v349 = vpack.c.bf16 %v332, %v329
      %v350 = vpack.c.bf16 %v338, %v335
      %s351 = scalar_lea.vmem %s1, 32
      %v352 = vld [vmem:[%s351] sm:$0xf]
      %v353 = vld [vmem:[%s351 + $0x4] sm:$0xf]
      %v354 = vld [vmem:[%s351 + $0x8] sm:$0xf]
      %v355 = vld [vmem:[%s351 + $0xc] sm:$0xf]
      %v356 = vld [vmem:[%s351 + $0x10] sm:$0xf]
      %v357 = vld [vmem:[%s351 + $0x14] sm:$0xf]
      %v358 = vld [vmem:[%s351 + $0x18] sm:$0xf]
      %v359 = vld [vmem:[%s351 + $0x1c] sm:$0xf]
      %v368 = vunpack.c.l.b16 %v352
      %v369 = vunpack.c.l.b16 %v353
      %v370 = vunpack.c.l.b16 %v354
      %v371 = vunpack.c.l.b16 %v355
      %v372 = vunpack.c.l.b16 %v356
      %v373 = vunpack.c.l.b16 %v357
      %v374 = vunpack.c.l.b16 %v358
      %v375 = vunpack.c.l.b16 %v359
      %v376 = vpack.c.b16 %v369, %v368
      %v377 = vpack.c.b16 %v371, %v370
      %v378 = vpack.c.b16 %v373, %v372
      %v379 = vpack.c.b16 %v375, %v374
      %v385 = vsel %vm248, %v347, 0
      %v388 = vsel %vm248, %v348, 0
      %v391 = vsel %vm248, %v349, 0
      %v394 = vsel %vm248, %v350, 0
      %396 = vmatpush.bf16.msra.mxu0 0
      %397 = vmatpush.bf16.msra.mxu0 0
      %398 = vmatpush.bf16.msra.mxu0 0
      %399 = vmatpush.bf16.msra.mxu0 0
      %400 = vmatpush.bf16.msra.mxu0 %v379
      %401 = vmatpush.bf16.msra.mxu0 %v378
      %402 = vmatpush.bf16.msra.mxu0 %v377
      %403 = vmatpush.bf16.msra.mxu0 %v376
      %404 = vmatmul.bf16.gmra.mxu0 %v385
      %v405 = vpop.f32.mrf.mxu0
      %v406 = vadd.f32 0.0, %v405
      %v407 = vpop.f32.mrf.mxu0
      %v408 = vadd.f32 0.0, %v407
      %409 = vmatmul.bf16.gmra.mxu0 %v388
      %v410 = vpop.f32.mrf.mxu0
      %v411 = vadd.f32 0.0, %v410
      %v412 = vpop.f32.mrf.mxu0
      %v413 = vadd.f32 0.0, %v412
      %414 = vmatmul.bf16.gmra.mxu0 %v391
      %v415 = vpop.f32.mrf.mxu0
      %v416 = vadd.f32 0.0, %v415
      %v417 = vpop.f32.mrf.mxu0
      %v418 = vadd.f32 0.0, %v417
      %419 = vmatmul.bf16.gmra.mxu0 %v394
      %v420 = vpop.f32.mrf.mxu0
      %v421 = vadd.f32 0.0, %v420
      %v422 = vpop.f32.mrf.mxu0
      %v423 = vadd.f32 0.0, %v422
      %424 = vdwg.mxu0
      %v425 = vadd.f32 %v290, %v406
      %v426 = vadd.f32 %v291, %v408
      %v427 = vadd.f32 %v292, %v411
      %v428 = vadd.f32 %v293, %v413
      %v429 = vadd.f32 %v294, %v416
      %v430 = vadd.f32 %v295, %v418
      %v431 = vadd.f32 %v296, %v421
      %v432 = vadd.f32 %v297, %v423
      %vm433 = vcmask 1045504
      %v434 = vrot.slane %v190, 2
      %v435 = vrot.slane %v191, 2
      %v436 = vsel %vm433, %v434, %v435
      %v437 = vrot.slane %v192, 2
      %v438 = vrot.slane %v193, 2
      %v439 = vsel %vm433, %v437, %v438
      %v440 = vrot.slane %v194, 2
      %v441 = vrot.slane %v195, 2
      %v442 = vsel %vm433, %v440, %v441
      %v443 = vrot.slane %v196, 2
      %v444 = vrot.slane %v197, 2
      %v445 = vsel %vm433, %v443, %v444
      %v446 = vrot.slane %v198, 2
      %v447 = vrot.slane %v199, 2
      %v448 = vsel %vm433, %v446, %v447
      %v449 = vrot.slane %v200, 2
      %v450 = vrot.slane %v201, 2
      %v451 = vsel %vm433, %v449, %v450
      %v452 = vrot.slane %v202, 2
      %v453 = vrot.slane %v203, 2
      %v454 = vsel %vm433, %v452, %v453
      %v455 = vrot.slane %v204, 2
      %v456 = vrot.slane %v205, 2
      %v457 = vsel %vm433, %v455, %v456
      %v466 = vpack.c.bf16 %v439, %v436
      %v467 = vpack.c.bf16 %v445, %v442
      %v468 = vpack.c.bf16 %v451, %v448
      %v469 = vpack.c.bf16 %v457, %v454
      %s470 = scalar_lea.vmem %s1, 64
      %v471 = vld [vmem:[%s470] sm:$0xf]
      %v472 = vld [vmem:[%s470 + $0x4] sm:$0xf]
      %v473 = vld [vmem:[%s470 + $0x8] sm:$0xf]
      %v474 = vld [vmem:[%s470 + $0xc] sm:$0xf]
      %v475 = vld [vmem:[%s470 + $0x10] sm:$0xf]
      %v476 = vld [vmem:[%s470 + $0x14] sm:$0xf]
      %v477 = vld [vmem:[%s470 + $0x18] sm:$0xf]
      %v478 = vld [vmem:[%s470 + $0x1c] sm:$0xf]
      %v487 = vunpack.c.l.b16 %v471
      %v488 = vunpack.c.l.b16 %v472
      %v489 = vunpack.c.l.b16 %v473
      %v490 = vunpack.c.l.b16 %v474
      %v491 = vunpack.c.l.b16 %v475
      %v492 = vunpack.c.l.b16 %v476
      %v493 = vunpack.c.l.b16 %v477
      %v494 = vunpack.c.l.b16 %v478
      %v495 = vpack.c.b16 %v488, %v487
      %v496 = vpack.c.b16 %v490, %v489
      %v497 = vpack.c.b16 %v492, %v491
      %v498 = vpack.c.b16 %v494, %v493
      %v504 = vsel %vm248, %v466, 0
      %v507 = vsel %vm248, %v467, 0
      %v510 = vsel %vm248, %v468, 0
      %v513 = vsel %vm248, %v469, 0
      %515 = vmatpush.bf16.msra.mxu0 0
      %516 = vmatpush.bf16.msra.mxu0 0
      %517 = vmatpush.bf16.msra.mxu0 0
      %518 = vmatpush.bf16.msra.mxu0 0
      %519 = vmatpush.bf16.msra.mxu0 %v498
      %520 = vmatpush.bf16.msra.mxu0 %v497
      %521 = vmatpush.bf16.msra.mxu0 %v496
      %522 = vmatpush.bf16.msra.mxu0 %v495
      %523 = vmatmul.bf16.gmra.mxu0 %v504
      %v524 = vpop.f32.mrf.mxu0
      %v525 = vadd.f32 0.0, %v524
      %v526 = vpop.f32.mrf.mxu0
      %v527 = vadd.f32 0.0, %v526
      %528 = vmatmul.bf16.gmra.mxu0 %v507
      %v529 = vpop.f32.mrf.mxu0
      %v530 = vadd.f32 0.0, %v529
      %v531 = vpop.f32.mrf.mxu0
      %v532 = vadd.f32 0.0, %v531
      %533 = vmatmul.bf16.gmra.mxu0 %v510
      %v534 = vpop.f32.mrf.mxu0
      %v535 = vadd.f32 0.0, %v534
      %v536 = vpop.f32.mrf.mxu0
      %v537 = vadd.f32 0.0, %v536
      %538 = vmatmul.bf16.gmra.mxu0 %v513
      %v539 = vpop.f32.mrf.mxu0
      %v540 = vadd.f32 0.0, %v539
      %v541 = vpop.f32.mrf.mxu0
      %v542 = vadd.f32 0.0, %v541
      %543 = vdwg.mxu0
      %v544 = vadd.f32 %v425, %v525
      %v545 = vadd.f32 %v426, %v527
      %v546 = vadd.f32 %v427, %v530
      %v547 = vadd.f32 %v428, %v532
      %v548 = vadd.f32 %v429, %v535
      %v549 = vadd.f32 %v430, %v537
      %v550 = vadd.f32 %v431, %v540
      %v551 = vadd.f32 %v432, %v542
      %v552 = vpack.c.bf16 %v194, %v192
      %v553 = vpack.c.bf16 %v198, %v196
      %v554 = vpack.c.bf16 %v202, %v200
      %v555 = vpack.c.bf16 %v206, %v204
      %s556 = scalar_lea.vmem %s1, 96
      %v557 = vld [vmem:[%s556] sm:$0xf]
      %v558 = vld [vmem:[%s556 + $0x4] sm:$0xf]
      %v559 = vld [vmem:[%s556 + $0x8] sm:$0xf]
      %v560 = vld [vmem:[%s556 + $0xc] sm:$0xf]
      %v561 = vld [vmem:[%s556 + $0x10] sm:$0xf]
      %v562 = vld [vmem:[%s556 + $0x14] sm:$0xf]
      %v563 = vld [vmem:[%s556 + $0x18] sm:$0xf]
      %v564 = vld [vmem:[%s556 + $0x1c] sm:$0xf]
      %v573 = vunpack.c.l.b16 %v557
      %v574 = vunpack.c.l.b16 %v558
      %v575 = vunpack.c.l.b16 %v559
      %v576 = vunpack.c.l.b16 %v560
      %v577 = vunpack.c.l.b16 %v561
      %v578 = vunpack.c.l.b16 %v562
      %v579 = vunpack.c.l.b16 %v563
      %v580 = vunpack.c.l.b16 %v564
      %v581 = vpack.c.b16 %v574, %v573
      %v582 = vpack.c.b16 %v576, %v575
      %v583 = vpack.c.b16 %v578, %v577
      %v584 = vpack.c.b16 %v580, %v579
      %v590 = vsel %vm248, %v552, 0
      %v593 = vsel %vm248, %v553, 0
      %v596 = vsel %vm248, %v554, 0
      %v599 = vsel %vm248, %v555, 0
      %601 = vmatpush.bf16.msra.mxu0 0
      %602 = vmatpush.bf16.msra.mxu0 0
      %603 = vmatpush.bf16.msra.mxu0 0
      %604 = vmatpush.bf16.msra.mxu0 0
      %605 = vmatpush.bf16.msra.mxu0 %v584
      %606 = vmatpush.bf16.msra.mxu0 %v583
      %607 = vmatpush.bf16.msra.mxu0 %v582
      %608 = vmatpush.bf16.msra.mxu0 %v581
      %609 = vmatmul.bf16.gmra.mxu0 %v590
      %v610 = vpop.f32.mrf.mxu0
      %v611 = vadd.f32 0.0, %v610
      %v612 = vpop.f32.mrf.mxu0
      %v613 = vadd.f32 0.0, %v612
      %614 = vmatmul.bf16.gmra.mxu0 %v593
      %v615 = vpop.f32.mrf.mxu0
      %v616 = vadd.f32 0.0, %v615
      %v617 = vpop.f32.mrf.mxu0
      %v618 = vadd.f32 0.0, %v617
      %619 = vmatmul.bf16.gmra.mxu0 %v596
      %v620 = vpop.f32.mrf.mxu0
      %v621 = vadd.f32 0.0, %v620
      %v622 = vpop.f32.mrf.mxu0
      %v623 = vadd.f32 0.0, %v622
      %624 = vmatmul.bf16.gmra.mxu0 %v599
      %v625 = vpop.f32.mrf.mxu0
      %v626 = vadd.f32 0.0, %v625
      %v627 = vpop.f32.mrf.mxu0
      %v628 = vadd.f32 0.0, %v627
      %629 = vdwg.mxu0
      %v630 = vadd.f32 %v544, %v611
      %v631 = vadd.f32 %v545, %v613
      %v632 = vadd.f32 %v546, %v616
      %v633 = vadd.f32 %v547, %v618
      %v634 = vadd.f32 %v548, %v621
      %v635 = vadd.f32 %v549, %v623
      %v636 = vadd.f32 %v550, %v626
      %v637 = vadd.f32 %v551, %v628
      %v640 = vrot.slane %v206, 1
      %v641 = vrot.slane %v207, 1
      %v642 = vsel %vm314, %v640, %v641
      %v644 = vpack.c.bf16 %v323, %v320
      %v645 = vpack.c.bf16 %v329, %v326
      %v646 = vpack.c.bf16 %v335, %v332
      %v647 = vpack.c.bf16 %v642, %v338
      %s648 = scalar_lea.vmem %s1, 128
      %v649 = vld [vmem:[%s648] sm:$0xf]
      %v650 = vld [vmem:[%s648 + $0x4] sm:$0xf]
      %v651 = vld [vmem:[%s648 + $0x8] sm:$0xf]
      %v652 = vld [vmem:[%s648 + $0xc] sm:$0xf]
      %v653 = vld [vmem:[%s648 + $0x10] sm:$0xf]
      %v654 = vld [vmem:[%s648 + $0x14] sm:$0xf]
      %v655 = vld [vmem:[%s648 + $0x18] sm:$0xf]
      %v656 = vld [vmem:[%s648 + $0x1c] sm:$0xf]
      %v665 = vunpack.c.l.b16 %v649
      %v666 = vunpack.c.l.b16 %v650
      %v667 = vunpack.c.l.b16 %v651
      %v668 = vunpack.c.l.b16 %v652
      %v669 = vunpack.c.l.b16 %v653
      %v670 = vunpack.c.l.b16 %v654
      %v671 = vunpack.c.l.b16 %v655
      %v672 = vunpack.c.l.b16 %v656
      %v673 = vpack.c.b16 %v666, %v665
      %v674 = vpack.c.b16 %v668, %v667
      %v675 = vpack.c.b16 %v670, %v669
      %v676 = vpack.c.b16 %v672, %v671
      %v682 = vsel %vm248, %v644, 0
      %v685 = vsel %vm248, %v645, 0
      %v688 = vsel %vm248, %v646, 0
      %v691 = vsel %vm248, %v647, 0
      %693 = vmatpush.bf16.msra.mxu0 0
      %694 = vmatpush.bf16.msra.mxu0 0
      %695 = vmatpush.bf16.msra.mxu0 0
      %696 = vmatpush.bf16.msra.mxu0 0
      %697 = vmatpush.bf16.msra.mxu0 %v676
      %698 = vmatpush.bf16.msra.mxu0 %v675
      %699 = vmatpush.bf16.msra.mxu0 %v674
      %700 = vmatpush.bf16.msra.mxu0 %v673
      %701 = vmatmul.bf16.gmra.mxu0 %v682
      %v702 = vpop.f32.mrf.mxu0
      %v703 = vadd.f32 0.0, %v702
      %v704 = vpop.f32.mrf.mxu0
      %v705 = vadd.f32 0.0, %v704
      %706 = vmatmul.bf16.gmra.mxu0 %v685
      %v707 = vpop.f32.mrf.mxu0
      %v708 = vadd.f32 0.0, %v707
      %v709 = vpop.f32.mrf.mxu0
      %v710 = vadd.f32 0.0, %v709
      %711 = vmatmul.bf16.gmra.mxu0 %v688
      %v712 = vpop.f32.mrf.mxu0
      %v713 = vadd.f32 0.0, %v712
      %v714 = vpop.f32.mrf.mxu0
      %v715 = vadd.f32 0.0, %v714
      %716 = vmatmul.bf16.gmra.mxu0 %v691
      %v717 = vpop.f32.mrf.mxu0
      %v718 = vadd.f32 0.0, %v717
      %v719 = vpop.f32.mrf.mxu0
      %v720 = vadd.f32 0.0, %v719
      %721 = vdwg.mxu0
      %v722 = vadd.f32 %v630, %v703
      %v723 = vadd.f32 %v631, %v705
      %v724 = vadd.f32 %v632, %v708
      %v725 = vadd.f32 %v633, %v710
      %v726 = vadd.f32 %v634, %v713
      %v727 = vadd.f32 %v635, %v715
      %v728 = vadd.f32 %v636, %v718
      %v729 = vadd.f32 %v637, %v720
      %v730 = vmax.f32 %v722, 0.0
      %v731 = vmax.f32 %v723, 0.0
      %v732 = vmax.f32 %v724, 0.0
      %v733 = vmax.f32 %v725, 0.0
      %v734 = vmax.f32 %v726, 0.0
      %v735 = vmax.f32 %v727, 0.0
      %v736 = vmax.f32 %v728, 0.0
      %v737 = vmax.f32 %v729, 0.0
      %v738 = vpack.c.bf16 %v730, %v730
      %v739 = vpack.c.bf16 %v731, %v731
      %v740 = vpack.c.bf16 %v732, %v732
      %v741 = vpack.c.bf16 %v733, %v733
      %v742 = vpack.c.bf16 %v734, %v734
      %v743 = vpack.c.bf16 %v735, %v735
      %v744 = vpack.c.bf16 %v736, %v736
      %v745 = vpack.c.bf16 %v737, %v737
      %746 = vst [vmem:[%s170] sm:$0xf] %v738
      %747 = vst [vmem:[%s170 + $0x4] sm:$0xf] %v739
      %748 = vst [vmem:[%s170 + $0x8] sm:$0xf] %v740
      %749 = vst [vmem:[%s170 + $0xc] sm:$0xf] %v741
      %750 = vst [vmem:[%s170 + $0x10] sm:$0xf] %v742
      %751 = vst [vmem:[%s170 + $0x14] sm:$0xf] %v743
      %752 = vst [vmem:[%s170 + $0x18] sm:$0xf] %v744
      %753 = vst [vmem:[%s170 + $0x1c] sm:$0xf] %v745
      %p754 = scmp.lt.s32.totalorder %s14, 1
      %s755 = scalar_select %p754, %s14, 1
      %s756 = smul.addr %s755, 8
      %s757 = smul.addr %s756, 4
      %s758 = scalar_lea.vmem %s3, %s757
      // Predicated region
      $region33: #{forward.9} parent=31 // pred_check
        %p759 = pneg %p100
      $region34: #{forward.9} parent=31 // pred_check_branch
        %761 = sbr.rel (%p759) target = $region36
      $region35: #{forward.9} parent=31 // pred_region
        _
      $region36: #{forward.9} parent=31 // pred_fallthru
        _
    $region32: #{forward.9} parent=5 // pred_fallthru
      _
    %p762 = scmp.le.s32.totalorder 2, %s9
    // Predicated region
    $region37: #{forward.9} parent=5 // pred_check
      %p763 = pneg %p762
    $region38: #{forward.9} parent=5 // pred_check_branch
      %765 = sbr.rel (%p763) target = $region40
    $region39: #{forward.9} parent=5 // pred_region
      %s766 = ssub.s32 %s9, 2
      // Predicated region
      $region41: #{forward.9} parent=39 // pred_check
        %p767 = pneg %p106
      $region42: #{forward.9} parent=39 // pred_check_branch
        %769 = sbr.rel (%p767) target = $region44
      $region43: #{forward.9} parent=39 // pred_region
        %p770 = scmp.lt.s32.totalorder %s15, 1
        %s771 = scalar_select %p770, %s15, 1
        %s772 = smul.addr %s771, 8
        %s773 = smul.addr %s772, 4
        %s774 = scalar_lea.vmem %s3, %s773
      $region44: #{forward.9} parent=39 // pred_fallthru
        _
    $region40: #{forward.9} parent=5 // pred_fallthru
      _
  $region6: #{forward.9} parent=0 // loop_footer
    %s13 = sadd.s32 1, %s9
  $region7: #{forward.9} parent=0 // loop_footer_branch
    %8 = sbr.rel target = $region3
  $region8: #{forward.9} parent=0 // loop_exit
    _

// kernel: forward.11
$region0: #{forward.11}
  #allocation0 [shape = 'u32[]', space=smem, size = 0x4, offset = 0x4, fixed_abs, tag = 'smem constant byte address 0x4 - core index']
  #allocation1 [shape = 'u32[72,128]{1,0:T(1,128)}', space=vmem, size = 0x9000, scoped, tag = 'internal scratch']
  %s0 = inlined_call_operand.vmem [shape: bf16[2,10,10,128], index: 0, kind: input, shape index: {}]
  %s1 = inlined_call_operand.vmem [shape: bf16[5,128,256], index: 1, kind: input, shape index: {}]
  %s2 = inlined_call_operand.vmem [shape: f32[1,256], index: 2, kind: input, shape index: {}]
  %s3 = inlined_call_operand.vmem [shape: bf16[2,8,8,256], index: 3, kind: output, shape index: {}]
  %s4 = sld [smem:[#allocation0]]
  $region45: #{forward.11} parent=0
    _
  %s6 = ssub.s32 1, %s4
  %s7 = scalar_select 0, %s6, %s4
  loop: start=0, step=1, limit=4
  $region2: #{forward.11} parent=0 // loop_pre_header
    _
  $region3: #{forward.11} parent=0 // loop_header
    %s9 = sphi 0, %s13
    %p10 = scmp.ge.s32.totalorder %s9, 4
    %s19 = sphi 0, %s21
    %s22 = sphi 0, %s19
    %s23 = sphi 0, %s22
    %s39 = sphi 0, %s23
    %s43 = sphi 0, %s43
    %s45 = sphi 0, %s43
    %s46 = sphi 0, %s45
    %s60 = sphi 0, %s46
    %s64 = sphi 0, %s64
    %s66 = sphi 0, %s64
    %s67 = sphi 0, %s66
    %s81 = sphi 0, %s67
    %s87 = sphi 0, %s89
    %s90 = sphi 0, %s87
    %s91 = sphi 0, %s90
    %s107 = sphi 0, %s91
  $region4: #{forward.11} parent=0 // loop_header_branch
    %12 = sbr.rel (%p10) target = $region8
  $region5: #{forward.11} parent=0 // loop_body
    %s14 = ssub.s32 %s9, 1
    %s15 = ssub.s32 %s9, 2
    %s16 = sadd.s32 %s9, 1
    %s17 = ssub.s32 %s9, %s16
    %p18 = scmp.eq.s32.totalorder %s17, 0
    %s20 = sadd.s32 %s19, 1
    %s21 = scalar_select %p18, %s19, %s20
    %p24 = pneg %p18
    %p25 = scmp.eq.s32.totalorder %s9, 1
    %p26 = por %p24, %p25
    %p27 = scmp.ne.s32.totalorder %s19, %s22
    %p28 = scmp.eq.s32.totalorder %s9, 0
    %p29 = por %p27, %p28
    %p30 = scmp.ne.s32.totalorder %s19, %s22
    %p31 = scmp.eq.s32.totalorder %s14, 1
    %p32 = por %p30, %p31
    %p33 = scmp.ne.s32.totalorder %s22, %s23
    %p34 = scmp.eq.s32.totalorder %s14, 0
    %p35 = por %p33, %p34
    %p36 = scmp.ne.s32.totalorder %s22, %s23
    %p37 = scmp.eq.s32.totalorder %s15, 1
    %p38 = por %p36, %p37
    %p40 = scmp.ne.s32.totalorder %s23, %s39
    %p41 = scmp.eq.s32.totalorder %s15, 0
    %p42 = por %p40, %p41
    %s44 = sadd.s32 %s43, 1
    %p47 = scmp.eq.s32.totalorder %s9, 1
    %p48 = scmp.ne.s32.totalorder %s43, %s45
    %p49 = scmp.eq.s32.totalorder %s9, 0
    %p50 = por %p48, %p49
    %p51 = scmp.ne.s32.totalorder %s43, %s45
    %p52 = scmp.eq.s32.totalorder %s14, 1
    %p53 = por %p51, %p52
    %p54 = scmp.ne.s32.totalorder %s45, %s46
    %p55 = scmp.eq.s32.totalorder %s14, 0
    %p56 = por %p54, %p55
    %p57 = scmp.ne.s32.totalorder %s45, %s46
    %p58 = scmp.eq.s32.totalorder %s15, 1
    %p59 = por %p57, %p58
    %p61 = scmp.ne.s32.totalorder %s46, %s60
    %p62 = scmp.eq.s32.totalorder %s15, 0
    %p63 = por %p61, %p62
    %s65 = sadd.s32 %s64, 1
    %p68 = scmp.eq.s32.totalorder %s9, 1
    %p69 = scmp.ne.s32.totalorder %s64, %s66
    %p70 = scmp.eq.s32.totalorder %s9, 0
    %p71 = por %p69, %p70
    %p72 = scmp.ne.s32.totalorder %s64, %s66
    %p73 = scmp.eq.s32.totalorder %s14, 1
    %p74 = por %p72, %p73
    %p75 = scmp.ne.s32.totalorder %s66, %s67
    %p76 = scmp.eq.s32.totalorder %s14, 0
    %p77 = por %p75, %p76
    %p78 = scmp.ne.s32.totalorder %s66, %s67
    %p79 = scmp.eq.s32.totalorder %s15, 1
    %p80 = por %p78, %p79
    %p82 = scmp.ne.s32.totalorder %s67, %s81
    %p83 = scmp.eq.s32.totalorder %s15, 0
    %p84 = por %p82, %p83
    %s85 = ssub.s32 %s9, %s16
    %p86 = scmp.eq.s32.totalorder %s85, 0
    %s88 = sadd.s32 %s87, 1
    %s89 = scalar_select %p86, %s87, %s88
    %p92 = pneg %p86
    %p93 = scmp.eq.s32.totalorder %s9, 1
    %p94 = por %p92, %p93
    %p95 = scmp.ne.s32.totalorder %s87, %s90
    %p96 = scmp.eq.s32.totalorder %s9, 0
    %p97 = por %p95, %p96
    %p98 = scmp.ne.s32.totalorder %s87, %s90
    %p99 = scmp.eq.s32.totalorder %s14, 1
    %p100 = por %p98, %p99
    %p101 = scmp.ne.s32.totalorder %s90, %s91
    %p102 = scmp.eq.s32.totalorder %s14, 0
    %p103 = por %p101, %p102
    %p104 = scmp.ne.s32.totalorder %s90, %s91
    %p105 = scmp.eq.s32.totalorder %s15, 1
    %p106 = por %p104, %p105
    %p108 = scmp.ne.s32.totalorder %s91, %s107
    %p109 = scmp.eq.s32.totalorder %s15, 0
    %p110 = por %p108, %p109
    %p111 = scmp.le.s32.totalorder 1, %s9
    %p112 = scmp.lt.s32.totalorder %s9, 3
    %p113 = pnand %p111, %p112
    %p114 = pneg %p113
    // Predicated region
    $region9: #{forward.11} parent=5 // pred_check
      _
    $region10: #{forward.11} parent=5 // pred_check_branch
      %116 = sbr.rel (%p113) target = $region12
    $region11: #{forward.11} parent=5 // pred_region
      %s117 = ssub.s32 %s9, 1
      // Predicated region
      $region13: #{forward.11} parent=11 // pred_check
        %p118 = pneg %p56
      $region14: #{forward.11} parent=11 // pred_check_branch
        %120 = sbr.rel (%p118) target = $region16
      $region15: #{forward.11} parent=11 // pred_region
        _
      $region16: #{forward.11} parent=11 // pred_fallthru
        _
      // Predicated region
      $region17: #{forward.11} parent=11 // pred_check
        %p121 = pneg %p77
      $region18: #{forward.11} parent=11 // pred_check_branch
        %123 = sbr.rel (%p121) target = $region20
      $region19: #{forward.11} parent=11 // pred_region
        _
      $region20: #{forward.11} parent=11 // pred_fallthru
        _
    $region12: #{forward.11} parent=5 // pred_fallthru
      _
    %p124 = scmp.lt.s32.totalorder %s9, 2
    // Predicated region
    $region21: #{forward.11} parent=5 // pred_check
      %p125 = pneg %p124
    $region22: #{forward.11} parent=5 // pred_check_branch
      %127 = sbr.rel (%p125) target = $region24
    $region23: #{forward.11} parent=5 // pred_region
      // Predicated region
      $region25: #{forward.11} parent=23 // pred_check
        %p128 = pneg %p29
      $region26: #{forward.11} parent=23 // pred_check_branch
        %130 = sbr.rel (%p128) target = $region28
      $region27: #{forward.11} parent=23 // pred_region
        %p131 = scmp.lt.s32.totalorder %s9, 1
        %s132 = scalar_select %p131, %s9, 1
        %s133 = smul.addr %s132, 20
        %s134 = smul.addr %s133, 4
        %s135 = scalar_lea.vmem %s0, %s134
      $region28: #{forward.11} parent=23 // pred_fallthru
        _
    $region24: #{forward.11} parent=5 // pred_fallthru
      _
    %p136 = scmp.le.s32.totalorder 1, %s9
    %p137 = scmp.lt.s32.totalorder %s9, 3
    %p138 = pnand %p136, %p137
    %p139 = pneg %p138
    // Predicated region
    $region29: #{forward.11} parent=5 // pred_check
      _
    $region30: #{forward.11} parent=5 // pred_check_branch
      %141 = sbr.rel (%p138) target = $region32
    $region31: #{forward.11} parent=5 // pred_region
      %s142 = ssub.s32 %s9, 1
      %p143 = scmp.lt.s32.totalorder %s14, 1
      %s144 = scalar_select %p143, %s14, 1
      %s145 = smul.addr %s144, 20
      %s146 = smul.addr %s145, 4
      %s147 = scalar_lea.vmem %s0, %s146
      %p148 = pneg %p35
      %p149 = pneg %p32
      %p150 = pneg %p56
      %p151 = pneg %p53
      %p152 = pneg %p77
      %p153 = pneg %p74
      %p154 = pneg %p103
      %p155 = pneg %p100
      %p156 = scmp.lt.s32.totalorder %s14, 1
      %s157 = scalar_select %p156, %s14, 1
      %s158 = smul.addr %s157, 16
      %s159 = smul.addr %s158, 4
      %s160 = scalar_lea.vmem %s3, %s159
      %p161 = scmp.lt.s32.totalorder %s14, 1
      %s162 = scalar_select %p161, %s14, 1
      %s163 = smul.addr %s162, 20
      %s164 = smul.addr %s163, 4
      %s165 = scalar_lea.vmem %s0, %s164
      %p166 = scmp.lt.s32.totalorder %s14, 1
      %s167 = scalar_select %p166, %s14, 1
      %s168 = smul.addr %s167, 16
      %s169 = smul.addr %s168, 4
      %s170 = scalar_lea.vmem %s3, %s169
      %v171 = vld [vmem:[%s165] sm:$0xf]
      %v172 = vld [vmem:[%s165 + $0x4] sm:$0x1]
      %v173 = vld [vmem:[%s165 + $0x8] sm:$0xf]
      %v174 = vld [vmem:[%s165 + $0xc] sm:$0x1]
      %v175 = vld [vmem:[%s165 + $0x10] sm:$0xf]
      %v176 = vld [vmem:[%s165 + $0x14] sm:$0x1]
      %v177 = vld [vmem:[%s165 + $0x18] sm:$0xf]
      %v178 = vld [vmem:[%s165 + $0x1c] sm:$0x1]
      %v179 = vld [vmem:[%s165 + $0x20] sm:$0xf]
      %v180 = vld [vmem:[%s165 + $0x24] sm:$0x1]
      %v181 = vld [vmem:[%s165 + $0x28] sm:$0xf]
      %v182 = vld [vmem:[%s165 + $0x2c] sm:$0x1]
      %v183 = vld [vmem:[%s165 + $0x30] sm:$0xf]
      %v184 = vld [vmem:[%s165 + $0x34] sm:$0x1]
      %v185 = vld [vmem:[%s165 + $0x38] sm:$0xf]
      %v186 = vld [vmem:[%s165 + $0x3c] sm:$0x1]
      %v187 = vld [vmem:[%s165 + $0x40] sm:$0xf]
      %v188 = vld [vmem:[%s165 + $0x44] sm:$0x1]
      %v189 = vunpack.c.l.bf16 %v171
      %v190 = vunpack.c.l.bf16 %v172
      %v191 = vunpack.c.l.bf16 %v173
      %v192 = vunpack.c.l.bf16 %v174
      %v193 = vunpack.c.l.bf16 %v175
      %v194 = vunpack.c.l.bf16 %v176
      %v195 = vunpack.c.l.bf16 %v177
      %v196 = vunpack.c.l.bf16 %v178
      %v197 = vunpack.c.l.bf16 %v179
      %v198 = vunpack.c.l.bf16 %v180
      %v199 = vunpack.c.l.bf16 %v181
      %v200 = vunpack.c.l.bf16 %v182
      %v201 = vunpack.c.l.bf16 %v183
      %v202 = vunpack.c.l.bf16 %v184
      %v203 = vunpack.c.l.bf16 %v185
      %v204 = vunpack.c.l.bf16 %v186
      %v205 = vunpack.c.l.bf16 %v187
      %v206 = vunpack.c.l.bf16 %v188
      %v207 = vld [vmem:[%s2] sm:$0x3]
      %v209 = vperm.slane %v207, 0
      %v210 = vperm.slane %v207, 1
      %v213 = vpack.c.bf16 %v191, %v189
      %v214 = vpack.c.bf16 %v195, %v193
      %v215 = vpack.c.bf16 %v199, %v197
      %v216 = vpack.c.bf16 %v203, %v201
      %v217 = vld [vmem:[%s1] sm:$0xff]
      %v218 = vld [vmem:[%s1 + $0x8] sm:$0xff]
      %v219 = vld [vmem:[%s1 + $0x10] sm:$0xff]
      %v220 = vld [vmem:[%s1 + $0x18] sm:$0xff]
      %v221 = vld [vmem:[%s1 + $0x20] sm:$0xff]
      %v222 = vld [vmem:[%s1 + $0x28] sm:$0xff]
      %v223 = vld [vmem:[%s1 + $0x30] sm:$0xff]
      %v224 = vld [vmem:[%s1 + $0x38] sm:$0xff]
      %v225 = vld [vmem:[%s1 + $0x40] sm:$0xff]
      %v226 = vld [vmem:[%s1 + $0x48] sm:$0xff]
      %v227 = vld [vmem:[%s1 + $0x50] sm:$0xff]
      %v228 = vld [vmem:[%s1 + $0x58] sm:$0xff]
      %v229 = vld [vmem:[%s1 + $0x60] sm:$0xff]
      %v230 = vld [vmem:[%s1 + $0x68] sm:$0xff]
      %v231 = vld [vmem:[%s1 + $0x70] sm:$0xff]
      %v232 = vld [vmem:[%s1 + $0x78] sm:$0xff]
      %v249 = vunpack.c.l.b16 %v217
      %v250 = vunpack.c.h.b16 %v217
      %v251 = vunpack.c.l.b16 %v218
      %v252 = vunpack.c.h.b16 %v218
      %v253 = vunpack.c.l.b16 %v219
      %v254 = vunpack.c.h.b16 %v219
      %v255 = vunpack.c.l.b16 %v220
      %v256 = vunpack.c.h.b16 %v220
      %v257 = vunpack.c.l.b16 %v221
      %v258 = vunpack.c.h.b16 %v221
      %v259 = vunpack.c.l.b16 %v222
      %v260 = vunpack.c.h.b16 %v222
      %v261 = vunpack.c.l.b16 %v223
      %v262 = vunpack.c.h.b16 %v223
      %v263 = vunpack.c.l.b16 %v224
      %v264 = vunpack.c.h.b16 %v224
      %v265 = vunpack.c.l.b16 %v225
      %v266 = vunpack.c.h.b16 %v225
      %v267 = vunpack.c.l.b16 %v226
      %v268 = vunpack.c.h.b16 %v226
      %v269 = vunpack.c.l.b16 %v227
      %v270 = vunpack.c.h.b16 %v227
      %v271 = vunpack.c.l.b16 %v228
      %v272 = vunpack.c.h.b16 %v228
      %v273 = vunpack.c.l.b16 %v229
      %v274 = vunpack.c.h.b16 %v229
      %v275 = vunpack.c.l.b16 %v230
      %v276 = vunpack.c.h.b16 %v230
      %v277 = vunpack.c.l.b16 %v231
      %v278 = vunpack.c.h.b16 %v231
      %v279 = vunpack.c.l.b16 %v232
      %v280 = vunpack.c.h.b16 %v232
      %v281 = vpack.c.b16 %v251, %v249
      %v282 = vpack.c.b16 %v252, %v250
      %v283 = vpack.c.b16 %v255, %v253
      %v284 = vpack.c.b16 %v256, %v254
      %v285 = vpack.c.b16 %v259, %v257
      %v286 = vpack.c.b16 %v260, %v258
      %v287 = vpack.c.b16 %v263, %v261
      %v288 = vpack.c.b16 %v264, %v262
      %v289 = vpack.c.b16 %v267, %v265
      %v290 = vpack.c.b16 %v268, %v266
      %v291 = vpack.c.b16 %v271, %v269
      %v292 = vpack.c.b16 %v272, %v270
      %v293 = vpack.c.b16 %v275, %v273
      %v294 = vpack.c.b16 %v276, %v274
      %v295 = vpack.c.b16 %v279, %v277
      %v296 = vpack.c.b16 %v280, %v278
      %313 = vmatpush.bf16.msra.mxu0 %v295
      %314 = vmatpush.bf16.msra.mxu0 %v293
      %315 = vmatpush.bf16.msra.mxu0 %v291
      %316 = vmatpush.bf16.msra.mxu0 %v289
      %317 = vmatpush.bf16.msra.mxu0 %v287
      %318 = vmatpush.bf16.msra.mxu0 %v285
      %319 = vmatpush.bf16.msra.mxu0 %v283
      %320 = vmatpush.bf16.msra.mxu0 %v281
      %321 = vmatmul.bf16.gmra.mxu0 %v213
      %v322 = vpop.f32.mrf.mxu0
      %v323 = vadd.f32 0.0, %v322
      %v324 = vpop.f32.mrf.mxu0
      %v325 = vadd.f32 0.0, %v324
      %326 = vmatmul.bf16.gmra.mxu0 %v214
      %v327 = vpop.f32.mrf.mxu0
      %v328 = vadd.f32 0.0, %v327
      %v329 = vpop.f32.mrf.mxu0
      %v330 = vadd.f32 0.0, %v329
      %331 = vmatmul.bf16.gmra.mxu0 %v215
      %v332 = vpop.f32.mrf.mxu0
      %v333 = vadd.f32 0.0, %v332
      %v334 = vpop.f32.mrf.mxu0
      %v335 = vadd.f32 0.0, %v334
      %336 = vmatmul.bf16.gmra.mxu0 %v216
      %v337 = vpop.f32.mrf.mxu0
      %v338 = vadd.f32 0.0, %v337
      %v339 = vpop.f32.mrf.mxu0
      %v340 = vadd.f32 0.0, %v339
      %341 = vdwg.mxu0
      %342 = vmatpush.bf16.msra.mxu0 %v296
      %343 = vmatpush.bf16.msra.mxu0 %v294
      %344 = vmatpush.bf16.msra.mxu0 %v292
      %345 = vmatpush.bf16.msra.mxu0 %v290
      %346 = vmatpush.bf16.msra.mxu0 %v288
      %347 = vmatpush.bf16.msra.mxu0 %v286
      %348 = vmatpush.bf16.msra.mxu0 %v284
      %349 = vmatpush.bf16.msra.mxu0 %v282
      %350 = vmatmul.bf16.gmra.mxu0 %v213
      %v351 = vpop.f32.mrf.mxu0
      %v352 = vadd.f32 0.0, %v351
      %v353 = vpop.f32.mrf.mxu0
      %v354 = vadd.f32 0.0, %v353
      %355 = vmatmul.bf16.gmra.mxu0 %v214
      %v356 = vpop.f32.mrf.mxu0
      %v357 = vadd.f32 0.0, %v356
      %v358 = vpop.f32.mrf.mxu0
      %v359 = vadd.f32 0.0, %v358
      %360 = vmatmul.bf16.gmra.mxu0 %v215
      %v361 = vpop.f32.mrf.mxu0
      %v362 = vadd.f32 0.0, %v361
      %v363 = vpop.f32.mrf.mxu0
      %v364 = vadd.f32 0.0, %v363
      %365 = vmatmul.bf16.gmra.mxu0 %v216
      %v366 = vpop.f32.mrf.mxu0
      %v367 = vadd.f32 0.0, %v366
      %v368 = vpop.f32.mrf.mxu0
      %v369 = vadd.f32 0.0, %v368
      %370 = vdwg.mxu0
      %v371 = vadd.f32 %v209, %v323
      %v372 = vadd.f32 %v210, %v352
      %v373 = vadd.f32 %v209, %v325
      %v374 = vadd.f32 %v210, %v354
      %v375 = vadd.f32 %v209, %v328
      %v376 = vadd.f32 %v210, %v357
      %v377 = vadd.f32 %v209, %v330
      %v378 = vadd.f32 %v210, %v359
      %v379 = vadd.f32 %v209, %v333
      %v380 = vadd.f32 %v210, %v362
      %v381 = vadd.f32 %v209, %v335
      %v382 = vadd.f32 %v210, %v364
      %v383 = vadd.f32 %v209, %v338
      %v384 = vadd.f32 %v210, %v367
      %v385 = vadd.f32 %v209, %v340
      %v386 = vadd.f32 %v210, %v369
      %vm403 = vcmask 1046528
      %v404 = vrot.slane %v189, 1
      %v405 = vrot.slane %v190, 1
      %v406 = vsel %vm403, %v404, %v405
      %v407 = vrot.slane %v191, 1
      %v408 = vrot.slane %v192, 1
      %v409 = vsel %vm403, %v407, %v408
      %v410 = vrot.slane %v193, 1
      %v411 = vrot.slane %v194, 1
      %v412 = vsel %vm403, %v410, %v411
      %v413 = vrot.slane %v195, 1
      %v414 = vrot.slane %v196, 1
      %v415 = vsel %vm403, %v413, %v414
      %v416 = vrot.slane %v197, 1
      %v417 = vrot.slane %v198, 1
      %v418 = vsel %vm403, %v416, %v417
      %v419 = vrot.slane %v199, 1
      %v420 = vrot.slane %v200, 1
      %v421 = vsel %vm403, %v419, %v420
      %v422 = vrot.slane %v201, 1
      %v423 = vrot.slane %v202, 1
      %v424 = vsel %vm403, %v422, %v423
      %v425 = vrot.slane %v203, 1
      %v426 = vrot.slane %v204, 1
      %v427 = vsel %vm403, %v425, %v426
      %v436 = vpack.c.bf16 %v409, %v406
      %v437 = vpack.c.bf16 %v415, %v412
      %v438 = vpack.c.bf16 %v421, %v418
      %v439 = vpack.c.bf16 %v427, %v424
      %s440 = scalar_lea.vmem %s1, 128
      %v441 = vld [vmem:[%s440] sm:$0xff]
      %v442 = vld [vmem:[%s440 + $0x8] sm:$0xff]
      %v443 = vld [vmem:[%s440 + $0x10] sm:$0xff]
      %v444 = vld [vmem:[%s440 + $0x18] sm:$0xff]
      %v445 = vld [vmem:[%s440 + $0x20] sm:$0xff]
      %v446 = vld [vmem:[%s440 + $0x28] sm:$0xff]
      %v447 = vld [vmem:[%s440 + $0x30] sm:$0xff]
      %v448 = vld [vmem:[%s440 + $0x38] sm:$0xff]
      %v449 = vld [vmem:[%s440 + $0x40] sm:$0xff]
      %v450 = vld [vmem:[%s440 + $0x48] sm:$0xff]
      %v451 = vld [vmem:[%s440 + $0x50] sm:$0xff]
      %v452 = vld [vmem:[%s440 + $0x58] sm:$0xff]
      %v453 = vld [vmem:[%s440 + $0x60] sm:$0xff]
      %v454 = vld [vmem:[%s440 + $0x68] sm:$0xff]
      %v455 = vld [vmem:[%s440 + $0x70] sm:$0xff]
      %v456 = vld [vmem:[%s440 + $0x78] sm:$0xff]
      %v473 = vunpack.c.l.b16 %v441
      %v474 = vunpack.c.h.b16 %v441
      %v475 = vunpack.c.l.b16 %v442
      %v476 = vunpack.c.h.b16 %v442
      %v477 = vunpack.c.l.b16 %v443
      %v478 = vunpack.c.h.b16 %v443
      %v479 = vunpack.c.l.b16 %v444
      %v480 = vunpack.c.h.b16 %v444
      %v481 = vunpack.c.l.b16 %v445
      %v482 = vunpack.c.h.b16 %v445
      %v483 = vunpack.c.l.b16 %v446
      %v484 = vunpack.c.h.b16 %v446
      %v485 = vunpack.c.l.b16 %v447
      %v486 = vunpack.c.h.b16 %v447
      %v487 = vunpack.c.l.b16 %v448
      %v488 = vunpack.c.h.b16 %v448
      %v489 = vunpack.c.l.b16 %v449
      %v490 = vunpack.c.h.b16 %v449
      %v491 = vunpack.c.l.b16 %v450
      %v492 = vunpack.c.h.b16 %v450
      %v493 = vunpack.c.l.b16 %v451
      %v494 = vunpack.c.h.b16 %v451
      %v495 = vunpack.c.l.b16 %v452
      %v496 = vunpack.c.h.b16 %v452
      %v497 = vunpack.c.l.b16 %v453
      %v498 = vunpack.c.h.b16 %v453
      %v499 = vunpack.c.l.b16 %v454
      %v500 = vunpack.c.h.b16 %v454
      %v501 = vunpack.c.l.b16 %v455
      %v502 = vunpack.c.h.b16 %v455
      %v503 = vunpack.c.l.b16 %v456
      %v504 = vunpack.c.h.b16 %v456
      %v505 = vpack.c.b16 %v475, %v473
      %v506 = vpack.c.b16 %v476, %v474
      %v507 = vpack.c.b16 %v479, %v477
      %v508 = vpack.c.b16 %v480, %v478
      %v509 = vpack.c.b16 %v483, %v481
      %v510 = vpack.c.b16 %v484, %v482
      %v511 = vpack.c.b16 %v487, %v485
      %v512 = vpack.c.b16 %v488, %v486
      %v513 = vpack.c.b16 %v491, %v489
      %v514 = vpack.c.b16 %v492, %v490
      %v515 = vpack.c.b16 %v495, %v493
      %v516 = vpack.c.b16 %v496, %v494
      %v517 = vpack.c.b16 %v499, %v497
      %v518 = vpack.c.b16 %v500, %v498
      %v519 = vpack.c.b16 %v503, %v501
      %v520 = vpack.c.b16 %v504, %v502
      %537 = vmatpush.bf16.msra.mxu0 %v519
      %538 = vmatpush.bf16.msra.mxu0 %v517
      %539 = vmatpush.bf16.msra.mxu0 %v515
      %540 = vmatpush.bf16.msra.mxu0 %v513
      %541 = vmatpush.bf16.msra.mxu0 %v511
      %542 = vmatpush.bf16.msra.mxu0 %v509
      %543 = vmatpush.bf16.msra.mxu0 %v507
      %544 = vmatpush.bf16.msra.mxu0 %v505
      %545 = vmatmul.bf16.gmra.mxu0 %v436
      %v546 = vpop.f32.mrf.mxu0
      %v547 = vadd.f32 0.0, %v546
      %v548 = vpop.f32.mrf.mxu0
      %v549 = vadd.f32 0.0, %v548
      %550 = vmatmul.bf16.gmra.mxu0 %v437
      %v551 = vpop.f32.mrf.mxu0
      %v552 = vadd.f32 0.0, %v551
      %v553 = vpop.f32.mrf.mxu0
      %v554 = vadd.f32 0.0, %v553
      %555 = vmatmul.bf16.gmra.mxu0 %v438
      %v556 = vpop.f32.mrf.mxu0
      %v557 = vadd.f32 0.0, %v556
      %v558 = vpop.f32.mrf.mxu0
      %v559 = vadd.f32 0.0, %v558
      %560 = vmatmul.bf16.gmra.mxu0 %v439
      %v561 = vpop.f32.mrf.mxu0
      %v562 = vadd.f32 0.0, %v561
      %v563 = vpop.f32.mrf.mxu0
      %v564 = vadd.f32 0.0, %v563
      %565 = vdwg.mxu0
      %566 = vmatpush.bf16.msra.mxu0 %v520
      %567 = vmatpush.bf16.msra.mxu0 %v518
      %568 = vmatpush.bf16.msra.mxu0 %v516
      %569 = vmatpush.bf16.msra.mxu0 %v514
      %570 = vmatpush.bf16.msra.mxu0 %v512
      %571 = vmatpush.bf16.msra.mxu0 %v510
      %572 = vmatpush.bf16.msra.mxu0 %v508
      %573 = vmatpush.bf16.msra.mxu0 %v506
      %574 = vmatmul.bf16.gmra.mxu0 %v436
      %v575 = vpop.f32.mrf.mxu0
      %v576 = vadd.f32 0.0, %v575
      %v577 = vpop.f32.mrf.mxu0
      %v578 = vadd.f32 0.0, %v577
      %579 = vmatmul.bf16.gmra.mxu0 %v437
      %v580 = vpop.f32.mrf.mxu0
      %v581 = vadd.f32 0.0, %v580
      %v582 = vpop.f32.mrf.mxu0
      %v583 = vadd.f32 0.0, %v582
      %584 = vmatmul.bf16.gmra.mxu0 %v438
      %v585 = vpop.f32.mrf.mxu0
      %v586 = vadd.f32 0.0, %v585
      %v587 = vpop.f32.mrf.mxu0
      %v588 = vadd.f32 0.0, %v587
      %589 = vmatmul.bf16.gmra.mxu0 %v439
      %v590 = vpop.f32.mrf.mxu0
      %v591 = vadd.f32 0.0, %v590
      %v592 = vpop.f32.mrf.mxu0
      %v593 = vadd.f32 0.0, %v592
      %594 = vdwg.mxu0
      %v595 = vadd.f32 %v371, %v547
      %v596 = vadd.f32 %v372, %v576
      %v597 = vadd.f32 %v373, %v549
      %v598 = vadd.f32 %v374, %v578
      %v599 = vadd.f32 %v375, %v552
      %v600 = vadd.f32 %v376, %v581
      %v601 = vadd.f32 %v377, %v554
      %v602 = vadd.f32 %v378, %v583
      %v603 = vadd.f32 %v379, %v557
      %v604 = vadd.f32 %v380, %v586
      %v605 = vadd.f32 %v381, %v559
      %v606 = vadd.f32 %v382, %v588
      %v607 = vadd.f32 %v383, %v562
      %v608 = vadd.f32 %v384, %v591
      %v609 = vadd.f32 %v385, %v564
      %v610 = vadd.f32 %v386, %v593
      %vm611 = vcmask 1045504
      %v612 = vrot.slane %v189, 2
      %v613 = vrot.slane %v190, 2
      %v614 = vsel %vm611, %v612, %v613
      %v615 = vrot.slane %v191, 2
      %v616 = vrot.slane %v192, 2
      %v617 = vsel %vm611, %v615, %v616
      %v618 = vrot.slane %v193, 2
      %v619 = vrot.slane %v194, 2
      %v620 = vsel %vm611, %v618, %v619
      %v621 = vrot.slane %v195, 2
      %v622 = vrot.slane %v196, 2
      %v623 = vsel %vm611, %v621, %v622
      %v624 = vrot.slane %v197, 2
      %v625 = vrot.slane %v198, 2
      %v626 = vsel %vm611, %v624, %v625
      %v627 = vrot.slane %v199, 2
      %v628 = vrot.slane %v200, 2
      %v629 = vsel %vm611, %v627, %v628
      %v630 = vrot.slane %v201, 2
      %v631 = vrot.slane %v202, 2
      %v632 = vsel %vm611, %v630, %v631
      %v633 = vrot.slane %v203, 2
      %v634 = vrot.slane %v204, 2
      %v635 = vsel %vm611, %v633, %v634
      %v644 = vpack.c.bf16 %v617, %v614
      %v645 = vpack.c.bf16 %v623, %v620
      %v646 = vpack.c.bf16 %v629, %v626
      %v647 = vpack.c.bf16 %v635, %v632
      %s648 = scalar_lea.vmem %s1, 256
      %v649 = vld [vmem:[%s648] sm:$0xff]
      %v650 = vld [vmem:[%s648 + $0x8] sm:$0xff]
      %v651 = vld [vmem:[%s648 + $0x10] sm:$0xff]
      %v652 = vld [vmem:[%s648 + $0x18] sm:$0xff]
      %v653 = vld [vmem:[%s648 + $0x20] sm:$0xff]
      %v654 = vld [vmem:[%s648 + $0x28] sm:$0xff]
      %v655 = vld [vmem:[%s648 + $0x30] sm:$0xff]
      %v656 = vld [vmem:[%s648 + $0x38] sm:$0xff]
      %v657 = vld [vmem:[%s648 + $0x40] sm:$0xff]
      %v658 = vld [vmem:[%s648 + $0x48] sm:$0xff]
      %v659 = vld [vmem:[%s648 + $0x50] sm:$0xff]
      %v660 = vld [vmem:[%s648 + $0x58] sm:$0xff]
      %v661 = vld [vmem:[%s648 + $0x60] sm:$0xff]
      %v662 = vld [vmem:[%s648 + $0x68] sm:$0xff]
      %v663 = vld [vmem:[%s648 + $0x70] sm:$0xff]
      %v664 = vld [vmem:[%s648 + $0x78] sm:$0xff]
      %v681 = vunpack.c.l.b16 %v649
      %v682 = vunpack.c.h.b16 %v649
      %v683 = vunpack.c.l.b16 %v650
      %v684 = vunpack.c.h.b16 %v650
      %v685 = vunpack.c.l.b16 %v651
      %v686 = vunpack.c.h.b16 %v651
      %v687 = vunpack.c.l.b16 %v652
      %v688 = vunpack.c.h.b16 %v652
      %v689 = vunpack.c.l.b16 %v653
      %v690 = vunpack.c.h.b16 %v653
      %v691 = vunpack.c.l.b16 %v654
      %v692 = vunpack.c.h.b16 %v654
      %v693 = vunpack.c.l.b16 %v655
      %v694 = vunpack.c.h.b16 %v655
      %v695 = vunpack.c.l.b16 %v656
      %v696 = vunpack.c.h.b16 %v656
      %v697 = vunpack.c.l.b16 %v657
      %v698 = vunpack.c.h.b16 %v657
      %v699 = vunpack.c.l.b16 %v658
      %v700 = vunpack.c.h.b16 %v658
      %v701 = vunpack.c.l.b16 %v659
      %v702 = vunpack.c.h.b16 %v659
      %v703 = vunpack.c.l.b16 %v660
      %v704 = vunpack.c.h.b16 %v660
      %v705 = vunpack.c.l.b16 %v661
      %v706 = vunpack.c.h.b16 %v661
      %v707 = vunpack.c.l.b16 %v662
      %v708 = vunpack.c.h.b16 %v662
      %v709 = vunpack.c.l.b16 %v663
      %v710 = vunpack.c.h.b16 %v663
      %v711 = vunpack.c.l.b16 %v664
      %v712 = vunpack.c.h.b16 %v664
      %v713 = vpack.c.b16 %v683, %v681
      %v714 = vpack.c.b16 %v684, %v682
      %v715 = vpack.c.b16 %v687, %v685
      %v716 = vpack.c.b16 %v688, %v686
      %v717 = vpack.c.b16 %v691, %v689
      %v718 = vpack.c.b16 %v692, %v690
      %v719 = vpack.c.b16 %v695, %v693
      %v720 = vpack.c.b16 %v696, %v694
      %v721 = vpack.c.b16 %v699, %v697
      %v722 = vpack.c.b16 %v700, %v698
      %v723 = vpack.c.b16 %v703, %v701
      %v724 = vpack.c.b16 %v704, %v702
      %v725 = vpack.c.b16 %v707, %v705
      %v726 = vpack.c.b16 %v708, %v706
      %v727 = vpack.c.b16 %v711, %v709
      %v728 = vpack.c.b16 %v712, %v710
      %745 = vmatpush.bf16.msra.mxu0 %v727
      %746 = vmatpush.bf16.msra.mxu0 %v725
      %747 = vmatpush.bf16.msra.mxu0 %v723
      %748 = vmatpush.bf16.msra.mxu0 %v721
      %749 = vmatpush.bf16.msra.mxu0 %v719
      %750 = vmatpush.bf16.msra.mxu0 %v717
      %751 = vmatpush.bf16.msra.mxu0 %v715
      %752 = vmatpush.bf16.msra.mxu0 %v713
      %753 = vmatmul.bf16.gmra.mxu0 %v644
      %v754 = vpop.f32.mrf.mxu0
      %v755 = vadd.f32 0.0, %v754
      %v756 = vpop.f32.mrf.mxu0
      %v757 = vadd.f32 0.0, %v756
      %758 = vmatmul.bf16.gmra.mxu0 %v645
      %v759 = vpop.f32.mrf.mxu0
      %v760 = vadd.f32 0.0, %v759
      %v761 = vpop.f32.mrf.mxu0
      %v762 = vadd.f32 0.0, %v761
      %763 = vmatmul.bf16.gmra.mxu0 %v646
      %v764 = vpop.f32.mrf.mxu0
      %v765 = vadd.f32 0.0, %v764
      %v766 = vpop.f32.mrf.mxu0
      %v767 = vadd.f32 0.0, %v766
      %768 = vmatmul.bf16.gmra.mxu0 %v647
      %v769 = vpop.f32.mrf.mxu0
      %v770 = vadd.f32 0.0, %v769
      %v771 = vpop.f32.mrf.mxu0
      %v772 = vadd.f32 0.0, %v771
      %773 = vdwg.mxu0
      %774 = vmatpush.bf16.msra.mxu0 %v728
      %775 = vmatpush.bf16.msra.mxu0 %v726
      %776 = vmatpush.bf16.msra.mxu0 %v724
      %777 = vmatpush.bf16.msra.mxu0 %v722
      %778 = vmatpush.bf16.msra.mxu0 %v720
      %779 = vmatpush.bf16.msra.mxu0 %v718
      %780 = vmatpush.bf16.msra.mxu0 %v716
      %781 = vmatpush.bf16.msra.mxu0 %v714
      %782 = vmatmul.bf16.gmra.mxu0 %v644
      %v783 = vpop.f32.mrf.mxu0
      %v784 = vadd.f32 0.0, %v783
      %v785 = vpop.f32.mrf.mxu0
      %v786 = vadd.f32 0.0, %v785
      %787 = vmatmul.bf16.gmra.mxu0 %v645
      %v788 = vpop.f32.mrf.mxu0
      %v789 = vadd.f32 0.0, %v788
      %v790 = vpop.f32.mrf.mxu0
      %v791 = vadd.f32 0.0, %v790
      %792 = vmatmul.bf16.gmra.mxu0 %v646
      %v793 = vpop.f32.mrf.mxu0
      %v794 = vadd.f32 0.0, %v793
      %v795 = vpop.f32.mrf.mxu0
      %v796 = vadd.f32 0.0, %v795
      %797 = vmatmul.bf16.gmra.mxu0 %v647
      %v798 = vpop.f32.mrf.mxu0
      %v799 = vadd.f32 0.0, %v798
      %v800 = vpop.f32.mrf.mxu0
      %v801 = vadd.f32 0.0, %v800
      %802 = vdwg.mxu0
      %v803 = vadd.f32 %v595, %v755
      %v804 = vadd.f32 %v596, %v784
      %v805 = vadd.f32 %v597, %v757
      %v806 = vadd.f32 %v598, %v786
      %v807 = vadd.f32 %v599, %v760
      %v808 = vadd.f32 %v600, %v789
      %v809 = vadd.f32 %v601, %v762
      %v810 = vadd.f32 %v602, %v791
      %v811 = vadd.f32 %v603, %v765
      %v812 = vadd.f32 %v604, %v794
      %v813 = vadd.f32 %v605, %v767
      %v814 = vadd.f32 %v606, %v796
      %v815 = vadd.f32 %v607, %v770
      %v816 = vadd.f32 %v608, %v799
      %v817 = vadd.f32 %v609, %v772
      %v818 = vadd.f32 %v610, %v801
      %v819 = vpack.c.bf16 %v193, %v191
      %v820 = vpack.c.bf16 %v197, %v195
      %v821 = vpack.c.bf16 %v201, %v199
      %v822 = vpack.c.bf16 %v205, %v203
      %s823 = scalar_lea.vmem %s1, 384
      %v824 = vld [vmem:[%s823] sm:$0xff]
      %v825 = vld [vmem:[%s823 + $0x8] sm:$0xff]
      %v826 = vld [vmem:[%s823 + $0x10] sm:$0xff]
      %v827 = vld [vmem:[%s823 + $0x18] sm:$0xff]
      %v828 = vld [vmem:[%s823 + $0x20] sm:$0xff]
      %v829 = vld [vmem:[%s823 + $0x28] sm:$0xff]
      %v830 = vld [vmem:[%s823 + $0x30] sm:$0xff]
      %v831 = vld [vmem:[%s823 + $0x38] sm:$0xff]
      %v832 = vld [vmem:[%s823 + $0x40] sm:$0xff]
      %v833 = vld [vmem:[%s823 + $0x48] sm:$0xff]
      %v834 = vld [vmem:[%s823 + $0x50] sm:$0xff]
      %v835 = vld [vmem:[%s823 + $0x58] sm:$0xff]
      %v836 = vld [vmem:[%s823 + $0x60] sm:$0xff]
      %v837 = vld [vmem:[%s823 + $0x68] sm:$0xff]
      %v838 = vld [vmem:[%s823 + $0x70] sm:$0xff]
      %v839 = vld [vmem:[%s823 + $0x78] sm:$0xff]
      %v856 = vunpack.c.l.b16 %v824
      %v857 = vunpack.c.h.b16 %v824
      %v858 = vunpack.c.l.b16 %v825
      %v859 = vunpack.c.h.b16 %v825
      %v860 = vunpack.c.l.b16 %v826
      %v861 = vunpack.c.h.b16 %v826
      %v862 = vunpack.c.l.b16 %v827
      %v863 = vunpack.c.h.b16 %v827
      %v864 = vunpack.c.l.b16 %v828
      %v865 = vunpack.c.h.b16 %v828
      %v866 = vunpack.c.l.b16 %v829
      %v867 = vunpack.c.h.b16 %v829
      %v868 = vunpack.c.l.b16 %v830
      %v869 = vunpack.c.h.b16 %v830
      %v870 = vunpack.c.l.b16 %v831
      %v871 = vunpack.c.h.b16 %v831
      %v872 = vunpack.c.l.b16 %v832
      %v873 = vunpack.c.h.b16 %v832
      %v874 = vunpack.c.l.b16 %v833
      %v875 = vunpack.c.h.b16 %v833
      %v876 = vunpack.c.l.b16 %v834
      %v877 = vunpack.c.h.b16 %v834
      %v878 = vunpack.c.l.b16 %v835
      %v879 = vunpack.c.h.b16 %v835
      %v880 = vunpack.c.l.b16 %v836
      %v881 = vunpack.c.h.b16 %v836
      %v882 = vunpack.c.l.b16 %v837
      %v883 = vunpack.c.h.b16 %v837
      %v884 = vunpack.c.l.b16 %v838
      %v885 = vunpack.c.h.b16 %v838
      %v886 = vunpack.c.l.b16 %v839
      %v887 = vunpack.c.h.b16 %v839
      %v888 = vpack.c.b16 %v858, %v856
      %v889 = vpack.c.b16 %v859, %v857
      %v890 = vpack.c.b16 %v862, %v860
      %v891 = vpack.c.b16 %v863, %v861
      %v892 = vpack.c.b16 %v866, %v864
      %v893 = vpack.c.b16 %v867, %v865
      %v894 = vpack.c.b16 %v870, %v868
      %v895 = vpack.c.b16 %v871, %v869
      %v896 = vpack.c.b16 %v874, %v872
      %v897 = vpack.c.b16 %v875, %v873
      %v898 = vpack.c.b16 %v878, %v876
      %v899 = vpack.c.b16 %v879, %v877
      %v900 = vpack.c.b16 %v882, %v880
      %v901 = vpack.c.b16 %v883, %v881
      %v902 = vpack.c.b16 %v886, %v884
      %v903 = vpack.c.b16 %v887, %v885
      %920 = vmatpush.bf16.msra.mxu0 %v902
      %921 = vmatpush.bf16.msra.mxu0 %v900
      %922 = vmatpush.bf16.msra.mxu0 %v898
      %923 = vmatpush.bf16.msra.mxu0 %v896
      %924 = vmatpush.bf16.msra.mxu0 %v894
      %925 = vmatpush.bf16.msra.mxu0 %v892
      %926 = vmatpush.bf16.msra.mxu0 %v890
      %927 = vmatpush.bf16.msra.mxu0 %v888
      %928 = vmatmul.bf16.gmra.mxu0 %v819
      %v929 = vpop.f32.mrf.mxu0
      %v930 = vadd.f32 0.0, %v929
      %v931 = vpop.f32.mrf.mxu0
      %v932 = vadd.f32 0.0, %v931
      %933 = vmatmul.bf16.gmra.mxu0 %v820
      %v934 = vpop.f32.mrf.mxu0
      %v935 = vadd.f32 0.0, %v934
      %v936 = vpop.f32.mrf.mxu0
      %v937 = vadd.f32 0.0, %v936
      %938 = vmatmul.bf16.gmra.mxu0 %v821
      %v939 = vpop.f32.mrf.mxu0
      %v940 = vadd.f32 0.0, %v939
      %v941 = vpop.f32.mrf.mxu0
      %v942 = vadd.f32 0.0, %v941
      %943 = vmatmul.bf16.gmra.mxu0 %v822
      %v944 = vpop.f32.mrf.mxu0
      %v945 = vadd.f32 0.0, %v944
      %v946 = vpop.f32.mrf.mxu0
      %v947 = vadd.f32 0.0, %v946
      %948 = vdwg.mxu0
      %949 = vmatpush.bf16.msra.mxu0 %v903
      %950 = vmatpush.bf16.msra.mxu0 %v901
      %951 = vmatpush.bf16.msra.mxu0 %v899
      %952 = vmatpush.bf16.msra.mxu0 %v897
      %953 = vmatpush.bf16.msra.mxu0 %v895
      %954 = vmatpush.bf16.msra.mxu0 %v893
      %955 = vmatpush.bf16.msra.mxu0 %v891
      %956 = vmatpush.bf16.msra.mxu0 %v889
      %957 = vmatmul.bf16.gmra.mxu0 %v819
      %v958 = vpop.f32.mrf.mxu0
      %v959 = vadd.f32 0.0, %v958
      %v960 = vpop.f32.mrf.mxu0
      %v961 = vadd.f32 0.0, %v960
      %962 = vmatmul.bf16.gmra.mxu0 %v820
      %v963 = vpop.f32.mrf.mxu0
      %v964 = vadd.f32 0.0, %v963
      %v965 = vpop.f32.mrf.mxu0
      %v966 = vadd.f32 0.0, %v965
      %967 = vmatmul.bf16.gmra.mxu0 %v821
      %v968 = vpop.f32.mrf.mxu0
      %v969 = vadd.f32 0.0, %v968
      %v970 = vpop.f32.mrf.mxu0
      %v971 = vadd.f32 0.0, %v970
      %972 = vmatmul.bf16.gmra.mxu0 %v822
      %v973 = vpop.f32.mrf.mxu0
      %v974 = vadd.f32 0.0, %v973
      %v975 = vpop.f32.mrf.mxu0
      %v976 = vadd.f32 0.0, %v975
      %977 = vdwg.mxu0
      %v978 = vadd.f32 %v803, %v930
      %v979 = vadd.f32 %v804, %v959
      %v980 = vadd.f32 %v805, %v932
      %v981 = vadd.f32 %v806, %v961
      %v982 = vadd.f32 %v807, %v935
      %v983 = vadd.f32 %v808, %v964
      %v984 = vadd.f32 %v809, %v937
      %v985 = vadd.f32 %v810, %v966
      %v986 = vadd.f32 %v811, %v940
      %v987 = vadd.f32 %v812, %v969
      %v988 = vadd.f32 %v813, %v942
      %v989 = vadd.f32 %v814, %v971
      %v990 = vadd.f32 %v815, %v945
      %v991 = vadd.f32 %v816, %v974
      %v992 = vadd.f32 %v817, %v947
      %v993 = vadd.f32 %v818, %v976
      %v996 = vrot.slane %v205, 1
      %v997 = vrot.slane %v206, 1
      %v998 = vsel %vm403, %v996, %v997
      %v1000 = vpack.c.bf16 %v412, %v409
      %v1001 = vpack.c.bf16 %v418, %v415
      %v1002 = vpack.c.bf16 %v424, %v421
      %v1003 = vpack.c.bf16 %v998, %v427
      %s1004 = scalar_lea.vmem %s1, 512
      %v1005 = vld [vmem:[%s1004] sm:$0xff]
      %v1006 = vld [vmem:[%s1004 + $0x8] sm:$0xff]
      %v1007 = vld [vmem:[%s1004 + $0x10] sm:$0xff]
      %v1008 = vld [vmem:[%s1004 + $0x18] sm:$0xff]
      %v1009 = vld [vmem:[%s1004 + $0x20] sm:$0xff]
      %v1010 = vld [vmem:[%s1004 + $0x28] sm:$0xff]
      %v1011 = vld [vmem:[%s1004 + $0x30] sm:$0xff]
      %v1012 = vld [vmem:[%s1004 + $0x38] sm:$0xff]
      %v1013 = vld [vmem:[%s1004 + $0x40] sm:$0xff]
      %v1014 = vld [vmem:[%s1004 + $0x48] sm:$0xff]
      %v1015 = vld [vmem:[%s1004 + $0x50] sm:$0xff]
      %v1016 = vld [vmem:[%s1004 + $0x58] sm:$0xff]
      %v1017 = vld [vmem:[%s1004 + $0x60] sm:$0xff]
      %v1018 = vld [vmem:[%s1004 + $0x68] sm:$0xff]
      %v1019 = vld [vmem:[%s1004 + $0x70] sm:$0xff]
      %v1020 = vld [vmem:[%s1004 + $0x78] sm:$0xff]
      %v1037 = vunpack.c.l.b16 %v1005
      %v1038 = vunpack.c.h.b16 %v1005
      %v1039 = vunpack.c.l.b16 %v1006
      %v1040 = vunpack.c.h.b16 %v1006
      %v1041 = vunpack.c.l.b16 %v1007
      %v1042 = vunpack.c.h.b16 %v1007
      %v1043 = vunpack.c.l.b16 %v1008
      %v1044 = vunpack.c.h.b16 %v1008
      %v1045 = vunpack.c.l.b16 %v1009
      %v1046 = vunpack.c.h.b16 %v1009
      %v1047 = vunpack.c.l.b16 %v1010
      %v1048 = vunpack.c.h.b16 %v1010
      %v1049 = vunpack.c.l.b16 %v1011
      %v1050 = vunpack.c.h.b16 %v1011
      %v1051 = vunpack.c.l.b16 %v1012
      %v1052 = vunpack.c.h.b16 %v1012
      %v1053 = vunpack.c.l.b16 %v1013
      %v1054 = vunpack.c.h.b16 %v1013
      %v1055 = vunpack.c.l.b16 %v1014
      %v1056 = vunpack.c.h.b16 %v1014
      %v1057 = vunpack.c.l.b16 %v1015
      %v1058 = vunpack.c.h.b16 %v1015
      %v1059 = vunpack.c.l.b16 %v1016
      %v1060 = vunpack.c.h.b16 %v1016
      %v1061 = vunpack.c.l.b16 %v1017
      %v1062 = vunpack.c.h.b16 %v1017
      %v1063 = vunpack.c.l.b16 %v1018
      %v1064 = vunpack.c.h.b16 %v1018
      %v1065 = vunpack.c.l.b16 %v1019
      %v1066 = vunpack.c.h.b16 %v1019
      %v1067 = vunpack.c.l.b16 %v1020
      %v1068 = vunpack.c.h.b16 %v1020
      %v1069 = vpack.c.b16 %v1039, %v1037
      %v1070 = vpack.c.b16 %v1040, %v1038
      %v1071 = vpack.c.b16 %v1043, %v1041
      %v1072 = vpack.c.b16 %v1044, %v1042
      %v1073 = vpack.c.b16 %v1047, %v1045
      %v1074 = vpack.c.b16 %v1048, %v1046
      %v1075 = vpack.c.b16 %v1051, %v1049
      %v1076 = vpack.c.b16 %v1052, %v1050
      %v1077 = vpack.c.b16 %v1055, %v1053
      %v1078 = vpack.c.b16 %v1056, %v1054
      %v1079 = vpack.c.b16 %v1059, %v1057
      %v1080 = vpack.c.b16 %v1060, %v1058
      %v1081 = vpack.c.b16 %v1063, %v1061
      %v1082 = vpack.c.b16 %v1064, %v1062
      %v1083 = vpack.c.b16 %v1067, %v1065
      %v1084 = vpack.c.b16 %v1068, %v1066
      %1101 = vmatpush.bf16.msra.mxu0 %v1083
      %1102 = vmatpush.bf16.msra.mxu0 %v1081
      %1103 = vmatpush.bf16.msra.mxu0 %v1079
      %1104 = vmatpush.bf16.msra.mxu0 %v1077
      %1105 = vmatpush.bf16.msra.mxu0 %v1075
      %1106 = vmatpush.bf16.msra.mxu0 %v1073
      %1107 = vmatpush.bf16.msra.mxu0 %v1071
      %1108 = vmatpush.bf16.msra.mxu0 %v1069
      %1109 = vmatmul.bf16.gmra.mxu0 %v1000
      %v1110 = vpop.f32.mrf.mxu0
      %v1111 = vadd.f32 0.0, %v1110
      %v1112 = vpop.f32.mrf.mxu0
      %v1113 = vadd.f32 0.0, %v1112
      %1114 = vmatmul.bf16.gmra.mxu0 %v1001
      %v1115 = vpop.f32.mrf.mxu0
      %v1116 = vadd.f32 0.0, %v1115
      %v1117 = vpop.f32.mrf.mxu0
      %v1118 = vadd.f32 0.0, %v1117
      %1119 = vmatmul.bf16.gmra.mxu0 %v1002
      %v1120 = vpop.f32.mrf.mxu0
      %v1121 = vadd.f32 0.0, %v1120
      %v1122 = vpop.f32.mrf.mxu0
      %v1123 = vadd.f32 0.0, %v1122
      %1124 = vmatmul.bf16.gmra.mxu0 %v1003
      %v1125 = vpop.f32.mrf.mxu0
      %v1126 = vadd.f32 0.0, %v1125
      %v1127 = vpop.f32.mrf.mxu0
      %v1128 = vadd.f32 0.0, %v1127
      %1129 = vdwg.mxu0
      %1130 = vmatpush.bf16.msra.mxu0 %v1084
      %1131 = vmatpush.bf16.msra.mxu0 %v1082
      %1132 = vmatpush.bf16.msra.mxu0 %v1080
      %1133 = vmatpush.bf16.msra.mxu0 %v1078
      %1134 = vmatpush.bf16.msra.mxu0 %v1076
      %1135 = vmatpush.bf16.msra.mxu0 %v1074
      %1136 = vmatpush.bf16.msra.mxu0 %v1072
      %1137 = vmatpush.bf16.msra.mxu0 %v1070
      %1138 = vmatmul.bf16.gmra.mxu0 %v1000
      %v1139 = vpop.f32.mrf.mxu0
      %v1140 = vadd.f32 0.0, %v1139
      %v1141 = vpop.f32.mrf.mxu0
      %v1142 = vadd.f32 0.0, %v1141
      %1143 = vmatmul.bf16.gmra.mxu0 %v1001
      %v1144 = vpop.f32.mrf.mxu0
      %v1145 = vadd.f32 0.0, %v1144
      %v1146 = vpop.f32.mrf.mxu0
      %v1147 = vadd.f32 0.0, %v1146
      %1148 = vmatmul.bf16.gmra.mxu0 %v1002
      %v1149 = vpop.f32.mrf.mxu0
      %v1150 = vadd.f32 0.0, %v1149
      %v1151 = vpop.f32.mrf.mxu0
      %v1152 = vadd.f32 0.0, %v1151
      %1153 = vmatmul.bf16.gmra.mxu0 %v1003
      %v1154 = vpop.f32.mrf.mxu0
      %v1155 = vadd.f32 0.0, %v1154
      %v1156 = vpop.f32.mrf.mxu0
      %v1157 = vadd.f32 0.0, %v1156
      %1158 = vdwg.mxu0
      %v1159 = vadd.f32 %v978, %v1111
      %v1160 = vadd.f32 %v979, %v1140
      %v1161 = vadd.f32 %v980, %v1113
      %v1162 = vadd.f32 %v981, %v1142
      %v1163 = vadd.f32 %v982, %v1116
      %v1164 = vadd.f32 %v983, %v1145
      %v1165 = vadd.f32 %v984, %v1118
      %v1166 = vadd.f32 %v985, %v1147
      %v1167 = vadd.f32 %v986, %v1121
      %v1168 = vadd.f32 %v987, %v1150
      %v1169 = vadd.f32 %v988, %v1123
      %v1170 = vadd.f32 %v989, %v1152
      %v1171 = vadd.f32 %v990, %v1126
      %v1172 = vadd.f32 %v991, %v1155
      %v1173 = vadd.f32 %v992, %v1128
      %v1174 = vadd.f32 %v993, %v1157
      %v1175 = vmax.f32 %v1159, 0.0
      %v1176 = vmax.f32 %v1160, 0.0
      %v1177 = vmax.f32 %v1161, 0.0
      %v1178 = vmax.f32 %v1162, 0.0
      %v1179 = vmax.f32 %v1163, 0.0
      %v1180 = vmax.f32 %v1164, 0.0
      %v1181 = vmax.f32 %v1165, 0.0
      %v1182 = vmax.f32 %v1166, 0.0
      %v1183 = vmax.f32 %v1167, 0.0
      %v1184 = vmax.f32 %v1168, 0.0
      %v1185 = vmax.f32 %v1169, 0.0
      %v1186 = vmax.f32 %v1170, 0.0
      %v1187 = vmax.f32 %v1171, 0.0
      %v1188 = vmax.f32 %v1172, 0.0
      %v1189 = vmax.f32 %v1173, 0.0
      %v1190 = vmax.f32 %v1174, 0.0
      %v1191 = vpack.c.bf16 %v1176, %v1175
      %v1192 = vpack.c.bf16 %v1178, %v1177
      %v1193 = vpack.c.bf16 %v1180, %v1179
      %v1194 = vpack.c.bf16 %v1182, %v1181
      %v1195 = vpack.c.bf16 %v1184, %v1183
      %v1196 = vpack.c.bf16 %v1186, %v1185
      %v1197 = vpack.c.bf16 %v1188, %v1187
      %v1198 = vpack.c.bf16 %v1190, %v1189
      %1199 = vst [vmem:[%s170] sm:$0xff] %v1191
      %1200 = vst [vmem:[%s170 + $0x8] sm:$0xff] %v1192
      %1201 = vst [vmem:[%s170 + $0x10] sm:$0xff] %v1193
      %1202 = vst [vmem:[%s170 + $0x18] sm:$0xff] %v1194
      %1203 = vst [vmem:[%s170 + $0x20] sm:$0xff] %v1195
      %1204 = vst [vmem:[%s170 + $0x28] sm:$0xff] %v1196
      %1205 = vst [vmem:[%s170 + $0x30] sm:$0xff] %v1197
      %1206 = vst [vmem:[%s170 + $0x38] sm:$0xff] %v1198
      %p1207 = scmp.lt.s32.totalorder %s14, 1
      %s1208 = scalar_select %p1207, %s14, 1
      %s1209 = smul.addr %s1208, 16
      %s1210 = smul.addr %s1209, 4
      %s1211 = scalar_lea.vmem %s3, %s1210
      // Predicated region
      $region33: #{forward.11} parent=31 // pred_check
        %p1212 = pneg %p100
      $region34: #{forward.11} parent=31 // pred_check_branch
        %1214 = sbr.rel (%p1212) target = $region36
      $region35: #{forward.11} parent=31 // pred_region
        _
      $region36: #{forward.11} parent=31 // pred_fallthru
        _
    $region32: #{forward.11} parent=5 // pred_fallthru
      _
    %p1215 = scmp.le.s32.totalorder 2, %s9
    // Predicated region
    $region37: #{forward.11} parent=5 // pred_check
      %p1216 = pneg %p1215
    $region38: #{forward.11} parent=5 // pred_check_branch
      %1218 = sbr.rel (%p1216) target = $region40
    $region39: #{forward.11} parent=5 // pred_region
      %s1219 = ssub.s32 %s9, 2
      // Predicated region
      $region41: #{forward.11} parent=39 // pred_check
        %p1220 = pneg %p106
      $region42: #{forward.11} parent=39 // pred_check_branch
        %1222 = sbr.rel (%p1220) target = $region44
      $region43: #{forward.11} parent=39 // pred_region
        %p1223 = scmp.lt.s32.totalorder %s15, 1
        %s1224 = scalar_select %p1223, %s15, 1
        %s1225 = smul.addr %s1224, 16
        %s1226 = smul.addr %s1225, 4
        %s1227 = scalar_lea.vmem %s3, %s1226
      $region44: #{forward.11} parent=39 // pred_fallthru
        _
    $region40: #{forward.11} parent=5 // pred_fallthru
      _
  $region6: #{forward.11} parent=0 // loop_footer
    %s13 = sadd.s32 1, %s9
  $region7: #{forward.11} parent=0 // loop_footer_branch
    %8 = sbr.rel target = $region3
  $region8: #{forward.11} parent=0 // loop_exit
    _

// kernel: forward.10
$region0: #{forward.10}
  #allocation0 [shape = 'u32[]', space=smem, size = 0x4, offset = 0x4, fixed_abs, tag = 'smem constant byte address 0x4 - core index']
  #allocation1 [shape = 'u32[72,128]{1,0:T(1,128)}', space=vmem, size = 0x9000, scoped, tag = 'internal scratch']
  %s0 = inlined_call_operand.vmem [shape: bf16[2,10,10,128], index: 0, kind: input, shape index: {}]
  %s1 = inlined_call_operand.vmem [shape: bf16[2,8,8,64], index: 1, kind: input, shape index: {}]
  %s2 = inlined_call_operand.vmem [shape: bf16[5,128,128], index: 2, kind: input, shape index: {}]
  %s3 = inlined_call_operand.vmem [shape: f32[1,128], index: 3, kind: input, shape index: {}]
  %s4 = inlined_call_operand.vmem [shape: bf16[64,128], index: 4, kind: input, shape index: {}]
  %s5 = inlined_call_operand.vmem [shape: f32[1,128], index: 5, kind: input, shape index: {}]
  %s6 = inlined_call_operand.vmem [shape: bf16[2,8,8,128], index: 6, kind: output, shape index: {}]
  %s7 = sld [smem:[#allocation0]]
  $region57: #{forward.10} parent=0
    _
  %s9 = ssub.s32 1, %s7
  %s10 = scalar_select 0, %s9, %s7
  loop: start=0, step=1, limit=4
  $region2: #{forward.10} parent=0 // loop_pre_header
    _
  $region3: #{forward.10} parent=0 // loop_header
    %s12 = sphi 0, %s16
    %p13 = scmp.ge.s32.totalorder %s12, 4
    %s22 = sphi 0, %s24
    %s25 = sphi 0, %s22
    %s26 = sphi 0, %s25
    %s42 = sphi 0, %s26
    %s48 = sphi 0, %s50
    %s51 = sphi 0, %s48
    %s52 = sphi 0, %s51
    %s68 = sphi 0, %s52
    %s72 = sphi 0, %s72
    %s74 = sphi 0, %s72
    %s75 = sphi 0, %s74
    %s89 = sphi 0, %s75
    %s93 = sphi 0, %s93
    %s95 = sphi 0, %s93
    %s96 = sphi 0, %s95
    %s110 = sphi 0, %s96
    %s114 = sphi 0, %s114
    %s116 = sphi 0, %s114
    %s117 = sphi 0, %s116
    %s131 = sphi 0, %s117
    %s135 = sphi 0, %s135
    %s137 = sphi 0, %s135
    %s138 = sphi 0, %s137
    %s152 = sphi 0, %s138
    %s158 = sphi 0, %s160
    %s161 = sphi 0, %s158
    %s162 = sphi 0, %s161
    %s178 = sphi 0, %s162
  $region4: #{forward.10} parent=0 // loop_header_branch
    %15 = sbr.rel (%p13) target = $region8
  $region5: #{forward.10} parent=0 // loop_body
    %s17 = ssub.s32 %s12, 1
    %s18 = ssub.s32 %s12, 2
    %s19 = sadd.s32 %s12, 1
    %s20 = ssub.s32 %s12, %s19
    %p21 = scmp.eq.s32.totalorder %s20, 0
    %s23 = sadd.s32 %s22, 1
    %s24 = scalar_select %p21, %s22, %s23
    %p27 = pneg %p21
    %p28 = scmp.eq.s32.totalorder %s12, 1
    %p29 = por %p27, %p28
    %p30 = scmp.ne.s32.totalorder %s22, %s25
    %p31 = scmp.eq.s32.totalorder %s12, 0
    %p32 = por %p30, %p31
    %p33 = scmp.ne.s32.totalorder %s22, %s25
    %p34 = scmp.eq.s32.totalorder %s17, 1
    %p35 = por %p33, %p34
    %p36 = scmp.ne.s32.totalorder %s25, %s26
    %p37 = scmp.eq.s32.totalorder %s17, 0
    %p38 = por %p36, %p37
    %p39 = scmp.ne.s32.totalorder %s25, %s26
    %p40 = scmp.eq.s32.totalorder %s18, 1
    %p41 = por %p39, %p40
    %p43 = scmp.ne.s32.totalorder %s26, %s42
    %p44 = scmp.eq.s32.totalorder %s18, 0
    %p45 = por %p43, %p44
    %s46 = ssub.s32 %s12, %s19
    %p47 = scmp.eq.s32.totalorder %s46, 0
    %s49 = sadd.s32 %s48, 1
    %s50 = scalar_select %p47, %s48, %s49
    %p53 = pneg %p47
    %p54 = scmp.eq.s32.totalorder %s12, 1
    %p55 = por %p53, %p54
    %p56 = scmp.ne.s32.totalorder %s48, %s51
    %p57 = scmp.eq.s32.totalorder %s12, 0
    %p58 = por %p56, %p57
    %p59 = scmp.ne.s32.totalorder %s48, %s51
    %p60 = scmp.eq.s32.totalorder %s17, 1
    %p61 = por %p59, %p60
    %p62 = scmp.ne.s32.totalorder %s51, %s52
    %p63 = scmp.eq.s32.totalorder %s17, 0
    %p64 = por %p62, %p63
    %p65 = scmp.ne.s32.totalorder %s51, %s52
    %p66 = scmp.eq.s32.totalorder %s18, 1
    %p67 = por %p65, %p66
    %p69 = scmp.ne.s32.totalorder %s52, %s68
    %p70 = scmp.eq.s32.totalorder %s18, 0
    %p71 = por %p69, %p70
    %s73 = sadd.s32 %s72, 1
    %p76 = scmp.eq.s32.totalorder %s12, 1
    %p77 = scmp.ne.s32.totalorder %s72, %s74
    %p78 = scmp.eq.s32.totalorder %s12, 0
    %p79 = por %p77, %p78
    %p80 = scmp.ne.s32.totalorder %s72, %s74
    %p81 = scmp.eq.s32.totalorder %s17, 1
    %p82 = por %p80, %p81
    %p83 = scmp.ne.s32.totalorder %s74, %s75
    %p84 = scmp.eq.s32.totalorder %s17, 0
    %p85 = por %p83, %p84
    %p86 = scmp.ne.s32.totalorder %s74, %s75
    %p87 = scmp.eq.s32.totalorder %s18, 1
    %p88 = por %p86, %p87
    %p90 = scmp.ne.s32.totalorder %s75, %s89
    %p91 = scmp.eq.s32.totalorder %s18, 0
    %p92 = por %p90, %p91
    %s94 = sadd.s32 %s93, 1
    %p97 = scmp.eq.s32.totalorder %s12, 1
    %p98 = scmp.ne.s32.totalorder %s93, %s95
    %p99 = scmp.eq.s32.totalorder %s12, 0
    %p100 = por %p98, %p99
    %p101 = scmp.ne.s32.totalorder %s93, %s95
    %p102 = scmp.eq.s32.totalorder %s17, 1
    %p103 = por %p101, %p102
    %p104 = scmp.ne.s32.totalorder %s95, %s96
    %p105 = scmp.eq.s32.totalorder %s17, 0
    %p106 = por %p104, %p105
    %p107 = scmp.ne.s32.totalorder %s95, %s96
    %p108 = scmp.eq.s32.totalorder %s18, 1
    %p109 = por %p107, %p108
    %p111 = scmp.ne.s32.totalorder %s96, %s110
    %p112 = scmp.eq.s32.totalorder %s18, 0
    %p113 = por %p111, %p112
    %s115 = sadd.s32 %s114, 1
    %p118 = scmp.eq.s32.totalorder %s12, 1
    %p119 = scmp.ne.s32.totalorder %s114, %s116
    %p120 = scmp.eq.s32.totalorder %s12, 0
    %p121 = por %p119, %p120
    %p122 = scmp.ne.s32.totalorder %s114, %s116
    %p123 = scmp.eq.s32.totalorder %s17, 1
    %p124 = por %p122, %p123
    %p125 = scmp.ne.s32.totalorder %s116, %s117
    %p126 = scmp.eq.s32.totalorder %s17, 0
    %p127 = por %p125, %p126
    %p128 = scmp.ne.s32.totalorder %s116, %s117
    %p129 = scmp.eq.s32.totalorder %s18, 1
    %p130 = por %p128, %p129
    %p132 = scmp.ne.s32.totalorder %s117, %s131
    %p133 = scmp.eq.s32.totalorder %s18, 0
    %p134 = por %p132, %p133
    %s136 = sadd.s32 %s135, 1
    %p139 = scmp.eq.s32.totalorder %s12, 1
    %p140 = scmp.ne.s32.totalorder %s135, %s137
    %p141 = scmp.eq.s32.totalorder %s12, 0
    %p142 = por %p140, %p141
    %p143 = scmp.ne.s32.totalorder %s135, %s137
    %p144 = scmp.eq.s32.totalorder %s17, 1
    %p145 = por %p143, %p144
    %p146 = scmp.ne.s32.totalorder %s137, %s138
    %p147 = scmp.eq.s32.totalorder %s17, 0
    %p148 = por %p146, %p147
    %p149 = scmp.ne.s32.totalorder %s137, %s138
    %p150 = scmp.eq.s32.totalorder %s18, 1
    %p151 = por %p149, %p150
    %p153 = scmp.ne.s32.totalorder %s138, %s152
    %p154 = scmp.eq.s32.totalorder %s18, 0
    %p155 = por %p153, %p154
    %s156 = ssub.s32 %s12, %s19
    %p157 = scmp.eq.s32.totalorder %s156, 0
    %s159 = sadd.s32 %s158, 1
    %s160 = scalar_select %p157, %s158, %s159
    %p163 = pneg %p157
    %p164 = scmp.eq.s32.totalorder %s12, 1
    %p165 = por %p163, %p164
    %p166 = scmp.ne.s32.totalorder %s158, %s161
    %p167 = scmp.eq.s32.totalorder %s12, 0
    %p168 = por %p166, %p167
    %p169 = scmp.ne.s32.totalorder %s158, %s161
    %p170 = scmp.eq.s32.totalorder %s17, 1
    %p171 = por %p169, %p170
    %p172 = scmp.ne.s32.totalorder %s161, %s162
    %p173 = scmp.eq.s32.totalorder %s17, 0
    %p174 = por %p172, %p173
    %p175 = scmp.ne.s32.totalorder %s161, %s162
    %p176 = scmp.eq.s32.totalorder %s18, 1
    %p177 = por %p175, %p176
    %p179 = scmp.ne.s32.totalorder %s162, %s178
    %p180 = scmp.eq.s32.totalorder %s18, 0
    %p181 = por %p179, %p180
    %p182 = scmp.le.s32.totalorder 1, %s12
    %p183 = scmp.lt.s32.totalorder %s12, 3
    %p184 = pnand %p182, %p183
    %p185 = pneg %p184
    // Predicated region
    $region9: #{forward.10} parent=5 // pred_check
      _
    $region10: #{forward.10} parent=5 // pred_check_branch
      %187 = sbr.rel (%p184) target = $region12
    $region11: #{forward.10} parent=5 // pred_region
      %s188 = ssub.s32 %s12, 1
      // Predicated region
      $region13: #{forward.10} parent=11 // pred_check
        %p189 = pneg %p85
      $region14: #{forward.10} parent=11 // pred_check_branch
        %191 = sbr.rel (%p189) target = $region16
      $region15: #{forward.10} parent=11 // pred_region
        _
      $region16: #{forward.10} parent=11 // pred_fallthru
        _
      // Predicated region
      $region17: #{forward.10} parent=11 // pred_check
        %p192 = pneg %p106
      $region18: #{forward.10} parent=11 // pred_check_branch
        %194 = sbr.rel (%p192) target = $region20
      $region19: #{forward.10} parent=11 // pred_region
        _
      $region20: #{forward.10} parent=11 // pred_fallthru
        _
      // Predicated region
      $region21: #{forward.10} parent=11 // pred_check
        %p195 = pneg %p127
      $region22: #{forward.10} parent=11 // pred_check_branch
        %197 = sbr.rel (%p195) target = $region24
      $region23: #{forward.10} parent=11 // pred_region
        _
      $region24: #{forward.10} parent=11 // pred_fallthru
        _
      // Predicated region
      $region25: #{forward.10} parent=11 // pred_check
        %p198 = pneg %p148
      $region26: #{forward.10} parent=11 // pred_check_branch
        %200 = sbr.rel (%p198) target = $region28
      $region27: #{forward.10} parent=11 // pred_region
        _
      $region28: #{forward.10} parent=11 // pred_fallthru
        _
    $region12: #{forward.10} parent=5 // pred_fallthru
      _
    %p201 = scmp.lt.s32.totalorder %s12, 2
    // Predicated region
    $region29: #{forward.10} parent=5 // pred_check
      %p202 = pneg %p201
    $region30: #{forward.10} parent=5 // pred_check_branch
      %204 = sbr.rel (%p202) target = $region32
    $region31: #{forward.10} parent=5 // pred_region
      // Predicated region
      $region33: #{forward.10} parent=31 // pred_check
        %p205 = pneg %p32
      $region34: #{forward.10} parent=31 // pred_check_branch
        %207 = sbr.rel (%p205) target = $region36
      $region35: #{forward.10} parent=31 // pred_region
        %p208 = scmp.lt.s32.totalorder %s12, 1
        %s209 = scalar_select %p208, %s12, 1
        %s210 = smul.addr %s209, 20
        %s211 = smul.addr %s210, 4
        %s212 = scalar_lea.vmem %s0, %s211
      $region36: #{forward.10} parent=31 // pred_fallthru
        _
      // Predicated region
      $region37: #{forward.10} parent=31 // pred_check
        %p213 = pneg %p58
      $region38: #{forward.10} parent=31 // pred_check_branch
        %215 = sbr.rel (%p213) target = $region40
      $region39: #{forward.10} parent=31 // pred_region
        %p216 = scmp.lt.s32.totalorder %s12, 1
        %s217 = scalar_select %p216, %s12, 1
        %s218 = smul.addr %s217, 8
        %s219 = smul.addr %s218, 4
        %s220 = scalar_lea.vmem %s1, %s219
      $region40: #{forward.10} parent=31 // pred_fallthru
        _
    $region32: #{forward.10} parent=5 // pred_fallthru
      _
    %p221 = scmp.le.s32.totalorder 1, %s12
    %p222 = scmp.lt.s32.totalorder %s12, 3
    %p223 = pnand %p221, %p222
    %p224 = pneg %p223
    // Predicated region
    $region41: #{forward.10} parent=5 // pred_check
      _
    $region42: #{forward.10} parent=5 // pred_check_branch
      %226 = sbr.rel (%p223) target = $region44
    $region43: #{forward.10} parent=5 // pred_region
      %s227 = ssub.s32 %s12, 1
      %p228 = scmp.lt.s32.totalorder %s17, 1
      %s229 = scalar_select %p228, %s17, 1
      %s230 = smul.addr %s229, 20
      %s231 = smul.addr %s230, 4
      %s232 = scalar_lea.vmem %s0, %s231
      %p233 = pneg %p38
      %p234 = pneg %p35
      %p235 = scmp.lt.s32.totalorder %s17, 1
      %s236 = scalar_select %p235, %s17, 1
      %s237 = smul.addr %s236, 8
      %s238 = smul.addr %s237, 4
      %s239 = scalar_lea.vmem %s1, %s238
      %p240 = pneg %p64
      %p241 = pneg %p61
      %p242 = pneg %p85
      %p243 = pneg %p82
      %p244 = pneg %p106
      %p245 = pneg %p103
      %p246 = pneg %p127
      %p247 = pneg %p124
      %p248 = pneg %p148
      %p249 = pneg %p145
      %p250 = pneg %p174
      %p251 = pneg %p171
      %p252 = scmp.lt.s32.totalorder %s17, 1
      %s253 = scalar_select %p252, %s17, 1
      %s254 = smul.addr %s253, 8
      %s255 = smul.addr %s254, 4
      %s256 = scalar_lea.vmem %s6, %s255
      %p257 = scmp.lt.s32.totalorder %s17, 1
      %s258 = scalar_select %p257, %s17, 1
      %s259 = smul.addr %s258, 20
      %s260 = smul.addr %s259, 4
      %s261 = scalar_lea.vmem %s0, %s260
      %p262 = scmp.lt.s32.totalorder %s17, 1
      %s263 = scalar_select %p262, %s17, 1
      %s264 = smul.addr %s263, 8
      %s265 = smul.addr %s264, 4
      %s266 = scalar_lea.vmem %s1, %s265
      %p267 = scmp.lt.s32.totalorder %s17, 1
      %s268 = scalar_select %p267, %s17, 1
      %s269 = smul.addr %s268, 8
      %s270 = smul.addr %s269, 4
      %s271 = scalar_lea.vmem %s6, %s270
      %v273 = vld [vmem:[%s261] sm:$0xf]
      %v274 = vld [vmem:[%s261 + $0x4] sm:$0x1]
      %v275 = vld [vmem:[%s261 + $0x8] sm:$0xf]
      %v276 = vld [vmem:[%s261 + $0xc] sm:$0x1]
      %v277 = vld [vmem:[%s261 + $0x10] sm:$0xf]
      %v278 = vld [vmem:[%s261 + $0x14] sm:$0x1]
      %v279 = vld [vmem:[%s261 + $0x18] sm:$0xf]
      %v280 = vld [vmem:[%s261 + $0x1c] sm:$0x1]
      %v281 = vld [vmem:[%s261 + $0x20] sm:$0xf]
      %v282 = vld [vmem:[%s261 + $0x24] sm:$0x1]
      %v283 = vld [vmem:[%s261 + $0x28] sm:$0xf]
      %v284 = vld [vmem:[%s261 + $0x2c] sm:$0x1]
      %v285 = vld [vmem:[%s261 + $0x30] sm:$0xf]
      %v286 = vld [vmem:[%s261 + $0x34] sm:$0x1]
      %v287 = vld [vmem:[%s261 + $0x38] sm:$0xf]
      %v288 = vld [vmem:[%s261 + $0x3c] sm:$0x1]
      %v289 = vld [vmem:[%s261 + $0x40] sm:$0xf]
      %v290 = vld [vmem:[%s261 + $0x44] sm:$0x1]
      %v291 = vunpack.c.l.bf16 %v273
      %v292 = vunpack.c.l.bf16 %v274
      %v293 = vunpack.c.l.bf16 %v275
      %v294 = vunpack.c.l.bf16 %v276
      %v295 = vunpack.c.l.bf16 %v277
      %v296 = vunpack.c.l.bf16 %v278
      %v297 = vunpack.c.l.bf16 %v279
      %v298 = vunpack.c.l.bf16 %v280
      %v299 = vunpack.c.l.bf16 %v281
      %v300 = vunpack.c.l.bf16 %v282
      %v301 = vunpack.c.l.bf16 %v283
      %v302 = vunpack.c.l.bf16 %v284
      %v303 = vunpack.c.l.bf16 %v285
      %v304 = vunpack.c.l.bf16 %v286
      %v305 = vunpack.c.l.bf16 %v287
      %v306 = vunpack.c.l.bf16 %v288
      %v307 = vunpack.c.l.bf16 %v289
      %v308 = vunpack.c.l.bf16 %v290
      %v309 = vld [vmem:[%s3] sm:$0x1]
      %v310 = vld [vmem:[%s5] sm:$0x1]
      %v311 = vadd.f32 %v309, %v310
      %v313 = vperm.slane %v311, 0
      %v315 = vpack.c.bf16 %v293, %v291
      %v316 = vpack.c.bf16 %v297, %v295
      %v317 = vpack.c.bf16 %v301, %v299
      %v318 = vpack.c.bf16 %v305, %v303
      %v319 = vld [vmem:[%s2] sm:$0xf]
      %v320 = vld [vmem:[%s2 + $0x4] sm:$0xf]
      %v321 = vld [vmem:[%s2 + $0x8] sm:$0xf]
      %v322 = vld [vmem:[%s2 + $0xc] sm:$0xf]
      %v323 = vld [vmem:[%s2 + $0x10] sm:$0xf]
      %v324 = vld [vmem:[%s2 + $0x14] sm:$0xf]
      %v325 = vld [vmem:[%s2 + $0x18] sm:$0xf]
      %v326 = vld [vmem:[%s2 + $0x1c] sm:$0xf]
      %v327 = vld [vmem:[%s2 + $0x20] sm:$0xf]
      %v328 = vld [vmem:[%s2 + $0x24] sm:$0xf]
      %v329 = vld [vmem:[%s2 + $0x28] sm:$0xf]
      %v330 = vld [vmem:[%s2 + $0x2c] sm:$0xf]
      %v331 = vld [vmem:[%s2 + $0x30] sm:$0xf]
      %v332 = vld [vmem:[%s2 + $0x34] sm:$0xf]
      %v333 = vld [vmem:[%s2 + $0x38] sm:$0xf]
      %v334 = vld [vmem:[%s2 + $0x3c] sm:$0xf]
      %v351 = vunpack.c.l.b16 %v319
      %v352 = vunpack.c.l.b16 %v320
      %v353 = vunpack.c.l.b16 %v321
      %v354 = vunpack.c.l.b16 %v322
      %v355 = vunpack.c.l.b16 %v323
      %v356 = vunpack.c.l.b16 %v324
      %v357 = vunpack.c.l.b16 %v325
      %v358 = vunpack.c.l.b16 %v326
      %v359 = vunpack.c.l.b16 %v327
      %v360 = vunpack.c.l.b16 %v328
      %v361 = vunpack.c.l.b16 %v329
      %v362 = vunpack.c.l.b16 %v330
      %v363 = vunpack.c.l.b16 %v331
      %v364 = vunpack.c.l.b16 %v332
      %v365 = vunpack.c.l.b16 %v333
      %v366 = vunpack.c.l.b16 %v334
      %v367 = vpack.c.b16 %v352, %v351
      %v368 = vpack.c.b16 %v354, %v353
      %v369 = vpack.c.b16 %v356, %v355
      %v370 = vpack.c.b16 %v358, %v357
      %v371 = vpack.c.b16 %v360, %v359
      %v372 = vpack.c.b16 %v362, %v361
      %v373 = vpack.c.b16 %v364, %v363
      %v374 = vpack.c.b16 %v366, %v365
      %383 = vmatpush.bf16.msra.mxu0 %v374
      %384 = vmatpush.bf16.msra.mxu0 %v373
      %385 = vmatpush.bf16.msra.mxu0 %v372
      %386 = vmatpush.bf16.msra.mxu0 %v371
      %387 = vmatpush.bf16.msra.mxu0 %v370
      %388 = vmatpush.bf16.msra.mxu0 %v369
      %389 = vmatpush.bf16.msra.mxu0 %v368
      %390 = vmatpush.bf16.msra.mxu0 %v367
      %391 = vmatmul.bf16.gmra.mxu0 %v315
      %v392 = vpop.f32.mrf.mxu0
      %v393 = vadd.f32 0.0, %v392
      %v394 = vpop.f32.mrf.mxu0
      %v395 = vadd.f32 0.0, %v394
      %396 = vmatmul.bf16.gmra.mxu0 %v316
      %v397 = vpop.f32.mrf.mxu0
      %v398 = vadd.f32 0.0, %v397
      %v399 = vpop.f32.mrf.mxu0
      %v400 = vadd.f32 0.0, %v399
      %401 = vmatmul.bf16.gmra.mxu0 %v317
      %v402 = vpop.f32.mrf.mxu0
      %v403 = vadd.f32 0.0, %v402
      %v404 = vpop.f32.mrf.mxu0
      %v405 = vadd.f32 0.0, %v404
      %406 = vmatmul.bf16.gmra.mxu0 %v318
      %v407 = vpop.f32.mrf.mxu0
      %v408 = vadd.f32 0.0, %v407
      %v409 = vpop.f32.mrf.mxu0
      %v410 = vadd.f32 0.0, %v409
      %411 = vdwg.mxu0
      %v412 = vadd.f32 %v313, %v393
      %v413 = vadd.f32 %v313, %v395
      %v414 = vadd.f32 %v313, %v398
      %v415 = vadd.f32 %v313, %v400
      %v416 = vadd.f32 %v313, %v403
      %v417 = vadd.f32 %v313, %v405
      %v418 = vadd.f32 %v313, %v408
      %v419 = vadd.f32 %v313, %v410
      %vm436 = vcmask 1046528
      %v437 = vrot.slane %v291, 1
      %v438 = vrot.slane %v292, 1
      %v439 = vsel %vm436, %v437, %v438
      %v440 = vrot.slane %v293, 1
      %v441 = vrot.slane %v294, 1
      %v442 = vsel %vm436, %v440, %v441
      %v443 = vrot.slane %v295, 1
      %v444 = vrot.slane %v296, 1
      %v445 = vsel %vm436, %v443, %v444
      %v446 = vrot.slane %v297, 1
      %v447 = vrot.slane %v298, 1
      %v448 = vsel %vm436, %v446, %v447
      %v449 = vrot.slane %v299, 1
      %v450 = vrot.slane %v300, 1
      %v451 = vsel %vm436, %v449, %v450
      %v452 = vrot.slane %v301, 1
      %v453 = vrot.slane %v302, 1
      %v454 = vsel %vm436, %v452, %v453
      %v455 = vrot.slane %v303, 1
      %v456 = vrot.slane %v304, 1
      %v457 = vsel %vm436, %v455, %v456
      %v458 = vrot.slane %v305, 1
      %v459 = vrot.slane %v306, 1
      %v460 = vsel %vm436, %v458, %v459
      %v469 = vpack.c.bf16 %v442, %v439
      %v470 = vpack.c.bf16 %v448, %v445
      %v471 = vpack.c.bf16 %v454, %v451
      %v472 = vpack.c.bf16 %v460, %v457
      %s473 = scalar_lea.vmem %s2, 64
      %v474 = vld [vmem:[%s473] sm:$0xf]
      %v475 = vld [vmem:[%s473 + $0x4] sm:$0xf]
      %v476 = vld [vmem:[%s473 + $0x8] sm:$0xf]
      %v477 = vld [vmem:[%s473 + $0xc] sm:$0xf]
      %v478 = vld [vmem:[%s473 + $0x10] sm:$0xf]
      %v479 = vld [vmem:[%s473 + $0x14] sm:$0xf]
      %v480 = vld [vmem:[%s473 + $0x18] sm:$0xf]
      %v481 = vld [vmem:[%s473 + $0x1c] sm:$0xf]
      %v482 = vld [vmem:[%s473 + $0x20] sm:$0xf]
      %v483 = vld [vmem:[%s473 + $0x24] sm:$0xf]
      %v484 = vld [vmem:[%s473 + $0x28] sm:$0xf]
      %v485 = vld [vmem:[%s473 + $0x2c] sm:$0xf]
      %v486 = vld [vmem:[%s473 + $0x30] sm:$0xf]
      %v487 = vld [vmem:[%s473 + $0x34] sm:$0xf]
      %v488 = vld [vmem:[%s473 + $0x38] sm:$0xf]
      %v489 = vld [vmem:[%s473 + $0x3c] sm:$0xf]
      %v506 = vunpack.c.l.b16 %v474
      %v507 = vunpack.c.l.b16 %v475
      %v508 = vunpack.c.l.b16 %v476
      %v509 = vunpack.c.l.b16 %v477
      %v510 = vunpack.c.l.b16 %v478
      %v511 = vunpack.c.l.b16 %v479
      %v512 = vunpack.c.l.b16 %v480
      %v513 = vunpack.c.l.b16 %v481
      %v514 = vunpack.c.l.b16 %v482
      %v515 = vunpack.c.l.b16 %v483
      %v516 = vunpack.c.l.b16 %v484
      %v517 = vunpack.c.l.b16 %v485
      %v518 = vunpack.c.l.b16 %v486
      %v519 = vunpack.c.l.b16 %v487
      %v520 = vunpack.c.l.b16 %v488
      %v521 = vunpack.c.l.b16 %v489
      %v522 = vpack.c.b16 %v507, %v506
      %v523 = vpack.c.b16 %v509, %v508
      %v524 = vpack.c.b16 %v511, %v510
      %v525 = vpack.c.b16 %v513, %v512
      %v526 = vpack.c.b16 %v515, %v514
      %v527 = vpack.c.b16 %v517, %v516
      %v528 = vpack.c.b16 %v519, %v518
      %v529 = vpack.c.b16 %v521, %v520
      %538 = vmatpush.bf16.msra.mxu0 %v529
      %539 = vmatpush.bf16.msra.mxu0 %v528
      %540 = vmatpush.bf16.msra.mxu0 %v527
      %541 = vmatpush.bf16.msra.mxu0 %v526
      %542 = vmatpush.bf16.msra.mxu0 %v525
      %543 = vmatpush.bf16.msra.mxu0 %v524
      %544 = vmatpush.bf16.msra.mxu0 %v523
      %545 = vmatpush.bf16.msra.mxu0 %v522
      %546 = vmatmul.bf16.gmra.mxu0 %v469
      %v547 = vpop.f32.mrf.mxu0
      %v548 = vadd.f32 0.0, %v547
      %v549 = vpop.f32.mrf.mxu0
      %v550 = vadd.f32 0.0, %v549
      %551 = vmatmul.bf16.gmra.mxu0 %v470
      %v552 = vpop.f32.mrf.mxu0
      %v553 = vadd.f32 0.0, %v552
      %v554 = vpop.f32.mrf.mxu0
      %v555 = vadd.f32 0.0, %v554
      %556 = vmatmul.bf16.gmra.mxu0 %v471
      %v557 = vpop.f32.mrf.mxu0
      %v558 = vadd.f32 0.0, %v557
      %v559 = vpop.f32.mrf.mxu0
      %v560 = vadd.f32 0.0, %v559
      %561 = vmatmul.bf16.gmra.mxu0 %v472
      %v562 = vpop.f32.mrf.mxu0
      %v563 = vadd.f32 0.0, %v562
      %v564 = vpop.f32.mrf.mxu0
      %v565 = vadd.f32 0.0, %v564
      %566 = vdwg.mxu0
      %v567 = vadd.f32 %v412, %v548
      %v568 = vadd.f32 %v413, %v550
      %v569 = vadd.f32 %v414, %v553
      %v570 = vadd.f32 %v415, %v555
      %v571 = vadd.f32 %v416, %v558
      %v572 = vadd.f32 %v417, %v560
      %v573 = vadd.f32 %v418, %v563
      %v574 = vadd.f32 %v419, %v565
      %vm575 = vcmask 1045504
      %v576 = vrot.slane %v291, 2
      %v577 = vrot.slane %v292, 2
      %v578 = vsel %vm575, %v576, %v577
      %v579 = vrot.slane %v293, 2
      %v580 = vrot.slane %v294, 2
      %v581 = vsel %vm575, %v579, %v580
      %v582 = vrot.slane %v295, 2
      %v583 = vrot.slane %v296, 2
      %v584 = vsel %vm575, %v582, %v583
      %v585 = vrot.slane %v297, 2
      %v586 = vrot.slane %v298, 2
      %v587 = vsel %vm575, %v585, %v586
      %v588 = vrot.slane %v299, 2
      %v589 = vrot.slane %v300, 2
      %v590 = vsel %vm575, %v588, %v589
      %v591 = vrot.slane %v301, 2
      %v592 = vrot.slane %v302, 2
      %v593 = vsel %vm575, %v591, %v592
      %v594 = vrot.slane %v303, 2
      %v595 = vrot.slane %v304, 2
      %v596 = vsel %vm575, %v594, %v595
      %v597 = vrot.slane %v305, 2
      %v598 = vrot.slane %v306, 2
      %v599 = vsel %vm575, %v597, %v598
      %v608 = vpack.c.bf16 %v581, %v578
      %v609 = vpack.c.bf16 %v587, %v584
      %v610 = vpack.c.bf16 %v593, %v590
      %v611 = vpack.c.bf16 %v599, %v596
      %s612 = scalar_lea.vmem %s2, 128
      %v613 = vld [vmem:[%s612] sm:$0xf]
      %v614 = vld [vmem:[%s612 + $0x4] sm:$0xf]
      %v615 = vld [vmem:[%s612 + $0x8] sm:$0xf]
      %v616 = vld [vmem:[%s612 + $0xc] sm:$0xf]
      %v617 = vld [vmem:[%s612 + $0x10] sm:$0xf]
      %v618 = vld [vmem:[%s612 + $0x14] sm:$0xf]
      %v619 = vld [vmem:[%s612 + $0x18] sm:$0xf]
      %v620 = vld [vmem:[%s612 + $0x1c] sm:$0xf]
      %v621 = vld [vmem:[%s612 + $0x20] sm:$0xf]
      %v622 = vld [vmem:[%s612 + $0x24] sm:$0xf]
      %v623 = vld [vmem:[%s612 + $0x28] sm:$0xf]
      %v624 = vld [vmem:[%s612 + $0x2c] sm:$0xf]
      %v625 = vld [vmem:[%s612 + $0x30] sm:$0xf]
      %v626 = vld [vmem:[%s612 + $0x34] sm:$0xf]
      %v627 = vld [vmem:[%s612 + $0x38] sm:$0xf]
      %v628 = vld [vmem:[%s612 + $0x3c] sm:$0xf]
      %v645 = vunpack.c.l.b16 %v613
      %v646 = vunpack.c.l.b16 %v614
      %v647 = vunpack.c.l.b16 %v615
      %v648 = vunpack.c.l.b16 %v616
      %v649 = vunpack.c.l.b16 %v617
      %v650 = vunpack.c.l.b16 %v618
      %v651 = vunpack.c.l.b16 %v619
      %v652 = vunpack.c.l.b16 %v620
      %v653 = vunpack.c.l.b16 %v621
      %v654 = vunpack.c.l.b16 %v622
      %v655 = vunpack.c.l.b16 %v623
      %v656 = vunpack.c.l.b16 %v624
      %v657 = vunpack.c.l.b16 %v625
      %v658 = vunpack.c.l.b16 %v626
      %v659 = vunpack.c.l.b16 %v627
      %v660 = vunpack.c.l.b16 %v628
      %v661 = vpack.c.b16 %v646, %v645
      %v662 = vpack.c.b16 %v648, %v647
      %v663 = vpack.c.b16 %v650, %v649
      %v664 = vpack.c.b16 %v652, %v651
      %v665 = vpack.c.b16 %v654, %v653
      %v666 = vpack.c.b16 %v656, %v655
      %v667 = vpack.c.b16 %v658, %v657
      %v668 = vpack.c.b16 %v660, %v659
      %677 = vmatpush.bf16.msra.mxu0 %v668
      %678 = vmatpush.bf16.msra.mxu0 %v667
      %679 = vmatpush.bf16.msra.mxu0 %v666
      %680 = vmatpush.bf16.msra.mxu0 %v665
      %681 = vmatpush.bf16.msra.mxu0 %v664
      %682 = vmatpush.bf16.msra.mxu0 %v663
      %683 = vmatpush.bf16.msra.mxu0 %v662
      %684 = vmatpush.bf16.msra.mxu0 %v661
      %685 = vmatmul.bf16.gmra.mxu0 %v608
      %v686 = vpop.f32.mrf.mxu0
      %v687 = vadd.f32 0.0, %v686
      %v688 = vpop.f32.mrf.mxu0
      %v689 = vadd.f32 0.0, %v688
      %690 = vmatmul.bf16.gmra.mxu0 %v609
      %v691 = vpop.f32.mrf.mxu0
      %v692 = vadd.f32 0.0, %v691
      %v693 = vpop.f32.mrf.mxu0
      %v694 = vadd.f32 0.0, %v693
      %695 = vmatmul.bf16.gmra.mxu0 %v610
      %v696 = vpop.f32.mrf.mxu0
      %v697 = vadd.f32 0.0, %v696
      %v698 = vpop.f32.mrf.mxu0
      %v699 = vadd.f32 0.0, %v698
      %700 = vmatmul.bf16.gmra.mxu0 %v611
      %v701 = vpop.f32.mrf.mxu0
      %v702 = vadd.f32 0.0, %v701
      %v703 = vpop.f32.mrf.mxu0
      %v704 = vadd.f32 0.0, %v703
      %705 = vdwg.mxu0
      %v706 = vadd.f32 %v567, %v687
      %v707 = vadd.f32 %v568, %v689
      %v708 = vadd.f32 %v569, %v692
      %v709 = vadd.f32 %v570, %v694
      %v710 = vadd.f32 %v571, %v697
      %v711 = vadd.f32 %v572, %v699
      %v712 = vadd.f32 %v573, %v702
      %v713 = vadd.f32 %v574, %v704
      %v714 = vpack.c.bf16 %v295, %v293
      %v715 = vpack.c.bf16 %v299, %v297
      %v716 = vpack.c.bf16 %v303, %v301
      %v717 = vpack.c.bf16 %v307, %v305
      %s718 = scalar_lea.vmem %s2, 192
      %v719 = vld [vmem:[%s718] sm:$0xf]
      %v720 = vld [vmem:[%s718 + $0x4] sm:$0xf]
      %v721 = vld [vmem:[%s718 + $0x8] sm:$0xf]
      %v722 = vld [vmem:[%s718 + $0xc] sm:$0xf]
      %v723 = vld [vmem:[%s718 + $0x10] sm:$0xf]
      %v724 = vld [vmem:[%s718 + $0x14] sm:$0xf]
      %v725 = vld [vmem:[%s718 + $0x18] sm:$0xf]
      %v726 = vld [vmem:[%s718 + $0x1c] sm:$0xf]
      %v727 = vld [vmem:[%s718 + $0x20] sm:$0xf]
      %v728 = vld [vmem:[%s718 + $0x24] sm:$0xf]
      %v729 = vld [vmem:[%s718 + $0x28] sm:$0xf]
      %v730 = vld [vmem:[%s718 + $0x2c] sm:$0xf]
      %v731 = vld [vmem:[%s718 + $0x30] sm:$0xf]
      %v732 = vld [vmem:[%s718 + $0x34] sm:$0xf]
      %v733 = vld [vmem:[%s718 + $0x38] sm:$0xf]
      %v734 = vld [vmem:[%s718 + $0x3c] sm:$0xf]
      %v751 = vunpack.c.l.b16 %v719
      %v752 = vunpack.c.l.b16 %v720
      %v753 = vunpack.c.l.b16 %v721
      %v754 = vunpack.c.l.b16 %v722
      %v755 = vunpack.c.l.b16 %v723
      %v756 = vunpack.c.l.b16 %v724
      %v757 = vunpack.c.l.b16 %v725
      %v758 = vunpack.c.l.b16 %v726
      %v759 = vunpack.c.l.b16 %v727
      %v760 = vunpack.c.l.b16 %v728
      %v761 = vunpack.c.l.b16 %v729
      %v762 = vunpack.c.l.b16 %v730
      %v763 = vunpack.c.l.b16 %v731
      %v764 = vunpack.c.l.b16 %v732
      %v765 = vunpack.c.l.b16 %v733
      %v766 = vunpack.c.l.b16 %v734
      %v767 = vpack.c.b16 %v752, %v751
      %v768 = vpack.c.b16 %v754, %v753
      %v769 = vpack.c.b16 %v756, %v755
      %v770 = vpack.c.b16 %v758, %v757
      %v771 = vpack.c.b16 %v760, %v759
      %v772 = vpack.c.b16 %v762, %v761
      %v773 = vpack.c.b16 %v764, %v763
      %v774 = vpack.c.b16 %v766, %v765
      %783 = vmatpush.bf16.msra.mxu0 %v774
      %784 = vmatpush.bf16.msra.mxu0 %v773
      %785 = vmatpush.bf16.msra.mxu0 %v772
      %786 = vmatpush.bf16.msra.mxu0 %v771
      %787 = vmatpush.bf16.msra.mxu0 %v770
      %788 = vmatpush.bf16.msra.mxu0 %v769
      %789 = vmatpush.bf16.msra.mxu0 %v768
      %790 = vmatpush.bf16.msra.mxu0 %v767
      %791 = vmatmul.bf16.gmra.mxu0 %v714
      %v792 = vpop.f32.mrf.mxu0
      %v793 = vadd.f32 0.0, %v792
      %v794 = vpop.f32.mrf.mxu0
      %v795 = vadd.f32 0.0, %v794
      %796 = vmatmul.bf16.gmra.mxu0 %v715
      %v797 = vpop.f32.mrf.mxu0
      %v798 = vadd.f32 0.0, %v797
      %v799 = vpop.f32.mrf.mxu0
      %v800 = vadd.f32 0.0, %v799
      %801 = vmatmul.bf16.gmra.mxu0 %v716
      %v802 = vpop.f32.mrf.mxu0
      %v803 = vadd.f32 0.0, %v802
      %v804 = vpop.f32.mrf.mxu0
      %v805 = vadd.f32 0.0, %v804
      %806 = vmatmul.bf16.gmra.mxu0 %v717
      %v807 = vpop.f32.mrf.mxu0
      %v808 = vadd.f32 0.0, %v807
      %v809 = vpop.f32.mrf.mxu0
      %v810 = vadd.f32 0.0, %v809
      %811 = vdwg.mxu0
      %v812 = vadd.f32 %v706, %v793
      %v813 = vadd.f32 %v707, %v795
      %v814 = vadd.f32 %v708, %v798
      %v815 = vadd.f32 %v709, %v800
      %v816 = vadd.f32 %v710, %v803
      %v817 = vadd.f32 %v711, %v805
      %v818 = vadd.f32 %v712, %v808
      %v819 = vadd.f32 %v713, %v810
      %v822 = vrot.slane %v307, 1
      %v823 = vrot.slane %v308, 1
      %v824 = vsel %vm436, %v822, %v823
      %v826 = vpack.c.bf16 %v445, %v442
      %v827 = vpack.c.bf16 %v451, %v448
      %v828 = vpack.c.bf16 %v457, %v454
      %v829 = vpack.c.bf16 %v824, %v460
      %s830 = scalar_lea.vmem %s2, 256
      %v831 = vld [vmem:[%s830] sm:$0xf]
      %v832 = vld [vmem:[%s830 + $0x4] sm:$0xf]
      %v833 = vld [vmem:[%s830 + $0x8] sm:$0xf]
      %v834 = vld [vmem:[%s830 + $0xc] sm:$0xf]
      %v835 = vld [vmem:[%s830 + $0x10] sm:$0xf]
      %v836 = vld [vmem:[%s830 + $0x14] sm:$0xf]
      %v837 = vld [vmem:[%s830 + $0x18] sm:$0xf]
      %v838 = vld [vmem:[%s830 + $0x1c] sm:$0xf]
      %v839 = vld [vmem:[%s830 + $0x20] sm:$0xf]
      %v840 = vld [vmem:[%s830 + $0x24] sm:$0xf]
      %v841 = vld [vmem:[%s830 + $0x28] sm:$0xf]
      %v842 = vld [vmem:[%s830 + $0x2c] sm:$0xf]
      %v843 = vld [vmem:[%s830 + $0x30] sm:$0xf]
      %v844 = vld [vmem:[%s830 + $0x34] sm:$0xf]
      %v845 = vld [vmem:[%s830 + $0x38] sm:$0xf]
      %v846 = vld [vmem:[%s830 + $0x3c] sm:$0xf]
      %v863 = vunpack.c.l.b16 %v831
      %v864 = vunpack.c.l.b16 %v832
      %v865 = vunpack.c.l.b16 %v833
      %v866 = vunpack.c.l.b16 %v834
      %v867 = vunpack.c.l.b16 %v835
      %v868 = vunpack.c.l.b16 %v836
      %v869 = vunpack.c.l.b16 %v837
      %v870 = vunpack.c.l.b16 %v838
      %v871 = vunpack.c.l.b16 %v839
      %v872 = vunpack.c.l.b16 %v840
      %v873 = vunpack.c.l.b16 %v841
      %v874 = vunpack.c.l.b16 %v842
      %v875 = vunpack.c.l.b16 %v843
      %v876 = vunpack.c.l.b16 %v844
      %v877 = vunpack.c.l.b16 %v845
      %v878 = vunpack.c.l.b16 %v846
      %v879 = vpack.c.b16 %v864, %v863
      %v880 = vpack.c.b16 %v866, %v865
      %v881 = vpack.c.b16 %v868, %v867
      %v882 = vpack.c.b16 %v870, %v869
      %v883 = vpack.c.b16 %v872, %v871
      %v884 = vpack.c.b16 %v874, %v873
      %v885 = vpack.c.b16 %v876, %v875
      %v886 = vpack.c.b16 %v878, %v877
      %895 = vmatpush.bf16.msra.mxu0 %v886
      %896 = vmatpush.bf16.msra.mxu0 %v885
      %897 = vmatpush.bf16.msra.mxu0 %v884
      %898 = vmatpush.bf16.msra.mxu0 %v883
      %899 = vmatpush.bf16.msra.mxu0 %v882
      %900 = vmatpush.bf16.msra.mxu0 %v881
      %901 = vmatpush.bf16.msra.mxu0 %v880
      %902 = vmatpush.bf16.msra.mxu0 %v879
      %903 = vmatmul.bf16.gmra.mxu0 %v826
      %v904 = vpop.f32.mrf.mxu0
      %v905 = vadd.f32 0.0, %v904
      %v906 = vpop.f32.mrf.mxu0
      %v907 = vadd.f32 0.0, %v906
      %908 = vmatmul.bf16.gmra.mxu0 %v827
      %v909 = vpop.f32.mrf.mxu0
      %v910 = vadd.f32 0.0, %v909
      %v911 = vpop.f32.mrf.mxu0
      %v912 = vadd.f32 0.0, %v911
      %913 = vmatmul.bf16.gmra.mxu0 %v828
      %v914 = vpop.f32.mrf.mxu0
      %v915 = vadd.f32 0.0, %v914
      %v916 = vpop.f32.mrf.mxu0
      %v917 = vadd.f32 0.0, %v916
      %918 = vmatmul.bf16.gmra.mxu0 %v829
      %v919 = vpop.f32.mrf.mxu0
      %v920 = vadd.f32 0.0, %v919
      %v921 = vpop.f32.mrf.mxu0
      %v922 = vadd.f32 0.0, %v921
      %923 = vdwg.mxu0
      %v924 = vadd.f32 %v812, %v905
      %v925 = vadd.f32 %v813, %v907
      %v926 = vadd.f32 %v814, %v910
      %v927 = vadd.f32 %v815, %v912
      %v928 = vadd.f32 %v816, %v915
      %v929 = vadd.f32 %v817, %v917
      %v930 = vadd.f32 %v818, %v920
      %v931 = vadd.f32 %v819, %v922
      %v932 = vld [vmem:[%s266] sm:$0xf]
      %v933 = vld [vmem:[%s266 + $0x4] sm:$0xf]
      %v934 = vld [vmem:[%s266 + $0x8] sm:$0xf]
      %v935 = vld [vmem:[%s266 + $0xc] sm:$0xf]
      %v936 = vld [vmem:[%s266 + $0x10] sm:$0xf]
      %v937 = vld [vmem:[%s266 + $0x14] sm:$0xf]
      %v938 = vld [vmem:[%s266 + $0x18] sm:$0xf]
      %v939 = vld [vmem:[%s266 + $0x1c] sm:$0xf]
      %v940 = vunpack.c.l.bf16 %v932
      %v941 = vunpack.c.l.bf16 %v933
      %v942 = vunpack.c.l.bf16 %v934
      %v943 = vunpack.c.l.bf16 %v935
      %v944 = vunpack.c.l.bf16 %v936
      %v945 = vunpack.c.l.bf16 %v937
      %v946 = vunpack.c.l.bf16 %v938
      %v947 = vunpack.c.l.bf16 %v939
      %v948 = vpack.c.bf16 %v941, %v940
      %v949 = vpack.c.bf16 %v943, %v942
      %v950 = vpack.c.bf16 %v945, %v944
      %v951 = vpack.c.bf16 %v947, %v946
      %v952 = vld [vmem:[%s4] sm:$0xf]
      %v953 = vld [vmem:[%s4 + $0x4] sm:$0xf]
      %v954 = vld [vmem:[%s4 + $0x8] sm:$0xf]
      %v955 = vld [vmem:[%s4 + $0xc] sm:$0xf]
      %v956 = vld [vmem:[%s4 + $0x10] sm:$0xf]
      %v957 = vld [vmem:[%s4 + $0x14] sm:$0xf]
      %v958 = vld [vmem:[%s4 + $0x18] sm:$0xf]
      %v959 = vld [vmem:[%s4 + $0x1c] sm:$0xf]
      %v968 = vunpack.c.l.b16 %v952
      %v969 = vunpack.c.l.b16 %v953
      %v970 = vunpack.c.l.b16 %v954
      %v971 = vunpack.c.l.b16 %v955
      %v972 = vunpack.c.l.b16 %v956
      %v973 = vunpack.c.l.b16 %v957
      %v974 = vunpack.c.l.b16 %v958
      %v975 = vunpack.c.l.b16 %v959
      %v976 = vpack.c.b16 %v969, %v968
      %v977 = vpack.c.b16 %v971, %v970
      %v978 = vpack.c.b16 %v973, %v972
      %v979 = vpack.c.b16 %v975, %v974
      %vm984 = vcmask 523264
      %v986 = vsel %vm984, %v948, 0
      %v989 = vsel %vm984, %v949, 0
      %v992 = vsel %vm984, %v950, 0
      %v995 = vsel %vm984, %v951, 0
      %997 = vmatpush.bf16.msra.mxu0 0
      %998 = vmatpush.bf16.msra.mxu0 0
      %999 = vmatpush.bf16.msra.mxu0 0
      %1000 = vmatpush.bf16.msra.mxu0 0
      %1001 = vmatpush.bf16.msra.mxu0 %v979
      %1002 = vmatpush.bf16.msra.mxu0 %v978
      %1003 = vmatpush.bf16.msra.mxu0 %v977
      %1004 = vmatpush.bf16.msra.mxu0 %v976
      %1005 = vmatmul.bf16.gmra.mxu0 %v986
      %v1006 = vpop.f32.mrf.mxu0
      %v1007 = vadd.f32 0.0, %v1006
      %v1008 = vpop.f32.mrf.mxu0
      %v1009 = vadd.f32 0.0, %v1008
      %1010 = vmatmul.bf16.gmra.mxu0 %v989
      %v1011 = vpop.f32.mrf.mxu0
      %v1012 = vadd.f32 0.0, %v1011
      %v1013 = vpop.f32.mrf.mxu0
      %v1014 = vadd.f32 0.0, %v1013
      %1015 = vmatmul.bf16.gmra.mxu0 %v992
      %v1016 = vpop.f32.mrf.mxu0
      %v1017 = vadd.f32 0.0, %v1016
      %v1018 = vpop.f32.mrf.mxu0
      %v1019 = vadd.f32 0.0, %v1018
      %1020 = vmatmul.bf16.gmra.mxu0 %v995
      %v1021 = vpop.f32.mrf.mxu0
      %v1022 = vadd.f32 0.0, %v1021
      %v1023 = vpop.f32.mrf.mxu0
      %v1024 = vadd.f32 0.0, %v1023
      %1025 = vdwg.mxu0
      %v1026 = vadd.f32 %v924, %v1007
      %v1027 = vadd.f32 %v925, %v1009
      %v1028 = vadd.f32 %v926, %v1012
      %v1029 = vadd.f32 %v927, %v1014
      %v1030 = vadd.f32 %v928, %v1017
      %v1031 = vadd.f32 %v929, %v1019
      %v1032 = vadd.f32 %v930, %v1022
      %v1033 = vadd.f32 %v931, %v1024
      %v1034 = vmax.f32 %v1026, 0.0
      %v1035 = vmax.f32 %v1027, 0.0
      %v1036 = vmax.f32 %v1028, 0.0
      %v1037 = vmax.f32 %v1029, 0.0
      %v1038 = vmax.f32 %v1030, 0.0
      %v1039 = vmax.f32 %v1031, 0.0
      %v1040 = vmax.f32 %v1032, 0.0
      %v1041 = vmax.f32 %v1033, 0.0
      %v1042 = vpack.c.bf16 %v1034, %v1034
      %v1043 = vpack.c.bf16 %v1035, %v1035
      %v1044 = vpack.c.bf16 %v1036, %v1036
      %v1045 = vpack.c.bf16 %v1037, %v1037
      %v1046 = vpack.c.bf16 %v1038, %v1038
      %v1047 = vpack.c.bf16 %v1039, %v1039
      %v1048 = vpack.c.bf16 %v1040, %v1040
      %v1049 = vpack.c.bf16 %v1041, %v1041
      %1050 = vst [vmem:[%s271] sm:$0xf] %v1042
      %1051 = vst [vmem:[%s271 + $0x4] sm:$0xf] %v1043
      %1052 = vst [vmem:[%s271 + $0x8] sm:$0xf] %v1044
      %1053 = vst [vmem:[%s271 + $0xc] sm:$0xf] %v1045
      %1054 = vst [vmem:[%s271 + $0x10] sm:$0xf] %v1046
      %1055 = vst [vmem:[%s271 + $0x14] sm:$0xf] %v1047
      %1056 = vst [vmem:[%s271 + $0x18] sm:$0xf] %v1048
      %1057 = vst [vmem:[%s271 + $0x1c] sm:$0xf] %v1049
      %p1058 = scmp.lt.s32.totalorder %s17, 1
      %s1059 = scalar_select %p1058, %s17, 1
      %s1060 = smul.addr %s1059, 8
      %s1061 = smul.addr %s1060, 4
      %s1062 = scalar_lea.vmem %s6, %s1061
      // Predicated region
      $region45: #{forward.10} parent=43 // pred_check
        %p1063 = pneg %p171
      $region46: #{forward.10} parent=43 // pred_check_branch
        %1065 = sbr.rel (%p1063) target = $region48
      $region47: #{forward.10} parent=43 // pred_region
        _
      $region48: #{forward.10} parent=43 // pred_fallthru
        _
    $region44: #{forward.10} parent=5 // pred_fallthru
      _
    %p1066 = scmp.le.s32.totalorder 2, %s12
    // Predicated region
    $region49: #{forward.10} parent=5 // pred_check
      %p1067 = pneg %p1066
    $region50: #{forward.10} parent=5 // pred_check_branch
      %1069 = sbr.rel (%p1067) target = $region52
    $region51: #{forward.10} parent=5 // pred_region
      %s1070 = ssub.s32 %s12, 2
      // Predicated region
      $region53: #{forward.10} parent=51 // pred_check
        %p1071 = pneg %p177
      $region54: #{forward.10} parent=51 // pred_check_branch
        %1073 = sbr.rel (%p1071) target = $region56
      $region55: #{forward.10} parent=51 // pred_region
        %p1074 = scmp.lt.s32.totalorder %s18, 1
        %s1075 = scalar_select %p1074, %s18, 1
        %s1076 = smul.addr %s1075, 8
        %s1077 = smul.addr %s1076, 4
        %s1078 = scalar_lea.vmem %s6, %s1077
      $region56: #{forward.10} parent=51 // pred_fallthru
        _
    $region52: #{forward.10} parent=5 // pred_fallthru
      _
  $region6: #{forward.10} parent=0 // loop_footer
    %s16 = sadd.s32 1, %s12
  $region7: #{forward.10} parent=0 // loop_footer_branch
    %11 = sbr.rel target = $region3
  $region8: #{forward.10} parent=0 // loop_exit
    _

// kernel: forward.13
$region0: #{forward.13}
  #allocation0 [shape = 'u32[]', space=smem, size = 0x4, offset = 0x4, fixed_abs, tag = 'smem constant byte address 0x4 - core index']
  #allocation1 [shape = 'u32[72,128]{1,0:T(1,128)}', space=vmem, size = 0x9000, scoped, tag = 'internal scratch']
  %s0 = inlined_call_operand.vmem [shape: bf16[2,8,8,256], index: 0, kind: input, shape index: {}]
  %s1 = inlined_call_operand.vmem [shape: bf16[1,256,3], index: 1, kind: input, shape index: {}]
  %s2 = inlined_call_operand.vmem [shape: f32[1,3], index: 2, kind: input, shape index: {}]
  %s3 = inlined_call_operand.vmem [shape: f32[2,8,8,3], index: 3, kind: output, shape index: {}]
  %s4 = sld [smem:[#allocation0]]
  $region45: #{forward.13} parent=0
    _
  %s6 = ssub.s32 1, %s4
  %s7 = scalar_select 0, %s6, %s4
  loop: start=0, step=1, limit=4
  $region2: #{forward.13} parent=0 // loop_pre_header
    _
  $region3: #{forward.13} parent=0 // loop_header
    %s9 = sphi 0, %s13
    %p10 = scmp.ge.s32.totalorder %s9, 4
    %s19 = sphi 0, %s21
    %s22 = sphi 0, %s19
    %s23 = sphi 0, %s22
    %s39 = sphi 0, %s23
    %s43 = sphi 0, %s43
    %s45 = sphi 0, %s43
    %s46 = sphi 0, %s45
    %s60 = sphi 0, %s46
    %s64 = sphi 0, %s64
    %s66 = sphi 0, %s64
    %s67 = sphi 0, %s66
    %s81 = sphi 0, %s67
    %s87 = sphi 0, %s89
    %s90 = sphi 0, %s87
    %s91 = sphi 0, %s90
    %s107 = sphi 0, %s91
  $region4: #{forward.13} parent=0 // loop_header_branch
    %12 = sbr.rel (%p10) target = $region8
  $region5: #{forward.13} parent=0 // loop_body
    %s14 = ssub.s32 %s9, 1
    %s15 = ssub.s32 %s9, 2
    %s16 = sadd.s32 %s9, 1
    %s17 = ssub.s32 %s9, %s16
    %p18 = scmp.eq.s32.totalorder %s17, 0
    %s20 = sadd.s32 %s19, 1
    %s21 = scalar_select %p18, %s19, %s20
    %p24 = pneg %p18
    %p25 = scmp.eq.s32.totalorder %s9, 1
    %p26 = por %p24, %p25
    %p27 = scmp.ne.s32.totalorder %s19, %s22
    %p28 = scmp.eq.s32.totalorder %s9, 0
    %p29 = por %p27, %p28
    %p30 = scmp.ne.s32.totalorder %s19, %s22
    %p31 = scmp.eq.s32.totalorder %s14, 1
    %p32 = por %p30, %p31
    %p33 = scmp.ne.s32.totalorder %s22, %s23
    %p34 = scmp.eq.s32.totalorder %s14, 0
    %p35 = por %p33, %p34
    %p36 = scmp.ne.s32.totalorder %s22, %s23
    %p37 = scmp.eq.s32.totalorder %s15, 1
    %p38 = por %p36, %p37
    %p40 = scmp.ne.s32.totalorder %s23, %s39
    %p41 = scmp.eq.s32.totalorder %s15, 0
    %p42 = por %p40, %p41
    %s44 = sadd.s32 %s43, 1
    %p47 = scmp.eq.s32.totalorder %s9, 1
    %p48 = scmp.ne.s32.totalorder %s43, %s45
    %p49 = scmp.eq.s32.totalorder %s9, 0
    %p50 = por %p48, %p49
    %p51 = scmp.ne.s32.totalorder %s43, %s45
    %p52 = scmp.eq.s32.totalorder %s14, 1
    %p53 = por %p51, %p52
    %p54 = scmp.ne.s32.totalorder %s45, %s46
    %p55 = scmp.eq.s32.totalorder %s14, 0
    %p56 = por %p54, %p55
    %p57 = scmp.ne.s32.totalorder %s45, %s46
    %p58 = scmp.eq.s32.totalorder %s15, 1
    %p59 = por %p57, %p58
    %p61 = scmp.ne.s32.totalorder %s46, %s60
    %p62 = scmp.eq.s32.totalorder %s15, 0
    %p63 = por %p61, %p62
    %s65 = sadd.s32 %s64, 1
    %p68 = scmp.eq.s32.totalorder %s9, 1
    %p69 = scmp.ne.s32.totalorder %s64, %s66
    %p70 = scmp.eq.s32.totalorder %s9, 0
    %p71 = por %p69, %p70
    %p72 = scmp.ne.s32.totalorder %s64, %s66
    %p73 = scmp.eq.s32.totalorder %s14, 1
    %p74 = por %p72, %p73
    %p75 = scmp.ne.s32.totalorder %s66, %s67
    %p76 = scmp.eq.s32.totalorder %s14, 0
    %p77 = por %p75, %p76
    %p78 = scmp.ne.s32.totalorder %s66, %s67
    %p79 = scmp.eq.s32.totalorder %s15, 1
    %p80 = por %p78, %p79
    %p82 = scmp.ne.s32.totalorder %s67, %s81
    %p83 = scmp.eq.s32.totalorder %s15, 0
    %p84 = por %p82, %p83
    %s85 = ssub.s32 %s9, %s16
    %p86 = scmp.eq.s32.totalorder %s85, 0
    %s88 = sadd.s32 %s87, 1
    %s89 = scalar_select %p86, %s87, %s88
    %p92 = pneg %p86
    %p93 = scmp.eq.s32.totalorder %s9, 1
    %p94 = por %p92, %p93
    %p95 = scmp.ne.s32.totalorder %s87, %s90
    %p96 = scmp.eq.s32.totalorder %s9, 0
    %p97 = por %p95, %p96
    %p98 = scmp.ne.s32.totalorder %s87, %s90
    %p99 = scmp.eq.s32.totalorder %s14, 1
    %p100 = por %p98, %p99
    %p101 = scmp.ne.s32.totalorder %s90, %s91
    %p102 = scmp.eq.s32.totalorder %s14, 0
    %p103 = por %p101, %p102
    %p104 = scmp.ne.s32.totalorder %s90, %s91
    %p105 = scmp.eq.s32.totalorder %s15, 1
    %p106 = por %p104, %p105
    %p108 = scmp.ne.s32.totalorder %s91, %s107
    %p109 = scmp.eq.s32.totalorder %s15, 0
    %p110 = por %p108, %p109
    %p111 = scmp.le.s32.totalorder 1, %s9
    %p112 = scmp.lt.s32.totalorder %s9, 3
    %p113 = pnand %p111, %p112
    %p114 = pneg %p113
    // Predicated region
    $region9: #{forward.13} parent=5 // pred_check
      _
    $region10: #{forward.13} parent=5 // pred_check_branch
      %116 = sbr.rel (%p113) target = $region12
    $region11: #{forward.13} parent=5 // pred_region
      %s117 = ssub.s32 %s9, 1
      // Predicated region
      $region13: #{forward.13} parent=11 // pred_check
        %p118 = pneg %p56
      $region14: #{forward.13} parent=11 // pred_check_branch
        %120 = sbr.rel (%p118) target = $region16
      $region15: #{forward.13} parent=11 // pred_region
        _
      $region16: #{forward.13} parent=11 // pred_fallthru
        _
      // Predicated region
      $region17: #{forward.13} parent=11 // pred_check
        %p121 = pneg %p77
      $region18: #{forward.13} parent=11 // pred_check_branch
        %123 = sbr.rel (%p121) target = $region20
      $region19: #{forward.13} parent=11 // pred_region
        _
      $region20: #{forward.13} parent=11 // pred_fallthru
        _
    $region12: #{forward.13} parent=5 // pred_fallthru
      _
    %p124 = scmp.lt.s32.totalorder %s9, 2
    // Predicated region
    $region21: #{forward.13} parent=5 // pred_check
      %p125 = pneg %p124
    $region22: #{forward.13} parent=5 // pred_check_branch
      %127 = sbr.rel (%p125) target = $region24
    $region23: #{forward.13} parent=5 // pred_region
      // Predicated region
      $region25: #{forward.13} parent=23 // pred_check
        %p128 = pneg %p29
      $region26: #{forward.13} parent=23 // pred_check_branch
        %130 = sbr.rel (%p128) target = $region28
      $region27: #{forward.13} parent=23 // pred_region
        %p131 = scmp.lt.s32.totalorder %s9, 1
        %s132 = scalar_select %p131, %s9, 1
        %s133 = smul.addr %s132, 16
        %s134 = smul.addr %s133, 4
        %s135 = scalar_lea.vmem %s0, %s134
      $region28: #{forward.13} parent=23 // pred_fallthru
        _
    $region24: #{forward.13} parent=5 // pred_fallthru
      _
    %p136 = scmp.le.s32.totalorder 1, %s9
    %p137 = scmp.lt.s32.totalorder %s9, 3
    %p138 = pnand %p136, %p137
    %p139 = pneg %p138
    // Predicated region
    $region29: #{forward.13} parent=5 // pred_check
      _
    $region30: #{forward.13} parent=5 // pred_check_branch
      %141 = sbr.rel (%p138) target = $region32
    $region31: #{forward.13} parent=5 // pred_region
      %s142 = ssub.s32 %s9, 1
      %p143 = scmp.lt.s32.totalorder %s14, 1
      %s144 = scalar_select %p143, %s14, 1
      %s145 = smul.addr %s144, 16
      %s146 = smul.addr %s145, 4
      %s147 = scalar_lea.vmem %s0, %s146
      %p148 = pneg %p35
      %p149 = pneg %p32
      %p150 = pneg %p56
      %p151 = pneg %p53
      %p152 = pneg %p77
      %p153 = pneg %p74
      %p154 = pneg %p103
      %p155 = pneg %p100
      %p156 = scmp.lt.s32.totalorder %s14, 1
      %s157 = scalar_select %p156, %s14, 1
      %s158 = smul.addr %s157, 8
      %s159 = smul.addr %s158, 8
      %s160 = scalar_lea.vmem %s3, %s159
      %p161 = scmp.lt.s32.totalorder %s14, 1
      %s162 = scalar_select %p161, %s14, 1
      %s163 = smul.addr %s162, 16
      %s164 = smul.addr %s163, 4
      %s165 = scalar_lea.vmem %s0, %s164
      %p166 = scmp.lt.s32.totalorder %s14, 1
      %s167 = scalar_select %p166, %s14, 1
      %s168 = smul.addr %s167, 8
      %s169 = smul.addr %s168, 8
      %s170 = scalar_lea.vmem %s3, %s169
      %v171 = vld [vmem:[%s165] sm:$0xff]
      %v172 = vld [vmem:[%s165 + $0x8] sm:$0xff]
      %v173 = vld [vmem:[%s165 + $0x10] sm:$0xff]
      %v174 = vld [vmem:[%s165 + $0x18] sm:$0xff]
      %v175 = vld [vmem:[%s165 + $0x20] sm:$0xff]
      %v176 = vld [vmem:[%s165 + $0x28] sm:$0xff]
      %v177 = vld [vmem:[%s165 + $0x30] sm:$0xff]
      %v178 = vld [vmem:[%s165 + $0x38] sm:$0xff]
      %v179 = vunpack.c.l.bf16 %v171
      %v180 = vunpack.c.h.bf16 %v171
      %v181 = vunpack.c.l.bf16 %v172
      %v182 = vunpack.c.h.bf16 %v172
      %v183 = vunpack.c.l.bf16 %v173
      %v184 = vunpack.c.h.bf16 %v173
      %v185 = vunpack.c.l.bf16 %v174
      %v186 = vunpack.c.h.bf16 %v174
      %v187 = vunpack.c.l.bf16 %v175
      %v188 = vunpack.c.h.bf16 %v175
      %v189 = vunpack.c.l.bf16 %v176
      %v190 = vunpack.c.h.bf16 %v176
      %v191 = vunpack.c.l.bf16 %v177
      %v192 = vunpack.c.h.bf16 %v177
      %v193 = vunpack.c.l.bf16 %v178
      %v194 = vunpack.c.h.bf16 %v178
      %v195 = vld [vmem:[%s2] sm:$0x1]
      %v197 = vperm.slane %v195, 0
      %v199 = vpack.c.bf16 %v181, %v179
      %v200 = vpack.c.bf16 %v182, %v180
      %v201 = vpack.c.bf16 %v185, %v183
      %v202 = vpack.c.bf16 %v186, %v184
      %v203 = vpack.c.bf16 %v189, %v187
      %v204 = vpack.c.bf16 %v190, %v188
      %v205 = vpack.c.bf16 %v193, %v191
      %v206 = vpack.c.bf16 %v194, %v192
      %v207 = vld [vmem:[%s1] sm:$0xf]
      %v208 = vld [vmem:[%s1 + $0x4] sm:$0xf]
      %v209 = vld [vmem:[%s1 + $0x8] sm:$0xf]
      %v210 = vld [vmem:[%s1 + $0xc] sm:$0xf]
      %v211 = vld [vmem:[%s1 + $0x10] sm:$0xf]
      %v212 = vld [vmem:[%s1 + $0x14] sm:$0xf]
      %v213 = vld [vmem:[%s1 + $0x18] sm:$0xf]
      %v214 = vld [vmem:[%s1 + $0x1c] sm:$0xf]
      %v215 = vld [vmem:[%s1 + $0x20] sm:$0xf]
      %v216 = vld [vmem:[%s1 + $0x24] sm:$0xf]
      %v217 = vld [vmem:[%s1 + $0x28] sm:$0xf]
      %v218 = vld [vmem:[%s1 + $0x2c] sm:$0xf]
      %v219 = vld [vmem:[%s1 + $0x30] sm:$0xf]
      %v220 = vld [vmem:[%s1 + $0x34] sm:$0xf]
      %v221 = vld [vmem:[%s1 + $0x38] sm:$0xf]
      %v222 = vld [vmem:[%s1 + $0x3c] sm:$0xf]
      %v223 = vld [vmem:[%s1 + $0x40] sm:$0xf]
      %v224 = vld [vmem:[%s1 + $0x44] sm:$0xf]
      %v225 = vld [vmem:[%s1 + $0x48] sm:$0xf]
      %v226 = vld [vmem:[%s1 + $0x4c] sm:$0xf]
      %v227 = vld [vmem:[%s1 + $0x50] sm:$0xf]
      %v228 = vld [vmem:[%s1 + $0x54] sm:$0xf]
      %v229 = vld [vmem:[%s1 + $0x58] sm:$0xf]
      %v230 = vld [vmem:[%s1 + $0x5c] sm:$0xf]
      %v231 = vld [vmem:[%s1 + $0x60] sm:$0xf]
      %v232 = vld [vmem:[%s1 + $0x64] sm:$0xf]
      %v233 = vld [vmem:[%s1 + $0x68] sm:$0xf]
      %v234 = vld [vmem:[%s1 + $0x6c] sm:$0xf]
      %v235 = vld [vmem:[%s1 + $0x70] sm:$0xf]
      %v236 = vld [vmem:[%s1 + $0x74] sm:$0xf]
      %v237 = vld [vmem:[%s1 + $0x78] sm:$0xf]
      %v238 = vld [vmem:[%s1 + $0x7c] sm:$0xf]
      %v271 = vunpack.c.l.b16 %v207
      %v272 = vunpack.c.l.b16 %v208
      %v273 = vunpack.c.l.b16 %v209
      %v274 = vunpack.c.l.b16 %v210
      %v275 = vunpack.c.l.b16 %v211
      %v276 = vunpack.c.l.b16 %v212
      %v277 = vunpack.c.l.b16 %v213
      %v278 = vunpack.c.l.b16 %v214
      %v279 = vunpack.c.l.b16 %v215
      %v280 = vunpack.c.l.b16 %v216
      %v281 = vunpack.c.l.b16 %v217
      %v282 = vunpack.c.l.b16 %v218
      %v283 = vunpack.c.l.b16 %v219
      %v284 = vunpack.c.l.b16 %v220
      %v285 = vunpack.c.l.b16 %v221
      %v286 = vunpack.c.l.b16 %v222
      %v287 = vunpack.c.l.b16 %v223
      %v288 = vunpack.c.l.b16 %v224
      %v289 = vunpack.c.l.b16 %v225
      %v290 = vunpack.c.l.b16 %v226
      %v291 = vunpack.c.l.b16 %v227
      %v292 = vunpack.c.l.b16 %v228
      %v293 = vunpack.c.l.b16 %v229
      %v294 = vunpack.c.l.b16 %v230
      %v295 = vunpack.c.l.b16 %v231
      %v296 = vunpack.c.l.b16 %v232
      %v297 = vunpack.c.l.b16 %v233
      %v298 = vunpack.c.l.b16 %v234
      %v299 = vunpack.c.l.b16 %v235
      %v300 = vunpack.c.l.b16 %v236
      %v301 = vunpack.c.l.b16 %v237
      %v302 = vunpack.c.l.b16 %v238
      %v303 = vpack.c.b16 %v272, %v271
      %v304 = vpack.c.b16 %v274, %v273
      %v305 = vpack.c.b16 %v276, %v275
      %v306 = vpack.c.b16 %v278, %v277
      %v307 = vpack.c.b16 %v280, %v279
      %v308 = vpack.c.b16 %v282, %v281
      %v309 = vpack.c.b16 %v284, %v283
      %v310 = vpack.c.b16 %v286, %v285
      %v311 = vpack.c.b16 %v288, %v287
      %v312 = vpack.c.b16 %v290, %v289
      %v313 = vpack.c.b16 %v292, %v291
      %v314 = vpack.c.b16 %v294, %v293
      %v315 = vpack.c.b16 %v296, %v295
      %v316 = vpack.c.b16 %v298, %v297
      %v317 = vpack.c.b16 %v300, %v299
      %v318 = vpack.c.b16 %v302, %v301
      %335 = vmatpush.bf16.msra.mxu0 %v310
      %336 = vmatpush.bf16.msra.mxu0 %v309
      %337 = vmatpush.bf16.msra.mxu0 %v308
      %338 = vmatpush.bf16.msra.mxu0 %v307
      %339 = vmatpush.bf16.msra.mxu0 %v306
      %340 = vmatpush.bf16.msra.mxu0 %v305
      %341 = vmatpush.bf16.msra.mxu0 %v304
      %342 = vmatpush.bf16.msra.mxu0 %v303
      %343 = vmatmul.bf16.gmra.mxu0 %v199
      %v344 = vpop.f32.mrf.mxu0
      %v345 = vadd.f32 0.0, %v344
      %v346 = vpop.f32.mrf.mxu0
      %v347 = vadd.f32 0.0, %v346
      %348 = vmatmul.bf16.gmra.mxu0 %v201
      %v349 = vpop.f32.mrf.mxu0
      %v350 = vadd.f32 0.0, %v349
      %v351 = vpop.f32.mrf.mxu0
      %v352 = vadd.f32 0.0, %v351
      %353 = vmatmul.bf16.gmra.mxu0 %v203
      %v354 = vpop.f32.mrf.mxu0
      %v355 = vadd.f32 0.0, %v354
      %v356 = vpop.f32.mrf.mxu0
      %v357 = vadd.f32 0.0, %v356
      %358 = vmatmul.bf16.gmra.mxu0 %v205
      %v359 = vpop.f32.mrf.mxu0
      %v360 = vadd.f32 0.0, %v359
      %v361 = vpop.f32.mrf.mxu0
      %v362 = vadd.f32 0.0, %v361
      %363 = vdwg.mxu0
      %364 = vmatpush.bf16.msra.mxu0 %v318
      %365 = vmatpush.bf16.msra.mxu0 %v317
      %366 = vmatpush.bf16.msra.mxu0 %v316
      %367 = vmatpush.bf16.msra.mxu0 %v315
      %368 = vmatpush.bf16.msra.mxu0 %v314
      %369 = vmatpush.bf16.msra.mxu0 %v313
      %370 = vmatpush.bf16.msra.mxu0 %v312
      %371 = vmatpush.bf16.msra.mxu0 %v311
      %372 = vmatmul.bf16.gmra.mxu0 %v200
      %v373 = vpop.f32.mrf.mxu0
      %v374 = vadd.f32 %v345, %v373
      %v375 = vpop.f32.mrf.mxu0
      %v376 = vadd.f32 %v347, %v375
      %377 = vmatmul.bf16.gmra.mxu0 %v202
      %v378 = vpop.f32.mrf.mxu0
      %v379 = vadd.f32 %v350, %v378
      %v380 = vpop.f32.mrf.mxu0
      %v381 = vadd.f32 %v352, %v380
      %382 = vmatmul.bf16.gmra.mxu0 %v204
      %v383 = vpop.f32.mrf.mxu0
      %v384 = vadd.f32 %v355, %v383
      %v385 = vpop.f32.mrf.mxu0
      %v386 = vadd.f32 %v357, %v385
      %387 = vmatmul.bf16.gmra.mxu0 %v206
      %v388 = vpop.f32.mrf.mxu0
      %v389 = vadd.f32 %v360, %v388
      %v390 = vpop.f32.mrf.mxu0
      %v391 = vadd.f32 %v362, %v390
      %392 = vdwg.mxu0
      %v393 = vadd.f32 %v197, %v374
      %v394 = vadd.f32 %v197, %v376
      %v395 = vadd.f32 %v197, %v379
      %v396 = vadd.f32 %v197, %v381
      %v397 = vadd.f32 %v197, %v384
      %v398 = vadd.f32 %v197, %v386
      %v399 = vadd.f32 %v197, %v389
      %v400 = vadd.f32 %v197, %v391
      %vm401 = vcmask 23552
      %402 = vst.msk [vmem:[%s170] sm:$0xff] %vm401, %v393
      %403 = vst.msk [vmem:[%s170 + $0x8] sm:$0xff] %vm401, %v394
      %404 = vst.msk [vmem:[%s170 + $0x10] sm:$0xff] %vm401, %v395
      %405 = vst.msk [vmem:[%s170 + $0x18] sm:$0xff] %vm401, %v396
      %406 = vst.msk [vmem:[%s170 + $0x20] sm:$0xff] %vm401, %v397
      %407 = vst.msk [vmem:[%s170 + $0x28] sm:$0xff] %vm401, %v398
      %408 = vst.msk [vmem:[%s170 + $0x30] sm:$0xff] %vm401, %v399
      %409 = vst.msk [vmem:[%s170 + $0x38] sm:$0xff] %vm401, %v400
      %p410 = scmp.lt.s32.totalorder %s14, 1
      %s411 = scalar_select %p410, %s14, 1
      %s412 = smul.addr %s411, 8
      %s413 = smul.addr %s412, 8
      %s414 = scalar_lea.vmem %s3, %s413
      // Predicated region
      $region33: #{forward.13} parent=31 // pred_check
        %p415 = pneg %p100
      $region34: #{forward.13} parent=31 // pred_check_branch
        %417 = sbr.rel (%p415) target = $region36
      $region35: #{forward.13} parent=31 // pred_region
        _
      $region36: #{forward.13} parent=31 // pred_fallthru
        _
    $region32: #{forward.13} parent=5 // pred_fallthru
      _
    %p418 = scmp.le.s32.totalorder 2, %s9
    // Predicated region
    $region37: #{forward.13} parent=5 // pred_check
      %p419 = pneg %p418
    $region38: #{forward.13} parent=5 // pred_check_branch
      %421 = sbr.rel (%p419) target = $region40
    $region39: #{forward.13} parent=5 // pred_region
      %s422 = ssub.s32 %s9, 2
      // Predicated region
      $region41: #{forward.13} parent=39 // pred_check
        %p423 = pneg %p106
      $region42: #{forward.13} parent=39 // pred_check_branch
        %425 = sbr.rel (%p423) target = $region44
      $region43: #{forward.13} parent=39 // pred_region
        %p426 = scmp.lt.s32.totalorder %s15, 1
        %s427 = scalar_select %p426, %s15, 1
        %s428 = smul.addr %s427, 8
        %s429 = smul.addr %s428, 8
        %s430 = scalar_lea.vmem %s3, %s429
      $region44: #{forward.13} parent=39 // pred_fallthru
        _
    $region40: #{forward.13} parent=5 // pred_fallthru
      _
  $region6: #{forward.13} parent=0 // loop_footer
    %s13 = sadd.s32 1, %s9
  $region7: #{forward.13} parent=0 // loop_footer_branch
    %8 = sbr.rel target = $region3
  $region8: #{forward.13} parent=0 // loop_exit
    _

// kernel: forward.12
$region0: #{forward.12}
  #allocation0 [shape = 'u32[]', space=smem, size = 0x4, offset = 0x4, fixed_abs, tag = 'smem constant byte address 0x4 - core index']
  #allocation1 [shape = 'u32[72,128]{1,0:T(1,128)}', space=vmem, size = 0x9000, scoped, tag = 'internal scratch']
  %s0 = inlined_call_operand.vmem [shape: bf16[2,10,10,256], index: 0, kind: input, shape index: {}]
  %s1 = inlined_call_operand.vmem [shape: bf16[2,8,8,128], index: 1, kind: input, shape index: {}]
  %s2 = inlined_call_operand.vmem [shape: bf16[5,256,256], index: 2, kind: input, shape index: {}]
  %s3 = inlined_call_operand.vmem [shape: f32[1,256], index: 3, kind: input, shape index: {}]
  %s4 = inlined_call_operand.vmem [shape: bf16[128,256], index: 4, kind: input, shape index: {}]
  %s5 = inlined_call_operand.vmem [shape: f32[1,256], index: 5, kind: input, shape index: {}]
  %s6 = inlined_call_operand.vmem [shape: bf16[2,8,8,256], index: 6, kind: output, shape index: {}]
  %s7 = sld [smem:[#allocation0]]
  $region57: #{forward.12} parent=0
    _
  %s9 = ssub.s32 1, %s7
  %s10 = scalar_select 0, %s9, %s7
  loop: start=0, step=1, limit=4
  $region2: #{forward.12} parent=0 // loop_pre_header
    _
  $region3: #{forward.12} parent=0 // loop_header
    %s12 = sphi 0, %s16
    %p13 = scmp.ge.s32.totalorder %s12, 4
    %s22 = sphi 0, %s24
    %s25 = sphi 0, %s22
    %s26 = sphi 0, %s25
    %s42 = sphi 0, %s26
    %s48 = sphi 0, %s50
    %s51 = sphi 0, %s48
    %s52 = sphi 0, %s51
    %s68 = sphi 0, %s52
    %s72 = sphi 0, %s72
    %s74 = sphi 0, %s72
    %s75 = sphi 0, %s74
    %s89 = sphi 0, %s75
    %s93 = sphi 0, %s93
    %s95 = sphi 0, %s93
    %s96 = sphi 0, %s95
    %s110 = sphi 0, %s96
    %s114 = sphi 0, %s114
    %s116 = sphi 0, %s114
    %s117 = sphi 0, %s116
    %s131 = sphi 0, %s117
    %s135 = sphi 0, %s135
    %s137 = sphi 0, %s135
    %s138 = sphi 0, %s137
    %s152 = sphi 0, %s138
    %s158 = sphi 0, %s160
    %s161 = sphi 0, %s158
    %s162 = sphi 0, %s161
    %s178 = sphi 0, %s162
  $region4: #{forward.12} parent=0 // loop_header_branch
    %15 = sbr.rel (%p13) target = $region8
  $region5: #{forward.12} parent=0 // loop_body
    %s17 = ssub.s32 %s12, 1
    %s18 = ssub.s32 %s12, 2
    %s19 = sadd.s32 %s12, 1
    %s20 = ssub.s32 %s12, %s19
    %p21 = scmp.eq.s32.totalorder %s20, 0
    %s23 = sadd.s32 %s22, 1
    %s24 = scalar_select %p21, %s22, %s23
    %p27 = pneg %p21
    %p28 = scmp.eq.s32.totalorder %s12, 1
    %p29 = por %p27, %p28
    %p30 = scmp.ne.s32.totalorder %s22, %s25
    %p31 = scmp.eq.s32.totalorder %s12, 0
    %p32 = por %p30, %p31
    %p33 = scmp.ne.s32.totalorder %s22, %s25
    %p34 = scmp.eq.s32.totalorder %s17, 1
    %p35 = por %p33, %p34
    %p36 = scmp.ne.s32.totalorder %s25, %s26
    %p37 = scmp.eq.s32.totalorder %s17, 0
    %p38 = por %p36, %p37
    %p39 = scmp.ne.s32.totalorder %s25, %s26
    %p40 = scmp.eq.s32.totalorder %s18, 1
    %p41 = por %p39, %p40
    %p43 = scmp.ne.s32.totalorder %s26, %s42
    %p44 = scmp.eq.s32.totalorder %s18, 0
    %p45 = por %p43, %p44
    %s46 = ssub.s32 %s12, %s19
    %p47 = scmp.eq.s32.totalorder %s46, 0
    %s49 = sadd.s32 %s48, 1
    %s50 = scalar_select %p47, %s48, %s49
    %p53 = pneg %p47
    %p54 = scmp.eq.s32.totalorder %s12, 1
    %p55 = por %p53, %p54
    %p56 = scmp.ne.s32.totalorder %s48, %s51
    %p57 = scmp.eq.s32.totalorder %s12, 0
    %p58 = por %p56, %p57
    %p59 = scmp.ne.s32.totalorder %s48, %s51
    %p60 = scmp.eq.s32.totalorder %s17, 1
    %p61 = por %p59, %p60
    %p62 = scmp.ne.s32.totalorder %s51, %s52
    %p63 = scmp.eq.s32.totalorder %s17, 0
    %p64 = por %p62, %p63
    %p65 = scmp.ne.s32.totalorder %s51, %s52
    %p66 = scmp.eq.s32.totalorder %s18, 1
    %p67 = por %p65, %p66
    %p69 = scmp.ne.s32.totalorder %s52, %s68
    %p70 = scmp.eq.s32.totalorder %s18, 0
    %p71 = por %p69, %p70
    %s73 = sadd.s32 %s72, 1
    %p76 = scmp.eq.s32.totalorder %s12, 1
    %p77 = scmp.ne.s32.totalorder %s72, %s74
    %p78 = scmp.eq.s32.totalorder %s12, 0
    %p79 = por %p77, %p78
    %p80 = scmp.ne.s32.totalorder %s72, %s74
    %p81 = scmp.eq.s32.totalorder %s17, 1
    %p82 = por %p80, %p81
    %p83 = scmp.ne.s32.totalorder %s74, %s75
    %p84 = scmp.eq.s32.totalorder %s17, 0
    %p85 = por %p83, %p84
    %p86 = scmp.ne.s32.totalorder %s74, %s75
    %p87 = scmp.eq.s32.totalorder %s18, 1
    %p88 = por %p86, %p87
    %p90 = scmp.ne.s32.totalorder %s75, %s89
    %p91 = scmp.eq.s32.totalorder %s18, 0
    %p92 = por %p90, %p91
    %s94 = sadd.s32 %s93, 1
    %p97 = scmp.eq.s32.totalorder %s12, 1
    %p98 = scmp.ne.s32.totalorder %s93, %s95
    %p99 = scmp.eq.s32.totalorder %s12, 0
    %p100 = por %p98, %p99
    %p101 = scmp.ne.s32.totalorder %s93, %s95
    %p102 = scmp.eq.s32.totalorder %s17, 1
    %p103 = por %p101, %p102
    %p104 = scmp.ne.s32.totalorder %s95, %s96
    %p105 = scmp.eq.s32.totalorder %s17, 0
    %p106 = por %p104, %p105
    %p107 = scmp.ne.s32.totalorder %s95, %s96
    %p108 = scmp.eq.s32.totalorder %s18, 1
    %p109 = por %p107, %p108
    %p111 = scmp.ne.s32.totalorder %s96, %s110
    %p112 = scmp.eq.s32.totalorder %s18, 0
    %p113 = por %p111, %p112
    %s115 = sadd.s32 %s114, 1
    %p118 = scmp.eq.s32.totalorder %s12, 1
    %p119 = scmp.ne.s32.totalorder %s114, %s116
    %p120 = scmp.eq.s32.totalorder %s12, 0
    %p121 = por %p119, %p120
    %p122 = scmp.ne.s32.totalorder %s114, %s116
    %p123 = scmp.eq.s32.totalorder %s17, 1
    %p124 = por %p122, %p123
    %p125 = scmp.ne.s32.totalorder %s116, %s117
    %p126 = scmp.eq.s32.totalorder %s17, 0
    %p127 = por %p125, %p126
    %p128 = scmp.ne.s32.totalorder %s116, %s117
    %p129 = scmp.eq.s32.totalorder %s18, 1
    %p130 = por %p128, %p129
    %p132 = scmp.ne.s32.totalorder %s117, %s131
    %p133 = scmp.eq.s32.totalorder %s18, 0
    %p134 = por %p132, %p133
    %s136 = sadd.s32 %s135, 1
    %p139 = scmp.eq.s32.totalorder %s12, 1
    %p140 = scmp.ne.s32.totalorder %s135, %s137
    %p141 = scmp.eq.s32.totalorder %s12, 0
    %p142 = por %p140, %p141
    %p143 = scmp.ne.s32.totalorder %s135, %s137
    %p144 = scmp.eq.s32.totalorder %s17, 1
    %p145 = por %p143, %p144
    %p146 = scmp.ne.s32.totalorder %s137, %s138
    %p147 = scmp.eq.s32.totalorder %s17, 0
    %p148 = por %p146, %p147
    %p149 = scmp.ne.s32.totalorder %s137, %s138
    %p150 = scmp.eq.s32.totalorder %s18, 1
    %p151 = por %p149, %p150
    %p153 = scmp.ne.s32.totalorder %s138, %s152
    %p154 = scmp.eq.s32.totalorder %s18, 0
    %p155 = por %p153, %p154
    %s156 = ssub.s32 %s12, %s19
    %p157 = scmp.eq.s32.totalorder %s156, 0
    %s159 = sadd.s32 %s158, 1
    %s160 = scalar_select %p157, %s158, %s159
    %p163 = pneg %p157
    %p164 = scmp.eq.s32.totalorder %s12, 1
    %p165 = por %p163, %p164
    %p166 = scmp.ne.s32.totalorder %s158, %s161
    %p167 = scmp.eq.s32.totalorder %s12, 0
    %p168 = por %p166, %p167
    %p169 = scmp.ne.s32.totalorder %s158, %s161
    %p170 = scmp.eq.s32.totalorder %s17, 1
    %p171 = por %p169, %p170
    %p172 = scmp.ne.s32.totalorder %s161, %s162
    %p173 = scmp.eq.s32.totalorder %s17, 0
    %p174 = por %p172, %p173
    %p175 = scmp.ne.s32.totalorder %s161, %s162
    %p176 = scmp.eq.s32.totalorder %s18, 1
    %p177 = por %p175, %p176
    %p179 = scmp.ne.s32.totalorder %s162, %s178
    %p180 = scmp.eq.s32.totalorder %s18, 0
    %p181 = por %p179, %p180
    %p182 = scmp.le.s32.totalorder 1, %s12
    %p183 = scmp.lt.s32.totalorder %s12, 3
    %p184 = pnand %p182, %p183
    %p185 = pneg %p184
    // Predicated region
    $region9: #{forward.12} parent=5 // pred_check
      _
    $region10: #{forward.12} parent=5 // pred_check_branch
      %187 = sbr.rel (%p184) target = $region12
    $region11: #{forward.12} parent=5 // pred_region
      %s188 = ssub.s32 %s12, 1
      // Predicated region
      $region13: #{forward.12} parent=11 // pred_check
        %p189 = pneg %p85
      $region14: #{forward.12} parent=11 // pred_check_branch
        %191 = sbr.rel (%p189) target = $region16
      $region15: #{forward.12} parent=11 // pred_region
        _
      $region16: #{forward.12} parent=11 // pred_fallthru
        _
      // Predicated region
      $region17: #{forward.12} parent=11 // pred_check
        %p192 = pneg %p106
      $region18: #{forward.12} parent=11 // pred_check_branch
        %194 = sbr.rel (%p192) target = $region20
      $region19: #{forward.12} parent=11 // pred_region
        _
      $region20: #{forward.12} parent=11 // pred_fallthru
        _
      // Predicated region
      $region21: #{forward.12} parent=11 // pred_check
        %p195 = pneg %p127
      $region22: #{forward.12} parent=11 // pred_check_branch
        %197 = sbr.rel (%p195) target = $region24
      $region23: #{forward.12} parent=11 // pred_region
        _
      $region24: #{forward.12} parent=11 // pred_fallthru
        _
      // Predicated region
      $region25: #{forward.12} parent=11 // pred_check
        %p198 = pneg %p148
      $region26: #{forward.12} parent=11 // pred_check_branch
        %200 = sbr.rel (%p198) target = $region28
      $region27: #{forward.12} parent=11 // pred_region
        _
      $region28: #{forward.12} parent=11 // pred_fallthru
        _
    $region12: #{forward.12} parent=5 // pred_fallthru
      _
    %p201 = scmp.lt.s32.totalorder %s12, 2
    // Predicated region
    $region29: #{forward.12} parent=5 // pred_check
      %p202 = pneg %p201
    $region30: #{forward.12} parent=5 // pred_check_branch
      %204 = sbr.rel (%p202) target = $region32
    $region31: #{forward.12} parent=5 // pred_region
      // Predicated region
      $region33: #{forward.12} parent=31 // pred_check
        %p205 = pneg %p32
      $region34: #{forward.12} parent=31 // pred_check_branch
        %207 = sbr.rel (%p205) target = $region36
      $region35: #{forward.12} parent=31 // pred_region
        %p208 = scmp.lt.s32.totalorder %s12, 1
        %s209 = scalar_select %p208, %s12, 1
        %s210 = smul.addr %s209, 40
        %s211 = smul.addr %s210, 4
        %s212 = scalar_lea.vmem %s0, %s211
      $region36: #{forward.12} parent=31 // pred_fallthru
        _
      // Predicated region
      $region37: #{forward.12} parent=31 // pred_check
        %p213 = pneg %p58
      $region38: #{forward.12} parent=31 // pred_check_branch
        %215 = sbr.rel (%p213) target = $region40
      $region39: #{forward.12} parent=31 // pred_region
        %p216 = scmp.lt.s32.totalorder %s12, 1
        %s217 = scalar_select %p216, %s12, 1
        %s218 = smul.addr %s217, 8
        %s219 = smul.addr %s218, 4
        %s220 = scalar_lea.vmem %s1, %s219
      $region40: #{forward.12} parent=31 // pred_fallthru
        _
    $region32: #{forward.12} parent=5 // pred_fallthru
      _
    %p221 = scmp.le.s32.totalorder 1, %s12
    %p222 = scmp.lt.s32.totalorder %s12, 3
    %p223 = pnand %p221, %p222
    %p224 = pneg %p223
    // Predicated region
    $region41: #{forward.12} parent=5 // pred_check
      _
    $region42: #{forward.12} parent=5 // pred_check_branch
      %226 = sbr.rel (%p223) target = $region44
    $region43: #{forward.12} parent=5 // pred_region
      %s227 = ssub.s32 %s12, 1
      %p228 = scmp.lt.s32.totalorder %s17, 1
      %s229 = scalar_select %p228, %s17, 1
      %s230 = smul.addr %s229, 40
      %s231 = smul.addr %s230, 4
      %s232 = scalar_lea.vmem %s0, %s231
      %p233 = pneg %p38
      %p234 = pneg %p35
      %p235 = scmp.lt.s32.totalorder %s17, 1
      %s236 = scalar_select %p235, %s17, 1
      %s237 = smul.addr %s236, 8
      %s238 = smul.addr %s237, 4
      %s239 = scalar_lea.vmem %s1, %s238
      %p240 = pneg %p64
      %p241 = pneg %p61
      %p242 = pneg %p85
      %p243 = pneg %p82
      %p244 = pneg %p106
      %p245 = pneg %p103
      %p246 = pneg %p127
      %p247 = pneg %p124
      %p248 = pneg %p148
      %p249 = pneg %p145
      %p250 = pneg %p174
      %p251 = pneg %p171
      %p252 = scmp.lt.s32.totalorder %s17, 1
      %s253 = scalar_select %p252, %s17, 1
      %s254 = smul.addr %s253, 16
      %s255 = smul.addr %s254, 4
      %s256 = scalar_lea.vmem %s6, %s255
      %p257 = scmp.lt.s32.totalorder %s17, 1
      %s258 = scalar_select %p257, %s17, 1
      %s259 = smul.addr %s258, 40
      %s260 = smul.addr %s259, 4
      %s261 = scalar_lea.vmem %s0, %s260
      %p262 = scmp.lt.s32.totalorder %s17, 1
      %s263 = scalar_select %p262, %s17, 1
      %s264 = smul.addr %s263, 8
      %s265 = smul.addr %s264, 4
      %s266 = scalar_lea.vmem %s1, %s265
      %p267 = scmp.lt.s32.totalorder %s17, 1
      %s268 = scalar_select %p267, %s17, 1
      %s269 = smul.addr %s268, 16
      %s270 = smul.addr %s269, 4
      %s271 = scalar_lea.vmem %s6, %s270
      %v272 = vld [vmem:[%s261] sm:$0xff]
      %v273 = vld [vmem:[%s261 + $0x8] sm:$0x11]
      %v274 = vld [vmem:[%s261 + $0x10] sm:$0xff]
      %v275 = vld [vmem:[%s261 + $0x18] sm:$0x11]
      %v276 = vld [vmem:[%s261 + $0x20] sm:$0xff]
      %v277 = vld [vmem:[%s261 + $0x28] sm:$0x11]
      %v278 = vld [vmem:[%s261 + $0x30] sm:$0xff]
      %v279 = vld [vmem:[%s261 + $0x38] sm:$0x11]
      %v280 = vld [vmem:[%s261 + $0x40] sm:$0xff]
      %v281 = vld [vmem:[%s261 + $0x48] sm:$0x11]
      %v282 = vld [vmem:[%s261 + $0x50] sm:$0xff]
      %v283 = vld [vmem:[%s261 + $0x58] sm:$0x11]
      %v284 = vld [vmem:[%s261 + $0x60] sm:$0xff]
      %v285 = vld [vmem:[%s261 + $0x68] sm:$0x11]
      %v286 = vld [vmem:[%s261 + $0x70] sm:$0xff]
      %v287 = vld [vmem:[%s261 + $0x78] sm:$0x11]
      %v288 = vld [vmem:[%s261 + $0x80] sm:$0xff]
      %v289 = vld [vmem:[%s261 + $0x88] sm:$0x11]
      %v290 = vunpack.c.l.bf16 %v272
      %v291 = vunpack.c.h.bf16 %v272
      %v292 = vunpack.c.l.bf16 %v273
      %v293 = vunpack.c.h.bf16 %v273
      %v294 = vunpack.c.l.bf16 %v274
      %v295 = vunpack.c.h.bf16 %v274
      %v296 = vunpack.c.l.bf16 %v275
      %v297 = vunpack.c.h.bf16 %v275
      %v298 = vunpack.c.l.bf16 %v276
      %v299 = vunpack.c.h.bf16 %v276
      %v300 = vunpack.c.l.bf16 %v277
      %v301 = vunpack.c.h.bf16 %v277
      %v302 = vunpack.c.l.bf16 %v278
      %v303 = vunpack.c.h.bf16 %v278
      %v304 = vunpack.c.l.bf16 %v279
      %v305 = vunpack.c.h.bf16 %v279
      %v306 = vunpack.c.l.bf16 %v280
      %v307 = vunpack.c.h.bf16 %v280
      %v308 = vunpack.c.l.bf16 %v281
      %v309 = vunpack.c.h.bf16 %v281
      %v310 = vunpack.c.l.bf16 %v282
      %v311 = vunpack.c.h.bf16 %v282
      %v312 = vunpack.c.l.bf16 %v283
      %v313 = vunpack.c.h.bf16 %v283
      %v314 = vunpack.c.l.bf16 %v284
      %v315 = vunpack.c.h.bf16 %v284
      %v316 = vunpack.c.l.bf16 %v285
      %v317 = vunpack.c.h.bf16 %v285
      %v318 = vunpack.c.l.bf16 %v286
      %v319 = vunpack.c.h.bf16 %v286
      %v320 = vunpack.c.l.bf16 %v287
      %v321 = vunpack.c.h.bf16 %v287
      %v322 = vunpack.c.l.bf16 %v288
      %v323 = vunpack.c.h.bf16 %v288
      %v324 = vunpack.c.l.bf16 %v289
      %v325 = vunpack.c.h.bf16 %v289
      %v326 = vld [vmem:[%s3] sm:$0x3]
      %v327 = vld [vmem:[%s5] sm:$0x3]
      %v328 = vadd.f32 %v326, %v327
      %v330 = vperm.slane %v328, 0
      %v331 = vperm.slane %v328, 1
      %v334 = vpack.c.bf16 %v294, %v290
      %v335 = vpack.c.bf16 %v295, %v291
      %v336 = vpack.c.bf16 %v302, %v298
      %v337 = vpack.c.bf16 %v303, %v299
      %v338 = vpack.c.bf16 %v310, %v306
      %v339 = vpack.c.bf16 %v311, %v307
      %v340 = vpack.c.bf16 %v318, %v314
      %v341 = vpack.c.bf16 %v319, %v315
      %v342 = vld [vmem:[%s2] sm:$0xff]
      %v343 = vld [vmem:[%s2 + $0x8] sm:$0xff]
      %v344 = vld [vmem:[%s2 + $0x10] sm:$0xff]
      %v345 = vld [vmem:[%s2 + $0x18] sm:$0xff]
      %v346 = vld [vmem:[%s2 + $0x20] sm:$0xff]
      %v347 = vld [vmem:[%s2 + $0x28] sm:$0xff]
      %v348 = vld [vmem:[%s2 + $0x30] sm:$0xff]
      %v349 = vld [vmem:[%s2 + $0x38] sm:$0xff]
      %v350 = vld [vmem:[%s2 + $0x40] sm:$0xff]
      %v351 = vld [vmem:[%s2 + $0x48] sm:$0xff]
      %v352 = vld [vmem:[%s2 + $0x50] sm:$0xff]
      %v353 = vld [vmem:[%s2 + $0x58] sm:$0xff]
      %v354 = vld [vmem:[%s2 + $0x60] sm:$0xff]
      %v355 = vld [vmem:[%s2 + $0x68] sm:$0xff]
      %v356 = vld [vmem:[%s2 + $0x70] sm:$0xff]
      %v357 = vld [vmem:[%s2 + $0x78] sm:$0xff]
      %v358 = vld [vmem:[%s2 + $0x80] sm:$0xff]
      %v359 = vld [vmem:[%s2 + $0x88] sm:$0xff]
      %v360 = vld [vmem:[%s2 + $0x90] sm:$0xff]
      %v361 = vld [vmem:[%s2 + $0x98] sm:$0xff]
      %v362 = vld [vmem:[%s2 + $0xa0] sm:$0xff]
      %v363 = vld [vmem:[%s2 + $0xa8] sm:$0xff]
      %v364 = vld [vmem:[%s2 + $0xb0] sm:$0xff]
      %v365 = vld [vmem:[%s2 + $0xb8] sm:$0xff]
      %v366 = vld [vmem:[%s2 + $0xc0] sm:$0xff]
      %v367 = vld [vmem:[%s2 + $0xc8] sm:$0xff]
      %v368 = vld [vmem:[%s2 + $0xd0] sm:$0xff]
      %v369 = vld [vmem:[%s2 + $0xd8] sm:$0xff]
      %v370 = vld [vmem:[%s2 + $0xe0] sm:$0xff]
      %v371 = vld [vmem:[%s2 + $0xe8] sm:$0xff]
      %v372 = vld [vmem:[%s2 + $0xf0] sm:$0xff]
      %v373 = vld [vmem:[%s2 + $0xf8] sm:$0xff]
      %v406 = vunpack.c.l.b16 %v342
      %v407 = vunpack.c.h.b16 %v342
      %v408 = vunpack.c.l.b16 %v343
      %v409 = vunpack.c.h.b16 %v343
      %v410 = vunpack.c.l.b16 %v344
      %v411 = vunpack.c.h.b16 %v344
      %v412 = vunpack.c.l.b16 %v345
      %v413 = vunpack.c.h.b16 %v345
      %v414 = vunpack.c.l.b16 %v346
      %v415 = vunpack.c.h.b16 %v346
      %v416 = vunpack.c.l.b16 %v347
      %v417 = vunpack.c.h.b16 %v347
      %v418 = vunpack.c.l.b16 %v348
      %v419 = vunpack.c.h.b16 %v348
      %v420 = vunpack.c.l.b16 %v349
      %v421 = vunpack.c.h.b16 %v349
      %v422 = vunpack.c.l.b16 %v350
      %v423 = vunpack.c.h.b16 %v350
      %v424 = vunpack.c.l.b16 %v351
      %v425 = vunpack.c.h.b16 %v351
      %v426 = vunpack.c.l.b16 %v352
      %v427 = vunpack.c.h.b16 %v352
      %v428 = vunpack.c.l.b16 %v353
      %v429 = vunpack.c.h.b16 %v353
      %v430 = vunpack.c.l.b16 %v354
      %v431 = vunpack.c.h.b16 %v354
      %v432 = vunpack.c.l.b16 %v355
      %v433 = vunpack.c.h.b16 %v355
      %v434 = vunpack.c.l.b16 %v356
      %v435 = vunpack.c.h.b16 %v356
      %v436 = vunpack.c.l.b16 %v357
      %v437 = vunpack.c.h.b16 %v357
      %v438 = vunpack.c.l.b16 %v358
      %v439 = vunpack.c.h.b16 %v358
      %v440 = vunpack.c.l.b16 %v359
      %v441 = vunpack.c.h.b16 %v359
      %v442 = vunpack.c.l.b16 %v360
      %v443 = vunpack.c.h.b16 %v360
      %v444 = vunpack.c.l.b16 %v361
      %v445 = vunpack.c.h.b16 %v361
      %v446 = vunpack.c.l.b16 %v362
      %v447 = vunpack.c.h.b16 %v362
      %v448 = vunpack.c.l.b16 %v363
      %v449 = vunpack.c.h.b16 %v363
      %v450 = vunpack.c.l.b16 %v364
      %v451 = vunpack.c.h.b16 %v364
      %v452 = vunpack.c.l.b16 %v365
      %v453 = vunpack.c.h.b16 %v365
      %v454 = vunpack.c.l.b16 %v366
      %v455 = vunpack.c.h.b16 %v366
      %v456 = vunpack.c.l.b16 %v367
      %v457 = vunpack.c.h.b16 %v367
      %v458 = vunpack.c.l.b16 %v368
      %v459 = vunpack.c.h.b16 %v368
      %v460 = vunpack.c.l.b16 %v369
      %v461 = vunpack.c.h.b16 %v369
      %v462 = vunpack.c.l.b16 %v370
      %v463 = vunpack.c.h.b16 %v370
      %v464 = vunpack.c.l.b16 %v371
      %v465 = vunpack.c.h.b16 %v371
      %v466 = vunpack.c.l.b16 %v372
      %v467 = vunpack.c.h.b16 %v372
      %v468 = vunpack.c.l.b16 %v373
      %v469 = vunpack.c.h.b16 %v373
      %v470 = vpack.c.b16 %v408, %v406
      %v471 = vpack.c.b16 %v409, %v407
      %v472 = vpack.c.b16 %v412, %v410
      %v473 = vpack.c.b16 %v413, %v411
      %v474 = vpack.c.b16 %v416, %v414
      %v475 = vpack.c.b16 %v417, %v415
      %v476 = vpack.c.b16 %v420, %v418
      %v477 = vpack.c.b16 %v421, %v419
      %v478 = vpack.c.b16 %v424, %v422
      %v479 = vpack.c.b16 %v425, %v423
      %v480 = vpack.c.b16 %v428, %v426
      %v481 = vpack.c.b16 %v429, %v427
      %v482 = vpack.c.b16 %v432, %v430
      %v483 = vpack.c.b16 %v433, %v431
      %v484 = vpack.c.b16 %v436, %v434
      %v485 = vpack.c.b16 %v437, %v435
      %v486 = vpack.c.b16 %v440, %v438
      %v487 = vpack.c.b16 %v441, %v439
      %v488 = vpack.c.b16 %v444, %v442
      %v489 = vpack.c.b16 %v445, %v443
      %v490 = vpack.c.b16 %v448, %v446
      %v491 = vpack.c.b16 %v449, %v447
      %v492 = vpack.c.b16 %v452, %v450
      %v493 = vpack.c.b16 %v453, %v451
      %v494 = vpack.c.b16 %v456, %v454
      %v495 = vpack.c.b16 %v457, %v455
      %v496 = vpack.c.b16 %v460, %v458
      %v497 = vpack.c.b16 %v461, %v459
      %v498 = vpack.c.b16 %v464, %v462
      %v499 = vpack.c.b16 %v465, %v463
      %v500 = vpack.c.b16 %v468, %v466
      %v501 = vpack.c.b16 %v469, %v467
      %534 = vmatpush.bf16.msra.mxu0 %v484
      %535 = vmatpush.bf16.msra.mxu0 %v482
      %536 = vmatpush.bf16.msra.mxu0 %v480
      %537 = vmatpush.bf16.msra.mxu0 %v478
      %538 = vmatpush.bf16.msra.mxu0 %v476
      %539 = vmatpush.bf16.msra.mxu0 %v474
      %540 = vmatpush.bf16.msra.mxu0 %v472
      %541 = vmatpush.bf16.msra.mxu0 %v470
      %542 = vmatmul.bf16.gmra.mxu0 %v334
      %v543 = vpop.f32.mrf.mxu0
      %v544 = vadd.f32 0.0, %v543
      %v545 = vpop.f32.mrf.mxu0
      %v546 = vadd.f32 0.0, %v545
      %547 = vmatmul.bf16.gmra.mxu0 %v336
      %v548 = vpop.f32.mrf.mxu0
      %v549 = vadd.f32 0.0, %v548
      %v550 = vpop.f32.mrf.mxu0
      %v551 = vadd.f32 0.0, %v550
      %552 = vmatmul.bf16.gmra.mxu0 %v338
      %v553 = vpop.f32.mrf.mxu0
      %v554 = vadd.f32 0.0, %v553
      %v555 = vpop.f32.mrf.mxu0
      %v556 = vadd.f32 0.0, %v555
      %557 = vmatmul.bf16.gmra.mxu0 %v340
      %v558 = vpop.f32.mrf.mxu0
      %v559 = vadd.f32 0.0, %v558
      %v560 = vpop.f32.mrf.mxu0
      %v561 = vadd.f32 0.0, %v560
      %562 = vdwg.mxu0
      %563 = vmatpush.bf16.msra.mxu0 %v500
      %564 = vmatpush.bf16.msra.mxu0 %v498
      %565 = vmatpush.bf16.msra.mxu0 %v496
      %566 = vmatpush.bf16.msra.mxu0 %v494
      %567 = vmatpush.bf16.msra.mxu0 %v492
      %568 = vmatpush.bf16.msra.mxu0 %v490
      %569 = vmatpush.bf16.msra.mxu0 %v488
      %570 = vmatpush.bf16.msra.mxu0 %v486
      %571 = vmatmul.bf16.gmra.mxu0 %v335
      %v572 = vpop.f32.mrf.mxu0
      %v573 = vadd.f32 %v544, %v572
      %v574 = vpop.f32.mrf.mxu0
      %v575 = vadd.f32 %v546, %v574
      %576 = vmatmul.bf16.gmra.mxu0 %v337
      %v577 = vpop.f32.mrf.mxu0
      %v578 = vadd.f32 %v549, %v577
      %v579 = vpop.f32.mrf.mxu0
      %v580 = vadd.f32 %v551, %v579
      %581 = vmatmul.bf16.gmra.mxu0 %v339
      %v582 = vpop.f32.mrf.mxu0
      %v583 = vadd.f32 %v554, %v582
      %v584 = vpop.f32.mrf.mxu0
      %v585 = vadd.f32 %v556, %v584
      %586 = vmatmul.bf16.gmra.mxu0 %v341
      %v587 = vpop.f32.mrf.mxu0
      %v588 = vadd.f32 %v559, %v587
      %v589 = vpop.f32.mrf.mxu0
      %v590 = vadd.f32 %v561, %v589
      %591 = vdwg.mxu0
      %592 = vmatpush.bf16.msra.mxu0 %v485
      %593 = vmatpush.bf16.msra.mxu0 %v483
      %594 = vmatpush.bf16.msra.mxu0 %v481
      %595 = vmatpush.bf16.msra.mxu0 %v479
      %596 = vmatpush.bf16.msra.mxu0 %v477
      %597 = vmatpush.bf16.msra.mxu0 %v475
      %598 = vmatpush.bf16.msra.mxu0 %v473
      %599 = vmatpush.bf16.msra.mxu0 %v471
      %600 = vmatmul.bf16.gmra.mxu0 %v334
      %v601 = vpop.f32.mrf.mxu0
      %v602 = vadd.f32 0.0, %v601
      %v603 = vpop.f32.mrf.mxu0
      %v604 = vadd.f32 0.0, %v603
      %605 = vmatmul.bf16.gmra.mxu0 %v336
      %v606 = vpop.f32.mrf.mxu0
      %v607 = vadd.f32 0.0, %v606
      %v608 = vpop.f32.mrf.mxu0
      %v609 = vadd.f32 0.0, %v608
      %610 = vmatmul.bf16.gmra.mxu0 %v338
      %v611 = vpop.f32.mrf.mxu0
      %v612 = vadd.f32 0.0, %v611
      %v613 = vpop.f32.mrf.mxu0
      %v614 = vadd.f32 0.0, %v613
      %615 = vmatmul.bf16.gmra.mxu0 %v340
      %v616 = vpop.f32.mrf.mxu0
      %v617 = vadd.f32 0.0, %v616
      %v618 = vpop.f32.mrf.mxu0
      %v619 = vadd.f32 0.0, %v618
      %620 = vdwg.mxu0
      %621 = vmatpush.bf16.msra.mxu0 %v501
      %622 = vmatpush.bf16.msra.mxu0 %v499
      %623 = vmatpush.bf16.msra.mxu0 %v497
      %624 = vmatpush.bf16.msra.mxu0 %v495
      %625 = vmatpush.bf16.msra.mxu0 %v493
      %626 = vmatpush.bf16.msra.mxu0 %v491
      %627 = vmatpush.bf16.msra.mxu0 %v489
      %628 = vmatpush.bf16.msra.mxu0 %v487
      %629 = vmatmul.bf16.gmra.mxu0 %v335
      %v630 = vpop.f32.mrf.mxu0
      %v631 = vadd.f32 %v602, %v630
      %v632 = vpop.f32.mrf.mxu0
      %v633 = vadd.f32 %v604, %v632
      %634 = vmatmul.bf16.gmra.mxu0 %v337
      %v635 = vpop.f32.mrf.mxu0
      %v636 = vadd.f32 %v607, %v635
      %v637 = vpop.f32.mrf.mxu0
      %v638 = vadd.f32 %v609, %v637
      %639 = vmatmul.bf16.gmra.mxu0 %v339
      %v640 = vpop.f32.mrf.mxu0
      %v641 = vadd.f32 %v612, %v640
      %v642 = vpop.f32.mrf.mxu0
      %v643 = vadd.f32 %v614, %v642
      %644 = vmatmul.bf16.gmra.mxu0 %v341
      %v645 = vpop.f32.mrf.mxu0
      %v646 = vadd.f32 %v617, %v645
      %v647 = vpop.f32.mrf.mxu0
      %v648 = vadd.f32 %v619, %v647
      %649 = vdwg.mxu0
      %v650 = vadd.f32 %v330, %v573
      %v651 = vadd.f32 %v331, %v631
      %v652 = vadd.f32 %v330, %v575
      %v653 = vadd.f32 %v331, %v633
      %v654 = vadd.f32 %v330, %v578
      %v655 = vadd.f32 %v331, %v636
      %v656 = vadd.f32 %v330, %v580
      %v657 = vadd.f32 %v331, %v638
      %v658 = vadd.f32 %v330, %v583
      %v659 = vadd.f32 %v331, %v641
      %v660 = vadd.f32 %v330, %v585
      %v661 = vadd.f32 %v331, %v643
      %v662 = vadd.f32 %v330, %v588
      %v663 = vadd.f32 %v331, %v646
      %v664 = vadd.f32 %v330, %v590
      %v665 = vadd.f32 %v331, %v648
      %vm698 = vcmask 1046528
      %v699 = vrot.slane %v290, 1
      %v700 = vrot.slane %v292, 1
      %v701 = vsel %vm698, %v699, %v700
      %v702 = vrot.slane %v291, 1
      %v703 = vrot.slane %v293, 1
      %v704 = vsel %vm698, %v702, %v703
      %v705 = vrot.slane %v294, 1
      %v706 = vrot.slane %v296, 1
      %v707 = vsel %vm698, %v705, %v706
      %v708 = vrot.slane %v295, 1
      %v709 = vrot.slane %v297, 1
      %v710 = vsel %vm698, %v708, %v709
      %v711 = vrot.slane %v298, 1
      %v712 = vrot.slane %v300, 1
      %v713 = vsel %vm698, %v711, %v712
      %v714 = vrot.slane %v299, 1
      %v715 = vrot.slane %v301, 1
      %v716 = vsel %vm698, %v714, %v715
      %v717 = vrot.slane %v302, 1
      %v718 = vrot.slane %v304, 1
      %v719 = vsel %vm698, %v717, %v718
      %v720 = vrot.slane %v303, 1
      %v721 = vrot.slane %v305, 1
      %v722 = vsel %vm698, %v720, %v721
      %v723 = vrot.slane %v306, 1
      %v724 = vrot.slane %v308, 1
      %v725 = vsel %vm698, %v723, %v724
      %v726 = vrot.slane %v307, 1
      %v727 = vrot.slane %v309, 1
      %v728 = vsel %vm698, %v726, %v727
      %v729 = vrot.slane %v310, 1
      %v730 = vrot.slane %v312, 1
      %v731 = vsel %vm698, %v729, %v730
      %v732 = vrot.slane %v311, 1
      %v733 = vrot.slane %v313, 1
      %v734 = vsel %vm698, %v732, %v733
      %v735 = vrot.slane %v314, 1
      %v736 = vrot.slane %v316, 1
      %v737 = vsel %vm698, %v735, %v736
      %v738 = vrot.slane %v315, 1
      %v739 = vrot.slane %v317, 1
      %v740 = vsel %vm698, %v738, %v739
      %v741 = vrot.slane %v318, 1
      %v742 = vrot.slane %v320, 1
      %v743 = vsel %vm698, %v741, %v742
      %v744 = vrot.slane %v319, 1
      %v745 = vrot.slane %v321, 1
      %v746 = vsel %vm698, %v744, %v745
      %v763 = vpack.c.bf16 %v707, %v701
      %v764 = vpack.c.bf16 %v710, %v704
      %v765 = vpack.c.bf16 %v719, %v713
      %v766 = vpack.c.bf16 %v722, %v716
      %v767 = vpack.c.bf16 %v731, %v725
      %v768 = vpack.c.bf16 %v734, %v728
      %v769 = vpack.c.bf16 %v743, %v737
      %v770 = vpack.c.bf16 %v746, %v740
      %s771 = scalar_lea.vmem %s2, 256
      %v772 = vld [vmem:[%s771] sm:$0xff]
      %v773 = vld [vmem:[%s771 + $0x8] sm:$0xff]
      %v774 = vld [vmem:[%s771 + $0x10] sm:$0xff]
      %v775 = vld [vmem:[%s771 + $0x18] sm:$0xff]
      %v776 = vld [vmem:[%s771 + $0x20] sm:$0xff]
      %v777 = vld [vmem:[%s771 + $0x28] sm:$0xff]
      %v778 = vld [vmem:[%s771 + $0x30] sm:$0xff]
      %v779 = vld [vmem:[%s771 + $0x38] sm:$0xff]
      %v780 = vld [vmem:[%s771 + $0x40] sm:$0xff]
      %v781 = vld [vmem:[%s771 + $0x48] sm:$0xff]
      %v782 = vld [vmem:[%s771 + $0x50] sm:$0xff]
      %v783 = vld [vmem:[%s771 + $0x58] sm:$0xff]
      %v784 = vld [vmem:[%s771 + $0x60] sm:$0xff]
      %v785 = vld [vmem:[%s771 + $0x68] sm:$0xff]
      %v786 = vld [vmem:[%s771 + $0x70] sm:$0xff]
      %v787 = vld [vmem:[%s771 + $0x78] sm:$0xff]
      %v788 = vld [vmem:[%s771 + $0x80] sm:$0xff]
      %v789 = vld [vmem:[%s771 + $0x88] sm:$0xff]
      %v790 = vld [vmem:[%s771 + $0x90] sm:$0xff]
      %v791 = vld [vmem:[%s771 + $0x98] sm:$0xff]
      %v792 = vld [vmem:[%s771 + $0xa0] sm:$0xff]
      %v793 = vld [vmem:[%s771 + $0xa8] sm:$0xff]
      %v794 = vld [vmem:[%s771 + $0xb0] sm:$0xff]
      %v795 = vld [vmem:[%s771 + $0xb8] sm:$0xff]
      %v796 = vld [vmem:[%s771 + $0xc0] sm:$0xff]
      %v797 = vld [vmem:[%s771 + $0xc8] sm:$0xff]
      %v798 = vld [vmem:[%s771 + $0xd0] sm:$0xff]
      %v799 = vld [vmem:[%s771 + $0xd8] sm:$0xff]
      %v800 = vld [vmem:[%s771 + $0xe0] sm:$0xff]
      %v801 = vld [vmem:[%s771 + $0xe8] sm:$0xff]
      %v802 = vld [vmem:[%s771 + $0xf0] sm:$0xff]
      %v803 = vld [vmem:[%s771 + $0xf8] sm:$0xff]
      %v836 = vunpack.c.l.b16 %v772
      %v837 = vunpack.c.h.b16 %v772
      %v838 = vunpack.c.l.b16 %v773
      %v839 = vunpack.c.h.b16 %v773
      %v840 = vunpack.c.l.b16 %v774
      %v841 = vunpack.c.h.b16 %v774
      %v842 = vunpack.c.l.b16 %v775
      %v843 = vunpack.c.h.b16 %v775
      %v844 = vunpack.c.l.b16 %v776
      %v845 = vunpack.c.h.b16 %v776
      %v846 = vunpack.c.l.b16 %v777
      %v847 = vunpack.c.h.b16 %v777
      %v848 = vunpack.c.l.b16 %v778
      %v849 = vunpack.c.h.b16 %v778
      %v850 = vunpack.c.l.b16 %v779
      %v851 = vunpack.c.h.b16 %v779
      %v852 = vunpack.c.l.b16 %v780
      %v853 = vunpack.c.h.b16 %v780
      %v854 = vunpack.c.l.b16 %v781
      %v855 = vunpack.c.h.b16 %v781
      %v856 = vunpack.c.l.b16 %v782
      %v857 = vunpack.c.h.b16 %v782
      %v858 = vunpack.c.l.b16 %v783
      %v859 = vunpack.c.h.b16 %v783
      %v860 = vunpack.c.l.b16 %v784
      %v861 = vunpack.c.h.b16 %v784
      %v862 = vunpack.c.l.b16 %v785
      %v863 = vunpack.c.h.b16 %v785
      %v864 = vunpack.c.l.b16 %v786
      %v865 = vunpack.c.h.b16 %v786
      %v866 = vunpack.c.l.b16 %v787
      %v867 = vunpack.c.h.b16 %v787
      %v868 = vunpack.c.l.b16 %v788
      %v869 = vunpack.c.h.b16 %v788
      %v870 = vunpack.c.l.b16 %v789
      %v871 = vunpack.c.h.b16 %v789
      %v872 = vunpack.c.l.b16 %v790
      %v873 = vunpack.c.h.b16 %v790
      %v874 = vunpack.c.l.b16 %v791
      %v875 = vunpack.c.h.b16 %v791
      %v876 = vunpack.c.l.b16 %v792
      %v877 = vunpack.c.h.b16 %v792
      %v878 = vunpack.c.l.b16 %v793
      %v879 = vunpack.c.h.b16 %v793
      %v880 = vunpack.c.l.b16 %v794
      %v881 = vunpack.c.h.b16 %v794
      %v882 = vunpack.c.l.b16 %v795
      %v883 = vunpack.c.h.b16 %v795
      %v884 = vunpack.c.l.b16 %v796
      %v885 = vunpack.c.h.b16 %v796
      %v886 = vunpack.c.l.b16 %v797
      %v887 = vunpack.c.h.b16 %v797
      %v888 = vunpack.c.l.b16 %v798
      %v889 = vunpack.c.h.b16 %v798
      %v890 = vunpack.c.l.b16 %v799
      %v891 = vunpack.c.h.b16 %v799
      %v892 = vunpack.c.l.b16 %v800
      %v893 = vunpack.c.h.b16 %v800
      %v894 = vunpack.c.l.b16 %v801
      %v895 = vunpack.c.h.b16 %v801
      %v896 = vunpack.c.l.b16 %v802
      %v897 = vunpack.c.h.b16 %v802
      %v898 = vunpack.c.l.b16 %v803
      %v899 = vunpack.c.h.b16 %v803
      %v900 = vpack.c.b16 %v838, %v836
      %v901 = vpack.c.b16 %v839, %v837
      %v902 = vpack.c.b16 %v842, %v840
      %v903 = vpack.c.b16 %v843, %v841
      %v904 = vpack.c.b16 %v846, %v844
      %v905 = vpack.c.b16 %v847, %v845
      %v906 = vpack.c.b16 %v850, %v848
      %v907 = vpack.c.b16 %v851, %v849
      %v908 = vpack.c.b16 %v854, %v852
      %v909 = vpack.c.b16 %v855, %v853
      %v910 = vpack.c.b16 %v858, %v856
      %v911 = vpack.c.b16 %v859, %v857
      %v912 = vpack.c.b16 %v862, %v860
      %v913 = vpack.c.b16 %v863, %v861
      %v914 = vpack.c.b16 %v866, %v864
      %v915 = vpack.c.b16 %v867, %v865
      %v916 = vpack.c.b16 %v870, %v868
      %v917 = vpack.c.b16 %v871, %v869
      %v918 = vpack.c.b16 %v874, %v872
      %v919 = vpack.c.b16 %v875, %v873
      %v920 = vpack.c.b16 %v878, %v876
      %v921 = vpack.c.b16 %v879, %v877
      %v922 = vpack.c.b16 %v882, %v880
      %v923 = vpack.c.b16 %v883, %v881
      %v924 = vpack.c.b16 %v886, %v884
      %v925 = vpack.c.b16 %v887, %v885
      %v926 = vpack.c.b16 %v890, %v888
      %v927 = vpack.c.b16 %v891, %v889
      %v928 = vpack.c.b16 %v894, %v892
      %v929 = vpack.c.b16 %v895, %v893
      %v930 = vpack.c.b16 %v898, %v896
      %v931 = vpack.c.b16 %v899, %v897
      %964 = vmatpush.bf16.msra.mxu0 %v914
      %965 = vmatpush.bf16.msra.mxu0 %v912
      %966 = vmatpush.bf16.msra.mxu0 %v910
      %967 = vmatpush.bf16.msra.mxu0 %v908
      %968 = vmatpush.bf16.msra.mxu0 %v906
      %969 = vmatpush.bf16.msra.mxu0 %v904
      %970 = vmatpush.bf16.msra.mxu0 %v902
      %971 = vmatpush.bf16.msra.mxu0 %v900
      %972 = vmatmul.bf16.gmra.mxu0 %v763
      %v973 = vpop.f32.mrf.mxu0
      %v974 = vadd.f32 0.0, %v973
      %v975 = vpop.f32.mrf.mxu0
      %v976 = vadd.f32 0.0, %v975
      %977 = vmatmul.bf16.gmra.mxu0 %v765
      %v978 = vpop.f32.mrf.mxu0
      %v979 = vadd.f32 0.0, %v978
      %v980 = vpop.f32.mrf.mxu0
      %v981 = vadd.f32 0.0, %v980
      %982 = vmatmul.bf16.gmra.mxu0 %v767
      %v983 = vpop.f32.mrf.mxu0
      %v984 = vadd.f32 0.0, %v983
      %v985 = vpop.f32.mrf.mxu0
      %v986 = vadd.f32 0.0, %v985
      %987 = vmatmul.bf16.gmra.mxu0 %v769
      %v988 = vpop.f32.mrf.mxu0
      %v989 = vadd.f32 0.0, %v988
      %v990 = vpop.f32.mrf.mxu0
      %v991 = vadd.f32 0.0, %v990
      %992 = vdwg.mxu0
      %993 = vmatpush.bf16.msra.mxu0 %v930
      %994 = vmatpush.bf16.msra.mxu0 %v928
      %995 = vmatpush.bf16.msra.mxu0 %v926
      %996 = vmatpush.bf16.msra.mxu0 %v924
      %997 = vmatpush.bf16.msra.mxu0 %v922
      %998 = vmatpush.bf16.msra.mxu0 %v920
      %999 = vmatpush.bf16.msra.mxu0 %v918
      %1000 = vmatpush.bf16.msra.mxu0 %v916
      %1001 = vmatmul.bf16.gmra.mxu0 %v764
      %v1002 = vpop.f32.mrf.mxu0
      %v1003 = vadd.f32 %v974, %v1002
      %v1004 = vpop.f32.mrf.mxu0
      %v1005 = vadd.f32 %v976, %v1004
      %1006 = vmatmul.bf16.gmra.mxu0 %v766
      %v1007 = vpop.f32.mrf.mxu0
      %v1008 = vadd.f32 %v979, %v1007
      %v1009 = vpop.f32.mrf.mxu0
      %v1010 = vadd.f32 %v981, %v1009
      %1011 = vmatmul.bf16.gmra.mxu0 %v768
      %v1012 = vpop.f32.mrf.mxu0
      %v1013 = vadd.f32 %v984, %v1012
      %v1014 = vpop.f32.mrf.mxu0
      %v1015 = vadd.f32 %v986, %v1014
      %1016 = vmatmul.bf16.gmra.mxu0 %v770
      %v1017 = vpop.f32.mrf.mxu0
      %v1018 = vadd.f32 %v989, %v1017
      %v1019 = vpop.f32.mrf.mxu0
      %v1020 = vadd.f32 %v991, %v1019
      %1021 = vdwg.mxu0
      %1022 = vmatpush.bf16.msra.mxu0 %v915
      %1023 = vmatpush.bf16.msra.mxu0 %v913
      %1024 = vmatpush.bf16.msra.mxu0 %v911
      %1025 = vmatpush.bf16.msra.mxu0 %v909
      %1026 = vmatpush.bf16.msra.mxu0 %v907
      %1027 = vmatpush.bf16.msra.mxu0 %v905
      %1028 = vmatpush.bf16.msra.mxu0 %v903
      %1029 = vmatpush.bf16.msra.mxu0 %v901
      %1030 = vmatmul.bf16.gmra.mxu0 %v763
      %v1031 = vpop.f32.mrf.mxu0
      %v1032 = vadd.f32 0.0, %v1031
      %v1033 = vpop.f32.mrf.mxu0
      %v1034 = vadd.f32 0.0, %v1033
      %1035 = vmatmul.bf16.gmra.mxu0 %v765
      %v1036 = vpop.f32.mrf.mxu0
      %v1037 = vadd.f32 0.0, %v1036
      %v1038 = vpop.f32.mrf.mxu0
      %v1039 = vadd.f32 0.0, %v1038
      %1040 = vmatmul.bf16.gmra.mxu0 %v767
      %v1041 = vpop.f32.mrf.mxu0
      %v1042 = vadd.f32 0.0, %v1041
      %v1043 = vpop.f32.mrf.mxu0
      %v1044 = vadd.f32 0.0, %v1043
      %1045 = vmatmul.bf16.gmra.mxu0 %v769
      %v1046 = vpop.f32.mrf.mxu0
      %v1047 = vadd.f32 0.0, %v1046
      %v1048 = vpop.f32.mrf.mxu0
      %v1049 = vadd.f32 0.0, %v1048
      %1050 = vdwg.mxu0
      %1051 = vmatpush.bf16.msra.mxu0 %v931
      %1052 = vmatpush.bf16.msra.mxu0 %v929
      %1053 = vmatpush.bf16.msra.mxu0 %v927
      %1054 = vmatpush.bf16.msra.mxu0 %v925
      %1055 = vmatpush.bf16.msra.mxu0 %v923
      %1056 = vmatpush.bf16.msra.mxu0 %v921
      %1057 = vmatpush.bf16.msra.mxu0 %v919
      %1058 = vmatpush.bf16.msra.mxu0 %v917
      %1059 = vmatmul.bf16.gmra.mxu0 %v764
      %v1060 = vpop.f32.mrf.mxu0
      %v1061 = vadd.f32 %v1032, %v1060
      %v1062 = vpop.f32.mrf.mxu0
      %v1063 = vadd.f32 %v1034, %v1062
      %1064 = vmatmul.bf16.gmra.mxu0 %v766
      %v1065 = vpop.f32.mrf.mxu0
      %v1066 = vadd.f32 %v1037, %v1065
      %v1067 = vpop.f32.mrf.mxu0
      %v1068 = vadd.f32 %v1039, %v1067
      %1069 = vmatmul.bf16.gmra.mxu0 %v768
      %v1070 = vpop.f32.mrf.mxu0
      %v1071 = vadd.f32 %v1042, %v1070
      %v1072 = vpop.f32.mrf.mxu0
      %v1073 = vadd.f32 %v1044, %v1072
      %1074 = vmatmul.bf16.gmra.mxu0 %v770
      %v1075 = vpop.f32.mrf.mxu0
      %v1076 = vadd.f32 %v1047, %v1075
      %v1077 = vpop.f32.mrf.mxu0
      %v1078 = vadd.f32 %v1049, %v1077
      %1079 = vdwg.mxu0
      %v1080 = vadd.f32 %v650, %v1003
      %v1081 = vadd.f32 %v651, %v1061
      %v1082 = vadd.f32 %v652, %v1005
      %v1083 = vadd.f32 %v653, %v1063
      %v1084 = vadd.f32 %v654, %v1008
      %v1085 = vadd.f32 %v655, %v1066
      %v1086 = vadd.f32 %v656, %v1010
      %v1087 = vadd.f32 %v657, %v1068
      %v1088 = vadd.f32 %v658, %v1013
      %v1089 = vadd.f32 %v659, %v1071
      %v1090 = vadd.f32 %v660, %v1015
      %v1091 = vadd.f32 %v661, %v1073
      %v1092 = vadd.f32 %v662, %v1018
      %v1093 = vadd.f32 %v663, %v1076
      %v1094 = vadd.f32 %v664, %v1020
      %v1095 = vadd.f32 %v665, %v1078
      %vm1096 = vcmask 1045504
      %v1097 = vrot.slane %v290, 2
      %v1098 = vrot.slane %v292, 2
      %v1099 = vsel %vm1096, %v1097, %v1098
      %v1100 = vrot.slane %v291, 2
      %v1101 = vrot.slane %v293, 2
      %v1102 = vsel %vm1096, %v1100, %v1101
      %v1103 = vrot.slane %v294, 2
      %v1104 = vrot.slane %v296, 2
      %v1105 = vsel %vm1096, %v1103, %v1104
      %v1106 = vrot.slane %v295, 2
      %v1107 = vrot.slane %v297, 2
      %v1108 = vsel %vm1096, %v1106, %v1107
      %v1109 = vrot.slane %v298, 2
      %v1110 = vrot.slane %v300, 2
      %v1111 = vsel %vm1096, %v1109, %v1110
      %v1112 = vrot.slane %v299, 2
      %v1113 = vrot.slane %v301, 2
      %v1114 = vsel %vm1096, %v1112, %v1113
      %v1115 = vrot.slane %v302, 2
      %v1116 = vrot.slane %v304, 2
      %v1117 = vsel %vm1096, %v1115, %v1116
      %v1118 = vrot.slane %v303, 2
      %v1119 = vrot.slane %v305, 2
      %v1120 = vsel %vm1096, %v1118, %v1119
      %v1121 = vrot.slane %v306, 2
      %v1122 = vrot.slane %v308, 2
      %v1123 = vsel %vm1096, %v1121, %v1122
      %v1124 = vrot.slane %v307, 2
      %v1125 = vrot.slane %v309, 2
      %v1126 = vsel %vm1096, %v1124, %v1125
      %v1127 = vrot.slane %v310, 2
      %v1128 = vrot.slane %v312, 2
      %v1129 = vsel %vm1096, %v1127, %v1128
      %v1130 = vrot.slane %v311, 2
      %v1131 = vrot.slane %v313, 2
      %v1132 = vsel %vm1096, %v1130, %v1131
      %v1133 = vrot.slane %v314, 2
      %v1134 = vrot.slane %v316, 2
      %v1135 = vsel %vm1096, %v1133, %v1134
      %v1136 = vrot.slane %v315, 2
      %v1137 = vrot.slane %v317, 2
      %v1138 = vsel %vm1096, %v1136, %v1137
      %v1139 = vrot.slane %v318, 2
      %v1140 = vrot.slane %v320, 2
      %v1141 = vsel %vm1096, %v1139, %v1140
      %v1142 = vrot.slane %v319, 2
      %v1143 = vrot.slane %v321, 2
      %v1144 = vsel %vm1096, %v1142, %v1143
      %v1161 = vpack.c.bf16 %v1105, %v1099
      %v1162 = vpack.c.bf16 %v1108, %v1102
      %v1163 = vpack.c.bf16 %v1117, %v1111
      %v1164 = vpack.c.bf16 %v1120, %v1114
      %v1165 = vpack.c.bf16 %v1129, %v1123
      %v1166 = vpack.c.bf16 %v1132, %v1126
      %v1167 = vpack.c.bf16 %v1141, %v1135
      %v1168 = vpack.c.bf16 %v1144, %v1138
      %s1169 = scalar_lea.vmem %s2, 512
      %v1170 = vld [vmem:[%s1169] sm:$0xff]
      %v1171 = vld [vmem:[%s1169 + $0x8] sm:$0xff]
      %v1172 = vld [vmem:[%s1169 + $0x10] sm:$0xff]
      %v1173 = vld [vmem:[%s1169 + $0x18] sm:$0xff]
      %v1174 = vld [vmem:[%s1169 + $0x20] sm:$0xff]
      %v1175 = vld [vmem:[%s1169 + $0x28] sm:$0xff]
      %v1176 = vld [vmem:[%s1169 + $0x30] sm:$0xff]
      %v1177 = vld [vmem:[%s1169 + $0x38] sm:$0xff]
      %v1178 = vld [vmem:[%s1169 + $0x40] sm:$0xff]
      %v1179 = vld [vmem:[%s1169 + $0x48] sm:$0xff]
      %v1180 = vld [vmem:[%s1169 + $0x50] sm:$0xff]
      %v1181 = vld [vmem:[%s1169 + $0x58] sm:$0xff]
      %v1182 = vld [vmem:[%s1169 + $0x60] sm:$0xff]
      %v1183 = vld [vmem:[%s1169 + $0x68] sm:$0xff]
      %v1184 = vld [vmem:[%s1169 + $0x70] sm:$0xff]
      %v1185 = vld [vmem:[%s1169 + $0x78] sm:$0xff]
      %v1186 = vld [vmem:[%s1169 + $0x80] sm:$0xff]
      %v1187 = vld [vmem:[%s1169 + $0x88] sm:$0xff]
      %v1188 = vld [vmem:[%s1169 + $0x90] sm:$0xff]
      %v1189 = vld [vmem:[%s1169 + $0x98] sm:$0xff]
      %v1190 = vld [vmem:[%s1169 + $0xa0] sm:$0xff]
      %v1191 = vld [vmem:[%s1169 + $0xa8] sm:$0xff]
      %v1192 = vld [vmem:[%s1169 + $0xb0] sm:$0xff]
      %v1193 = vld [vmem:[%s1169 + $0xb8] sm:$0xff]
      %v1194 = vld [vmem:[%s1169 + $0xc0] sm:$0xff]
      %v1195 = vld [vmem:[%s1169 + $0xc8] sm:$0xff]
      %v1196 = vld [vmem:[%s1169 + $0xd0] sm:$0xff]
      %v1197 = vld [vmem:[%s1169 + $0xd8] sm:$0xff]
      %v1198 = vld [vmem:[%s1169 + $0xe0] sm:$0xff]
      %v1199 = vld [vmem:[%s1169 + $0xe8] sm:$0xff]
      %v1200 = vld [vmem:[%s1169 + $0xf0] sm:$0xff]
      %v1201 = vld [vmem:[%s1169 + $0xf8] sm:$0xff]
      %v1234 = vunpack.c.l.b16 %v1170
      %v1235 = vunpack.c.h.b16 %v1170
      %v1236 = vunpack.c.l.b16 %v1171
      %v1237 = vunpack.c.h.b16 %v1171
      %v1238 = vunpack.c.l.b16 %v1172
      %v1239 = vunpack.c.h.b16 %v1172
      %v1240 = vunpack.c.l.b16 %v1173
      %v1241 = vunpack.c.h.b16 %v1173
      %v1242 = vunpack.c.l.b16 %v1174
      %v1243 = vunpack.c.h.b16 %v1174
      %v1244 = vunpack.c.l.b16 %v1175
      %v1245 = vunpack.c.h.b16 %v1175
      %v1246 = vunpack.c.l.b16 %v1176
      %v1247 = vunpack.c.h.b16 %v1176
      %v1248 = vunpack.c.l.b16 %v1177
      %v1249 = vunpack.c.h.b16 %v1177
      %v1250 = vunpack.c.l.b16 %v1178
      %v1251 = vunpack.c.h.b16 %v1178
      %v1252 = vunpack.c.l.b16 %v1179
      %v1253 = vunpack.c.h.b16 %v1179
      %v1254 = vunpack.c.l.b16 %v1180
      %v1255 = vunpack.c.h.b16 %v1180
      %v1256 = vunpack.c.l.b16 %v1181
      %v1257 = vunpack.c.h.b16 %v1181
      %v1258 = vunpack.c.l.b16 %v1182
      %v1259 = vunpack.c.h.b16 %v1182
      %v1260 = vunpack.c.l.b16 %v1183
      %v1261 = vunpack.c.h.b16 %v1183
      %v1262 = vunpack.c.l.b16 %v1184
      %v1263 = vunpack.c.h.b16 %v1184
      %v1264 = vunpack.c.l.b16 %v1185
      %v1265 = vunpack.c.h.b16 %v1185
      %v1266 = vunpack.c.l.b16 %v1186
      %v1267 = vunpack.c.h.b16 %v1186
      %v1268 = vunpack.c.l.b16 %v1187
      %v1269 = vunpack.c.h.b16 %v1187
      %v1270 = vunpack.c.l.b16 %v1188
      %v1271 = vunpack.c.h.b16 %v1188
      %v1272 = vunpack.c.l.b16 %v1189
      %v1273 = vunpack.c.h.b16 %v1189
      %v1274 = vunpack.c.l.b16 %v1190
      %v1275 = vunpack.c.h.b16 %v1190
      %v1276 = vunpack.c.l.b16 %v1191
      %v1277 = vunpack.c.h.b16 %v1191
      %v1278 = vunpack.c.l.b16 %v1192
      %v1279 = vunpack.c.h.b16 %v1192
      %v1280 = vunpack.c.l.b16 %v1193
      %v1281 = vunpack.c.h.b16 %v1193
      %v1282 = vunpack.c.l.b16 %v1194
      %v1283 = vunpack.c.h.b16 %v1194
      %v1284 = vunpack.c.l.b16 %v1195
      %v1285 = vunpack.c.h.b16 %v1195
      %v1286 = vunpack.c.l.b16 %v1196
      %v1287 = vunpack.c.h.b16 %v1196
      %v1288 = vunpack.c.l.b16 %v1197
      %v1289 = vunpack.c.h.b16 %v1197
      %v1290 = vunpack.c.l.b16 %v1198
      %v1291 = vunpack.c.h.b16 %v1198
      %v1292 = vunpack.c.l.b16 %v1199
      %v1293 = vunpack.c.h.b16 %v1199
      %v1294 = vunpack.c.l.b16 %v1200
      %v1295 = vunpack.c.h.b16 %v1200
      %v1296 = vunpack.c.l.b16 %v1201
      %v1297 = vunpack.c.h.b16 %v1201
      %v1298 = vpack.c.b16 %v1236, %v1234
      %v1299 = vpack.c.b16 %v1237, %v1235
      %v1300 = vpack.c.b16 %v1240, %v1238
      %v1301 = vpack.c.b16 %v1241, %v1239
      %v1302 = vpack.c.b16 %v1244, %v1242
      %v1303 = vpack.c.b16 %v1245, %v1243
      %v1304 = vpack.c.b16 %v1248, %v1246
      %v1305 = vpack.c.b16 %v1249, %v1247
      %v1306 = vpack.c.b16 %v1252, %v1250
      %v1307 = vpack.c.b16 %v1253, %v1251
      %v1308 = vpack.c.b16 %v1256, %v1254
      %v1309 = vpack.c.b16 %v1257, %v1255
      %v1310 = vpack.c.b16 %v1260, %v1258
      %v1311 = vpack.c.b16 %v1261, %v1259
      %v1312 = vpack.c.b16 %v1264, %v1262
      %v1313 = vpack.c.b16 %v1265, %v1263
      %v1314 = vpack.c.b16 %v1268, %v1266
      %v1315 = vpack.c.b16 %v1269, %v1267
      %v1316 = vpack.c.b16 %v1272, %v1270
      %v1317 = vpack.c.b16 %v1273, %v1271
      %v1318 = vpack.c.b16 %v1276, %v1274
      %v1319 = vpack.c.b16 %v1277, %v1275
      %v1320 = vpack.c.b16 %v1280, %v1278
      %v1321 = vpack.c.b16 %v1281, %v1279
      %v1322 = vpack.c.b16 %v1284, %v1282
      %v1323 = vpack.c.b16 %v1285, %v1283
      %v1324 = vpack.c.b16 %v1288, %v1286
      %v1325 = vpack.c.b16 %v1289, %v1287
      %v1326 = vpack.c.b16 %v1292, %v1290
      %v1327 = vpack.c.b16 %v1293, %v1291
      %v1328 = vpack.c.b16 %v1296, %v1294
      %v1329 = vpack.c.b16 %v1297, %v1295
      %1362 = vmatpush.bf16.msra.mxu0 %v1312
      %1363 = vmatpush.bf16.msra.mxu0 %v1310
      %1364 = vmatpush.bf16.msra.mxu0 %v1308
      %1365 = vmatpush.bf16.msra.mxu0 %v1306
      %1366 = vmatpush.bf16.msra.mxu0 %v1304
      %1367 = vmatpush.bf16.msra.mxu0 %v1302
      %1368 = vmatpush.bf16.msra.mxu0 %v1300
      %1369 = vmatpush.bf16.msra.mxu0 %v1298
      %1370 = vmatmul.bf16.gmra.mxu0 %v1161
      %v1371 = vpop.f32.mrf.mxu0
      %v1372 = vadd.f32 0.0, %v1371
      %v1373 = vpop.f32.mrf.mxu0
      %v1374 = vadd.f32 0.0, %v1373
      %1375 = vmatmul.bf16.gmra.mxu0 %v1163
      %v1376 = vpop.f32.mrf.mxu0
      %v1377 = vadd.f32 0.0, %v1376
      %v1378 = vpop.f32.mrf.mxu0
      %v1379 = vadd.f32 0.0, %v1378
      %1380 = vmatmul.bf16.gmra.mxu0 %v1165
      %v1381 = vpop.f32.mrf.mxu0
      %v1382 = vadd.f32 0.0, %v1381
      %v1383 = vpop.f32.mrf.mxu0
      %v1384 = vadd.f32 0.0, %v1383
      %1385 = vmatmul.bf16.gmra.mxu0 %v1167
      %v1386 = vpop.f32.mrf.mxu0
      %v1387 = vadd.f32 0.0, %v1386
      %v1388 = vpop.f32.mrf.mxu0
      %v1389 = vadd.f32 0.0, %v1388
      %1390 = vdwg.mxu0
      %1391 = vmatpush.bf16.msra.mxu0 %v1328
      %1392 = vmatpush.bf16.msra.mxu0 %v1326
      %1393 = vmatpush.bf16.msra.mxu0 %v1324
      %1394 = vmatpush.bf16.msra.mxu0 %v1322
      %1395 = vmatpush.bf16.msra.mxu0 %v1320
      %1396 = vmatpush.bf16.msra.mxu0 %v1318
      %1397 = vmatpush.bf16.msra.mxu0 %v1316
      %1398 = vmatpush.bf16.msra.mxu0 %v1314
      %1399 = vmatmul.bf16.gmra.mxu0 %v1162
      %v1400 = vpop.f32.mrf.mxu0
      %v1401 = vadd.f32 %v1372, %v1400
      %v1402 = vpop.f32.mrf.mxu0
      %v1403 = vadd.f32 %v1374, %v1402
      %1404 = vmatmul.bf16.gmra.mxu0 %v1164
      %v1405 = vpop.f32.mrf.mxu0
      %v1406 = vadd.f32 %v1377, %v1405
      %v1407 = vpop.f32.mrf.mxu0
      %v1408 = vadd.f32 %v1379, %v1407
      %1409 = vmatmul.bf16.gmra.mxu0 %v1166
      %v1410 = vpop.f32.mrf.mxu0
      %v1411 = vadd.f32 %v1382, %v1410
      %v1412 = vpop.f32.mrf.mxu0
      %v1413 = vadd.f32 %v1384, %v1412
      %1414 = vmatmul.bf16.gmra.mxu0 %v1168
      %v1415 = vpop.f32.mrf.mxu0
      %v1416 = vadd.f32 %v1387, %v1415
      %v1417 = vpop.f32.mrf.mxu0
      %v1418 = vadd.f32 %v1389, %v1417
      %1419 = vdwg.mxu0
      %1420 = vmatpush.bf16.msra.mxu0 %v1313
      %1421 = vmatpush.bf16.msra.mxu0 %v1311
      %1422 = vmatpush.bf16.msra.mxu0 %v1309
      %1423 = vmatpush.bf16.msra.mxu0 %v1307
      %1424 = vmatpush.bf16.msra.mxu0 %v1305
      %1425 = vmatpush.bf16.msra.mxu0 %v1303
      %1426 = vmatpush.bf16.msra.mxu0 %v1301
      %1427 = vmatpush.bf16.msra.mxu0 %v1299
      %1428 = vmatmul.bf16.gmra.mxu0 %v1161
      %v1429 = vpop.f32.mrf.mxu0
      %v1430 = vadd.f32 0.0, %v1429
      %v1431 = vpop.f32.mrf.mxu0
      %v1432 = vadd.f32 0.0, %v1431
      %1433 = vmatmul.bf16.gmra.mxu0 %v1163
      %v1434 = vpop.f32.mrf.mxu0
      %v1435 = vadd.f32 0.0, %v1434
      %v1436 = vpop.f32.mrf.mxu0
      %v1437 = vadd.f32 0.0, %v1436
      %1438 = vmatmul.bf16.gmra.mxu0 %v1165
      %v1439 = vpop.f32.mrf.mxu0
      %v1440 = vadd.f32 0.0, %v1439
      %v1441 = vpop.f32.mrf.mxu0
      %v1442 = vadd.f32 0.0, %v1441
      %1443 = vmatmul.bf16.gmra.mxu0 %v1167
      %v1444 = vpop.f32.mrf.mxu0
      %v1445 = vadd.f32 0.0, %v1444
      %v1446 = vpop.f32.mrf.mxu0
      %v1447 = vadd.f32 0.0, %v1446
      %1448 = vdwg.mxu0
      %1449 = vmatpush.bf16.msra.mxu0 %v1329
      %1450 = vmatpush.bf16.msra.mxu0 %v1327
      %1451 = vmatpush.bf16.msra.mxu0 %v1325
      %1452 = vmatpush.bf16.msra.mxu0 %v1323
      %1453 = vmatpush.bf16.msra.mxu0 %v1321
      %1454 = vmatpush.bf16.msra.mxu0 %v1319
      %1455 = vmatpush.bf16.msra.mxu0 %v1317
      %1456 = vmatpush.bf16.msra.mxu0 %v1315
      %1457 = vmatmul.bf16.gmra.mxu0 %v1162
      %v1458 = vpop.f32.mrf.mxu0
      %v1459 = vadd.f32 %v1430, %v1458
      %v1460 = vpop.f32.mrf.mxu0
      %v1461 = vadd.f32 %v1432, %v1460
      %1462 = vmatmul.bf16.gmra.mxu0 %v1164
      %v1463 = vpop.f32.mrf.mxu0
      %v1464 = vadd.f32 %v1435, %v1463
      %v1465 = vpop.f32.mrf.mxu0
      %v1466 = vadd.f32 %v1437, %v1465
      %1467 = vmatmul.bf16.gmra.mxu0 %v1166
      %v1468 = vpop.f32.mrf.mxu0
      %v1469 = vadd.f32 %v1440, %v1468
      %v1470 = vpop.f32.mrf.mxu0
      %v1471 = vadd.f32 %v1442, %v1470
      %1472 = vmatmul.bf16.gmra.mxu0 %v1168
      %v1473 = vpop.f32.mrf.mxu0
      %v1474 = vadd.f32 %v1445, %v1473
      %v1475 = vpop.f32.mrf.mxu0
      %v1476 = vadd.f32 %v1447, %v1475
      %1477 = vdwg.mxu0
      %v1478 = vadd.f32 %v1080, %v1401
      %v1479 = vadd.f32 %v1081, %v1459
      %v1480 = vadd.f32 %v1082, %v1403
      %v1481 = vadd.f32 %v1083, %v1461
      %v1482 = vadd.f32 %v1084, %v1406
      %v1483 = vadd.f32 %v1085, %v1464
      %v1484 = vadd.f32 %v1086, %v1408
      %v1485 = vadd.f32 %v1087, %v1466
      %v1486 = vadd.f32 %v1088, %v1411
      %v1487 = vadd.f32 %v1089, %v1469
      %v1488 = vadd.f32 %v1090, %v1413
      %v1489 = vadd.f32 %v1091, %v1471
      %v1490 = vadd.f32 %v1092, %v1416
      %v1491 = vadd.f32 %v1093, %v1474
      %v1492 = vadd.f32 %v1094, %v1418
      %v1493 = vadd.f32 %v1095, %v1476
      %v1494 = vpack.c.bf16 %v298, %v294
      %v1495 = vpack.c.bf16 %v299, %v295
      %v1496 = vpack.c.bf16 %v306, %v302
      %v1497 = vpack.c.bf16 %v307, %v303
      %v1498 = vpack.c.bf16 %v314, %v310
      %v1499 = vpack.c.bf16 %v315, %v311
      %v1500 = vpack.c.bf16 %v322, %v318
      %v1501 = vpack.c.bf16 %v323, %v319
      %s1502 = scalar_lea.vmem %s2, 768
      %v1503 = vld [vmem:[%s1502] sm:$0xff]
      %v1504 = vld [vmem:[%s1502 + $0x8] sm:$0xff]
      %v1505 = vld [vmem:[%s1502 + $0x10] sm:$0xff]
      %v1506 = vld [vmem:[%s1502 + $0x18] sm:$0xff]
      %v1507 = vld [vmem:[%s1502 + $0x20] sm:$0xff]
      %v1508 = vld [vmem:[%s1502 + $0x28] sm:$0xff]
      %v1509 = vld [vmem:[%s1502 + $0x30] sm:$0xff]
      %v1510 = vld [vmem:[%s1502 + $0x38] sm:$0xff]
      %v1511 = vld [vmem:[%s1502 + $0x40] sm:$0xff]
      %v1512 = vld [vmem:[%s1502 + $0x48] sm:$0xff]
      %v1513 = vld [vmem:[%s1502 + $0x50] sm:$0xff]
      %v1514 = vld [vmem:[%s1502 + $0x58] sm:$0xff]
      %v1515 = vld [vmem:[%s1502 + $0x60] sm:$0xff]
      %v1516 = vld [vmem:[%s1502 + $0x68] sm:$0xff]
      %v1517 = vld [vmem:[%s1502 + $0x70] sm:$0xff]
      %v1518 = vld [vmem:[%s1502 + $0x78] sm:$0xff]
      %v1519 = vld [vmem:[%s1502 + $0x80] sm:$0xff]
      %v1520 = vld [vmem:[%s1502 + $0x88] sm:$0xff]
      %v1521 = vld [vmem:[%s1502 + $0x90] sm:$0xff]
      %v1522 = vld [vmem:[%s1502 + $0x98] sm:$0xff]
      %v1523 = vld [vmem:[%s1502 + $0xa0] sm:$0xff]
      %v1524 = vld [vmem:[%s1502 + $0xa8] sm:$0xff]
      %v1525 = vld [vmem:[%s1502 + $0xb0] sm:$0xff]
      %v1526 = vld [vmem:[%s1502 + $0xb8] sm:$0xff]
      %v1527 = vld [vmem:[%s1502 + $0xc0] sm:$0xff]
      %v1528 = vld [vmem:[%s1502 + $0xc8] sm:$0xff]
      %v1529 = vld [vmem:[%s1502 + $0xd0] sm:$0xff]
      %v1530 = vld [vmem:[%s1502 + $0xd8] sm:$0xff]
      %v1531 = vld [vmem:[%s1502 + $0xe0] sm:$0xff]
      %v1532 = vld [vmem:[%s1502 + $0xe8] sm:$0xff]
      %v1533 = vld [vmem:[%s1502 + $0xf0] sm:$0xff]
      %v1534 = vld [vmem:[%s1502 + $0xf8] sm:$0xff]
      %v1567 = vunpack.c.l.b16 %v1503
      %v1568 = vunpack.c.h.b16 %v1503
      %v1569 = vunpack.c.l.b16 %v1504
      %v1570 = vunpack.c.h.b16 %v1504
      %v1571 = vunpack.c.l.b16 %v1505
      %v1572 = vunpack.c.h.b16 %v1505
      %v1573 = vunpack.c.l.b16 %v1506
      %v1574 = vunpack.c.h.b16 %v1506
      %v1575 = vunpack.c.l.b16 %v1507
      %v1576 = vunpack.c.h.b16 %v1507
      %v1577 = vunpack.c.l.b16 %v1508
      %v1578 = vunpack.c.h.b16 %v1508
      %v1579 = vunpack.c.l.b16 %v1509
      %v1580 = vunpack.c.h.b16 %v1509
      %v1581 = vunpack.c.l.b16 %v1510
      %v1582 = vunpack.c.h.b16 %v1510
      %v1583 = vunpack.c.l.b16 %v1511
      %v1584 = vunpack.c.h.b16 %v1511
      %v1585 = vunpack.c.l.b16 %v1512
      %v1586 = vunpack.c.h.b16 %v1512
      %v1587 = vunpack.c.l.b16 %v1513
      %v1588 = vunpack.c.h.b16 %v1513
      %v1589 = vunpack.c.l.b16 %v1514
      %v1590 = vunpack.c.h.b16 %v1514
      %v1591 = vunpack.c.l.b16 %v1515
      %v1592 = vunpack.c.h.b16 %v1515
      %v1593 = vunpack.c.l.b16 %v1516
      %v1594 = vunpack.c.h.b16 %v1516
      %v1595 = vunpack.c.l.b16 %v1517
      %v1596 = vunpack.c.h.b16 %v1517
      %v1597 = vunpack.c.l.b16 %v1518
      %v1598 = vunpack.c.h.b16 %v1518
      %v1599 = vunpack.c.l.b16 %v1519
      %v1600 = vunpack.c.h.b16 %v1519
      %v1601 = vunpack.c.l.b16 %v1520
      %v1602 = vunpack.c.h.b16 %v1520
      %v1603 = vunpack.c.l.b16 %v1521
      %v1604 = vunpack.c.h.b16 %v1521
      %v1605 = vunpack.c.l.b16 %v1522
      %v1606 = vunpack.c.h.b16 %v1522
      %v1607 = vunpack.c.l.b16 %v1523
      %v1608 = vunpack.c.h.b16 %v1523
      %v1609 = vunpack.c.l.b16 %v1524
      %v1610 = vunpack.c.h.b16 %v1524
      %v1611 = vunpack.c.l.b16 %v1525
      %v1612 = vunpack.c.h.b16 %v1525
      %v1613 = vunpack.c.l.b16 %v1526
      %v1614 = vunpack.c.h.b16 %v1526
      %v1615 = vunpack.c.l.b16 %v1527
      %v1616 = vunpack.c.h.b16 %v1527
      %v1617 = vunpack.c.l.b16 %v1528
      %v1618 = vunpack.c.h.b16 %v1528
      %v1619 = vunpack.c.l.b16 %v1529
      %v1620 = vunpack.c.h.b16 %v1529
      %v1621 = vunpack.c.l.b16 %v1530
      %v1622 = vunpack.c.h.b16 %v1530
      %v1623 = vunpack.c.l.b16 %v1531
      %v1624 = vunpack.c.h.b16 %v1531
      %v1625 = vunpack.c.l.b16 %v1532
      %v1626 = vunpack.c.h.b16 %v1532
      %v1627 = vunpack.c.l.b16 %v1533
      %v1628 = vunpack.c.h.b16 %v1533
      %v1629 = vunpack.c.l.b16 %v1534
      %v1630 = vunpack.c.h.b16 %v1534
      %v1631 = vpack.c.b16 %v1569, %v1567
      %v1632 = vpack.c.b16 %v1570, %v1568
      %v1633 = vpack.c.b16 %v1573, %v1571
      %v1634 = vpack.c.b16 %v1574, %v1572
      %v1635 = vpack.c.b16 %v1577, %v1575
      %v1636 = vpack.c.b16 %v1578, %v1576
      %v1637 = vpack.c.b16 %v1581, %v1579
      %v1638 = vpack.c.b16 %v1582, %v1580
      %v1639 = vpack.c.b16 %v1585, %v1583
      %v1640 = vpack.c.b16 %v1586, %v1584
      %v1641 = vpack.c.b16 %v1589, %v1587
      %v1642 = vpack.c.b16 %v1590, %v1588
      %v1643 = vpack.c.b16 %v1593, %v1591
      %v1644 = vpack.c.b16 %v1594, %v1592
      %v1645 = vpack.c.b16 %v1597, %v1595
      %v1646 = vpack.c.b16 %v1598, %v1596
      %v1647 = vpack.c.b16 %v1601, %v1599
      %v1648 = vpack.c.b16 %v1602, %v1600
      %v1649 = vpack.c.b16 %v1605, %v1603
      %v1650 = vpack.c.b16 %v1606, %v1604
      %v1651 = vpack.c.b16 %v1609, %v1607
      %v1652 = vpack.c.b16 %v1610, %v1608
      %v1653 = vpack.c.b16 %v1613, %v1611
      %v1654 = vpack.c.b16 %v1614, %v1612
      %v1655 = vpack.c.b16 %v1617, %v1615
      %v1656 = vpack.c.b16 %v1618, %v1616
      %v1657 = vpack.c.b16 %v1621, %v1619
      %v1658 = vpack.c.b16 %v1622, %v1620
      %v1659 = vpack.c.b16 %v1625, %v1623
      %v1660 = vpack.c.b16 %v1626, %v1624
      %v1661 = vpack.c.b16 %v1629, %v1627
      %v1662 = vpack.c.b16 %v1630, %v1628
      %1695 = vmatpush.bf16.msra.mxu0 %v1645
      %1696 = vmatpush.bf16.msra.mxu0 %v1643
      %1697 = vmatpush.bf16.msra.mxu0 %v1641
      %1698 = vmatpush.bf16.msra.mxu0 %v1639
      %1699 = vmatpush.bf16.msra.mxu0 %v1637
      %1700 = vmatpush.bf16.msra.mxu0 %v1635
      %1701 = vmatpush.bf16.msra.mxu0 %v1633
      %1702 = vmatpush.bf16.msra.mxu0 %v1631
      %1703 = vmatmul.bf16.gmra.mxu0 %v1494
      %v1704 = vpop.f32.mrf.mxu0
      %v1705 = vadd.f32 0.0, %v1704
      %v1706 = vpop.f32.mrf.mxu0
      %v1707 = vadd.f32 0.0, %v1706
      %1708 = vmatmul.bf16.gmra.mxu0 %v1496
      %v1709 = vpop.f32.mrf.mxu0
      %v1710 = vadd.f32 0.0, %v1709
      %v1711 = vpop.f32.mrf.mxu0
      %v1712 = vadd.f32 0.0, %v1711
      %1713 = vmatmul.bf16.gmra.mxu0 %v1498
      %v1714 = vpop.f32.mrf.mxu0
      %v1715 = vadd.f32 0.0, %v1714
      %v1716 = vpop.f32.mrf.mxu0
      %v1717 = vadd.f32 0.0, %v1716
      %1718 = vmatmul.bf16.gmra.mxu0 %v1500
      %v1719 = vpop.f32.mrf.mxu0
      %v1720 = vadd.f32 0.0, %v1719
      %v1721 = vpop.f32.mrf.mxu0
      %v1722 = vadd.f32 0.0, %v1721
      %1723 = vdwg.mxu0
      %1724 = vmatpush.bf16.msra.mxu0 %v1661
      %1725 = vmatpush.bf16.msra.mxu0 %v1659
      %1726 = vmatpush.bf16.msra.mxu0 %v1657
      %1727 = vmatpush.bf16.msra.mxu0 %v1655
      %1728 = vmatpush.bf16.msra.mxu0 %v1653
      %1729 = vmatpush.bf16.msra.mxu0 %v1651
      %1730 = vmatpush.bf16.msra.mxu0 %v1649
      %1731 = vmatpush.bf16.msra.mxu0 %v1647
      %1732 = vmatmul.bf16.gmra.mxu0 %v1495
      %v1733 = vpop.f32.mrf.mxu0
      %v1734 = vadd.f32 %v1705, %v1733
      %v1735 = vpop.f32.mrf.mxu0
      %v1736 = vadd.f32 %v1707, %v1735
      %1737 = vmatmul.bf16.gmra.mxu0 %v1497
      %v1738 = vpop.f32.mrf.mxu0
      %v1739 = vadd.f32 %v1710, %v1738
      %v1740 = vpop.f32.mrf.mxu0
      %v1741 = vadd.f32 %v1712, %v1740
      %1742 = vmatmul.bf16.gmra.mxu0 %v1499
      %v1743 = vpop.f32.mrf.mxu0
      %v1744 = vadd.f32 %v1715, %v1743
      %v1745 = vpop.f32.mrf.mxu0
      %v1746 = vadd.f32 %v1717, %v1745
      %1747 = vmatmul.bf16.gmra.mxu0 %v1501
      %v1748 = vpop.f32.mrf.mxu0
      %v1749 = vadd.f32 %v1720, %v1748
      %v1750 = vpop.f32.mrf.mxu0
      %v1751 = vadd.f32 %v1722, %v1750
      %1752 = vdwg.mxu0
      %1753 = vmatpush.bf16.msra.mxu0 %v1646
      %1754 = vmatpush.bf16.msra.mxu0 %v1644
      %1755 = vmatpush.bf16.msra.mxu0 %v1642
      %1756 = vmatpush.bf16.msra.mxu0 %v1640
      %1757 = vmatpush.bf16.msra.mxu0 %v1638
      %1758 = vmatpush.bf16.msra.mxu0 %v1636
      %1759 = vmatpush.bf16.msra.mxu0 %v1634
      %1760 = vmatpush.bf16.msra.mxu0 %v1632
      %1761 = vmatmul.bf16.gmra.mxu0 %v1494
      %v1762 = vpop.f32.mrf.mxu0
      %v1763 = vadd.f32 0.0, %v1762
      %v1764 = vpop.f32.mrf.mxu0
      %v1765 = vadd.f32 0.0, %v1764
      %1766 = vmatmul.bf16.gmra.mxu0 %v1496
      %v1767 = vpop.f32.mrf.mxu0
      %v1768 = vadd.f32 0.0, %v1767
      %v1769 = vpop.f32.mrf.mxu0
      %v1770 = vadd.f32 0.0, %v1769
      %1771 = vmatmul.bf16.gmra.mxu0 %v1498
      %v1772 = vpop.f32.mrf.mxu0
      %v1773 = vadd.f32 0.0, %v1772
      %v1774 = vpop.f32.mrf.mxu0
      %v1775 = vadd.f32 0.0, %v1774
      %1776 = vmatmul.bf16.gmra.mxu0 %v1500
      %v1777 = vpop.f32.mrf.mxu0
      %v1778 = vadd.f32 0.0, %v1777
      %v1779 = vpop.f32.mrf.mxu0
      %v1780 = vadd.f32 0.0, %v1779
      %1781 = vdwg.mxu0
      %1782 = vmatpush.bf16.msra.mxu0 %v1662
      %1783 = vmatpush.bf16.msra.mxu0 %v1660
      %1784 = vmatpush.bf16.msra.mxu0 %v1658
      %1785 = vmatpush.bf16.msra.mxu0 %v1656
      %1786 = vmatpush.bf16.msra.mxu0 %v1654
      %1787 = vmatpush.bf16.msra.mxu0 %v1652
      %1788 = vmatpush.bf16.msra.mxu0 %v1650
      %1789 = vmatpush.bf16.msra.mxu0 %v1648
      %1790 = vmatmul.bf16.gmra.mxu0 %v1495
      %v1791 = vpop.f32.mrf.mxu0
      %v1792 = vadd.f32 %v1763, %v1791
      %v1793 = vpop.f32.mrf.mxu0
      %v1794 = vadd.f32 %v1765, %v1793
      %1795 = vmatmul.bf16.gmra.mxu0 %v1497
      %v1796 = vpop.f32.mrf.mxu0
      %v1797 = vadd.f32 %v1768, %v1796
      %v1798 = vpop.f32.mrf.mxu0
      %v1799 = vadd.f32 %v1770, %v1798
      %1800 = vmatmul.bf16.gmra.mxu0 %v1499
      %v1801 = vpop.f32.mrf.mxu0
      %v1802 = vadd.f32 %v1773, %v1801
      %v1803 = vpop.f32.mrf.mxu0
      %v1804 = vadd.f32 %v1775, %v1803
      %1805 = vmatmul.bf16.gmra.mxu0 %v1501
      %v1806 = vpop.f32.mrf.mxu0
      %v1807 = vadd.f32 %v1778, %v1806
      %v1808 = vpop.f32.mrf.mxu0
      %v1809 = vadd.f32 %v1780, %v1808
      %1810 = vdwg.mxu0
      %v1811 = vadd.f32 %v1478, %v1734
      %v1812 = vadd.f32 %v1479, %v1792
      %v1813 = vadd.f32 %v1480, %v1736
      %v1814 = vadd.f32 %v1481, %v1794
      %v1815 = vadd.f32 %v1482, %v1739
      %v1816 = vadd.f32 %v1483, %v1797
      %v1817 = vadd.f32 %v1484, %v1741
      %v1818 = vadd.f32 %v1485, %v1799
      %v1819 = vadd.f32 %v1486, %v1744
      %v1820 = vadd.f32 %v1487, %v1802
      %v1821 = vadd.f32 %v1488, %v1746
      %v1822 = vadd.f32 %v1489, %v1804
      %v1823 = vadd.f32 %v1490, %v1749
      %v1824 = vadd.f32 %v1491, %v1807
      %v1825 = vadd.f32 %v1492, %v1751
      %v1826 = vadd.f32 %v1493, %v1809
      %v1831 = vrot.slane %v322, 1
      %v1832 = vrot.slane %v324, 1
      %v1833 = vsel %vm698, %v1831, %v1832
      %v1834 = vrot.slane %v323, 1
      %v1835 = vrot.slane %v325, 1
      %v1836 = vsel %vm698, %v1834, %v1835
      %v1839 = vpack.c.bf16 %v713, %v707
      %v1840 = vpack.c.bf16 %v716, %v710
      %v1841 = vpack.c.bf16 %v725, %v719
      %v1842 = vpack.c.bf16 %v728, %v722
      %v1843 = vpack.c.bf16 %v737, %v731
      %v1844 = vpack.c.bf16 %v740, %v734
      %v1845 = vpack.c.bf16 %v1833, %v743
      %v1846 = vpack.c.bf16 %v1836, %v746
      %s1847 = scalar_lea.vmem %s2, 1024
      %v1848 = vld [vmem:[%s1847] sm:$0xff]
      %v1849 = vld [vmem:[%s1847 + $0x8] sm:$0xff]
      %v1850 = vld [vmem:[%s1847 + $0x10] sm:$0xff]
      %v1851 = vld [vmem:[%s1847 + $0x18] sm:$0xff]
      %v1852 = vld [vmem:[%s1847 + $0x20] sm:$0xff]
      %v1853 = vld [vmem:[%s1847 + $0x28] sm:$0xff]
      %v1854 = vld [vmem:[%s1847 + $0x30] sm:$0xff]
      %v1855 = vld [vmem:[%s1847 + $0x38] sm:$0xff]
      %v1856 = vld [vmem:[%s1847 + $0x40] sm:$0xff]
      %v1857 = vld [vmem:[%s1847 + $0x48] sm:$0xff]
      %v1858 = vld [vmem:[%s1847 + $0x50] sm:$0xff]
      %v1859 = vld [vmem:[%s1847 + $0x58] sm:$0xff]
      %v1860 = vld [vmem:[%s1847 + $0x60] sm:$0xff]
      %v1861 = vld [vmem:[%s1847 + $0x68] sm:$0xff]
      %v1862 = vld [vmem:[%s1847 + $0x70] sm:$0xff]
      %v1863 = vld [vmem:[%s1847 + $0x78] sm:$0xff]
      %v1864 = vld [vmem:[%s1847 + $0x80] sm:$0xff]
      %v1865 = vld [vmem:[%s1847 + $0x88] sm:$0xff]
      %v1866 = vld [vmem:[%s1847 + $0x90] sm:$0xff]
      %v1867 = vld [vmem:[%s1847 + $0x98] sm:$0xff]
      %v1868 = vld [vmem:[%s1847 + $0xa0] sm:$0xff]
      %v1869 = vld [vmem:[%s1847 + $0xa8] sm:$0xff]
      %v1870 = vld [vmem:[%s1847 + $0xb0] sm:$0xff]
      %v1871 = vld [vmem:[%s1847 + $0xb8] sm:$0xff]
      %v1872 = vld [vmem:[%s1847 + $0xc0] sm:$0xff]
      %v1873 = vld [vmem:[%s1847 + $0xc8] sm:$0xff]
      %v1874 = vld [vmem:[%s1847 + $0xd0] sm:$0xff]
      %v1875 = vld [vmem:[%s1847 + $0xd8] sm:$0xff]
      %v1876 = vld [vmem:[%s1847 + $0xe0] sm:$0xff]
      %v1877 = vld [vmem:[%s1847 + $0xe8] sm:$0xff]
      %v1878 = vld [vmem:[%s1847 + $0xf0] sm:$0xff]
      %v1879 = vld [vmem:[%s1847 + $0xf8] sm:$0xff]
      %v1912 = vunpack.c.l.b16 %v1848
      %v1913 = vunpack.c.h.b16 %v1848
      %v1914 = vunpack.c.l.b16 %v1849
      %v1915 = vunpack.c.h.b16 %v1849
      %v1916 = vunpack.c.l.b16 %v1850
      %v1917 = vunpack.c.h.b16 %v1850
      %v1918 = vunpack.c.l.b16 %v1851
      %v1919 = vunpack.c.h.b16 %v1851
      %v1920 = vunpack.c.l.b16 %v1852
      %v1921 = vunpack.c.h.b16 %v1852
      %v1922 = vunpack.c.l.b16 %v1853
      %v1923 = vunpack.c.h.b16 %v1853
      %v1924 = vunpack.c.l.b16 %v1854
      %v1925 = vunpack.c.h.b16 %v1854
      %v1926 = vunpack.c.l.b16 %v1855
      %v1927 = vunpack.c.h.b16 %v1855
      %v1928 = vunpack.c.l.b16 %v1856
      %v1929 = vunpack.c.h.b16 %v1856
      %v1930 = vunpack.c.l.b16 %v1857
      %v1931 = vunpack.c.h.b16 %v1857
      %v1932 = vunpack.c.l.b16 %v1858
      %v1933 = vunpack.c.h.b16 %v1858
      %v1934 = vunpack.c.l.b16 %v1859
      %v1935 = vunpack.c.h.b16 %v1859
      %v1936 = vunpack.c.l.b16 %v1860
      %v1937 = vunpack.c.h.b16 %v1860
      %v1938 = vunpack.c.l.b16 %v1861
      %v1939 = vunpack.c.h.b16 %v1861
      %v1940 = vunpack.c.l.b16 %v1862
      %v1941 = vunpack.c.h.b16 %v1862
      %v1942 = vunpack.c.l.b16 %v1863
      %v1943 = vunpack.c.h.b16 %v1863
      %v1944 = vunpack.c.l.b16 %v1864
      %v1945 = vunpack.c.h.b16 %v1864
      %v1946 = vunpack.c.l.b16 %v1865
      %v1947 = vunpack.c.h.b16 %v1865
      %v1948 = vunpack.c.l.b16 %v1866
      %v1949 = vunpack.c.h.b16 %v1866
      %v1950 = vunpack.c.l.b16 %v1867
      %v1951 = vunpack.c.h.b16 %v1867
      %v1952 = vunpack.c.l.b16 %v1868
      %v1953 = vunpack.c.h.b16 %v1868
      %v1954 = vunpack.c.l.b16 %v1869
      %v1955 = vunpack.c.h.b16 %v1869
      %v1956 = vunpack.c.l.b16 %v1870
      %v1957 = vunpack.c.h.b16 %v1870
      %v1958 = vunpack.c.l.b16 %v1871
      %v1959 = vunpack.c.h.b16 %v1871
      %v1960 = vunpack.c.l.b16 %v1872
      %v1961 = vunpack.c.h.b16 %v1872
      %v1962 = vunpack.c.l.b16 %v1873
      %v1963 = vunpack.c.h.b16 %v1873
      %v1964 = vunpack.c.l.b16 %v1874
      %v1965 = vunpack.c.h.b16 %v1874
      %v1966 = vunpack.c.l.b16 %v1875
      %v1967 = vunpack.c.h.b16 %v1875
      %v1968 = vunpack.c.l.b16 %v1876
      %v1969 = vunpack.c.h.b16 %v1876
      %v1970 = vunpack.c.l.b16 %v1877
      %v1971 = vunpack.c.h.b16 %v1877
      %v1972 = vunpack.c.l.b16 %v1878
      %v1973 = vunpack.c.h.b16 %v1878
      %v1974 = vunpack.c.l.b16 %v1879
      %v1975 = vunpack.c.h.b16 %v1879
      %v1976 = vpack.c.b16 %v1914, %v1912
      %v1977 = vpack.c.b16 %v1915, %v1913
      %v1978 = vpack.c.b16 %v1918, %v1916
      %v1979 = vpack.c.b16 %v1919, %v1917
      %v1980 = vpack.c.b16 %v1922, %v1920
      %v1981 = vpack.c.b16 %v1923, %v1921
      %v1982 = vpack.c.b16 %v1926, %v1924
      %v1983 = vpack.c.b16 %v1927, %v1925
      %v1984 = vpack.c.b16 %v1930, %v1928
      %v1985 = vpack.c.b16 %v1931, %v1929
      %v1986 = vpack.c.b16 %v1934, %v1932
      %v1987 = vpack.c.b16 %v1935, %v1933
      %v1988 = vpack.c.b16 %v1938, %v1936
      %v1989 = vpack.c.b16 %v1939, %v1937
      %v1990 = vpack.c.b16 %v1942, %v1940
      %v1991 = vpack.c.b16 %v1943, %v1941
      %v1992 = vpack.c.b16 %v1946, %v1944
      %v1993 = vpack.c.b16 %v1947, %v1945
      %v1994 = vpack.c.b16 %v1950, %v1948
      %v1995 = vpack.c.b16 %v1951, %v1949
      %v1996 = vpack.c.b16 %v1954, %v1952
      %v1997 = vpack.c.b16 %v1955, %v1953
      %v1998 = vpack.c.b16 %v1958, %v1956
      %v1999 = vpack.c.b16 %v1959, %v1957
      %v2000 = vpack.c.b16 %v1962, %v1960
      %v2001 = vpack.c.b16 %v1963, %v1961
      %v2002 = vpack.c.b16 %v1966, %v1964
      %v2003 = vpack.c.b16 %v1967, %v1965
      %v2004 = vpack.c.b16 %v1970, %v1968
      %v2005 = vpack.c.b16 %v1971, %v1969
      %v2006 = vpack.c.b16 %v1974, %v1972
      %v2007 = vpack.c.b16 %v1975, %v1973
      %2040 = vmatpush.bf16.msra.mxu0 %v1990
      %2041 = vmatpush.bf16.msra.mxu0 %v1988
      %2042 = vmatpush.bf16.msra.mxu0 %v1986
      %2043 = vmatpush.bf16.msra.mxu0 %v1984
      %2044 = vmatpush.bf16.msra.mxu0 %v1982
      %2045 = vmatpush.bf16.msra.mxu0 %v1980
      %2046 = vmatpush.bf16.msra.mxu0 %v1978
      %2047 = vmatpush.bf16.msra.mxu0 %v1976
      %2048 = vmatmul.bf16.gmra.mxu0 %v1839
      %v2049 = vpop.f32.mrf.mxu0
      %v2050 = vadd.f32 0.0, %v2049
      %v2051 = vpop.f32.mrf.mxu0
      %v2052 = vadd.f32 0.0, %v2051
      %2053 = vmatmul.bf16.gmra.mxu0 %v1841
      %v2054 = vpop.f32.mrf.mxu0
      %v2055 = vadd.f32 0.0, %v2054
      %v2056 = vpop.f32.mrf.mxu0
      %v2057 = vadd.f32 0.0, %v2056
      %2058 = vmatmul.bf16.gmra.mxu0 %v1843
      %v2059 = vpop.f32.mrf.mxu0
      %v2060 = vadd.f32 0.0, %v2059
      %v2061 = vpop.f32.mrf.mxu0
      %v2062 = vadd.f32 0.0, %v2061
      %2063 = vmatmul.bf16.gmra.mxu0 %v1845
      %v2064 = vpop.f32.mrf.mxu0
      %v2065 = vadd.f32 0.0, %v2064
      %v2066 = vpop.f32.mrf.mxu0
      %v2067 = vadd.f32 0.0, %v2066
      %2068 = vdwg.mxu0
      %2069 = vmatpush.bf16.msra.mxu0 %v2006
      %2070 = vmatpush.bf16.msra.mxu0 %v2004
      %2071 = vmatpush.bf16.msra.mxu0 %v2002
      %2072 = vmatpush.bf16.msra.mxu0 %v2000
      %2073 = vmatpush.bf16.msra.mxu0 %v1998
      %2074 = vmatpush.bf16.msra.mxu0 %v1996
      %2075 = vmatpush.bf16.msra.mxu0 %v1994
      %2076 = vmatpush.bf16.msra.mxu0 %v1992
      %2077 = vmatmul.bf16.gmra.mxu0 %v1840
      %v2078 = vpop.f32.mrf.mxu0
      %v2079 = vadd.f32 %v2050, %v2078
      %v2080 = vpop.f32.mrf.mxu0
      %v2081 = vadd.f32 %v2052, %v2080
      %2082 = vmatmul.bf16.gmra.mxu0 %v1842
      %v2083 = vpop.f32.mrf.mxu0
      %v2084 = vadd.f32 %v2055, %v2083
      %v2085 = vpop.f32.mrf.mxu0
      %v2086 = vadd.f32 %v2057, %v2085
      %2087 = vmatmul.bf16.gmra.mxu0 %v1844
      %v2088 = vpop.f32.mrf.mxu0
      %v2089 = vadd.f32 %v2060, %v2088
      %v2090 = vpop.f32.mrf.mxu0
      %v2091 = vadd.f32 %v2062, %v2090
      %2092 = vmatmul.bf16.gmra.mxu0 %v1846
      %v2093 = vpop.f32.mrf.mxu0
      %v2094 = vadd.f32 %v2065, %v2093
      %v2095 = vpop.f32.mrf.mxu0
      %v2096 = vadd.f32 %v2067, %v2095
      %2097 = vdwg.mxu0
      %2098 = vmatpush.bf16.msra.mxu0 %v1991
      %2099 = vmatpush.bf16.msra.mxu0 %v1989
      %2100 = vmatpush.bf16.msra.mxu0 %v1987
      %2101 = vmatpush.bf16.msra.mxu0 %v1985
      %2102 = vmatpush.bf16.msra.mxu0 %v1983
      %2103 = vmatpush.bf16.msra.mxu0 %v1981
      %2104 = vmatpush.bf16.msra.mxu0 %v1979
      %2105 = vmatpush.bf16.msra.mxu0 %v1977
      %2106 = vmatmul.bf16.gmra.mxu0 %v1839
      %v2107 = vpop.f32.mrf.mxu0
      %v2108 = vadd.f32 0.0, %v2107
      %v2109 = vpop.f32.mrf.mxu0
      %v2110 = vadd.f32 0.0, %v2109
      %2111 = vmatmul.bf16.gmra.mxu0 %v1841
      %v2112 = vpop.f32.mrf.mxu0
      %v2113 = vadd.f32 0.0, %v2112
      %v2114 = vpop.f32.mrf.mxu0
      %v2115 = vadd.f32 0.0, %v2114
      %2116 = vmatmul.bf16.gmra.mxu0 %v1843
      %v2117 = vpop.f32.mrf.mxu0
      %v2118 = vadd.f32 0.0, %v2117
      %v2119 = vpop.f32.mrf.mxu0
      %v2120 = vadd.f32 0.0, %v2119
      %2121 = vmatmul.bf16.gmra.mxu0 %v1845
      %v2122 = vpop.f32.mrf.mxu0
      %v2123 = vadd.f32 0.0, %v2122
      %v2124 = vpop.f32.mrf.mxu0
      %v2125 = vadd.f32 0.0, %v2124
      %2126 = vdwg.mxu0
      %2127 = vmatpush.bf16.msra.mxu0 %v2007
      %2128 = vmatpush.bf16.msra.mxu0 %v2005
      %2129 = vmatpush.bf16.msra.mxu0 %v2003
      %2130 = vmatpush.bf16.msra.mxu0 %v2001
      %2131 = vmatpush.bf16.msra.mxu0 %v1999
      %2132 = vmatpush.bf16.msra.mxu0 %v1997
      %2133 = vmatpush.bf16.msra.mxu0 %v1995
      %2134 = vmatpush.bf16.msra.mxu0 %v1993
      %2135 = vmatmul.bf16.gmra.mxu0 %v1840
      %v2136 = vpop.f32.mrf.mxu0
      %v2137 = vadd.f32 %v2108, %v2136
      %v2138 = vpop.f32.mrf.mxu0
      %v2139 = vadd.f32 %v2110, %v2138
      %2140 = vmatmul.bf16.gmra.mxu0 %v1842
      %v2141 = vpop.f32.mrf.mxu0
      %v2142 = vadd.f32 %v2113, %v2141
      %v2143 = vpop.f32.mrf.mxu0
      %v2144 = vadd.f32 %v2115, %v2143
      %2145 = vmatmul.bf16.gmra.mxu0 %v1844
      %v2146 = vpop.f32.mrf.mxu0
      %v2147 = vadd.f32 %v2118, %v2146
      %v2148 = vpop.f32.mrf.mxu0
      %v2149 = vadd.f32 %v2120, %v2148
      %2150 = vmatmul.bf16.gmra.mxu0 %v1846
      %v2151 = vpop.f32.mrf.mxu0
      %v2152 = vadd.f32 %v2123, %v2151
      %v2153 = vpop.f32.mrf.mxu0
      %v2154 = vadd.f32 %v2125, %v2153
      %2155 = vdwg.mxu0
      %v2156 = vadd.f32 %v1811, %v2079
      %v2157 = vadd.f32 %v1812, %v2137
      %v2158 = vadd.f32 %v1813, %v2081
      %v2159 = vadd.f32 %v1814, %v2139
      %v2160 = vadd.f32 %v1815, %v2084
      %v2161 = vadd.f32 %v1816, %v2142
      %v2162 = vadd.f32 %v1817, %v2086
      %v2163 = vadd.f32 %v1818, %v2144
      %v2164 = vadd.f32 %v1819, %v2089
      %v2165 = vadd.f32 %v1820, %v2147
      %v2166 = vadd.f32 %v1821, %v2091
      %v2167 = vadd.f32 %v1822, %v2149
      %v2168 = vadd.f32 %v1823, %v2094
      %v2169 = vadd.f32 %v1824, %v2152
      %v2170 = vadd.f32 %v1825, %v2096
      %v2171 = vadd.f32 %v1826, %v2154
      %v2172 = vld [vmem:[%s266] sm:$0xf]
      %v2173 = vld [vmem:[%s266 + $0x4] sm:$0xf]
      %v2174 = vld [vmem:[%s266 + $0x8] sm:$0xf]
      %v2175 = vld [vmem:[%s266 + $0xc] sm:$0xf]
      %v2176 = vld [vmem:[%s266 + $0x10] sm:$0xf]
      %v2177 = vld [vmem:[%s266 + $0x14] sm:$0xf]
      %v2178 = vld [vmem:[%s266 + $0x18] sm:$0xf]
      %v2179 = vld [vmem:[%s266 + $0x1c] sm:$0xf]
      %v2180 = vunpack.c.l.bf16 %v2172
      %v2181 = vunpack.c.l.bf16 %v2173
      %v2182 = vunpack.c.l.bf16 %v2174
      %v2183 = vunpack.c.l.bf16 %v2175
      %v2184 = vunpack.c.l.bf16 %v2176
      %v2185 = vunpack.c.l.bf16 %v2177
      %v2186 = vunpack.c.l.bf16 %v2178
      %v2187 = vunpack.c.l.bf16 %v2179
      %v2188 = vpack.c.bf16 %v2181, %v2180
      %v2189 = vpack.c.bf16 %v2183, %v2182
      %v2190 = vpack.c.bf16 %v2185, %v2184
      %v2191 = vpack.c.bf16 %v2187, %v2186
      %v2192 = vld [vmem:[%s4] sm:$0xff]
      %v2193 = vld [vmem:[%s4 + $0x8] sm:$0xff]
      %v2194 = vld [vmem:[%s4 + $0x10] sm:$0xff]
      %v2195 = vld [vmem:[%s4 + $0x18] sm:$0xff]
      %v2196 = vld [vmem:[%s4 + $0x20] sm:$0xff]
      %v2197 = vld [vmem:[%s4 + $0x28] sm:$0xff]
      %v2198 = vld [vmem:[%s4 + $0x30] sm:$0xff]
      %v2199 = vld [vmem:[%s4 + $0x38] sm:$0xff]
      %v2200 = vld [vmem:[%s4 + $0x40] sm:$0xff]
      %v2201 = vld [vmem:[%s4 + $0x48] sm:$0xff]
      %v2202 = vld [vmem:[%s4 + $0x50] sm:$0xff]
      %v2203 = vld [vmem:[%s4 + $0x58] sm:$0xff]
      %v2204 = vld [vmem:[%s4 + $0x60] sm:$0xff]
      %v2205 = vld [vmem:[%s4 + $0x68] sm:$0xff]
      %v2206 = vld [vmem:[%s4 + $0x70] sm:$0xff]
      %v2207 = vld [vmem:[%s4 + $0x78] sm:$0xff]
      %v2224 = vunpack.c.l.b16 %v2192
      %v2225 = vunpack.c.h.b16 %v2192
      %v2226 = vunpack.c.l.b16 %v2193
      %v2227 = vunpack.c.h.b16 %v2193
      %v2228 = vunpack.c.l.b16 %v2194
      %v2229 = vunpack.c.h.b16 %v2194
      %v2230 = vunpack.c.l.b16 %v2195
      %v2231 = vunpack.c.h.b16 %v2195
      %v2232 = vunpack.c.l.b16 %v2196
      %v2233 = vunpack.c.h.b16 %v2196
      %v2234 = vunpack.c.l.b16 %v2197
      %v2235 = vunpack.c.h.b16 %v2197
      %v2236 = vunpack.c.l.b16 %v2198
      %v2237 = vunpack.c.h.b16 %v2198
      %v2238 = vunpack.c.l.b16 %v2199
      %v2239 = vunpack.c.h.b16 %v2199
      %v2240 = vunpack.c.l.b16 %v2200
      %v2241 = vunpack.c.h.b16 %v2200
      %v2242 = vunpack.c.l.b16 %v2201
      %v2243 = vunpack.c.h.b16 %v2201
      %v2244 = vunpack.c.l.b16 %v2202
      %v2245 = vunpack.c.h.b16 %v2202
      %v2246 = vunpack.c.l.b16 %v2203
      %v2247 = vunpack.c.h.b16 %v2203
      %v2248 = vunpack.c.l.b16 %v2204
      %v2249 = vunpack.c.h.b16 %v2204
      %v2250 = vunpack.c.l.b16 %v2205
      %v2251 = vunpack.c.h.b16 %v2205
      %v2252 = vunpack.c.l.b16 %v2206
      %v2253 = vunpack.c.h.b16 %v2206
      %v2254 = vunpack.c.l.b16 %v2207
      %v2255 = vunpack.c.h.b16 %v2207
      %v2256 = vpack.c.b16 %v2226, %v2224
      %v2257 = vpack.c.b16 %v2227, %v2225
      %v2258 = vpack.c.b16 %v2230, %v2228
      %v2259 = vpack.c.b16 %v2231, %v2229
      %v2260 = vpack.c.b16 %v2234, %v2232
      %v2261 = vpack.c.b16 %v2235, %v2233
      %v2262 = vpack.c.b16 %v2238, %v2236
      %v2263 = vpack.c.b16 %v2239, %v2237
      %v2264 = vpack.c.b16 %v2242, %v2240
      %v2265 = vpack.c.b16 %v2243, %v2241
      %v2266 = vpack.c.b16 %v2246, %v2244
      %v2267 = vpack.c.b16 %v2247, %v2245
      %v2268 = vpack.c.b16 %v2250, %v2248
      %v2269 = vpack.c.b16 %v2251, %v2249
      %v2270 = vpack.c.b16 %v2254, %v2252
      %v2271 = vpack.c.b16 %v2255, %v2253
      %2288 = vmatpush.bf16.msra.mxu0 %v2270
      %2289 = vmatpush.bf16.msra.mxu0 %v2268
      %2290 = vmatpush.bf16.msra.mxu0 %v2266
      %2291 = vmatpush.bf16.msra.mxu0 %v2264
      %2292 = vmatpush.bf16.msra.mxu0 %v2262
      %2293 = vmatpush.bf16.msra.mxu0 %v2260
      %2294 = vmatpush.bf16.msra.mxu0 %v2258
      %2295 = vmatpush.bf16.msra.mxu0 %v2256
      %2296 = vmatmul.bf16.gmra.mxu0 %v2188
      %v2297 = vpop.f32.mrf.mxu0
      %v2298 = vadd.f32 0.0, %v2297
      %v2299 = vpop.f32.mrf.mxu0
      %v2300 = vadd.f32 0.0, %v2299
      %2301 = vmatmul.bf16.gmra.mxu0 %v2189
      %v2302 = vpop.f32.mrf.mxu0
      %v2303 = vadd.f32 0.0, %v2302
      %v2304 = vpop.f32.mrf.mxu0
      %v2305 = vadd.f32 0.0, %v2304
      %2306 = vmatmul.bf16.gmra.mxu0 %v2190
      %v2307 = vpop.f32.mrf.mxu0
      %v2308 = vadd.f32 0.0, %v2307
      %v2309 = vpop.f32.mrf.mxu0
      %v2310 = vadd.f32 0.0, %v2309
      %2311 = vmatmul.bf16.gmra.mxu0 %v2191
      %v2312 = vpop.f32.mrf.mxu0
      %v2313 = vadd.f32 0.0, %v2312
      %v2314 = vpop.f32.mrf.mxu0
      %v2315 = vadd.f32 0.0, %v2314
      %2316 = vdwg.mxu0
      %2317 = vmatpush.bf16.msra.mxu0 %v2271
      %2318 = vmatpush.bf16.msra.mxu0 %v2269
      %2319 = vmatpush.bf16.msra.mxu0 %v2267
      %2320 = vmatpush.bf16.msra.mxu0 %v2265
      %2321 = vmatpush.bf16.msra.mxu0 %v2263
      %2322 = vmatpush.bf16.msra.mxu0 %v2261
      %2323 = vmatpush.bf16.msra.mxu0 %v2259
      %2324 = vmatpush.bf16.msra.mxu0 %v2257
      %2325 = vmatmul.bf16.gmra.mxu0 %v2188
      %v2326 = vpop.f32.mrf.mxu0
      %v2327 = vadd.f32 0.0, %v2326
      %v2328 = vpop.f32.mrf.mxu0
      %v2329 = vadd.f32 0.0, %v2328
      %2330 = vmatmul.bf16.gmra.mxu0 %v2189
      %v2331 = vpop.f32.mrf.mxu0
      %v2332 = vadd.f32 0.0, %v2331
      %v2333 = vpop.f32.mrf.mxu0
      %v2334 = vadd.f32 0.0, %v2333
      %2335 = vmatmul.bf16.gmra.mxu0 %v2190
      %v2336 = vpop.f32.mrf.mxu0
      %v2337 = vadd.f32 0.0, %v2336
      %v2338 = vpop.f32.mrf.mxu0
      %v2339 = vadd.f32 0.0, %v2338
      %2340 = vmatmul.bf16.gmra.mxu0 %v2191
      %v2341 = vpop.f32.mrf.mxu0
      %v2342 = vadd.f32 0.0, %v2341
      %v2343 = vpop.f32.mrf.mxu0
      %v2344 = vadd.f32 0.0, %v2343
      %2345 = vdwg.mxu0
      %v2346 = vadd.f32 %v2156, %v2298
      %v2347 = vadd.f32 %v2157, %v2327
      %v2348 = vadd.f32 %v2158, %v2300
      %v2349 = vadd.f32 %v2159, %v2329
      %v2350 = vadd.f32 %v2160, %v2303
      %v2351 = vadd.f32 %v2161, %v2332
      %v2352 = vadd.f32 %v2162, %v2305
      %v2353 = vadd.f32 %v2163, %v2334
      %v2354 = vadd.f32 %v2164, %v2308
      %v2355 = vadd.f32 %v2165, %v2337
      %v2356 = vadd.f32 %v2166, %v2310
      %v2357 = vadd.f32 %v2167, %v2339
      %v2358 = vadd.f32 %v2168, %v2313
      %v2359 = vadd.f32 %v2169, %v2342
      %v2360 = vadd.f32 %v2170, %v2315
      %v2361 = vadd.f32 %v2171, %v2344
      %v2362 = vmax.f32 %v2346, 0.0
      %v2363 = vmax.f32 %v2347, 0.0
      %v2364 = vmax.f32 %v2348, 0.0
      %v2365 = vmax.f32 %v2349, 0.0
      %v2366 = vmax.f32 %v2350, 0.0
      %v2367 = vmax.f32 %v2351, 0.0
      %v2368 = vmax.f32 %v2352, 0.0
      %v2369 = vmax.f32 %v2353, 0.0
      %v2370 = vmax.f32 %v2354, 0.0
      %v2371 = vmax.f32 %v2355, 0.0
      %v2372 = vmax.f32 %v2356, 0.0
      %v2373 = vmax.f32 %v2357, 0.0
      %v2374 = vmax.f32 %v2358, 0.0
      %v2375 = vmax.f32 %v2359, 0.0
      %v2376 = vmax.f32 %v2360, 0.0
      %v2377 = vmax.f32 %v2361, 0.0
      %v2378 = vpack.c.bf16 %v2363, %v2362
      %v2379 = vpack.c.bf16 %v2365, %v2364
      %v2380 = vpack.c.bf16 %v2367, %v2366
      %v2381 = vpack.c.bf16 %v2369, %v2368
      %v2382 = vpack.c.bf16 %v2371, %v2370
      %v2383 = vpack.c.bf16 %v2373, %v2372
      %v2384 = vpack.c.bf16 %v2375, %v2374
      %v2385 = vpack.c.bf16 %v2377, %v2376
      %2386 = vst [vmem:[%s271] sm:$0xff] %v2378
      %2387 = vst [vmem:[%s271 + $0x8] sm:$0xff] %v2379
      %2388 = vst [vmem:[%s271 + $0x10] sm:$0xff] %v2380
      %2389 = vst [vmem:[%s271 + $0x18] sm:$0xff] %v2381
      %2390 = vst [vmem:[%s271 + $0x20] sm:$0xff] %v2382
      %2391 = vst [vmem:[%s271 + $0x28] sm:$0xff] %v2383
      %2392 = vst [vmem:[%s271 + $0x30] sm:$0xff] %v2384
      %2393 = vst [vmem:[%s271 + $0x38] sm:$0xff] %v2385
      %p2394 = scmp.lt.s32.totalorder %s17, 1
      %s2395 = scalar_select %p2394, %s17, 1
      %s2396 = smul.addr %s2395, 16
      %s2397 = smul.addr %s2396, 4
      %s2398 = scalar_lea.vmem %s6, %s2397
      // Predicated region
      $region45: #{forward.12} parent=43 // pred_check
        %p2399 = pneg %p171
      $region46: #{forward.12} parent=43 // pred_check_branch
        %2401 = sbr.rel (%p2399) target = $region48
      $region47: #{forward.12} parent=43 // pred_region
        _
      $region48: #{forward.12} parent=43 // pred_fallthru
        _
    $region44: #{forward.12} parent=5 // pred_fallthru
      _
    %p2402 = scmp.le.s32.totalorder 2, %s12
    // Predicated region
    $region49: #{forward.12} parent=5 // pred_check
      %p2403 = pneg %p2402
    $region50: #{forward.12} parent=5 // pred_check_branch
      %2405 = sbr.rel (%p2403) target = $region52
    $region51: #{forward.12} parent=5 // pred_region
      %s2406 = ssub.s32 %s12, 2
      // Predicated region
      $region53: #{forward.12} parent=51 // pred_check
        %p2407 = pneg %p177
      $region54: #{forward.12} parent=51 // pred_check_branch
        %2409 = sbr.rel (%p2407) target = $region56
      $region55: #{forward.12} parent=51 // pred_region
        %p2410 = scmp.lt.s32.totalorder %s18, 1
        %s2411 = scalar_select %p2410, %s18, 1
        %s2412 = smul.addr %s2411, 16
        %s2413 = smul.addr %s2412, 4
        %s2414 = scalar_lea.vmem %s6, %s2413
      $region56: #{forward.12} parent=51 // pred_fallthru
        _
    $region52: #{forward.12} parent=5 // pred_fallthru
      _
  $region6: #{forward.12} parent=0 // loop_footer
    %s16 = sadd.s32 1, %s12
  $region7: #{forward.12} parent=0 // loop_footer_branch
    %11 = sbr.rel target = $region3
  $region8: #{forward.12} parent=0 // loop_exit
    _

</llo_original>
